<compile_context>
chip_gen: v5e
topology: v5e:2x2
jax: 0.10.0
libtpu: 0.0.40
codegen_flags: <defaults>
</compile_context>

<pallas_src>
import functools

import jax
import jax.numpy as jnp
from jax import lax
from jax.experimental import pallas as pl
from jax.experimental.pallas import tpu as pltpu

CP = 128       # channel padding (lane width)
HALO_H = 2     # zero halo rows above/below (max conv padding = 2 for the 5x5)

# (cin, cout, kernel, relu) for the four DSConv2d blocks of SimpleRSNet(13, 12).
LAYERS = [
    (13, 64, 5, True),
    (64, 64, 3, True),
    (64, 32, 3, True),
    (32, 12, 3, False),
]
TOTAL_TAPS = sum(k * k for _, _, k, _ in LAYERS)   # 52


# ---------------------------------------------------------------------------
# Fused kernel: all four depthwise-separable conv layers in one invocation.
# ---------------------------------------------------------------------------
def _rsnet_kernel(x_ref, dw_ref, pw_ref, o_ref, *, H, W):
    """One batch element per grid step.

    x_ref : (1, H + 2*HALO_H, W, CP) f32 zero-padded input block.  Also used
            as the writable activation buffer between layers: each layer
            overwrites only the interior rows, the zero halo rows and the
            zero padded channels stay zero (packed pw columns beyond cout are
            zero).
    dw_ref: (TOTAL_TAPS, CP) f32  per-tap per-channel depthwise weights.
    pw_ref: (len(LAYERS), CP, CP) bf16 pointwise 1x1 weights, indexed [ci, co].
    o_ref : (1, H, W, CP) f32 lane-dense output block (first 12 lanes real).
    """
    n_layers = len(LAYERS)
    tap0 = 0
    for idx, (_, _, k, relu) in enumerate(LAYERS):
        p = k // 2

        # H-shifted slabs: H is a major dim, so these slices are free/aligned.
        slabs = [
            x_ref[:, HALO_H + kh - p:HALO_H + kh - p + H, :, :].reshape(H, W, CP)
            for kh in range(k)
        ]

        # Depthwise conv, accumulated entirely in vreg-resident values.
        acc = None
        for kw in range(k):
            delta = kw - p
            # Sum over kh first (no W shift needed) ...
            part = None
            for kh in range(k):
                t = tap0 + kh * k + kw
                term = slabs[kh] * dw_ref[t:t + 1]            # (H,W,CP)*(1,CP)
                part = term if part is None else part + term
            # ... then one W (sublane) shift per kw, via an XLU roll on the
            # lane-dense flat view; wrapped columns are zeroed (conv zero-pad).
            if delta != 0:
                rolled = pltpu.roll(
                    part.reshape(H * W, CP), (-delta) % (H * W), 0
                ).reshape(H, W, CP)
                col = lax.broadcasted_iota(jnp.int32, (W, CP), 0)
                keep = col < (W - delta) if delta > 0 else col >= (-delta)
                part = jnp.where(keep, rolled, 0.0)
            acc = part if acc is None else acc + part
        tap0 += k * k

        # Pointwise 1x1 conv: (H*W,128) @ (128,128) on the MXU, bf16 inputs,
        # f32 accumulate, f32/ReLU epilogue (v5e-friendly).
        flat = acc.reshape(H * W, CP).astype(jnp.bfloat16)
        y = jnp.dot(flat, pw_ref[idx], preferred_element_type=jnp.float32)
        if relu:
            y = jnp.maximum(y, 0.0)

        if idx == n_layers - 1:
            o_ref[...] = y.reshape(1, H, W, CP).astype(o_ref.dtype)
        else:
            # In-place writeback into the interior of the input block.
            x_ref[:, HALO_H:HALO_H + H, :, :] = y.reshape(1, H, W, CP)


# ---------------------------------------------------------------------------
# Host wrapper
# ---------------------------------------------------------------------------
def simple_rsnet_forward(x_nchw, dw_table, pw_stack):
    """x_nchw: (N, 13, H, W) f32 -> (N, 12, H, W) f32."""
    N, C, H, W = x_nchw.shape
    assert C == LAYERS[0][0] and C <= CP
    assert W % 8 == 0, "W must be a multiple of 8 (sublane width)"
    Hp = H + 2 * HALO_H

    # NCHW -> NHWC, pad channels to 128 lanes, add the zero H halo.
    xn = jnp.transpose(x_nchw, (0, 2, 3, 1))
    x_pad = jnp.zeros((N, Hp, W, CP), jnp.float32)
    x_pad = x_pad.at[:, HALO_H:HALO_H + H, :, :C].set(xn)

    out = pl.pallas_call(
        functools.partial(_rsnet_kernel, H=H, W=W),
        out_shape=jax.ShapeDtypeStruct((N, H, W, CP), jnp.float32),
        grid=(N,),
        in_specs=[
            pl.BlockSpec((1, Hp, W, CP), lambda i: (i, 0, 0, 0)),
            pl.BlockSpec((TOTAL_TAPS, CP), lambda i: (0, 0)),
            pl.BlockSpec((len(LAYERS), CP, CP), lambda i: (0, 0, 0)),
        ],
        out_specs=pl.BlockSpec((1, H, W, CP), lambda i: (i, 0, 0, 0)),
        compiler_params=pltpu.CompilerParams(
            dimension_semantics=("parallel",)),
    )(x_pad, dw_table, pw_stack)

    cout = LAYERS[-1][1]
    return jnp.transpose(out[..., :cout], (0, 3, 1, 2))   # NHWC -> NCHW


# ---------------------------------------------------------------------------
# Parameters (PyTorch layout) and kernel-layout packing
# ---------------------------------------------------------------------------
def init_params(key):
    """Weights in torch layout: depthwise (Cin,1,K,K), pointwise (Cout,Cin,1,1)."""
    params = []
    for i, (cin, cout, k, _) in enumerate(LAYERS):
        kd, kp = jax.random.split(jax.random.fold_in(key, i))
        dw_bound = 1.0 / k               # 1/sqrt(fan_in), fan_in = k*k (groups=cin)
        pw_bound = 1.0 / (cin ** 0.5)    # fan_in = cin for the 1x1 conv
        dw = jax.random.uniform(kd, (cin, 1, k, k), jnp.float32, -dw_bound, dw_bound)
        pw = jax.random.uniform(kp, (cout, cin, 1, 1), jnp.float32, -pw_bound, pw_bound)
        params.append((dw, pw))
    return params


def pack_params(params):
    """Torch-layout weights -> one (52,128) f32 dw tap table + (4,128,128) bf16 pw stack."""
    dw_rows, pw_list = [], []
    for (dw, pw), (cin, cout, k, _) in zip(params, LAYERS):
        # depthwise: (cin,1,k,k) -> (k*k, 128), row t = kh*k + kw
        dw_kkc = jnp.transpose(dw[:, 0], (1, 2, 0)).reshape(k * k, cin)
        dw_rows.append(jnp.zeros((k * k, CP), jnp.float32).at[:, :cin].set(dw_kkc))
        # pointwise: (cout,cin,1,1) -> (128, 128) indexed [ci, co]
        pw_cc = jnp.transpose(pw[:, :, 0, 0], (1, 0))
        pw_list.append(jnp.zeros((CP, CP), jnp.float32).at[:cin, :cout].set(pw_cc))
    dw_table = jnp.concatenate(dw_rows, axis=0)              # (52, 128) f32
    pw_stack = jnp.stack(pw_list).astype(jnp.bfloat16)       # (4, 128, 128) bf16
    return dw_table, pw_stack


# ---------------------------------------------------------------------------
# Pure-JAX reference (matches PyTorch semantics) for the correctness check.
# ---------------------------------------------------------------------------
def reference_forward(x_nchw, params):
    x = jnp.transpose(x_nchw, (0, 2, 3, 1))
    for (dw, pw), (cin, cout, k, relu) in zip(params, LAYERS):
        dw_hwio = jnp.transpose(dw, (2, 3, 1, 0))       # (k,k,1,cin)
        pw_hwio = jnp.transpose(pw, (2, 3, 1, 0))       # (1,1,cin,cout)
        p = k // 2
        x = lax.conv_general_dilated(
            x, dw_hwio, (1, 1), [(p, p), (p, p)],
            dimension_numbers=("NHWC", "HWIO", "NHWC"),
            feature_group_count=cin,
            precision=lax.Precision.HIGHEST)
        x = lax.conv_general_dilated(
            x, pw_hwio, (1, 1), [(0, 0), (0, 0)],
            dimension_numbers=("NHWC", "HWIO", "NHWC"),
            precision=lax.Precision.HIGHEST)
        if relu:
            x = jnp.maximum(x, 0.0)
    return jnp.transpose(x, (0, 3, 1, 2))


if __name__ == "__main__":
    key = jax.random.PRNGKey(0)
    N, C, H, W = 2, 13, 16, 16          # num_channels=13, out_channels=12
    x = jax.random.normal(jax.random.fold_in(key, 100), (N, C, H, W), jnp.float32)

    params = init_params(key)
    dw_table, pw_stack = pack_params(params)

    fwd = jax.jit(simple_rsnet_forward)
    out = jax.block_until_ready(fwd(x, dw_table, pw_stack))
    assert out.shape == (N, LAYERS[-1][1], H, W), out.shape

    ref = reference_forward(x, params)
    max_err = float(jnp.max(jnp.abs(out - ref)))
    assert max_err < 2e-2, f"max abs err {max_err}"

    print("KERNEL_OK")
</pallas_src>

<mosaic_0001>
module attributes {stable_mosaic.version = 11 : i64} {
  func.func @_rsnet_kernel(%arg0: i32, %arg1: memref<1x20x16x128xf32, #tpu.memory_space<vmem>>, %arg2: memref<52x128xf32, #tpu.memory_space<vmem>>, %arg3: memref<4x128x128xbf16, #tpu.memory_space<vmem>>, %arg4: memref<1x16x16x128xf32, #tpu.memory_space<vmem>>) attributes {dimension_semantics = [#tpu.dimension_semantics<parallel>], iteration_bounds = array<i64: 2>, scalar_prefetch = 0 : i64, scratch_operands = 0 : i64, tpu.core_type = #tpu.core_type<tc>, window_params = [{transform_indices = @transform_0, window_bounds = array<i64: 1, 20, 16, 128>}, {pipeline_mode = #tpu.pipeline_mode<synchronous>, transform_indices = @transform_1, window_bounds = array<i64: 52, 128>}, {pipeline_mode = #tpu.pipeline_mode<synchronous>, transform_indices = @transform_2, window_bounds = array<i64: 4, 128, 128>}, {transform_indices = @transform_3, window_bounds = array<i64: 1, 16, 16, 128>}]} {
    %c0 = arith.constant 0 : index
    %c0_0 = arith.constant 0 : index
    %c0_1 = arith.constant 0 : index
    %c0_2 = arith.constant 0 : index
    %0 = vector.load %arg1[%c0, %c0_0, %c0_1, %c0_2] : memref<1x20x16x128xf32, #tpu.memory_space<vmem>>, vector<1x16x16x128xf32>
    %1 = vector.shape_cast %0 : vector<1x16x16x128xf32> to vector<16x16x128xf32>
    %c0_3 = arith.constant 0 : index
    %c1 = arith.constant 1 : index
    %c0_4 = arith.constant 0 : index
    %c0_5 = arith.constant 0 : index
    %2 = vector.load %arg1[%c0_3, %c1, %c0_4, %c0_5] : memref<1x20x16x128xf32, #tpu.memory_space<vmem>>, vector<1x16x16x128xf32>
    %3 = vector.shape_cast %2 : vector<1x16x16x128xf32> to vector<16x16x128xf32>
    %c0_6 = arith.constant 0 : index
    %c2 = arith.constant 2 : index
    %c0_7 = arith.constant 0 : index
    %c0_8 = arith.constant 0 : index
    %4 = vector.load %arg1[%c0_6, %c2, %c0_7, %c0_8] : memref<1x20x16x128xf32, #tpu.memory_space<vmem>>, vector<1x16x16x128xf32>
    %5 = vector.shape_cast %4 : vector<1x16x16x128xf32> to vector<16x16x128xf32>
    %c0_9 = arith.constant 0 : index
    %c3 = arith.constant 3 : index
    %c0_10 = arith.constant 0 : index
    %c0_11 = arith.constant 0 : index
    %6 = vector.load %arg1[%c0_9, %c3, %c0_10, %c0_11] : memref<1x20x16x128xf32, #tpu.memory_space<vmem>>, vector<1x16x16x128xf32>
    %7 = vector.shape_cast %6 : vector<1x16x16x128xf32> to vector<16x16x128xf32>
    %c0_12 = arith.constant 0 : index
    %c4 = arith.constant 4 : index
    %c0_13 = arith.constant 0 : index
    %c0_14 = arith.constant 0 : index
    %8 = vector.load %arg1[%c0_12, %c4, %c0_13, %c0_14] : memref<1x20x16x128xf32, #tpu.memory_space<vmem>>, vector<1x16x16x128xf32>
    %9 = vector.shape_cast %8 : vector<1x16x16x128xf32> to vector<16x16x128xf32>
    %c0_15 = arith.constant 0 : index
    %c0_16 = arith.constant 0 : index
    %10 = vector.load %arg2[%c0_15, %c0_16] : memref<52x128xf32, #tpu.memory_space<vmem>>, vector<1x128xf32>
    %11 = vector.shape_cast %10 : vector<1x128xf32> to vector<1x1x128xf32>
    %12 = vector.broadcast %11 : vector<1x1x128xf32> to vector<16x16x128xf32>
    %13 = arith.mulf %1, %12 : vector<16x16x128xf32>
    %c5 = arith.constant 5 : index
    %c0_17 = arith.constant 0 : index
    %14 = vector.load %arg2[%c5, %c0_17] : memref<52x128xf32, #tpu.memory_space<vmem>>, vector<1x128xf32>
    %15 = vector.shape_cast %14 : vector<1x128xf32> to vector<1x1x128xf32>
    %16 = vector.broadcast %15 : vector<1x1x128xf32> to vector<16x16x128xf32>
    %17 = arith.mulf %3, %16 : vector<16x16x128xf32>
    %18 = arith.addf %13, %17 : vector<16x16x128xf32>
    %c10 = arith.constant 10 : index
    %c0_18 = arith.constant 0 : index
    %19 = vector.load %arg2[%c10, %c0_18] : memref<52x128xf32, #tpu.memory_space<vmem>>, vector<1x128xf32>
    %20 = vector.shape_cast %19 : vector<1x128xf32> to vector<1x1x128xf32>
    %21 = vector.broadcast %20 : vector<1x1x128xf32> to vector<16x16x128xf32>
    %22 = arith.mulf %5, %21 : vector<16x16x128xf32>
    %23 = arith.addf %18, %22 : vector<16x16x128xf32>
    %c15 = arith.constant 15 : index
    %c0_19 = arith.constant 0 : index
    %24 = vector.load %arg2[%c15, %c0_19] : memref<52x128xf32, #tpu.memory_space<vmem>>, vector<1x128xf32>
    %25 = vector.shape_cast %24 : vector<1x128xf32> to vector<1x1x128xf32>
    %26 = vector.broadcast %25 : vector<1x1x128xf32> to vector<16x16x128xf32>
    %27 = arith.mulf %7, %26 : vector<16x16x128xf32>
    %28 = arith.addf %23, %27 : vector<16x16x128xf32>
    %c20 = arith.constant 20 : index
    %c0_20 = arith.constant 0 : index
    %29 = vector.load %arg2[%c20, %c0_20] : memref<52x128xf32, #tpu.memory_space<vmem>>, vector<1x128xf32>
    %30 = vector.shape_cast %29 : vector<1x128xf32> to vector<1x1x128xf32>
    %31 = vector.broadcast %30 : vector<1x1x128xf32> to vector<16x16x128xf32>
    %32 = arith.mulf %9, %31 : vector<16x16x128xf32>
    %33 = arith.addf %28, %32 : vector<16x16x128xf32>
    %34 = vector.shape_cast %33 : vector<16x16x128xf32> to vector<256x128xf32>
    %c2_i32 = arith.constant 2 : i32
    %35 = tpu.dynamic_rotate %34 by %c2_i32 dim 0 : vector<256x128xf32>, i32 -> vector<256x128xf32>
    %36 = vector.shape_cast %35 : vector<256x128xf32> to vector<16x16x128xf32>
    %37 = tpu.iota {dimensions = array<i32: 0>} : vector<16x128xi32>
    %c2_i32_21 = arith.constant 2 : i32
    %38 = vector.broadcast %c2_i32_21 : i32 to vector<16x128xi32>
    %39 = arith.cmpi sge, %37, %38 : vector<16x128xi32>
    %cst = arith.constant 0.000000e+00 : f32
    %40 = vector.shape_cast %39 : vector<16x128xi1> to vector<1x16x128xi1>
    %41 = vector.broadcast %40 : vector<1x16x128xi1> to vector<16x16x128xi1>
    %42 = vector.broadcast %cst : f32 to vector<16x16x128xf32>
    %43 = arith.select %41, %36, %42 : vector<16x16x128xi1>, vector<16x16x128xf32>
    %c1_22 = arith.constant 1 : index
    %c0_23 = arith.constant 0 : index
    %44 = vector.load %arg2[%c1_22, %c0_23] : memref<52x128xf32, #tpu.memory_space<vmem>>, vector<1x128xf32>
    %45 = vector.shape_cast %44 : vector<1x128xf32> to vector<1x1x128xf32>
    %46 = vector.broadcast %45 : vector<1x1x128xf32> to vector<16x16x128xf32>
    %47 = arith.mulf %1, %46 : vector<16x16x128xf32>
    %c6 = arith.constant 6 : index
    %c0_24 = arith.constant 0 : index
    %48 = vector.load %arg2[%c6, %c0_24] : memref<52x128xf32, #tpu.memory_space<vmem>>, vector<1x128xf32>
    %49 = vector.shape_cast %48 : vector<1x128xf32> to vector<1x1x128xf32>
    %50 = vector.broadcast %49 : vector<1x1x128xf32> to vector<16x16x128xf32>
    %51 = arith.mulf %3, %50 : vector<16x16x128xf32>
    %52 = arith.addf %47, %51 : vector<16x16x128xf32>
    %c11 = arith.constant 11 : index
    %c0_25 = arith.constant 0 : index
    %53 = vector.load %arg2[%c11, %c0_25] : memref<52x128xf32, #tpu.memory_space<vmem>>, vector<1x128xf32>
    %54 = vector.shape_cast %53 : vector<1x128xf32> to vector<1x1x128xf32>
    %55 = vector.broadcast %54 : vector<1x1x128xf32> to vector<16x16x128xf32>
    %56 = arith.mulf %5, %55 : vector<16x16x128xf32>
    %57 = arith.addf %52, %56 : vector<16x16x128xf32>
    %c16 = arith.constant 16 : index
    %c0_26 = arith.constant 0 : index
    %58 = vector.load %arg2[%c16, %c0_26] : memref<52x128xf32, #tpu.memory_space<vmem>>, vector<1x128xf32>
    %59 = vector.shape_cast %58 : vector<1x128xf32> to vector<1x1x128xf32>
    %60 = vector.broadcast %59 : vector<1x1x128xf32> to vector<16x16x128xf32>
    %61 = arith.mulf %7, %60 : vector<16x16x128xf32>
    %62 = arith.addf %57, %61 : vector<16x16x128xf32>
    %c21 = arith.constant 21 : index
    %c0_27 = arith.constant 0 : index
    %63 = vector.load %arg2[%c21, %c0_27] : memref<52x128xf32, #tpu.memory_space<vmem>>, vector<1x128xf32>
    %64 = vector.shape_cast %63 : vector<1x128xf32> to vector<1x1x128xf32>
    %65 = vector.broadcast %64 : vector<1x1x128xf32> to vector<16x16x128xf32>
    %66 = arith.mulf %9, %65 : vector<16x16x128xf32>
    %67 = arith.addf %62, %66 : vector<16x16x128xf32>
    %68 = vector.shape_cast %67 : vector<16x16x128xf32> to vector<256x128xf32>
    %c1_i32 = arith.constant 1 : i32
    %69 = tpu.dynamic_rotate %68 by %c1_i32 dim 0 : vector<256x128xf32>, i32 -> vector<256x128xf32>
    %70 = vector.shape_cast %69 : vector<256x128xf32> to vector<16x16x128xf32>
    %71 = tpu.iota {dimensions = array<i32: 0>} : vector<16x128xi32>
    %c1_i32_28 = arith.constant 1 : i32
    %72 = vector.broadcast %c1_i32_28 : i32 to vector<16x128xi32>
    %73 = arith.cmpi sge, %71, %72 : vector<16x128xi32>
    %cst_29 = arith.constant 0.000000e+00 : f32
    %74 = vector.shape_cast %73 : vector<16x128xi1> to vector<1x16x128xi1>
    %75 = vector.broadcast %74 : vector<1x16x128xi1> to vector<16x16x128xi1>
    %76 = vector.broadcast %cst_29 : f32 to vector<16x16x128xf32>
    %77 = arith.select %75, %70, %76 : vector<16x16x128xi1>, vector<16x16x128xf32>
    %78 = arith.addf %43, %77 : vector<16x16x128xf32>
    %c2_30 = arith.constant 2 : index
    %c0_31 = arith.constant 0 : index
    %79 = vector.load %arg2[%c2_30, %c0_31] : memref<52x128xf32, #tpu.memory_space<vmem>>, vector<1x128xf32>
    %80 = vector.shape_cast %79 : vector<1x128xf32> to vector<1x1x128xf32>
    %81 = vector.broadcast %80 : vector<1x1x128xf32> to vector<16x16x128xf32>
    %82 = arith.mulf %1, %81 : vector<16x16x128xf32>
    %c7 = arith.constant 7 : index
    %c0_32 = arith.constant 0 : index
    %83 = vector.load %arg2[%c7, %c0_32] : memref<52x128xf32, #tpu.memory_space<vmem>>, vector<1x128xf32>
    %84 = vector.shape_cast %83 : vector<1x128xf32> to vector<1x1x128xf32>
    %85 = vector.broadcast %84 : vector<1x1x128xf32> to vector<16x16x128xf32>
    %86 = arith.mulf %3, %85 : vector<16x16x128xf32>
    %87 = arith.addf %82, %86 : vector<16x16x128xf32>
    %c12 = arith.constant 12 : index
    %c0_33 = arith.constant 0 : index
    %88 = vector.load %arg2[%c12, %c0_33] : memref<52x128xf32, #tpu.memory_space<vmem>>, vector<1x128xf32>
    %89 = vector.shape_cast %88 : vector<1x128xf32> to vector<1x1x128xf32>
    %90 = vector.broadcast %89 : vector<1x1x128xf32> to vector<16x16x128xf32>
    %91 = arith.mulf %5, %90 : vector<16x16x128xf32>
    %92 = arith.addf %87, %91 : vector<16x16x128xf32>
    %c17 = arith.constant 17 : index
    %c0_34 = arith.constant 0 : index
    %93 = vector.load %arg2[%c17, %c0_34] : memref<52x128xf32, #tpu.memory_space<vmem>>, vector<1x128xf32>
    %94 = vector.shape_cast %93 : vector<1x128xf32> to vector<1x1x128xf32>
    %95 = vector.broadcast %94 : vector<1x1x128xf32> to vector<16x16x128xf32>
    %96 = arith.mulf %7, %95 : vector<16x16x128xf32>
    %97 = arith.addf %92, %96 : vector<16x16x128xf32>
    %c22 = arith.constant 22 : index
    %c0_35 = arith.constant 0 : index
    %98 = vector.load %arg2[%c22, %c0_35] : memref<52x128xf32, #tpu.memory_space<vmem>>, vector<1x128xf32>
    %99 = vector.shape_cast %98 : vector<1x128xf32> to vector<1x1x128xf32>
    %100 = vector.broadcast %99 : vector<1x1x128xf32> to vector<16x16x128xf32>
    %101 = arith.mulf %9, %100 : vector<16x16x128xf32>
    %102 = arith.addf %97, %101 : vector<16x16x128xf32>
    %103 = arith.addf %78, %102 : vector<16x16x128xf32>
    %c3_36 = arith.constant 3 : index
    %c0_37 = arith.constant 0 : index
    %104 = vector.load %arg2[%c3_36, %c0_37] : memref<52x128xf32, #tpu.memory_space<vmem>>, vector<1x128xf32>
    %105 = vector.shape_cast %104 : vector<1x128xf32> to vector<1x1x128xf32>
    %106 = vector.broadcast %105 : vector<1x1x128xf32> to vector<16x16x128xf32>
    %107 = arith.mulf %1, %106 : vector<16x16x128xf32>
    %c8 = arith.constant 8 : index
    %c0_38 = arith.constant 0 : index
    %108 = vector.load %arg2[%c8, %c0_38] : memref<52x128xf32, #tpu.memory_space<vmem>>, vector<1x128xf32>
    %109 = vector.shape_cast %108 : vector<1x128xf32> to vector<1x1x128xf32>
    %110 = vector.broadcast %109 : vector<1x1x128xf32> to vector<16x16x128xf32>
    %111 = arith.mulf %3, %110 : vector<16x16x128xf32>
    %112 = arith.addf %107, %111 : vector<16x16x128xf32>
    %c13 = arith.constant 13 : index
    %c0_39 = arith.constant 0 : index
    %113 = vector.load %arg2[%c13, %c0_39] : memref<52x128xf32, #tpu.memory_space<vmem>>, vector<1x128xf32>
    %114 = vector.shape_cast %113 : vector<1x128xf32> to vector<1x1x128xf32>
    %115 = vector.broadcast %114 : vector<1x1x128xf32> to vector<16x16x128xf32>
    %116 = arith.mulf %5, %115 : vector<16x16x128xf32>
    %117 = arith.addf %112, %116 : vector<16x16x128xf32>
    %c18 = arith.constant 18 : index
    %c0_40 = arith.constant 0 : index
    %118 = vector.load %arg2[%c18, %c0_40] : memref<52x128xf32, #tpu.memory_space<vmem>>, vector<1x128xf32>
    %119 = vector.shape_cast %118 : vector<1x128xf32> to vector<1x1x128xf32>
    %120 = vector.broadcast %119 : vector<1x1x128xf32> to vector<16x16x128xf32>
    %121 = arith.mulf %7, %120 : vector<16x16x128xf32>
    %122 = arith.addf %117, %121 : vector<16x16x128xf32>
    %c23 = arith.constant 23 : index
    %c0_41 = arith.constant 0 : index
    %123 = vector.load %arg2[%c23, %c0_41] : memref<52x128xf32, #tpu.memory_space<vmem>>, vector<1x128xf32>
    %124 = vector.shape_cast %123 : vector<1x128xf32> to vector<1x1x128xf32>
    %125 = vector.broadcast %124 : vector<1x1x128xf32> to vector<16x16x128xf32>
    %126 = arith.mulf %9, %125 : vector<16x16x128xf32>
    %127 = arith.addf %122, %126 : vector<16x16x128xf32>
    %128 = vector.shape_cast %127 : vector<16x16x128xf32> to vector<256x128xf32>
    %c255_i32 = arith.constant 255 : i32
    %129 = tpu.dynamic_rotate %128 by %c255_i32 dim 0 : vector<256x128xf32>, i32 -> vector<256x128xf32>
    %130 = vector.shape_cast %129 : vector<256x128xf32> to vector<16x16x128xf32>
    %131 = tpu.iota {dimensions = array<i32: 0>} : vector<16x128xi32>
    %c15_i32 = arith.constant 15 : i32
    %132 = vector.broadcast %c15_i32 : i32 to vector<16x128xi32>
    %133 = arith.cmpi slt, %131, %132 : vector<16x128xi32>
    %cst_42 = arith.constant 0.000000e+00 : f32
    %134 = vector.shape_cast %133 : vector<16x128xi1> to vector<1x16x128xi1>
    %135 = vector.broadcast %134 : vector<1x16x128xi1> to vector<16x16x128xi1>
    %136 = vector.broadcast %cst_42 : f32 to vector<16x16x128xf32>
    %137 = arith.select %135, %130, %136 : vector<16x16x128xi1>, vector<16x16x128xf32>
    %138 = arith.addf %103, %137 : vector<16x16x128xf32>
    %c4_43 = arith.constant 4 : index
    %c0_44 = arith.constant 0 : index
    %139 = vector.load %arg2[%c4_43, %c0_44] : memref<52x128xf32, #tpu.memory_space<vmem>>, vector<1x128xf32>
    %140 = vector.shape_cast %139 : vector<1x128xf32> to vector<1x1x128xf32>
    %141 = vector.broadcast %140 : vector<1x1x128xf32> to vector<16x16x128xf32>
    %142 = arith.mulf %1, %141 : vector<16x16x128xf32>
    %c9 = arith.constant 9 : index
    %c0_45 = arith.constant 0 : index
    %143 = vector.load %arg2[%c9, %c0_45] : memref<52x128xf32, #tpu.memory_space<vmem>>, vector<1x128xf32>
    %144 = vector.shape_cast %143 : vector<1x128xf32> to vector<1x1x128xf32>
    %145 = vector.broadcast %144 : vector<1x1x128xf32> to vector<16x16x128xf32>
    %146 = arith.mulf %3, %145 : vector<16x16x128xf32>
    %147 = arith.addf %142, %146 : vector<16x16x128xf32>
    %c14 = arith.constant 14 : index
    %c0_46 = arith.constant 0 : index
    %148 = vector.load %arg2[%c14, %c0_46] : memref<52x128xf32, #tpu.memory_space<vmem>>, vector<1x128xf32>
    %149 = vector.shape_cast %148 : vector<1x128xf32> to vector<1x1x128xf32>
    %150 = vector.broadcast %149 : vector<1x1x128xf32> to vector<16x16x128xf32>
    %151 = arith.mulf %5, %150 : vector<16x16x128xf32>
    %152 = arith.addf %147, %151 : vector<16x16x128xf32>
    %c19 = arith.constant 19 : index
    %c0_47 = arith.constant 0 : index
    %153 = vector.load %arg2[%c19, %c0_47] : memref<52x128xf32, #tpu.memory_space<vmem>>, vector<1x128xf32>
    %154 = vector.shape_cast %153 : vector<1x128xf32> to vector<1x1x128xf32>
    %155 = vector.broadcast %154 : vector<1x1x128xf32> to vector<16x16x128xf32>
    %156 = arith.mulf %7, %155 : vector<16x16x128xf32>
    %157 = arith.addf %152, %156 : vector<16x16x128xf32>
    %c24 = arith.constant 24 : index
    %c0_48 = arith.constant 0 : index
    %158 = vector.load %arg2[%c24, %c0_48] : memref<52x128xf32, #tpu.memory_space<vmem>>, vector<1x128xf32>
    %159 = vector.shape_cast %158 : vector<1x128xf32> to vector<1x1x128xf32>
    %160 = vector.broadcast %159 : vector<1x1x128xf32> to vector<16x16x128xf32>
    %161 = arith.mulf %9, %160 : vector<16x16x128xf32>
    %162 = arith.addf %157, %161 : vector<16x16x128xf32>
    %163 = vector.shape_cast %162 : vector<16x16x128xf32> to vector<256x128xf32>
    %c254_i32 = arith.constant 254 : i32
    %164 = tpu.dynamic_rotate %163 by %c254_i32 dim 0 : vector<256x128xf32>, i32 -> vector<256x128xf32>
    %165 = vector.shape_cast %164 : vector<256x128xf32> to vector<16x16x128xf32>
    %166 = tpu.iota {dimensions = array<i32: 0>} : vector<16x128xi32>
    %c14_i32 = arith.constant 14 : i32
    %167 = vector.broadcast %c14_i32 : i32 to vector<16x128xi32>
    %168 = arith.cmpi slt, %166, %167 : vector<16x128xi32>
    %cst_49 = arith.constant 0.000000e+00 : f32
    %169 = vector.shape_cast %168 : vector<16x128xi1> to vector<1x16x128xi1>
    %170 = vector.broadcast %169 : vector<1x16x128xi1> to vector<16x16x128xi1>
    %171 = vector.broadcast %cst_49 : f32 to vector<16x16x128xf32>
    %172 = arith.select %170, %165, %171 : vector<16x16x128xi1>, vector<16x16x128xf32>
    %173 = arith.addf %138, %172 : vector<16x16x128xf32>
    %174 = vector.shape_cast %173 : vector<16x16x128xf32> to vector<256x128xf32>
    %175 = arith.truncf %174 : vector<256x128xf32> to vector<256x128xbf16>
    %c0_50 = arith.constant 0 : index
    %c0_51 = arith.constant 0 : index
    %c0_52 = arith.constant 0 : index
    %176 = vector.load %arg3[%c0_50, %c0_51, %c0_52] : memref<4x128x128xbf16, #tpu.memory_space<vmem>>, vector<1x128x128xbf16>
    %177 = vector.shape_cast %176 : vector<1x128x128xbf16> to vector<128x128xbf16>
    %cst_53 = arith.constant dense<0.000000e+00> : vector<256x128xf32>
    %178 = tpu.matmul %175, %177, %cst_53 {dimension_numbers = #tpu.dot_dimension_numbers<[1], [0], [0], [1], [0, 0, 1, 1], [], []>} : vector<256x128xbf16>, vector<128x128xbf16>, vector<256x128xf32> -> vector<256x128xf32>
    %cst_54 = arith.constant 0.000000e+00 : f32
    %179 = vector.broadcast %cst_54 : f32 to vector<256x128xf32>
    %180 = arith.maximumf %178, %179 : vector<256x128xf32>
    %181 = vector.shape_cast %180 : vector<256x128xf32> to vector<1x16x16x128xf32>
    %c0_55 = arith.constant 0 : index
    %c2_56 = arith.constant 2 : index
    %c0_57 = arith.constant 0 : index
    %c0_58 = arith.constant 0 : index
    %182 = vector.load %arg1[%c0_55, %c2_56, %c0_57, %c0_58] : memref<1x20x16x128xf32, #tpu.memory_space<vmem>>, vector<1x16x16x128xf32>
    tpu.vector_store %arg1[%c0_55, %c2_56, %c0_57, %c0_58], %181 {strides = array<i32>} : memref<1x20x16x128xf32, #tpu.memory_space<vmem>>, vector<1x16x16x128xf32>,
    %c0_59 = arith.constant 0 : index
    %c1_60 = arith.constant 1 : index
    %c0_61 = arith.constant 0 : index
    %c0_62 = arith.constant 0 : index
    %183 = vector.load %arg1[%c0_59, %c1_60, %c0_61, %c0_62] : memref<1x20x16x128xf32, #tpu.memory_space<vmem>>, vector<1x16x16x128xf32>
    %184 = vector.shape_cast %183 : vector<1x16x16x128xf32> to vector<16x16x128xf32>
    %c0_63 = arith.constant 0 : index
    %c2_64 = arith.constant 2 : index
    %c0_65 = arith.constant 0 : index
    %c0_66 = arith.constant 0 : index
    %185 = vector.load %arg1[%c0_63, %c2_64, %c0_65, %c0_66] : memref<1x20x16x128xf32, #tpu.memory_space<vmem>>, vector<1x16x16x128xf32>
    %186 = vector.shape_cast %185 : vector<1x16x16x128xf32> to vector<16x16x128xf32>
    %c0_67 = arith.constant 0 : index
    %c3_68 = arith.constant 3 : index
    %c0_69 = arith.constant 0 : index
    %c0_70 = arith.constant 0 : index
    %187 = vector.load %arg1[%c0_67, %c3_68, %c0_69, %c0_70] : memref<1x20x16x128xf32, #tpu.memory_space<vmem>>, vector<1x16x16x128xf32>
    %188 = vector.shape_cast %187 : vector<1x16x16x128xf32> to vector<16x16x128xf32>
    %c25 = arith.constant 25 : index
    %c0_71 = arith.constant 0 : index
    %189 = vector.load %arg2[%c25, %c0_71] : memref<52x128xf32, #tpu.memory_space<vmem>>, vector<1x128xf32>
    %190 = vector.shape_cast %189 : vector<1x128xf32> to vector<1x1x128xf32>
    %191 = vector.broadcast %190 : vector<1x1x128xf32> to vector<16x16x128xf32>
    %192 = arith.mulf %184, %191 : vector<16x16x128xf32>
    %c28 = arith.constant 28 : index
    %c0_72 = arith.constant 0 : index
    %193 = vector.load %arg2[%c28, %c0_72] : memref<52x128xf32, #tpu.memory_space<vmem>>, vector<1x128xf32>
    %194 = vector.shape_cast %193 : vector<1x128xf32> to vector<1x1x128xf32>
    %195 = vector.broadcast %194 : vector<1x1x128xf32> to vector<16x16x128xf32>
    %196 = arith.mulf %186, %195 : vector<16x16x128xf32>
    %197 = arith.addf %192, %196 : vector<16x16x128xf32>
    %c31 = arith.constant 31 : index
    %c0_73 = arith.constant 0 : index
    %198 = vector.load %arg2[%c31, %c0_73] : memref<52x128xf32, #tpu.memory_space<vmem>>, vector<1x128xf32>
    %199 = vector.shape_cast %198 : vector<1x128xf32> to vector<1x1x128xf32>
    %200 = vector.broadcast %199 : vector<1x1x128xf32> to vector<16x16x128xf32>
    %201 = arith.mulf %188, %200 : vector<16x16x128xf32>
    %202 = arith.addf %197, %201 : vector<16x16x128xf32>
    %203 = vector.shape_cast %202 : vector<16x16x128xf32> to vector<256x128xf32>
    %c1_i32_74 = arith.constant 1 : i32
    %204 = tpu.dynamic_rotate %203 by %c1_i32_74 dim 0 : vector<256x128xf32>, i32 -> vector<256x128xf32>
    %205 = vector.shape_cast %204 : vector<256x128xf32> to vector<16x16x128xf32>
    %206 = tpu.iota {dimensions = array<i32: 0>} : vector<16x128xi32>
    %c1_i32_75 = arith.constant 1 : i32
    %207 = vector.broadcast %c1_i32_75 : i32 to vector<16x128xi32>
    %208 = arith.cmpi sge, %206, %207 : vector<16x128xi32>
    %cst_76 = arith.constant 0.000000e+00 : f32
    %209 = vector.shape_cast %208 : vector<16x128xi1> to vector<1x16x128xi1>
    %210 = vector.broadcast %209 : vector<1x16x128xi1> to vector<16x16x128xi1>
    %211 = vector.broadcast %cst_76 : f32 to vector<16x16x128xf32>
    %212 = arith.select %210, %205, %211 : vector<16x16x128xi1>, vector<16x16x128xf32>
    %c26 = arith.constant 26 : index
    %c0_77 = arith.constant 0 : index
    %213 = vector.load %arg2[%c26, %c0_77] : memref<52x128xf32, #tpu.memory_space<vmem>>, vector<1x128xf32>
    %214 = vector.shape_cast %213 : vector<1x128xf32> to vector<1x1x128xf32>
    %215 = vector.broadcast %214 : vector<1x1x128xf32> to vector<16x16x128xf32>
    %216 = arith.mulf %184, %215 : vector<16x16x128xf32>
    %c29 = arith.constant 29 : index
    %c0_78 = arith.constant 0 : index
    %217 = vector.load %arg2[%c29, %c0_78] : memref<52x128xf32, #tpu.memory_space<vmem>>, vector<1x128xf32>
    %218 = vector.shape_cast %217 : vector<1x128xf32> to vector<1x1x128xf32>
    %219 = vector.broadcast %218 : vector<1x1x128xf32> to vector<16x16x128xf32>
    %220 = arith.mulf %186, %219 : vector<16x16x128xf32>
    %221 = arith.addf %216, %220 : vector<16x16x128xf32>
    %c32 = arith.constant 32 : index
    %c0_79 = arith.constant 0 : index
    %222 = vector.load %arg2[%c32, %c0_79] : memref<52x128xf32, #tpu.memory_space<vmem>>, vector<1x128xf32>
    %223 = vector.shape_cast %222 : vector<1x128xf32> to vector<1x1x128xf32>
    %224 = vector.broadcast %223 : vector<1x1x128xf32> to vector<16x16x128xf32>
    %225 = arith.mulf %188, %224 : vector<16x16x128xf32>
    %226 = arith.addf %221, %225 : vector<16x16x128xf32>
    %227 = arith.addf %212, %226 : vector<16x16x128xf32>
    %c27 = arith.constant 27 : index
    %c0_80 = arith.constant 0 : index
    %228 = vector.load %arg2[%c27, %c0_80] : memref<52x128xf32, #tpu.memory_space<vmem>>, vector<1x128xf32>
    %229 = vector.shape_cast %228 : vector<1x128xf32> to vector<1x1x128xf32>
    %230 = vector.broadcast %229 : vector<1x1x128xf32> to vector<16x16x128xf32>
    %231 = arith.mulf %184, %230 : vector<16x16x128xf32>
    %c30 = arith.constant 30 : index
    %c0_81 = arith.constant 0 : index
    %232 = vector.load %arg2[%c30, %c0_81] : memref<52x128xf32, #tpu.memory_space<vmem>>, vector<1x128xf32>
    %233 = vector.shape_cast %232 : vector<1x128xf32> to vector<1x1x128xf32>
    %234 = vector.broadcast %233 : vector<1x1x128xf32> to vector<16x16x128xf32>
    %235 = arith.mulf %186, %234 : vector<16x16x128xf32>
    %236 = arith.addf %231, %235 : vector<16x16x128xf32>
    %c33 = arith.constant 33 : index
    %c0_82 = arith.constant 0 : index
    %237 = vector.load %arg2[%c33, %c0_82] : memref<52x128xf32, #tpu.memory_space<vmem>>, vector<1x128xf32>
    %238 = vector.shape_cast %237 : vector<1x128xf32> to vector<1x1x128xf32>
    %239 = vector.broadcast %238 : vector<1x1x128xf32> to vector<16x16x128xf32>
    %240 = arith.mulf %188, %239 : vector<16x16x128xf32>
    %241 = arith.addf %236, %240 : vector<16x16x128xf32>
    %242 = vector.shape_cast %241 : vector<16x16x128xf32> to vector<256x128xf32>
    %c255_i32_83 = arith.constant 255 : i32
    %243 = tpu.dynamic_rotate %242 by %c255_i32_83 dim 0 : vector<256x128xf32>, i32 -> vector<256x128xf32>
    %244 = vector.shape_cast %243 : vector<256x128xf32> to vector<16x16x128xf32>
    %245 = tpu.iota {dimensions = array<i32: 0>} : vector<16x128xi32>
    %c15_i32_84 = arith.constant 15 : i32
    %246 = vector.broadcast %c15_i32_84 : i32 to vector<16x128xi32>
    %247 = arith.cmpi slt, %245, %246 : vector<16x128xi32>
    %cst_85 = arith.constant 0.000000e+00 : f32
    %248 = vector.shape_cast %247 : vector<16x128xi1> to vector<1x16x128xi1>
    %249 = vector.broadcast %248 : vector<1x16x128xi1> to vector<16x16x128xi1>
    %250 = vector.broadcast %cst_85 : f32 to vector<16x16x128xf32>
    %251 = arith.select %249, %244, %250 : vector<16x16x128xi1>, vector<16x16x128xf32>
    %252 = arith.addf %227, %251 : vector<16x16x128xf32>
    %253 = vector.shape_cast %252 : vector<16x16x128xf32> to vector<256x128xf32>
    %254 = arith.truncf %253 : vector<256x128xf32> to vector<256x128xbf16>
    %c1_86 = arith.constant 1 : index
    %c0_87 = arith.constant 0 : index
    %c0_88 = arith.constant 0 : index
    %255 = vector.load %arg3[%c1_86, %c0_87, %c0_88] : memref<4x128x128xbf16, #tpu.memory_space<vmem>>, vector<1x128x128xbf16>
    %256 = vector.shape_cast %255 : vector<1x128x128xbf16> to vector<128x128xbf16>
    %cst_89 = arith.constant dense<0.000000e+00> : vector<256x128xf32>
    %257 = tpu.matmul %254, %256, %cst_89 {dimension_numbers = #tpu.dot_dimension_numbers<[1], [0], [0], [1], [0, 0, 1, 1], [], []>} : vector<256x128xbf16>, vector<128x128xbf16>, vector<256x128xf32> -> vector<256x128xf32>
    %cst_90 = arith.constant 0.000000e+00 : f32
    %258 = vector.broadcast %cst_90 : f32 to vector<256x128xf32>
    %259 = arith.maximumf %257, %258 : vector<256x128xf32>
    %260 = vector.shape_cast %259 : vector<256x128xf32> to vector<1x16x16x128xf32>
    %c0_91 = arith.constant 0 : index
    %c2_92 = arith.constant 2 : index
    %c0_93 = arith.constant 0 : index
    %c0_94 = arith.constant 0 : index
    %261 = vector.load %arg1[%c0_91, %c2_92, %c0_93, %c0_94] : memref<1x20x16x128xf32, #tpu.memory_space<vmem>>, vector<1x16x16x128xf32>
    tpu.vector_store %arg1[%c0_91, %c2_92, %c0_93, %c0_94], %260 {strides = array<i32>} : memref<1x20x16x128xf32, #tpu.memory_space<vmem>>, vector<1x16x16x128xf32>,
    %c0_95 = arith.constant 0 : index
    %c1_96 = arith.constant 1 : index
    %c0_97 = arith.constant 0 : index
    %c0_98 = arith.constant 0 : index
    %262 = vector.load %arg1[%c0_95, %c1_96, %c0_97, %c0_98] : memref<1x20x16x128xf32, #tpu.memory_space<vmem>>, vector<1x16x16x128xf32>
    %263 = vector.shape_cast %262 : vector<1x16x16x128xf32> to vector<16x16x128xf32>
    %c0_99 = arith.constant 0 : index
    %c2_100 = arith.constant 2 : index
    %c0_101 = arith.constant 0 : index
    %c0_102 = arith.constant 0 : index
    %264 = vector.load %arg1[%c0_99, %c2_100, %c0_101, %c0_102] : memref<1x20x16x128xf32, #tpu.memory_space<vmem>>, vector<1x16x16x128xf32>
    %265 = vector.shape_cast %264 : vector<1x16x16x128xf32> to vector<16x16x128xf32>
    %c0_103 = arith.constant 0 : index
    %c3_104 = arith.constant 3 : index
    %c0_105 = arith.constant 0 : index
    %c0_106 = arith.constant 0 : index
    %266 = vector.load %arg1[%c0_103, %c3_104, %c0_105, %c0_106] : memref<1x20x16x128xf32, #tpu.memory_space<vmem>>, vector<1x16x16x128xf32>
    %267 = vector.shape_cast %266 : vector<1x16x16x128xf32> to vector<16x16x128xf32>
    %c34 = arith.constant 34 : index
    %c0_107 = arith.constant 0 : index
    %268 = vector.load %arg2[%c34, %c0_107] : memref<52x128xf32, #tpu.memory_space<vmem>>, vector<1x128xf32>
    %269 = vector.shape_cast %268 : vector<1x128xf32> to vector<1x1x128xf32>
    %270 = vector.broadcast %269 : vector<1x1x128xf32> to vector<16x16x128xf32>
    %271 = arith.mulf %263, %270 : vector<16x16x128xf32>
    %c37 = arith.constant 37 : index
    %c0_108 = arith.constant 0 : index
    %272 = vector.load %arg2[%c37, %c0_108] : memref<52x128xf32, #tpu.memory_space<vmem>>, vector<1x128xf32>
    %273 = vector.shape_cast %272 : vector<1x128xf32> to vector<1x1x128xf32>
    %274 = vector.broadcast %273 : vector<1x1x128xf32> to vector<16x16x128xf32>
    %275 = arith.mulf %265, %274 : vector<16x16x128xf32>
    %276 = arith.addf %271, %275 : vector<16x16x128xf32>
    %c40 = arith.constant 40 : index
    %c0_109 = arith.constant 0 : index
    %277 = vector.load %arg2[%c40, %c0_109] : memref<52x128xf32, #tpu.memory_space<vmem>>, vector<1x128xf32>
    %278 = vector.shape_cast %277 : vector<1x128xf32> to vector<1x1x128xf32>
    %279 = vector.broadcast %278 : vector<1x1x128xf32> to vector<16x16x128xf32>
    %280 = arith.mulf %267, %279 : vector<16x16x128xf32>
    %281 = arith.addf %276, %280 : vector<16x16x128xf32>
    %282 = vector.shape_cast %281 : vector<16x16x128xf32> to vector<256x128xf32>
    %c1_i32_110 = arith.constant 1 : i32
    %283 = tpu.dynamic_rotate %282 by %c1_i32_110 dim 0 : vector<256x128xf32>, i32 -> vector<256x128xf32>
    %284 = vector.shape_cast %283 : vector<256x128xf32> to vector<16x16x128xf32>
    %285 = tpu.iota {dimensions = array<i32: 0>} : vector<16x128xi32>
    %c1_i32_111 = arith.constant 1 : i32
    %286 = vector.broadcast %c1_i32_111 : i32 to vector<16x128xi32>
    %287 = arith.cmpi sge, %285, %286 : vector<16x128xi32>
    %cst_112 = arith.constant 0.000000e+00 : f32
    %288 = vector.shape_cast %287 : vector<16x128xi1> to vector<1x16x128xi1>
    %289 = vector.broadcast %288 : vector<1x16x128xi1> to vector<16x16x128xi1>
    %290 = vector.broadcast %cst_112 : f32 to vector<16x16x128xf32>
    %291 = arith.select %289, %284, %290 : vector<16x16x128xi1>, vector<16x16x128xf32>
    %c35 = arith.constant 35 : index
    %c0_113 = arith.constant 0 : index
    %292 = vector.load %arg2[%c35, %c0_113] : memref<52x128xf32, #tpu.memory_space<vmem>>, vector<1x128xf32>
    %293 = vector.shape_cast %292 : vector<1x128xf32> to vector<1x1x128xf32>
    %294 = vector.broadcast %293 : vector<1x1x128xf32> to vector<16x16x128xf32>
    %295 = arith.mulf %263, %294 : vector<16x16x128xf32>
    %c38 = arith.constant 38 : index
    %c0_114 = arith.constant 0 : index
    %296 = vector.load %arg2[%c38, %c0_114] : memref<52x128xf32, #tpu.memory_space<vmem>>, vector<1x128xf32>
    %297 = vector.shape_cast %296 : vector<1x128xf32> to vector<1x1x128xf32>
    %298 = vector.broadcast %297 : vector<1x1x128xf32> to vector<16x16x128xf32>
    %299 = arith.mulf %265, %298 : vector<16x16x128xf32>
    %300 = arith.addf %295, %299 : vector<16x16x128xf32>
    %c41 = arith.constant 41 : index
    %c0_115 = arith.constant 0 : index
    %301 = vector.load %arg2[%c41, %c0_115] : memref<52x128xf32, #tpu.memory_space<vmem>>, vector<1x128xf32>
    %302 = vector.shape_cast %301 : vector<1x128xf32> to vector<1x1x128xf32>
    %303 = vector.broadcast %302 : vector<1x1x128xf32> to vector<16x16x128xf32>
    %304 = arith.mulf %267, %303 : vector<16x16x128xf32>
    %305 = arith.addf %300, %304 : vector<16x16x128xf32>
    %306 = arith.addf %291, %305 : vector<16x16x128xf32>
    %c36 = arith.constant 36 : index
    %c0_116 = arith.constant 0 : index
    %307 = vector.load %arg2[%c36, %c0_116] : memref<52x128xf32, #tpu.memory_space<vmem>>, vector<1x128xf32>
    %308 = vector.shape_cast %307 : vector<1x128xf32> to vector<1x1x128xf32>
    %309 = vector.broadcast %308 : vector<1x1x128xf32> to vector<16x16x128xf32>
    %310 = arith.mulf %263, %309 : vector<16x16x128xf32>
    %c39 = arith.constant 39 : index
    %c0_117 = arith.constant 0 : index
    %311 = vector.load %arg2[%c39, %c0_117] : memref<52x128xf32, #tpu.memory_space<vmem>>, vector<1x128xf32>
    %312 = vector.shape_cast %311 : vector<1x128xf32> to vector<1x1x128xf32>
    %313 = vector.broadcast %312 : vector<1x1x128xf32> to vector<16x16x128xf32>
    %314 = arith.mulf %265, %313 : vector<16x16x128xf32>
    %315 = arith.addf %310, %314 : vector<16x16x128xf32>
    %c42 = arith.constant 42 : index
    %c0_118 = arith.constant 0 : index
    %316 = vector.load %arg2[%c42, %c0_118] : memref<52x128xf32, #tpu.memory_space<vmem>>, vector<1x128xf32>
    %317 = vector.shape_cast %316 : vector<1x128xf32> to vector<1x1x128xf32>
    %318 = vector.broadcast %317 : vector<1x1x128xf32> to vector<16x16x128xf32>
    %319 = arith.mulf %267, %318 : vector<16x16x128xf32>
    %320 = arith.addf %315, %319 : vector<16x16x128xf32>
    %321 = vector.shape_cast %320 : vector<16x16x128xf32> to vector<256x128xf32>
    %c255_i32_119 = arith.constant 255 : i32
    %322 = tpu.dynamic_rotate %321 by %c255_i32_119 dim 0 : vector<256x128xf32>, i32 -> vector<256x128xf32>
    %323 = vector.shape_cast %322 : vector<256x128xf32> to vector<16x16x128xf32>
    %324 = tpu.iota {dimensions = array<i32: 0>} : vector<16x128xi32>
    %c15_i32_120 = arith.constant 15 : i32
    %325 = vector.broadcast %c15_i32_120 : i32 to vector<16x128xi32>
    %326 = arith.cmpi slt, %324, %325 : vector<16x128xi32>
    %cst_121 = arith.constant 0.000000e+00 : f32
    %327 = vector.shape_cast %326 : vector<16x128xi1> to vector<1x16x128xi1>
    %328 = vector.broadcast %327 : vector<1x16x128xi1> to vector<16x16x128xi1>
    %329 = vector.broadcast %cst_121 : f32 to vector<16x16x128xf32>
    %330 = arith.select %328, %323, %329 : vector<16x16x128xi1>, vector<16x16x128xf32>
    %331 = arith.addf %306, %330 : vector<16x16x128xf32>
    %332 = vector.shape_cast %331 : vector<16x16x128xf32> to vector<256x128xf32>
    %333 = arith.truncf %332 : vector<256x128xf32> to vector<256x128xbf16>
    %c2_122 = arith.constant 2 : index
    %c0_123 = arith.constant 0 : index
    %c0_124 = arith.constant 0 : index
    %334 = vector.load %arg3[%c2_122, %c0_123, %c0_124] : memref<4x128x128xbf16, #tpu.memory_space<vmem>>, vector<1x128x128xbf16>
    %335 = vector.shape_cast %334 : vector<1x128x128xbf16> to vector<128x128xbf16>
    %cst_125 = arith.constant dense<0.000000e+00> : vector<256x128xf32>
    %336 = tpu.matmul %333, %335, %cst_125 {dimension_numbers = #tpu.dot_dimension_numbers<[1], [0], [0], [1], [0, 0, 1, 1], [], []>} : vector<256x128xbf16>, vector<128x128xbf16>, vector<256x128xf32> -> vector<256x128xf32>
    %cst_126 = arith.constant 0.000000e+00 : f32
    %337 = vector.broadcast %cst_126 : f32 to vector<256x128xf32>
    %338 = arith.maximumf %336, %337 : vector<256x128xf32>
    %339 = vector.shape_cast %338 : vector<256x128xf32> to vector<1x16x16x128xf32>
    %c0_127 = arith.constant 0 : index
    %c2_128 = arith.constant 2 : index
    %c0_129 = arith.constant 0 : index
    %c0_130 = arith.constant 0 : index
    %340 = vector.load %arg1[%c0_127, %c2_128, %c0_129, %c0_130] : memref<1x20x16x128xf32, #tpu.memory_space<vmem>>, vector<1x16x16x128xf32>
    tpu.vector_store %arg1[%c0_127, %c2_128, %c0_129, %c0_130], %339 {strides = array<i32>} : memref<1x20x16x128xf32, #tpu.memory_space<vmem>>, vector<1x16x16x128xf32>,
    %c0_131 = arith.constant 0 : index
    %c1_132 = arith.constant 1 : index
    %c0_133 = arith.constant 0 : index
    %c0_134 = arith.constant 0 : index
    %341 = vector.load %arg1[%c0_131, %c1_132, %c0_133, %c0_134] : memref<1x20x16x128xf32, #tpu.memory_space<vmem>>, vector<1x16x16x128xf32>
    %342 = vector.shape_cast %341 : vector<1x16x16x128xf32> to vector<16x16x128xf32>
    %c0_135 = arith.constant 0 : index
    %c2_136 = arith.constant 2 : index
    %c0_137 = arith.constant 0 : index
    %c0_138 = arith.constant 0 : index
    %343 = vector.load %arg1[%c0_135, %c2_136, %c0_137, %c0_138] : memref<1x20x16x128xf32, #tpu.memory_space<vmem>>, vector<1x16x16x128xf32>
    %344 = vector.shape_cast %343 : vector<1x16x16x128xf32> to vector<16x16x128xf32>
    %c0_139 = arith.constant 0 : index
    %c3_140 = arith.constant 3 : index
    %c0_141 = arith.constant 0 : index
    %c0_142 = arith.constant 0 : index
    %345 = vector.load %arg1[%c0_139, %c3_140, %c0_141, %c0_142] : memref<1x20x16x128xf32, #tpu.memory_space<vmem>>, vector<1x16x16x128xf32>
    %346 = vector.shape_cast %345 : vector<1x16x16x128xf32> to vector<16x16x128xf32>
    %c43 = arith.constant 43 : index
    %c0_143 = arith.constant 0 : index
    %347 = vector.load %arg2[%c43, %c0_143] : memref<52x128xf32, #tpu.memory_space<vmem>>, vector<1x128xf32>
    %348 = vector.shape_cast %347 : vector<1x128xf32> to vector<1x1x128xf32>
    %349 = vector.broadcast %348 : vector<1x1x128xf32> to vector<16x16x128xf32>
    %350 = arith.mulf %342, %349 : vector<16x16x128xf32>
    %c46 = arith.constant 46 : index
    %c0_144 = arith.constant 0 : index
    %351 = vector.load %arg2[%c46, %c0_144] : memref<52x128xf32, #tpu.memory_space<vmem>>, vector<1x128xf32>
    %352 = vector.shape_cast %351 : vector<1x128xf32> to vector<1x1x128xf32>
    %353 = vector.broadcast %352 : vector<1x1x128xf32> to vector<16x16x128xf32>
    %354 = arith.mulf %344, %353 : vector<16x16x128xf32>
    %355 = arith.addf %350, %354 : vector<16x16x128xf32>
    %c49 = arith.constant 49 : index
    %c0_145 = arith.constant 0 : index
    %356 = vector.load %arg2[%c49, %c0_145] : memref<52x128xf32, #tpu.memory_space<vmem>>, vector<1x128xf32>
    %357 = vector.shape_cast %356 : vector<1x128xf32> to vector<1x1x128xf32>
    %358 = vector.broadcast %357 : vector<1x1x128xf32> to vector<16x16x128xf32>
    %359 = arith.mulf %346, %358 : vector<16x16x128xf32>
    %360 = arith.addf %355, %359 : vector<16x16x128xf32>
    %361 = vector.shape_cast %360 : vector<16x16x128xf32> to vector<256x128xf32>
    %c1_i32_146 = arith.constant 1 : i32
    %362 = tpu.dynamic_rotate %361 by %c1_i32_146 dim 0 : vector<256x128xf32>, i32 -> vector<256x128xf32>
    %363 = vector.shape_cast %362 : vector<256x128xf32> to vector<16x16x128xf32>
    %364 = tpu.iota {dimensions = array<i32: 0>} : vector<16x128xi32>
    %c1_i32_147 = arith.constant 1 : i32
    %365 = vector.broadcast %c1_i32_147 : i32 to vector<16x128xi32>
    %366 = arith.cmpi sge, %364, %365 : vector<16x128xi32>
    %cst_148 = arith.constant 0.000000e+00 : f32
    %367 = vector.shape_cast %366 : vector<16x128xi1> to vector<1x16x128xi1>
    %368 = vector.broadcast %367 : vector<1x16x128xi1> to vector<16x16x128xi1>
    %369 = vector.broadcast %cst_148 : f32 to vector<16x16x128xf32>
    %370 = arith.select %368, %363, %369 : vector<16x16x128xi1>, vector<16x16x128xf32>
    %c44 = arith.constant 44 : index
    %c0_149 = arith.constant 0 : index
    %371 = vector.load %arg2[%c44, %c0_149] : memref<52x128xf32, #tpu.memory_space<vmem>>, vector<1x128xf32>
    %372 = vector.shape_cast %371 : vector<1x128xf32> to vector<1x1x128xf32>
    %373 = vector.broadcast %372 : vector<1x1x128xf32> to vector<16x16x128xf32>
    %374 = arith.mulf %342, %373 : vector<16x16x128xf32>
    %c47 = arith.constant 47 : index
    %c0_150 = arith.constant 0 : index
    %375 = vector.load %arg2[%c47, %c0_150] : memref<52x128xf32, #tpu.memory_space<vmem>>, vector<1x128xf32>
    %376 = vector.shape_cast %375 : vector<1x128xf32> to vector<1x1x128xf32>
    %377 = vector.broadcast %376 : vector<1x1x128xf32> to vector<16x16x128xf32>
    %378 = arith.mulf %344, %377 : vector<16x16x128xf32>
    %379 = arith.addf %374, %378 : vector<16x16x128xf32>
    %c50 = arith.constant 50 : index
    %c0_151 = arith.constant 0 : index
    %380 = vector.load %arg2[%c50, %c0_151] : memref<52x128xf32, #tpu.memory_space<vmem>>, vector<1x128xf32>
    %381 = vector.shape_cast %380 : vector<1x128xf32> to vector<1x1x128xf32>
    %382 = vector.broadcast %381 : vector<1x1x128xf32> to vector<16x16x128xf32>
    %383 = arith.mulf %346, %382 : vector<16x16x128xf32>
    %384 = arith.addf %379, %383 : vector<16x16x128xf32>
    %385 = arith.addf %370, %384 : vector<16x16x128xf32>
    %c45 = arith.constant 45 : index
    %c0_152 = arith.constant 0 : index
    %386 = vector.load %arg2[%c45, %c0_152] : memref<52x128xf32, #tpu.memory_space<vmem>>, vector<1x128xf32>
    %387 = vector.shape_cast %386 : vector<1x128xf32> to vector<1x1x128xf32>
    %388 = vector.broadcast %387 : vector<1x1x128xf32> to vector<16x16x128xf32>
    %389 = arith.mulf %342, %388 : vector<16x16x128xf32>
    %c48 = arith.constant 48 : index
    %c0_153 = arith.constant 0 : index
    %390 = vector.load %arg2[%c48, %c0_153] : memref<52x128xf32, #tpu.memory_space<vmem>>, vector<1x128xf32>
    %391 = vector.shape_cast %390 : vector<1x128xf32> to vector<1x1x128xf32>
    %392 = vector.broadcast %391 : vector<1x1x128xf32> to vector<16x16x128xf32>
    %393 = arith.mulf %344, %392 : vector<16x16x128xf32>
    %394 = arith.addf %389, %393 : vector<16x16x128xf32>
    %c51 = arith.constant 51 : index
    %c0_154 = arith.constant 0 : index
    %395 = vector.load %arg2[%c51, %c0_154] : memref<52x128xf32, #tpu.memory_space<vmem>>, vector<1x128xf32>
    %396 = vector.shape_cast %395 : vector<1x128xf32> to vector<1x1x128xf32>
    %397 = vector.broadcast %396 : vector<1x1x128xf32> to vector<16x16x128xf32>
    %398 = arith.mulf %346, %397 : vector<16x16x128xf32>
    %399 = arith.addf %394, %398 : vector<16x16x128xf32>
    %400 = vector.shape_cast %399 : vector<16x16x128xf32> to vector<256x128xf32>
    %c255_i32_155 = arith.constant 255 : i32
    %401 = tpu.dynamic_rotate %400 by %c255_i32_155 dim 0 : vector<256x128xf32>, i32 -> vector<256x128xf32>
    %402 = vector.shape_cast %401 : vector<256x128xf32> to vector<16x16x128xf32>
    %403 = tpu.iota {dimensions = array<i32: 0>} : vector<16x128xi32>
    %c15_i32_156 = arith.constant 15 : i32
    %404 = vector.broadcast %c15_i32_156 : i32 to vector<16x128xi32>
    %405 = arith.cmpi slt, %403, %404 : vector<16x128xi32>
    %cst_157 = arith.constant 0.000000e+00 : f32
    %406 = vector.shape_cast %405 : vector<16x128xi1> to vector<1x16x128xi1>
    %407 = vector.broadcast %406 : vector<1x16x128xi1> to vector<16x16x128xi1>
    %408 = vector.broadcast %cst_157 : f32 to vector<16x16x128xf32>
    %409 = arith.select %407, %402, %408 : vector<16x16x128xi1>, vector<16x16x128xf32>
    %410 = arith.addf %385, %409 : vector<16x16x128xf32>
    %411 = vector.shape_cast %410 : vector<16x16x128xf32> to vector<256x128xf32>
    %412 = arith.truncf %411 : vector<256x128xf32> to vector<256x128xbf16>
    %c3_158 = arith.constant 3 : index
    %c0_159 = arith.constant 0 : index
    %c0_160 = arith.constant 0 : index
    %413 = vector.load %arg3[%c3_158, %c0_159, %c0_160] : memref<4x128x128xbf16, #tpu.memory_space<vmem>>, vector<1x128x128xbf16>
    %414 = vector.shape_cast %413 : vector<1x128x128xbf16> to vector<128x128xbf16>
    %cst_161 = arith.constant dense<0.000000e+00> : vector<256x128xf32>
    %415 = tpu.matmul %412, %414, %cst_161 {dimension_numbers = #tpu.dot_dimension_numbers<[1], [0], [0], [1], [0, 0, 1, 1], [], []>} : vector<256x128xbf16>, vector<128x128xbf16>, vector<256x128xf32> -> vector<256x128xf32>
    %416 = vector.shape_cast %415 : vector<256x128xf32> to vector<1x16x16x128xf32>
    %c0_162 = arith.constant 0 : index
    %c0_163 = arith.constant 0 : index
    %c0_164 = arith.constant 0 : index
    %c0_165 = arith.constant 0 : index
    %417 = vector.load %arg4[%c0_162, %c0_163, %c0_164, %c0_165] : memref<1x16x16x128xf32, #tpu.memory_space<vmem>>, vector<1x16x16x128xf32>
    tpu.vector_store %arg4[%c0_162, %c0_163, %c0_164, %c0_165], %416 {strides = array<i32>} : memref<1x16x16x128xf32, #tpu.memory_space<vmem>>, vector<1x16x16x128xf32>,
    return
  }
  func.func @transform_0(%arg0: i32) -> (i32, i32, i32, i32) {
    %c0_i32 = arith.constant 0 : i32
    %c0_i32_0 = arith.constant 0 : i32
    %c0_i32_1 = arith.constant 0 : i32
    %c0_i32_2 = arith.constant 0 : i32
    return %arg0, %c0_i32, %c0_i32_0, %c0_i32_1 : i32, i32, i32, i32
  }
  func.func @transform_1(%arg0: i32) -> (i32, i32) {
    %c0_i32 = arith.constant 0 : i32
    %c0_i32_0 = arith.constant 0 : i32
    %c0_i32_1 = arith.constant 0 : i32
    return %c0_i32, %c0_i32_0 : i32, i32
  }
  func.func @transform_2(%arg0: i32) -> (i32, i32, i32) {
    %c0_i32 = arith.constant 0 : i32
    %c0_i32_0 = arith.constant 0 : i32
    %c0_i32_1 = arith.constant 0 : i32
    %c0_i32_2 = arith.constant 0 : i32
    return %c0_i32, %c0_i32_0, %c0_i32_1 : i32, i32, i32
  }
  func.func @transform_3(%arg0: i32) -> (i32, i32, i32, i32) {
    %c0_i32 = arith.constant 0 : i32
    %c0_i32_0 = arith.constant 0 : i32
    %c0_i32_1 = arith.constant 0 : i32
    %c0_i32_2 = arith.constant 0 : i32
    return %arg0, %c0_i32, %c0_i32_0, %c0_i32_1 : i32, i32, i32, i32
  }
}

</mosaic_0001>

<llo_original>
// kernel: simple_rsnet_forward.1
$region0: #{simple_rsnet_forward.1}
  #allocation0 [shape = 'u32[]', space=smem, size = 0x4, offset = 0x4, fixed_abs, tag = 'smem constant byte address 0x4 - core index']
  #allocation1 [shape = 'u32[72,128]{1,0:T(1,128)}', space=vmem, size = 0x9000, scoped, tag = 'internal scratch']
  %s0 = inlined_call_operand.vmem [shape: f32[2,20,16,128], index: 0, kind: input, shape index: {}]
  %s1 = inlined_call_operand.vmem [shape: f32[52,128], index: 1, kind: input, shape index: {}]
  %s2 = inlined_call_operand.vmem [shape: bf16[4,128,128], index: 2, kind: input, shape index: {}]
  %s3 = inlined_call_operand.vmem [shape: f32[2,16,16,128], index: 3, kind: output, shape index: {}]
  %s4 = sld [smem:[#allocation0]]
  $region45: #{simple_rsnet_forward.1} parent=0
    _
  %s6 = ssub.s32 1, %s4
  %s7 = scalar_select 0, %s6, %s4
  loop: start=0, step=1, limit=4
  $region2: #{simple_rsnet_forward.1} parent=0 // loop_pre_header
    _
  $region3: #{simple_rsnet_forward.1} parent=0 // loop_header
    %s9 = sphi 0, %s13
    %p10 = scmp.ge.s32.totalorder %s9, 4
    %s19 = sphi 0, %s21
    %s22 = sphi 0, %s19
    %s23 = sphi 0, %s22
    %s39 = sphi 0, %s23
    %s43 = sphi 0, %s43
    %s45 = sphi 0, %s43
    %s46 = sphi 0, %s45
    %s60 = sphi 0, %s46
    %s64 = sphi 0, %s64
    %s66 = sphi 0, %s64
    %s67 = sphi 0, %s66
    %s81 = sphi 0, %s67
    %s87 = sphi 0, %s89
    %s90 = sphi 0, %s87
    %s91 = sphi 0, %s90
    %s107 = sphi 0, %s91
  $region4: #{simple_rsnet_forward.1} parent=0 // loop_header_branch
    %12 = sbr.rel (%p10) target = $region8
  $region5: #{simple_rsnet_forward.1} parent=0 // loop_body
    %s14 = ssub.s32 %s9, 1
    %s15 = ssub.s32 %s9, 2
    %s16 = sadd.s32 %s9, 1
    %s17 = ssub.s32 %s9, %s16
    %p18 = scmp.eq.s32.totalorder %s17, 0
    %s20 = sadd.s32 %s19, 1
    %s21 = scalar_select %p18, %s19, %s20
    %p24 = pneg %p18
    %p25 = scmp.eq.s32.totalorder %s9, 1
    %p26 = por %p24, %p25
    %p27 = scmp.ne.s32.totalorder %s19, %s22
    %p28 = scmp.eq.s32.totalorder %s9, 0
    %p29 = por %p27, %p28
    %p30 = scmp.ne.s32.totalorder %s19, %s22
    %p31 = scmp.eq.s32.totalorder %s14, 1
    %p32 = por %p30, %p31
    %p33 = scmp.ne.s32.totalorder %s22, %s23
    %p34 = scmp.eq.s32.totalorder %s14, 0
    %p35 = por %p33, %p34
    %p36 = scmp.ne.s32.totalorder %s22, %s23
    %p37 = scmp.eq.s32.totalorder %s15, 1
    %p38 = por %p36, %p37
    %p40 = scmp.ne.s32.totalorder %s23, %s39
    %p41 = scmp.eq.s32.totalorder %s15, 0
    %p42 = por %p40, %p41
    %s44 = sadd.s32 %s43, 1
    %p47 = scmp.eq.s32.totalorder %s9, 1
    %p48 = scmp.ne.s32.totalorder %s43, %s45
    %p49 = scmp.eq.s32.totalorder %s9, 0
    %p50 = por %p48, %p49
    %p51 = scmp.ne.s32.totalorder %s43, %s45
    %p52 = scmp.eq.s32.totalorder %s14, 1
    %p53 = por %p51, %p52
    %p54 = scmp.ne.s32.totalorder %s45, %s46
    %p55 = scmp.eq.s32.totalorder %s14, 0
    %p56 = por %p54, %p55
    %p57 = scmp.ne.s32.totalorder %s45, %s46
    %p58 = scmp.eq.s32.totalorder %s15, 1
    %p59 = por %p57, %p58
    %p61 = scmp.ne.s32.totalorder %s46, %s60
    %p62 = scmp.eq.s32.totalorder %s15, 0
    %p63 = por %p61, %p62
    %s65 = sadd.s32 %s64, 1
    %p68 = scmp.eq.s32.totalorder %s9, 1
    %p69 = scmp.ne.s32.totalorder %s64, %s66
    %p70 = scmp.eq.s32.totalorder %s9, 0
    %p71 = por %p69, %p70
    %p72 = scmp.ne.s32.totalorder %s64, %s66
    %p73 = scmp.eq.s32.totalorder %s14, 1
    %p74 = por %p72, %p73
    %p75 = scmp.ne.s32.totalorder %s66, %s67
    %p76 = scmp.eq.s32.totalorder %s14, 0
    %p77 = por %p75, %p76
    %p78 = scmp.ne.s32.totalorder %s66, %s67
    %p79 = scmp.eq.s32.totalorder %s15, 1
    %p80 = por %p78, %p79
    %p82 = scmp.ne.s32.totalorder %s67, %s81
    %p83 = scmp.eq.s32.totalorder %s15, 0
    %p84 = por %p82, %p83
    %s85 = ssub.s32 %s9, %s16
    %p86 = scmp.eq.s32.totalorder %s85, 0
    %s88 = sadd.s32 %s87, 1
    %s89 = scalar_select %p86, %s87, %s88
    %p92 = pneg %p86
    %p93 = scmp.eq.s32.totalorder %s9, 1
    %p94 = por %p92, %p93
    %p95 = scmp.ne.s32.totalorder %s87, %s90
    %p96 = scmp.eq.s32.totalorder %s9, 0
    %p97 = por %p95, %p96
    %p98 = scmp.ne.s32.totalorder %s87, %s90
    %p99 = scmp.eq.s32.totalorder %s14, 1
    %p100 = por %p98, %p99
    %p101 = scmp.ne.s32.totalorder %s90, %s91
    %p102 = scmp.eq.s32.totalorder %s14, 0
    %p103 = por %p101, %p102
    %p104 = scmp.ne.s32.totalorder %s90, %s91
    %p105 = scmp.eq.s32.totalorder %s15, 1
    %p106 = por %p104, %p105
    %p108 = scmp.ne.s32.totalorder %s91, %s107
    %p109 = scmp.eq.s32.totalorder %s15, 0
    %p110 = por %p108, %p109
    %p111 = scmp.le.s32.totalorder 1, %s9
    %p112 = scmp.lt.s32.totalorder %s9, 3
    %p113 = pnand %p111, %p112
    %p114 = pneg %p113
    // Predicated region
    $region9: #{simple_rsnet_forward.1} parent=5 // pred_check
      _
    $region10: #{simple_rsnet_forward.1} parent=5 // pred_check_branch
      %116 = sbr.rel (%p113) target = $region12
    $region11: #{simple_rsnet_forward.1} parent=5 // pred_region
      %s117 = ssub.s32 %s9, 1
      // Predicated region
      $region13: #{simple_rsnet_forward.1} parent=11 // pred_check
        %p118 = pneg %p56
      $region14: #{simple_rsnet_forward.1} parent=11 // pred_check_branch
        %120 = sbr.rel (%p118) target = $region16
      $region15: #{simple_rsnet_forward.1} parent=11 // pred_region
        _
      $region16: #{simple_rsnet_forward.1} parent=11 // pred_fallthru
        _
      // Predicated region
      $region17: #{simple_rsnet_forward.1} parent=11 // pred_check
        %p121 = pneg %p77
      $region18: #{simple_rsnet_forward.1} parent=11 // pred_check_branch
        %123 = sbr.rel (%p121) target = $region20
      $region19: #{simple_rsnet_forward.1} parent=11 // pred_region
        _
      $region20: #{simple_rsnet_forward.1} parent=11 // pred_fallthru
        _
    $region12: #{simple_rsnet_forward.1} parent=5 // pred_fallthru
      _
    %p124 = scmp.lt.s32.totalorder %s9, 2
    // Predicated region
    $region21: #{simple_rsnet_forward.1} parent=5 // pred_check
      %p125 = pneg %p124
    $region22: #{simple_rsnet_forward.1} parent=5 // pred_check_branch
      %127 = sbr.rel (%p125) target = $region24
    $region23: #{simple_rsnet_forward.1} parent=5 // pred_region
      // Predicated region
      $region25: #{simple_rsnet_forward.1} parent=23 // pred_check
        %p128 = pneg %p29
      $region26: #{simple_rsnet_forward.1} parent=23 // pred_check_branch
        %130 = sbr.rel (%p128) target = $region28
      $region27: #{simple_rsnet_forward.1} parent=23 // pred_region
        %p131 = scmp.lt.s32.totalorder %s9, 1
        %s132 = scalar_select %p131, %s9, 1
        %s133 = smul.addr %s132, 40
        %s134 = smul.addr %s133, 8
        %s135 = scalar_lea.vmem %s0, %s134
      $region28: #{simple_rsnet_forward.1} parent=23 // pred_fallthru
        _
    $region24: #{simple_rsnet_forward.1} parent=5 // pred_fallthru
      _
    %p136 = scmp.le.s32.totalorder 1, %s9
    %p137 = scmp.lt.s32.totalorder %s9, 3
    %p138 = pnand %p136, %p137
    %p139 = pneg %p138
    // Predicated region
    $region29: #{simple_rsnet_forward.1} parent=5 // pred_check
      _
    $region30: #{simple_rsnet_forward.1} parent=5 // pred_check_branch
      %141 = sbr.rel (%p138) target = $region32
    $region31: #{simple_rsnet_forward.1} parent=5 // pred_region
      %s142 = ssub.s32 %s9, 1
      %p143 = scmp.lt.s32.totalorder %s14, 1
      %s144 = scalar_select %p143, %s14, 1
      %s145 = smul.addr %s144, 40
      %s146 = smul.addr %s145, 8
      %s147 = scalar_lea.vmem %s0, %s146
      %p148 = pneg %p35
      %p149 = pneg %p32
      %p150 = pneg %p56
      %p151 = pneg %p53
      %p152 = pneg %p77
      %p153 = pneg %p74
      %p154 = pneg %p103
      %p155 = pneg %p100
      %p156 = scmp.lt.s32.totalorder %s14, 1
      %s157 = scalar_select %p156, %s14, 1
      %s158 = smul.addr %s157, 32
      %s159 = smul.addr %s158, 8
      %s160 = scalar_lea.vmem %s3, %s159
      %p161 = scmp.lt.s32.totalorder %s14, 1
      %s162 = scalar_select %p161, %s14, 1
      %s163 = smul.addr %s162, 40
      %s164 = smul.addr %s163, 8
      %s165 = scalar_lea.vmem %s0, %s164
      %p166 = scmp.lt.s32.totalorder %s14, 1
      %s167 = scalar_select %p166, %s14, 1
      %s168 = smul.addr %s167, 32
      %s169 = smul.addr %s168, 8
      %s170 = scalar_lea.vmem %s3, %s169
      %v171 = vld [vmem:[%s165] sm:$0xff]
      %v172 = vld [vmem:[%s165 + $0x8] sm:$0xff]
      %v173 = vld [vmem:[%s165 + $0x10] sm:$0xff]
      %v174 = vld [vmem:[%s165 + $0x18] sm:$0xff]
      %v175 = vld [vmem:[%s165 + $0x20] sm:$0xff]
      %v176 = vld [vmem:[%s165 + $0x28] sm:$0xff]
      %v177 = vld [vmem:[%s165 + $0x30] sm:$0xff]
      %v178 = vld [vmem:[%s165 + $0x38] sm:$0xff]
      %v179 = vld [vmem:[%s165 + $0x40] sm:$0xff]
      %v180 = vld [vmem:[%s165 + $0x48] sm:$0xff]
      %v181 = vld [vmem:[%s165 + $0x50] sm:$0xff]
      %v182 = vld [vmem:[%s165 + $0x58] sm:$0xff]
      %v183 = vld [vmem:[%s165 + $0x60] sm:$0xff]
      %v184 = vld [vmem:[%s165 + $0x68] sm:$0xff]
      %v185 = vld [vmem:[%s165 + $0x70] sm:$0xff]
      %v186 = vld [vmem:[%s165 + $0x78] sm:$0xff]
      %v187 = vld [vmem:[%s165 + $0x80] sm:$0xff]
      %v188 = vld [vmem:[%s165 + $0x88] sm:$0xff]
      %v189 = vld [vmem:[%s165 + $0x90] sm:$0xff]
      %v190 = vld [vmem:[%s165 + $0x98] sm:$0xff]
      %v191 = vld [vmem:[%s165 + $0xa0] sm:$0xff]
      %v192 = vld [vmem:[%s165 + $0xa8] sm:$0xff]
      %v193 = vld [vmem:[%s165 + $0xb0] sm:$0xff]
      %v194 = vld [vmem:[%s165 + $0xb8] sm:$0xff]
      %v195 = vld [vmem:[%s165 + $0xc0] sm:$0xff]
      %v196 = vld [vmem:[%s165 + $0xc8] sm:$0xff]
      %v197 = vld [vmem:[%s165 + $0xd0] sm:$0xff]
      %v198 = vld [vmem:[%s165 + $0xd8] sm:$0xff]
      %v199 = vld [vmem:[%s165 + $0xe0] sm:$0xff]
      %v200 = vld [vmem:[%s165 + $0xe8] sm:$0xff]
      %v201 = vld [vmem:[%s165 + $0xf0] sm:$0xff]
      %v202 = vld [vmem:[%s165 + $0xf8] sm:$0xff]
      %s203 = scalar_lea.vmem %s165, 16
      %v204 = vld [vmem:[%s203] sm:$0xff]
      %v205 = vld [vmem:[%s203 + $0x8] sm:$0xff]
      %v206 = vld [vmem:[%s203 + $0x10] sm:$0xff]
      %v207 = vld [vmem:[%s203 + $0x18] sm:$0xff]
      %v208 = vld [vmem:[%s203 + $0x20] sm:$0xff]
      %v209 = vld [vmem:[%s203 + $0x28] sm:$0xff]
      %v210 = vld [vmem:[%s203 + $0x30] sm:$0xff]
      %v211 = vld [vmem:[%s203 + $0x38] sm:$0xff]
      %v212 = vld [vmem:[%s203 + $0x40] sm:$0xff]
      %v213 = vld [vmem:[%s203 + $0x48] sm:$0xff]
      %v214 = vld [vmem:[%s203 + $0x50] sm:$0xff]
      %v215 = vld [vmem:[%s203 + $0x58] sm:$0xff]
      %v216 = vld [vmem:[%s203 + $0x60] sm:$0xff]
      %v217 = vld [vmem:[%s203 + $0x68] sm:$0xff]
      %v218 = vld [vmem:[%s203 + $0x70] sm:$0xff]
      %v219 = vld [vmem:[%s203 + $0x78] sm:$0xff]
      %v220 = vld [vmem:[%s203 + $0x80] sm:$0xff]
      %v221 = vld [vmem:[%s203 + $0x88] sm:$0xff]
      %v222 = vld [vmem:[%s203 + $0x90] sm:$0xff]
      %v223 = vld [vmem:[%s203 + $0x98] sm:$0xff]
      %v224 = vld [vmem:[%s203 + $0xa0] sm:$0xff]
      %v225 = vld [vmem:[%s203 + $0xa8] sm:$0xff]
      %v226 = vld [vmem:[%s203 + $0xb0] sm:$0xff]
      %v227 = vld [vmem:[%s203 + $0xb8] sm:$0xff]
      %v228 = vld [vmem:[%s203 + $0xc0] sm:$0xff]
      %v229 = vld [vmem:[%s203 + $0xc8] sm:$0xff]
      %v230 = vld [vmem:[%s203 + $0xd0] sm:$0xff]
      %v231 = vld [vmem:[%s203 + $0xd8] sm:$0xff]
      %v232 = vld [vmem:[%s203 + $0xe0] sm:$0xff]
      %v233 = vld [vmem:[%s203 + $0xe8] sm:$0xff]
      %v234 = vld [vmem:[%s203 + $0xf0] sm:$0xff]
      %v235 = vld [vmem:[%s203 + $0xf8] sm:$0xff]
      %s236 = scalar_lea.vmem %s165, 32
      %v237 = vld [vmem:[%s236] sm:$0xff]
      %v238 = vld [vmem:[%s236 + $0x8] sm:$0xff]
      %v239 = vld [vmem:[%s236 + $0x10] sm:$0xff]
      %v240 = vld [vmem:[%s236 + $0x18] sm:$0xff]
      %v241 = vld [vmem:[%s236 + $0x20] sm:$0xff]
      %v242 = vld [vmem:[%s236 + $0x28] sm:$0xff]
      %v243 = vld [vmem:[%s236 + $0x30] sm:$0xff]
      %v244 = vld [vmem:[%s236 + $0x38] sm:$0xff]
      %v245 = vld [vmem:[%s236 + $0x40] sm:$0xff]
      %v246 = vld [vmem:[%s236 + $0x48] sm:$0xff]
      %v247 = vld [vmem:[%s236 + $0x50] sm:$0xff]
      %v248 = vld [vmem:[%s236 + $0x58] sm:$0xff]
      %v249 = vld [vmem:[%s236 + $0x60] sm:$0xff]
      %v250 = vld [vmem:[%s236 + $0x68] sm:$0xff]
      %v251 = vld [vmem:[%s236 + $0x70] sm:$0xff]
      %v252 = vld [vmem:[%s236 + $0x78] sm:$0xff]
      %v253 = vld [vmem:[%s236 + $0x80] sm:$0xff]
      %v254 = vld [vmem:[%s236 + $0x88] sm:$0xff]
      %v255 = vld [vmem:[%s236 + $0x90] sm:$0xff]
      %v256 = vld [vmem:[%s236 + $0x98] sm:$0xff]
      %v257 = vld [vmem:[%s236 + $0xa0] sm:$0xff]
      %v258 = vld [vmem:[%s236 + $0xa8] sm:$0xff]
      %v259 = vld [vmem:[%s236 + $0xb0] sm:$0xff]
      %v260 = vld [vmem:[%s236 + $0xb8] sm:$0xff]
      %v261 = vld [vmem:[%s236 + $0xc0] sm:$0xff]
      %v262 = vld [vmem:[%s236 + $0xc8] sm:$0xff]
      %v263 = vld [vmem:[%s236 + $0xd0] sm:$0xff]
      %v264 = vld [vmem:[%s236 + $0xd8] sm:$0xff]
      %v265 = vld [vmem:[%s236 + $0xe0] sm:$0xff]
      %v266 = vld [vmem:[%s236 + $0xe8] sm:$0xff]
      %v267 = vld [vmem:[%s236 + $0xf0] sm:$0xff]
      %v268 = vld [vmem:[%s236 + $0xf8] sm:$0xff]
      %s269 = scalar_lea.vmem %s165, 48
      %v270 = vld [vmem:[%s269] sm:$0xff]
      %v271 = vld [vmem:[%s269 + $0x8] sm:$0xff]
      %v272 = vld [vmem:[%s269 + $0x10] sm:$0xff]
      %v273 = vld [vmem:[%s269 + $0x18] sm:$0xff]
      %v274 = vld [vmem:[%s269 + $0x20] sm:$0xff]
      %v275 = vld [vmem:[%s269 + $0x28] sm:$0xff]
      %v276 = vld [vmem:[%s269 + $0x30] sm:$0xff]
      %v277 = vld [vmem:[%s269 + $0x38] sm:$0xff]
      %v278 = vld [vmem:[%s269 + $0x40] sm:$0xff]
      %v279 = vld [vmem:[%s269 + $0x48] sm:$0xff]
      %v280 = vld [vmem:[%s269 + $0x50] sm:$0xff]
      %v281 = vld [vmem:[%s269 + $0x58] sm:$0xff]
      %v282 = vld [vmem:[%s269 + $0x60] sm:$0xff]
      %v283 = vld [vmem:[%s269 + $0x68] sm:$0xff]
      %v284 = vld [vmem:[%s269 + $0x70] sm:$0xff]
      %v285 = vld [vmem:[%s269 + $0x78] sm:$0xff]
      %v286 = vld [vmem:[%s269 + $0x80] sm:$0xff]
      %v287 = vld [vmem:[%s269 + $0x88] sm:$0xff]
      %v288 = vld [vmem:[%s269 + $0x90] sm:$0xff]
      %v289 = vld [vmem:[%s269 + $0x98] sm:$0xff]
      %v290 = vld [vmem:[%s269 + $0xa0] sm:$0xff]
      %v291 = vld [vmem:[%s269 + $0xa8] sm:$0xff]
      %v292 = vld [vmem:[%s269 + $0xb0] sm:$0xff]
      %v293 = vld [vmem:[%s269 + $0xb8] sm:$0xff]
      %v294 = vld [vmem:[%s269 + $0xc0] sm:$0xff]
      %v295 = vld [vmem:[%s269 + $0xc8] sm:$0xff]
      %v296 = vld [vmem:[%s269 + $0xd0] sm:$0xff]
      %v297 = vld [vmem:[%s269 + $0xd8] sm:$0xff]
      %v298 = vld [vmem:[%s269 + $0xe0] sm:$0xff]
      %v299 = vld [vmem:[%s269 + $0xe8] sm:$0xff]
      %v300 = vld [vmem:[%s269 + $0xf0] sm:$0xff]
      %v301 = vld [vmem:[%s269 + $0xf8] sm:$0xff]
      %s302 = scalar_lea.vmem %s165, 64
      %v303 = vld [vmem:[%s302] sm:$0xff]
      %v304 = vld [vmem:[%s302 + $0x8] sm:$0xff]
      %v305 = vld [vmem:[%s302 + $0x10] sm:$0xff]
      %v306 = vld [vmem:[%s302 + $0x18] sm:$0xff]
      %v307 = vld [vmem:[%s302 + $0x20] sm:$0xff]
      %v308 = vld [vmem:[%s302 + $0x28] sm:$0xff]
      %v309 = vld [vmem:[%s302 + $0x30] sm:$0xff]
      %v310 = vld [vmem:[%s302 + $0x38] sm:$0xff]
      %v311 = vld [vmem:[%s302 + $0x40] sm:$0xff]
      %v312 = vld [vmem:[%s302 + $0x48] sm:$0xff]
      %v313 = vld [vmem:[%s302 + $0x50] sm:$0xff]
      %v314 = vld [vmem:[%s302 + $0x58] sm:$0xff]
      %v315 = vld [vmem:[%s302 + $0x60] sm:$0xff]
      %v316 = vld [vmem:[%s302 + $0x68] sm:$0xff]
      %v317 = vld [vmem:[%s302 + $0x70] sm:$0xff]
      %v318 = vld [vmem:[%s302 + $0x78] sm:$0xff]
      %v319 = vld [vmem:[%s302 + $0x80] sm:$0xff]
      %v320 = vld [vmem:[%s302 + $0x88] sm:$0xff]
      %v321 = vld [vmem:[%s302 + $0x90] sm:$0xff]
      %v322 = vld [vmem:[%s302 + $0x98] sm:$0xff]
      %v323 = vld [vmem:[%s302 + $0xa0] sm:$0xff]
      %v324 = vld [vmem:[%s302 + $0xa8] sm:$0xff]
      %v325 = vld [vmem:[%s302 + $0xb0] sm:$0xff]
      %v326 = vld [vmem:[%s302 + $0xb8] sm:$0xff]
      %v327 = vld [vmem:[%s302 + $0xc0] sm:$0xff]
      %v328 = vld [vmem:[%s302 + $0xc8] sm:$0xff]
      %v329 = vld [vmem:[%s302 + $0xd0] sm:$0xff]
      %v330 = vld [vmem:[%s302 + $0xd8] sm:$0xff]
      %v331 = vld [vmem:[%s302 + $0xe0] sm:$0xff]
      %v332 = vld [vmem:[%s302 + $0xe8] sm:$0xff]
      %v333 = vld [vmem:[%s302 + $0xf0] sm:$0xff]
      %v334 = vld [vmem:[%s302 + $0xf8] sm:$0xff]
      %v335 = vld [vmem:[%s1] sm:$0x1]
      %v336 = vperm.slane %v335, 0
      %v337 = vmul.f32 %v171, %v336
      %v338 = vmul.f32 %v172, %v336
      %v339 = vmul.f32 %v173, %v336
      %v340 = vmul.f32 %v174, %v336
      %v341 = vmul.f32 %v175, %v336
      %v342 = vmul.f32 %v176, %v336
      %v343 = vmul.f32 %v177, %v336
      %v344 = vmul.f32 %v178, %v336
      %v345 = vmul.f32 %v179, %v336
      %v346 = vmul.f32 %v180, %v336
      %v347 = vmul.f32 %v181, %v336
      %v348 = vmul.f32 %v182, %v336
      %v349 = vmul.f32 %v183, %v336
      %v350 = vmul.f32 %v184, %v336
      %v351 = vmul.f32 %v185, %v336
      %v352 = vmul.f32 %v186, %v336
      %v353 = vmul.f32 %v187, %v336
      %v354 = vmul.f32 %v188, %v336
      %v355 = vmul.f32 %v189, %v336
      %v356 = vmul.f32 %v190, %v336
      %v357 = vmul.f32 %v191, %v336
      %v358 = vmul.f32 %v192, %v336
      %v359 = vmul.f32 %v193, %v336
      %v360 = vmul.f32 %v194, %v336
      %v361 = vmul.f32 %v195, %v336
      %v362 = vmul.f32 %v196, %v336
      %v363 = vmul.f32 %v197, %v336
      %v364 = vmul.f32 %v198, %v336
      %v365 = vmul.f32 %v199, %v336
      %v366 = vmul.f32 %v200, %v336
      %v367 = vmul.f32 %v201, %v336
      %v368 = vmul.f32 %v202, %v336
      %v369 = vld [vmem:[%s1 + $0x5] sm:$0x1]
      %v370 = vperm.slane %v369, 0
      %v371 = vmul.f32 %v204, %v370
      %v372 = vmul.f32 %v205, %v370
      %v373 = vmul.f32 %v206, %v370
      %v374 = vmul.f32 %v207, %v370
      %v375 = vmul.f32 %v208, %v370
      %v376 = vmul.f32 %v209, %v370
      %v377 = vmul.f32 %v210, %v370
      %v378 = vmul.f32 %v211, %v370
      %v379 = vmul.f32 %v212, %v370
      %v380 = vmul.f32 %v213, %v370
      %v381 = vmul.f32 %v214, %v370
      %v382 = vmul.f32 %v215, %v370
      %v383 = vmul.f32 %v216, %v370
      %v384 = vmul.f32 %v217, %v370
      %v385 = vmul.f32 %v218, %v370
      %v386 = vmul.f32 %v219, %v370
      %v387 = vmul.f32 %v220, %v370
      %v388 = vmul.f32 %v221, %v370
      %v389 = vmul.f32 %v222, %v370
      %v390 = vmul.f32 %v223, %v370
      %v391 = vmul.f32 %v224, %v370
      %v392 = vmul.f32 %v225, %v370
      %v393 = vmul.f32 %v226, %v370
      %v394 = vmul.f32 %v227, %v370
      %v395 = vmul.f32 %v228, %v370
      %v396 = vmul.f32 %v229, %v370
      %v397 = vmul.f32 %v230, %v370
      %v398 = vmul.f32 %v231, %v370
      %v399 = vmul.f32 %v232, %v370
      %v400 = vmul.f32 %v233, %v370
      %v401 = vmul.f32 %v234, %v370
      %v402 = vmul.f32 %v235, %v370
      %v403 = vadd.f32 %v337, %v371
      %v404 = vadd.f32 %v338, %v372
      %v405 = vadd.f32 %v339, %v373
      %v406 = vadd.f32 %v340, %v374
      %v407 = vadd.f32 %v341, %v375
      %v408 = vadd.f32 %v342, %v376
      %v409 = vadd.f32 %v343, %v377
      %v410 = vadd.f32 %v344, %v378
      %v411 = vadd.f32 %v345, %v379
      %v412 = vadd.f32 %v346, %v380
      %v413 = vadd.f32 %v347, %v381
      %v414 = vadd.f32 %v348, %v382
      %v415 = vadd.f32 %v349, %v383
      %v416 = vadd.f32 %v350, %v384
      %v417 = vadd.f32 %v351, %v385
      %v418 = vadd.f32 %v352, %v386
      %v419 = vadd.f32 %v353, %v387
      %v420 = vadd.f32 %v354, %v388
      %v421 = vadd.f32 %v355, %v389
      %v422 = vadd.f32 %v356, %v390
      %v423 = vadd.f32 %v357, %v391
      %v424 = vadd.f32 %v358, %v392
      %v425 = vadd.f32 %v359, %v393
      %v426 = vadd.f32 %v360, %v394
      %v427 = vadd.f32 %v361, %v395
      %v428 = vadd.f32 %v362, %v396
      %v429 = vadd.f32 %v363, %v397
      %v430 = vadd.f32 %v364, %v398
      %v431 = vadd.f32 %v365, %v399
      %v432 = vadd.f32 %v366, %v400
      %v433 = vadd.f32 %v367, %v401
      %v434 = vadd.f32 %v368, %v402
      %v435 = vld [vmem:[%s1 + $0xa] sm:$0x1]
      %v436 = vperm.slane %v435, 0
      %v437 = vmul.f32 %v237, %v436
      %v438 = vmul.f32 %v238, %v436
      %v439 = vmul.f32 %v239, %v436
      %v440 = vmul.f32 %v240, %v436
      %v441 = vmul.f32 %v241, %v436
      %v442 = vmul.f32 %v242, %v436
      %v443 = vmul.f32 %v243, %v436
      %v444 = vmul.f32 %v244, %v436
      %v445 = vmul.f32 %v245, %v436
      %v446 = vmul.f32 %v246, %v436
      %v447 = vmul.f32 %v247, %v436
      %v448 = vmul.f32 %v248, %v436
      %v449 = vmul.f32 %v249, %v436
      %v450 = vmul.f32 %v250, %v436
      %v451 = vmul.f32 %v251, %v436
      %v452 = vmul.f32 %v252, %v436
      %v453 = vmul.f32 %v253, %v436
      %v454 = vmul.f32 %v254, %v436
      %v455 = vmul.f32 %v255, %v436
      %v456 = vmul.f32 %v256, %v436
      %v457 = vmul.f32 %v257, %v436
      %v458 = vmul.f32 %v258, %v436
      %v459 = vmul.f32 %v259, %v436
      %v460 = vmul.f32 %v260, %v436
      %v461 = vmul.f32 %v261, %v436
      %v462 = vmul.f32 %v262, %v436
      %v463 = vmul.f32 %v263, %v436
      %v464 = vmul.f32 %v264, %v436
      %v465 = vmul.f32 %v265, %v436
      %v466 = vmul.f32 %v266, %v436
      %v467 = vmul.f32 %v267, %v436
      %v468 = vmul.f32 %v268, %v436
      %v469 = vadd.f32 %v403, %v437
      %v470 = vadd.f32 %v404, %v438
      %v471 = vadd.f32 %v405, %v439
      %v472 = vadd.f32 %v406, %v440
      %v473 = vadd.f32 %v407, %v441
      %v474 = vadd.f32 %v408, %v442
      %v475 = vadd.f32 %v409, %v443
      %v476 = vadd.f32 %v410, %v444
      %v477 = vadd.f32 %v411, %v445
      %v478 = vadd.f32 %v412, %v446
      %v479 = vadd.f32 %v413, %v447
      %v480 = vadd.f32 %v414, %v448
      %v481 = vadd.f32 %v415, %v449
      %v482 = vadd.f32 %v416, %v450
      %v483 = vadd.f32 %v417, %v451
      %v484 = vadd.f32 %v418, %v452
      %v485 = vadd.f32 %v419, %v453
      %v486 = vadd.f32 %v420, %v454
      %v487 = vadd.f32 %v421, %v455
      %v488 = vadd.f32 %v422, %v456
      %v489 = vadd.f32 %v423, %v457
      %v490 = vadd.f32 %v424, %v458
      %v491 = vadd.f32 %v425, %v459
      %v492 = vadd.f32 %v426, %v460
      %v493 = vadd.f32 %v427, %v461
      %v494 = vadd.f32 %v428, %v462
      %v495 = vadd.f32 %v429, %v463
      %v496 = vadd.f32 %v430, %v464
      %v497 = vadd.f32 %v431, %v465
      %v498 = vadd.f32 %v432, %v466
      %v499 = vadd.f32 %v433, %v467
      %v500 = vadd.f32 %v434, %v468
      %v501 = vld [vmem:[%s1 + $0xf] sm:$0x1]
      %v502 = vperm.slane %v501, 0
      %v503 = vmul.f32 %v270, %v502
      %v504 = vmul.f32 %v271, %v502
      %v505 = vmul.f32 %v272, %v502
      %v506 = vmul.f32 %v273, %v502
      %v507 = vmul.f32 %v274, %v502
      %v508 = vmul.f32 %v275, %v502
      %v509 = vmul.f32 %v276, %v502
      %v510 = vmul.f32 %v277, %v502
      %v511 = vmul.f32 %v278, %v502
      %v512 = vmul.f32 %v279, %v502
      %v513 = vmul.f32 %v280, %v502
      %v514 = vmul.f32 %v281, %v502
      %v515 = vmul.f32 %v282, %v502
      %v516 = vmul.f32 %v283, %v502
      %v517 = vmul.f32 %v284, %v502
      %v518 = vmul.f32 %v285, %v502
      %v519 = vmul.f32 %v286, %v502
      %v520 = vmul.f32 %v287, %v502
      %v521 = vmul.f32 %v288, %v502
      %v522 = vmul.f32 %v289, %v502
      %v523 = vmul.f32 %v290, %v502
      %v524 = vmul.f32 %v291, %v502
      %v525 = vmul.f32 %v292, %v502
      %v526 = vmul.f32 %v293, %v502
      %v527 = vmul.f32 %v294, %v502
      %v528 = vmul.f32 %v295, %v502
      %v529 = vmul.f32 %v296, %v502
      %v530 = vmul.f32 %v297, %v502
      %v531 = vmul.f32 %v298, %v502
      %v532 = vmul.f32 %v299, %v502
      %v533 = vmul.f32 %v300, %v502
      %v534 = vmul.f32 %v301, %v502
      %v535 = vadd.f32 %v469, %v503
      %v536 = vadd.f32 %v470, %v504
      %v537 = vadd.f32 %v471, %v505
      %v538 = vadd.f32 %v472, %v506
      %v539 = vadd.f32 %v473, %v507
      %v540 = vadd.f32 %v474, %v508
      %v541 = vadd.f32 %v475, %v509
      %v542 = vadd.f32 %v476, %v510
      %v543 = vadd.f32 %v477, %v511
      %v544 = vadd.f32 %v478, %v512
      %v545 = vadd.f32 %v479, %v513
      %v546 = vadd.f32 %v480, %v514
      %v547 = vadd.f32 %v481, %v515
      %v548 = vadd.f32 %v482, %v516
      %v549 = vadd.f32 %v483, %v517
      %v550 = vadd.f32 %v484, %v518
      %v551 = vadd.f32 %v485, %v519
      %v552 = vadd.f32 %v486, %v520
      %v553 = vadd.f32 %v487, %v521
      %v554 = vadd.f32 %v488, %v522
      %v555 = vadd.f32 %v489, %v523
      %v556 = vadd.f32 %v490, %v524
      %v557 = vadd.f32 %v491, %v525
      %v558 = vadd.f32 %v492, %v526
      %v559 = vadd.f32 %v493, %v527
      %v560 = vadd.f32 %v494, %v528
      %v561 = vadd.f32 %v495, %v529
      %v562 = vadd.f32 %v496, %v530
      %v563 = vadd.f32 %v497, %v531
      %v564 = vadd.f32 %v498, %v532
      %v565 = vadd.f32 %v499, %v533
      %v566 = vadd.f32 %v500, %v534
      %v567 = vld [vmem:[%s1 + $0x14] sm:$0x1]
      %v568 = vperm.slane %v567, 0
      %v569 = vmul.f32 %v303, %v568
      %v570 = vmul.f32 %v304, %v568
      %v571 = vmul.f32 %v305, %v568
      %v572 = vmul.f32 %v306, %v568
      %v573 = vmul.f32 %v307, %v568
      %v574 = vmul.f32 %v308, %v568
      %v575 = vmul.f32 %v309, %v568
      %v576 = vmul.f32 %v310, %v568
      %v577 = vmul.f32 %v311, %v568
      %v578 = vmul.f32 %v312, %v568
      %v579 = vmul.f32 %v313, %v568
      %v580 = vmul.f32 %v314, %v568
      %v581 = vmul.f32 %v315, %v568
      %v582 = vmul.f32 %v316, %v568
      %v583 = vmul.f32 %v317, %v568
      %v584 = vmul.f32 %v318, %v568
      %v585 = vmul.f32 %v319, %v568
      %v586 = vmul.f32 %v320, %v568
      %v587 = vmul.f32 %v321, %v568
      %v588 = vmul.f32 %v322, %v568
      %v589 = vmul.f32 %v323, %v568
      %v590 = vmul.f32 %v324, %v568
      %v591 = vmul.f32 %v325, %v568
      %v592 = vmul.f32 %v326, %v568
      %v593 = vmul.f32 %v327, %v568
      %v594 = vmul.f32 %v328, %v568
      %v595 = vmul.f32 %v329, %v568
      %v596 = vmul.f32 %v330, %v568
      %v597 = vmul.f32 %v331, %v568
      %v598 = vmul.f32 %v332, %v568
      %v599 = vmul.f32 %v333, %v568
      %v600 = vmul.f32 %v334, %v568
      %v601 = vadd.f32 %v535, %v569
      %v602 = vadd.f32 %v536, %v570
      %v603 = vadd.f32 %v537, %v571
      %v604 = vadd.f32 %v538, %v572
      %v605 = vadd.f32 %v539, %v573
      %v606 = vadd.f32 %v540, %v574
      %v607 = vadd.f32 %v541, %v575
      %v608 = vadd.f32 %v542, %v576
      %v609 = vadd.f32 %v543, %v577
      %v610 = vadd.f32 %v544, %v578
      %v611 = vadd.f32 %v545, %v579
      %v612 = vadd.f32 %v546, %v580
      %v613 = vadd.f32 %v547, %v581
      %v614 = vadd.f32 %v548, %v582
      %v615 = vadd.f32 %v549, %v583
      %v616 = vadd.f32 %v550, %v584
      %v617 = vadd.f32 %v551, %v585
      %v618 = vadd.f32 %v552, %v586
      %v619 = vadd.f32 %v553, %v587
      %v620 = vadd.f32 %v554, %v588
      %v621 = vadd.f32 %v555, %v589
      %v622 = vadd.f32 %v556, %v590
      %v623 = vadd.f32 %v557, %v591
      %v624 = vadd.f32 %v558, %v592
      %v625 = vadd.f32 %v559, %v593
      %v626 = vadd.f32 %v560, %v594
      %v627 = vadd.f32 %v561, %v595
      %v628 = vadd.f32 %v562, %v596
      %v629 = vadd.f32 %v563, %v597
      %v630 = vadd.f32 %v564, %v598
      %v631 = vadd.f32 %v565, %v599
      %v632 = vadd.f32 %v566, %v600
      %v633 = vrot.slane %v601, 6
      %v634 = vrot.slane %v602, 6
      %v635 = vrot.slane %v603, 6
      %v636 = vrot.slane %v604, 6
      %v637 = vrot.slane %v605, 6
      %v638 = vrot.slane %v606, 6
      %v639 = vrot.slane %v607, 6
      %v640 = vrot.slane %v608, 6
      %v641 = vrot.slane %v609, 6
      %v642 = vrot.slane %v610, 6
      %v643 = vrot.slane %v611, 6
      %v644 = vrot.slane %v612, 6
      %v645 = vrot.slane %v613, 6
      %v646 = vrot.slane %v614, 6
      %v647 = vrot.slane %v615, 6
      %v648 = vrot.slane %v616, 6
      %v649 = vrot.slane %v617, 6
      %v650 = vrot.slane %v618, 6
      %v651 = vrot.slane %v619, 6
      %v652 = vrot.slane %v620, 6
      %v653 = vrot.slane %v621, 6
      %v654 = vrot.slane %v622, 6
      %v655 = vrot.slane %v623, 6
      %v656 = vrot.slane %v624, 6
      %v657 = vrot.slane %v625, 6
      %v658 = vrot.slane %v626, 6
      %v659 = vrot.slane %v627, 6
      %v660 = vrot.slane %v628, 6
      %v661 = vrot.slane %v629, 6
      %v662 = vrot.slane %v630, 6
      %v663 = vrot.slane %v631, 6
      %v664 = vrot.slane %v632, 6
      %v665 = vlaneseq
      %v666 = vshrl.u32 %v665, 7
      %vm667 = vcmp.lt.s32.totalorder %v666, 2
      %v668 = vsel %vm667, %v663, %v664
      %v669 = vsel %vm667, %v662, %v663
      %v670 = vsel %vm667, %v661, %v662
      %v671 = vsel %vm667, %v660, %v661
      %v672 = vsel %vm667, %v659, %v660
      %v673 = vsel %vm667, %v658, %v659
      %v674 = vsel %vm667, %v657, %v658
      %v675 = vsel %vm667, %v656, %v657
      %v676 = vsel %vm667, %v655, %v656
      %v677 = vsel %vm667, %v654, %v655
      %v678 = vsel %vm667, %v653, %v654
      %v679 = vsel %vm667, %v652, %v653
      %v680 = vsel %vm667, %v651, %v652
      %v681 = vsel %vm667, %v650, %v651
      %v682 = vsel %vm667, %v649, %v650
      %v683 = vsel %vm667, %v648, %v649
      %v684 = vsel %vm667, %v647, %v648
      %v685 = vsel %vm667, %v646, %v647
      %v686 = vsel %vm667, %v645, %v646
      %v687 = vsel %vm667, %v644, %v645
      %v688 = vsel %vm667, %v643, %v644
      %v689 = vsel %vm667, %v642, %v643
      %v690 = vsel %vm667, %v641, %v642
      %v691 = vsel %vm667, %v640, %v641
      %v692 = vsel %vm667, %v639, %v640
      %v693 = vsel %vm667, %v638, %v639
      %v694 = vsel %vm667, %v637, %v638
      %v695 = vsel %vm667, %v636, %v637
      %v696 = vsel %vm667, %v635, %v636
      %v697 = vsel %vm667, %v634, %v635
      %v698 = vsel %vm667, %v633, %v634
      %v699 = vsel %vm667, %v664, %v633
      %v700 = vadd.s32 %v666, 8
      %vm701 = vcmp.ge.s32.totalorder %v666, 2
      %vm702 = vcmp.ge.s32.totalorder %v700, 2
      %v703 = vsel %vm701, 1, 0
      %v704 = vsel %vm702, 1, 0
      %vm705 = vcmp.eq.s32.totalorder %v703, 1
      %vm706 = vcmp.eq.s32.totalorder %v704, 1
      %v707 = vsel %vm705, %v699, 0.0
      %v708 = vsel %vm706, %v698, 0.0
      %v709 = vsel %vm705, %v697, 0.0
      %v710 = vsel %vm706, %v696, 0.0
      %v711 = vsel %vm705, %v695, 0.0
      %v712 = vsel %vm706, %v694, 0.0
      %v713 = vsel %vm705, %v693, 0.0
      %v714 = vsel %vm706, %v692, 0.0
      %v715 = vsel %vm705, %v691, 0.0
      %v716 = vsel %vm706, %v690, 0.0
      %v717 = vsel %vm705, %v689, 0.0
      %v718 = vsel %vm706, %v688, 0.0
      %v719 = vsel %vm705, %v687, 0.0
      %v720 = vsel %vm706, %v686, 0.0
      %v721 = vsel %vm705, %v685, 0.0
      %v722 = vsel %vm706, %v684, 0.0
      %v723 = vsel %vm705, %v683, 0.0
      %v724 = vsel %vm706, %v682, 0.0
      %v725 = vsel %vm705, %v681, 0.0
      %v726 = vsel %vm706, %v680, 0.0
      %v727 = vsel %vm705, %v679, 0.0
      %v728 = vsel %vm706, %v678, 0.0
      %v729 = vsel %vm705, %v677, 0.0
      %v730 = vsel %vm706, %v676, 0.0
      %v731 = vsel %vm705, %v675, 0.0
      %v732 = vsel %vm706, %v674, 0.0
      %v733 = vsel %vm705, %v673, 0.0
      %v734 = vsel %vm706, %v672, 0.0
      %v735 = vsel %vm705, %v671, 0.0
      %v736 = vsel %vm706, %v670, 0.0
      %v737 = vsel %vm705, %v669, 0.0
      %v738 = vsel %vm706, %v668, 0.0
      %v739 = vld [vmem:[%s1 + $0x1] sm:$0x1]
      %v740 = vperm.slane %v739, 0
      %v741 = vmul.f32 %v171, %v740
      %v742 = vmul.f32 %v172, %v740
      %v743 = vmul.f32 %v173, %v740
      %v744 = vmul.f32 %v174, %v740
      %v745 = vmul.f32 %v175, %v740
      %v746 = vmul.f32 %v176, %v740
      %v747 = vmul.f32 %v177, %v740
      %v748 = vmul.f32 %v178, %v740
      %v749 = vmul.f32 %v179, %v740
      %v750 = vmul.f32 %v180, %v740
      %v751 = vmul.f32 %v181, %v740
      %v752 = vmul.f32 %v182, %v740
      %v753 = vmul.f32 %v183, %v740
      %v754 = vmul.f32 %v184, %v740
      %v755 = vmul.f32 %v185, %v740
      %v756 = vmul.f32 %v186, %v740
      %v757 = vmul.f32 %v187, %v740
      %v758 = vmul.f32 %v188, %v740
      %v759 = vmul.f32 %v189, %v740
      %v760 = vmul.f32 %v190, %v740
      %v761 = vmul.f32 %v191, %v740
      %v762 = vmul.f32 %v192, %v740
      %v763 = vmul.f32 %v193, %v740
      %v764 = vmul.f32 %v194, %v740
      %v765 = vmul.f32 %v195, %v740
      %v766 = vmul.f32 %v196, %v740
      %v767 = vmul.f32 %v197, %v740
      %v768 = vmul.f32 %v198, %v740
      %v769 = vmul.f32 %v199, %v740
      %v770 = vmul.f32 %v200, %v740
      %v771 = vmul.f32 %v201, %v740
      %v772 = vmul.f32 %v202, %v740
      %v773 = vld [vmem:[%s1 + $0x6] sm:$0x1]
      %v774 = vperm.slane %v773, 0
      %v775 = vmul.f32 %v204, %v774
      %v776 = vmul.f32 %v205, %v774
      %v777 = vmul.f32 %v206, %v774
      %v778 = vmul.f32 %v207, %v774
      %v779 = vmul.f32 %v208, %v774
      %v780 = vmul.f32 %v209, %v774
      %v781 = vmul.f32 %v210, %v774
      %v782 = vmul.f32 %v211, %v774
      %v783 = vmul.f32 %v212, %v774
      %v784 = vmul.f32 %v213, %v774
      %v785 = vmul.f32 %v214, %v774
      %v786 = vmul.f32 %v215, %v774
      %v787 = vmul.f32 %v216, %v774
      %v788 = vmul.f32 %v217, %v774
      %v789 = vmul.f32 %v218, %v774
      %v790 = vmul.f32 %v219, %v774
      %v791 = vmul.f32 %v220, %v774
      %v792 = vmul.f32 %v221, %v774
      %v793 = vmul.f32 %v222, %v774
      %v794 = vmul.f32 %v223, %v774
      %v795 = vmul.f32 %v224, %v774
      %v796 = vmul.f32 %v225, %v774
      %v797 = vmul.f32 %v226, %v774
      %v798 = vmul.f32 %v227, %v774
      %v799 = vmul.f32 %v228, %v774
      %v800 = vmul.f32 %v229, %v774
      %v801 = vmul.f32 %v230, %v774
      %v802 = vmul.f32 %v231, %v774
      %v803 = vmul.f32 %v232, %v774
      %v804 = vmul.f32 %v233, %v774
      %v805 = vmul.f32 %v234, %v774
      %v806 = vmul.f32 %v235, %v774
      %v807 = vadd.f32 %v741, %v775
      %v808 = vadd.f32 %v742, %v776
      %v809 = vadd.f32 %v743, %v777
      %v810 = vadd.f32 %v744, %v778
      %v811 = vadd.f32 %v745, %v779
      %v812 = vadd.f32 %v746, %v780
      %v813 = vadd.f32 %v747, %v781
      %v814 = vadd.f32 %v748, %v782
      %v815 = vadd.f32 %v749, %v783
      %v816 = vadd.f32 %v750, %v784
      %v817 = vadd.f32 %v751, %v785
      %v818 = vadd.f32 %v752, %v786
      %v819 = vadd.f32 %v753, %v787
      %v820 = vadd.f32 %v754, %v788
      %v821 = vadd.f32 %v755, %v789
      %v822 = vadd.f32 %v756, %v790
      %v823 = vadd.f32 %v757, %v791
      %v824 = vadd.f32 %v758, %v792
      %v825 = vadd.f32 %v759, %v793
      %v826 = vadd.f32 %v760, %v794
      %v827 = vadd.f32 %v761, %v795
      %v828 = vadd.f32 %v762, %v796
      %v829 = vadd.f32 %v763, %v797
      %v830 = vadd.f32 %v764, %v798
      %v831 = vadd.f32 %v765, %v799
      %v832 = vadd.f32 %v766, %v800
      %v833 = vadd.f32 %v767, %v801
      %v834 = vadd.f32 %v768, %v802
      %v835 = vadd.f32 %v769, %v803
      %v836 = vadd.f32 %v770, %v804
      %v837 = vadd.f32 %v771, %v805
      %v838 = vadd.f32 %v772, %v806
      %v839 = vld [vmem:[%s1 + $0xb] sm:$0x1]
      %v840 = vperm.slane %v839, 0
      %v841 = vmul.f32 %v237, %v840
      %v842 = vmul.f32 %v238, %v840
      %v843 = vmul.f32 %v239, %v840
      %v844 = vmul.f32 %v240, %v840
      %v845 = vmul.f32 %v241, %v840
      %v846 = vmul.f32 %v242, %v840
      %v847 = vmul.f32 %v243, %v840
      %v848 = vmul.f32 %v244, %v840
      %v849 = vmul.f32 %v245, %v840
      %v850 = vmul.f32 %v246, %v840
      %v851 = vmul.f32 %v247, %v840
      %v852 = vmul.f32 %v248, %v840
      %v853 = vmul.f32 %v249, %v840
      %v854 = vmul.f32 %v250, %v840
      %v855 = vmul.f32 %v251, %v840
      %v856 = vmul.f32 %v252, %v840
      %v857 = vmul.f32 %v253, %v840
      %v858 = vmul.f32 %v254, %v840
      %v859 = vmul.f32 %v255, %v840
      %v860 = vmul.f32 %v256, %v840
      %v861 = vmul.f32 %v257, %v840
      %v862 = vmul.f32 %v258, %v840
      %v863 = vmul.f32 %v259, %v840
      %v864 = vmul.f32 %v260, %v840
      %v865 = vmul.f32 %v261, %v840
      %v866 = vmul.f32 %v262, %v840
      %v867 = vmul.f32 %v263, %v840
      %v868 = vmul.f32 %v264, %v840
      %v869 = vmul.f32 %v265, %v840
      %v870 = vmul.f32 %v266, %v840
      %v871 = vmul.f32 %v267, %v840
      %v872 = vmul.f32 %v268, %v840
      %v873 = vadd.f32 %v807, %v841
      %v874 = vadd.f32 %v808, %v842
      %v875 = vadd.f32 %v809, %v843
      %v876 = vadd.f32 %v810, %v844
      %v877 = vadd.f32 %v811, %v845
      %v878 = vadd.f32 %v812, %v846
      %v879 = vadd.f32 %v813, %v847
      %v880 = vadd.f32 %v814, %v848
      %v881 = vadd.f32 %v815, %v849
      %v882 = vadd.f32 %v816, %v850
      %v883 = vadd.f32 %v817, %v851
      %v884 = vadd.f32 %v818, %v852
      %v885 = vadd.f32 %v819, %v853
      %v886 = vadd.f32 %v820, %v854
      %v887 = vadd.f32 %v821, %v855
      %v888 = vadd.f32 %v822, %v856
      %v889 = vadd.f32 %v823, %v857
      %v890 = vadd.f32 %v824, %v858
      %v891 = vadd.f32 %v825, %v859
      %v892 = vadd.f32 %v826, %v860
      %v893 = vadd.f32 %v827, %v861
      %v894 = vadd.f32 %v828, %v862
      %v895 = vadd.f32 %v829, %v863
      %v896 = vadd.f32 %v830, %v864
      %v897 = vadd.f32 %v831, %v865
      %v898 = vadd.f32 %v832, %v866
      %v899 = vadd.f32 %v833, %v867
      %v900 = vadd.f32 %v834, %v868
      %v901 = vadd.f32 %v835, %v869
      %v902 = vadd.f32 %v836, %v870
      %v903 = vadd.f32 %v837, %v871
      %v904 = vadd.f32 %v838, %v872
      %v905 = vld [vmem:[%s1 + $0x10] sm:$0x1]
      %v906 = vperm.slane %v905, 0
      %v907 = vmul.f32 %v270, %v906
      %v908 = vmul.f32 %v271, %v906
      %v909 = vmul.f32 %v272, %v906
      %v910 = vmul.f32 %v273, %v906
      %v911 = vmul.f32 %v274, %v906
      %v912 = vmul.f32 %v275, %v906
      %v913 = vmul.f32 %v276, %v906
      %v914 = vmul.f32 %v277, %v906
      %v915 = vmul.f32 %v278, %v906
      %v916 = vmul.f32 %v279, %v906
      %v917 = vmul.f32 %v280, %v906
      %v918 = vmul.f32 %v281, %v906
      %v919 = vmul.f32 %v282, %v906
      %v920 = vmul.f32 %v283, %v906
      %v921 = vmul.f32 %v284, %v906
      %v922 = vmul.f32 %v285, %v906
      %v923 = vmul.f32 %v286, %v906
      %v924 = vmul.f32 %v287, %v906
      %v925 = vmul.f32 %v288, %v906
      %v926 = vmul.f32 %v289, %v906
      %v927 = vmul.f32 %v290, %v906
      %v928 = vmul.f32 %v291, %v906
      %v929 = vmul.f32 %v292, %v906
      %v930 = vmul.f32 %v293, %v906
      %v931 = vmul.f32 %v294, %v906
      %v932 = vmul.f32 %v295, %v906
      %v933 = vmul.f32 %v296, %v906
      %v934 = vmul.f32 %v297, %v906
      %v935 = vmul.f32 %v298, %v906
      %v936 = vmul.f32 %v299, %v906
      %v937 = vmul.f32 %v300, %v906
      %v938 = vmul.f32 %v301, %v906
      %v939 = vadd.f32 %v873, %v907
      %v940 = vadd.f32 %v874, %v908
      %v941 = vadd.f32 %v875, %v909
      %v942 = vadd.f32 %v876, %v910
      %v943 = vadd.f32 %v877, %v911
      %v944 = vadd.f32 %v878, %v912
      %v945 = vadd.f32 %v879, %v913
      %v946 = vadd.f32 %v880, %v914
      %v947 = vadd.f32 %v881, %v915
      %v948 = vadd.f32 %v882, %v916
      %v949 = vadd.f32 %v883, %v917
      %v950 = vadd.f32 %v884, %v918
      %v951 = vadd.f32 %v885, %v919
      %v952 = vadd.f32 %v886, %v920
      %v953 = vadd.f32 %v887, %v921
      %v954 = vadd.f32 %v888, %v922
      %v955 = vadd.f32 %v889, %v923
      %v956 = vadd.f32 %v890, %v924
      %v957 = vadd.f32 %v891, %v925
      %v958 = vadd.f32 %v892, %v926
      %v959 = vadd.f32 %v893, %v927
      %v960 = vadd.f32 %v894, %v928
      %v961 = vadd.f32 %v895, %v929
      %v962 = vadd.f32 %v896, %v930
      %v963 = vadd.f32 %v897, %v931
      %v964 = vadd.f32 %v898, %v932
      %v965 = vadd.f32 %v899, %v933
      %v966 = vadd.f32 %v900, %v934
      %v967 = vadd.f32 %v901, %v935
      %v968 = vadd.f32 %v902, %v936
      %v969 = vadd.f32 %v903, %v937
      %v970 = vadd.f32 %v904, %v938
      %v971 = vld [vmem:[%s1 + $0x15] sm:$0x1]
      %v972 = vperm.slane %v971, 0
      %v973 = vmul.f32 %v303, %v972
      %v974 = vmul.f32 %v304, %v972
      %v975 = vmul.f32 %v305, %v972
      %v976 = vmul.f32 %v306, %v972
      %v977 = vmul.f32 %v307, %v972
      %v978 = vmul.f32 %v308, %v972
      %v979 = vmul.f32 %v309, %v972
      %v980 = vmul.f32 %v310, %v972
      %v981 = vmul.f32 %v311, %v972
      %v982 = vmul.f32 %v312, %v972
      %v983 = vmul.f32 %v313, %v972
      %v984 = vmul.f32 %v314, %v972
      %v985 = vmul.f32 %v315, %v972
      %v986 = vmul.f32 %v316, %v972
      %v987 = vmul.f32 %v317, %v972
      %v988 = vmul.f32 %v318, %v972
      %v989 = vmul.f32 %v319, %v972
      %v990 = vmul.f32 %v320, %v972
      %v991 = vmul.f32 %v321, %v972
      %v992 = vmul.f32 %v322, %v972
      %v993 = vmul.f32 %v323, %v972
      %v994 = vmul.f32 %v324, %v972
      %v995 = vmul.f32 %v325, %v972
      %v996 = vmul.f32 %v326, %v972
      %v997 = vmul.f32 %v327, %v972
      %v998 = vmul.f32 %v328, %v972
      %v999 = vmul.f32 %v329, %v972
      %v1000 = vmul.f32 %v330, %v972
      %v1001 = vmul.f32 %v331, %v972
      %v1002 = vmul.f32 %v332, %v972
      %v1003 = vmul.f32 %v333, %v972
      %v1004 = vmul.f32 %v334, %v972
      %v1005 = vadd.f32 %v939, %v973
      %v1006 = vadd.f32 %v940, %v974
      %v1007 = vadd.f32 %v941, %v975
      %v1008 = vadd.f32 %v942, %v976
      %v1009 = vadd.f32 %v943, %v977
      %v1010 = vadd.f32 %v944, %v978
      %v1011 = vadd.f32 %v945, %v979
      %v1012 = vadd.f32 %v946, %v980
      %v1013 = vadd.f32 %v947, %v981
      %v1014 = vadd.f32 %v948, %v982
      %v1015 = vadd.f32 %v949, %v983
      %v1016 = vadd.f32 %v950, %v984
      %v1017 = vadd.f32 %v951, %v985
      %v1018 = vadd.f32 %v952, %v986
      %v1019 = vadd.f32 %v953, %v987
      %v1020 = vadd.f32 %v954, %v988
      %v1021 = vadd.f32 %v955, %v989
      %v1022 = vadd.f32 %v956, %v990
      %v1023 = vadd.f32 %v957, %v991
      %v1024 = vadd.f32 %v958, %v992
      %v1025 = vadd.f32 %v959, %v993
      %v1026 = vadd.f32 %v960, %v994
      %v1027 = vadd.f32 %v961, %v995
      %v1028 = vadd.f32 %v962, %v996
      %v1029 = vadd.f32 %v963, %v997
      %v1030 = vadd.f32 %v964, %v998
      %v1031 = vadd.f32 %v965, %v999
      %v1032 = vadd.f32 %v966, %v1000
      %v1033 = vadd.f32 %v967, %v1001
      %v1034 = vadd.f32 %v968, %v1002
      %v1035 = vadd.f32 %v969, %v1003
      %v1036 = vadd.f32 %v970, %v1004
      %v1037 = vrot.slane %v1005, 7
      %v1038 = vrot.slane %v1006, 7
      %v1039 = vrot.slane %v1007, 7
      %v1040 = vrot.slane %v1008, 7
      %v1041 = vrot.slane %v1009, 7
      %v1042 = vrot.slane %v1010, 7
      %v1043 = vrot.slane %v1011, 7
      %v1044 = vrot.slane %v1012, 7
      %v1045 = vrot.slane %v1013, 7
      %v1046 = vrot.slane %v1014, 7
      %v1047 = vrot.slane %v1015, 7
      %v1048 = vrot.slane %v1016, 7
      %v1049 = vrot.slane %v1017, 7
      %v1050 = vrot.slane %v1018, 7
      %v1051 = vrot.slane %v1019, 7
      %v1052 = vrot.slane %v1020, 7
      %v1053 = vrot.slane %v1021, 7
      %v1054 = vrot.slane %v1022, 7
      %v1055 = vrot.slane %v1023, 7
      %v1056 = vrot.slane %v1024, 7
      %v1057 = vrot.slane %v1025, 7
      %v1058 = vrot.slane %v1026, 7
      %v1059 = vrot.slane %v1027, 7
      %v1060 = vrot.slane %v1028, 7
      %v1061 = vrot.slane %v1029, 7
      %v1062 = vrot.slane %v1030, 7
      %v1063 = vrot.slane %v1031, 7
      %v1064 = vrot.slane %v1032, 7
      %v1065 = vrot.slane %v1033, 7
      %v1066 = vrot.slane %v1034, 7
      %v1067 = vrot.slane %v1035, 7
      %v1068 = vrot.slane %v1036, 7
      %vm1069 = vcmp.lt.s32.totalorder %v666, 1
      %v1070 = vsel %vm1069, %v1067, %v1068
      %v1071 = vsel %vm1069, %v1066, %v1067
      %v1072 = vsel %vm1069, %v1065, %v1066
      %v1073 = vsel %vm1069, %v1064, %v1065
      %v1074 = vsel %vm1069, %v1063, %v1064
      %v1075 = vsel %vm1069, %v1062, %v1063
      %v1076 = vsel %vm1069, %v1061, %v1062
      %v1077 = vsel %vm1069, %v1060, %v1061
      %v1078 = vsel %vm1069, %v1059, %v1060
      %v1079 = vsel %vm1069, %v1058, %v1059
      %v1080 = vsel %vm1069, %v1057, %v1058
      %v1081 = vsel %vm1069, %v1056, %v1057
      %v1082 = vsel %vm1069, %v1055, %v1056
      %v1083 = vsel %vm1069, %v1054, %v1055
      %v1084 = vsel %vm1069, %v1053, %v1054
      %v1085 = vsel %vm1069, %v1052, %v1053
      %v1086 = vsel %vm1069, %v1051, %v1052
      %v1087 = vsel %vm1069, %v1050, %v1051
      %v1088 = vsel %vm1069, %v1049, %v1050
      %v1089 = vsel %vm1069, %v1048, %v1049
      %v1090 = vsel %vm1069, %v1047, %v1048
      %v1091 = vsel %vm1069, %v1046, %v1047
      %v1092 = vsel %vm1069, %v1045, %v1046
      %v1093 = vsel %vm1069, %v1044, %v1045
      %v1094 = vsel %vm1069, %v1043, %v1044
      %v1095 = vsel %vm1069, %v1042, %v1043
      %v1096 = vsel %vm1069, %v1041, %v1042
      %v1097 = vsel %vm1069, %v1040, %v1041
      %v1098 = vsel %vm1069, %v1039, %v1040
      %v1099 = vsel %vm1069, %v1038, %v1039
      %v1100 = vsel %vm1069, %v1037, %v1038
      %v1101 = vsel %vm1069, %v1068, %v1037
      %vm1102 = vcmp.ge.s32.totalorder %v666, 1
      %vm1103 = vcmp.ge.s32.totalorder %v700, 1
      %v1104 = vsel %vm1102, 1, 0
      %v1105 = vsel %vm1103, 1, 0
      %vm1106 = vcmp.eq.s32.totalorder %v1104, 1
      %vm1107 = vcmp.eq.s32.totalorder %v1105, 1
      %v1108 = vsel %vm1106, %v1101, 0.0
      %v1109 = vsel %vm1107, %v1100, 0.0
      %v1110 = vsel %vm1106, %v1099, 0.0
      %v1111 = vsel %vm1107, %v1098, 0.0
      %v1112 = vsel %vm1106, %v1097, 0.0
      %v1113 = vsel %vm1107, %v1096, 0.0
      %v1114 = vsel %vm1106, %v1095, 0.0
      %v1115 = vsel %vm1107, %v1094, 0.0
      %v1116 = vsel %vm1106, %v1093, 0.0
      %v1117 = vsel %vm1107, %v1092, 0.0
      %v1118 = vsel %vm1106, %v1091, 0.0
      %v1119 = vsel %vm1107, %v1090, 0.0
      %v1120 = vsel %vm1106, %v1089, 0.0
      %v1121 = vsel %vm1107, %v1088, 0.0
      %v1122 = vsel %vm1106, %v1087, 0.0
      %v1123 = vsel %vm1107, %v1086, 0.0
      %v1124 = vsel %vm1106, %v1085, 0.0
      %v1125 = vsel %vm1107, %v1084, 0.0
      %v1126 = vsel %vm1106, %v1083, 0.0
      %v1127 = vsel %vm1107, %v1082, 0.0
      %v1128 = vsel %vm1106, %v1081, 0.0
      %v1129 = vsel %vm1107, %v1080, 0.0
      %v1130 = vsel %vm1106, %v1079, 0.0
      %v1131 = vsel %vm1107, %v1078, 0.0
      %v1132 = vsel %vm1106, %v1077, 0.0
      %v1133 = vsel %vm1107, %v1076, 0.0
      %v1134 = vsel %vm1106, %v1075, 0.0
      %v1135 = vsel %vm1107, %v1074, 0.0
      %v1136 = vsel %vm1106, %v1073, 0.0
      %v1137 = vsel %vm1107, %v1072, 0.0
      %v1138 = vsel %vm1106, %v1071, 0.0
      %v1139 = vsel %vm1107, %v1070, 0.0
      %v1140 = vadd.f32 %v707, %v1108
      %v1141 = vadd.f32 %v708, %v1109
      %v1142 = vadd.f32 %v709, %v1110
      %v1143 = vadd.f32 %v710, %v1111
      %v1144 = vadd.f32 %v711, %v1112
      %v1145 = vadd.f32 %v712, %v1113
      %v1146 = vadd.f32 %v713, %v1114
      %v1147 = vadd.f32 %v714, %v1115
      %v1148 = vadd.f32 %v715, %v1116
      %v1149 = vadd.f32 %v716, %v1117
      %v1150 = vadd.f32 %v717, %v1118
      %v1151 = vadd.f32 %v718, %v1119
      %v1152 = vadd.f32 %v719, %v1120
      %v1153 = vadd.f32 %v720, %v1121
      %v1154 = vadd.f32 %v721, %v1122
      %v1155 = vadd.f32 %v722, %v1123
      %v1156 = vadd.f32 %v723, %v1124
      %v1157 = vadd.f32 %v724, %v1125
      %v1158 = vadd.f32 %v725, %v1126
      %v1159 = vadd.f32 %v726, %v1127
      %v1160 = vadd.f32 %v727, %v1128
      %v1161 = vadd.f32 %v728, %v1129
      %v1162 = vadd.f32 %v729, %v1130
      %v1163 = vadd.f32 %v730, %v1131
      %v1164 = vadd.f32 %v731, %v1132
      %v1165 = vadd.f32 %v732, %v1133
      %v1166 = vadd.f32 %v733, %v1134
      %v1167 = vadd.f32 %v734, %v1135
      %v1168 = vadd.f32 %v735, %v1136
      %v1169 = vadd.f32 %v736, %v1137
      %v1170 = vadd.f32 %v737, %v1138
      %v1171 = vadd.f32 %v738, %v1139
      %v1172 = vld [vmem:[%s1 + $0x2] sm:$0x1]
      %v1173 = vperm.slane %v1172, 0
      %v1174 = vmul.f32 %v171, %v1173
      %v1175 = vmul.f32 %v172, %v1173
      %v1176 = vmul.f32 %v173, %v1173
      %v1177 = vmul.f32 %v174, %v1173
      %v1178 = vmul.f32 %v175, %v1173
      %v1179 = vmul.f32 %v176, %v1173
      %v1180 = vmul.f32 %v177, %v1173
      %v1181 = vmul.f32 %v178, %v1173
      %v1182 = vmul.f32 %v179, %v1173
      %v1183 = vmul.f32 %v180, %v1173
      %v1184 = vmul.f32 %v181, %v1173
      %v1185 = vmul.f32 %v182, %v1173
      %v1186 = vmul.f32 %v183, %v1173
      %v1187 = vmul.f32 %v184, %v1173
      %v1188 = vmul.f32 %v185, %v1173
      %v1189 = vmul.f32 %v186, %v1173
      %v1190 = vmul.f32 %v187, %v1173
      %v1191 = vmul.f32 %v188, %v1173
      %v1192 = vmul.f32 %v189, %v1173
      %v1193 = vmul.f32 %v190, %v1173
      %v1194 = vmul.f32 %v191, %v1173
      %v1195 = vmul.f32 %v192, %v1173
      %v1196 = vmul.f32 %v193, %v1173
      %v1197 = vmul.f32 %v194, %v1173
      %v1198 = vmul.f32 %v195, %v1173
      %v1199 = vmul.f32 %v196, %v1173
      %v1200 = vmul.f32 %v197, %v1173
      %v1201 = vmul.f32 %v198, %v1173
      %v1202 = vmul.f32 %v199, %v1173
      %v1203 = vmul.f32 %v200, %v1173
      %v1204 = vmul.f32 %v201, %v1173
      %v1205 = vmul.f32 %v202, %v1173
      %v1206 = vld [vmem:[%s1 + $0x7] sm:$0x1]
      %v1207 = vperm.slane %v1206, 0
      %v1208 = vmul.f32 %v204, %v1207
      %v1209 = vmul.f32 %v205, %v1207
      %v1210 = vmul.f32 %v206, %v1207
      %v1211 = vmul.f32 %v207, %v1207
      %v1212 = vmul.f32 %v208, %v1207
      %v1213 = vmul.f32 %v209, %v1207
      %v1214 = vmul.f32 %v210, %v1207
      %v1215 = vmul.f32 %v211, %v1207
      %v1216 = vmul.f32 %v212, %v1207
      %v1217 = vmul.f32 %v213, %v1207
      %v1218 = vmul.f32 %v214, %v1207
      %v1219 = vmul.f32 %v215, %v1207
      %v1220 = vmul.f32 %v216, %v1207
      %v1221 = vmul.f32 %v217, %v1207
      %v1222 = vmul.f32 %v218, %v1207
      %v1223 = vmul.f32 %v219, %v1207
      %v1224 = vmul.f32 %v220, %v1207
      %v1225 = vmul.f32 %v221, %v1207
      %v1226 = vmul.f32 %v222, %v1207
      %v1227 = vmul.f32 %v223, %v1207
      %v1228 = vmul.f32 %v224, %v1207
      %v1229 = vmul.f32 %v225, %v1207
      %v1230 = vmul.f32 %v226, %v1207
      %v1231 = vmul.f32 %v227, %v1207
      %v1232 = vmul.f32 %v228, %v1207
      %v1233 = vmul.f32 %v229, %v1207
      %v1234 = vmul.f32 %v230, %v1207
      %v1235 = vmul.f32 %v231, %v1207
      %v1236 = vmul.f32 %v232, %v1207
      %v1237 = vmul.f32 %v233, %v1207
      %v1238 = vmul.f32 %v234, %v1207
      %v1239 = vmul.f32 %v235, %v1207
      %v1240 = vadd.f32 %v1174, %v1208
      %v1241 = vadd.f32 %v1175, %v1209
      %v1242 = vadd.f32 %v1176, %v1210
      %v1243 = vadd.f32 %v1177, %v1211
      %v1244 = vadd.f32 %v1178, %v1212
      %v1245 = vadd.f32 %v1179, %v1213
      %v1246 = vadd.f32 %v1180, %v1214
      %v1247 = vadd.f32 %v1181, %v1215
      %v1248 = vadd.f32 %v1182, %v1216
      %v1249 = vadd.f32 %v1183, %v1217
      %v1250 = vadd.f32 %v1184, %v1218
      %v1251 = vadd.f32 %v1185, %v1219
      %v1252 = vadd.f32 %v1186, %v1220
      %v1253 = vadd.f32 %v1187, %v1221
      %v1254 = vadd.f32 %v1188, %v1222
      %v1255 = vadd.f32 %v1189, %v1223
      %v1256 = vadd.f32 %v1190, %v1224
      %v1257 = vadd.f32 %v1191, %v1225
      %v1258 = vadd.f32 %v1192, %v1226
      %v1259 = vadd.f32 %v1193, %v1227
      %v1260 = vadd.f32 %v1194, %v1228
      %v1261 = vadd.f32 %v1195, %v1229
      %v1262 = vadd.f32 %v1196, %v1230
      %v1263 = vadd.f32 %v1197, %v1231
      %v1264 = vadd.f32 %v1198, %v1232
      %v1265 = vadd.f32 %v1199, %v1233
      %v1266 = vadd.f32 %v1200, %v1234
      %v1267 = vadd.f32 %v1201, %v1235
      %v1268 = vadd.f32 %v1202, %v1236
      %v1269 = vadd.f32 %v1203, %v1237
      %v1270 = vadd.f32 %v1204, %v1238
      %v1271 = vadd.f32 %v1205, %v1239
      %v1272 = vld [vmem:[%s1 + $0xc] sm:$0x1]
      %v1273 = vperm.slane %v1272, 0
      %v1274 = vmul.f32 %v237, %v1273
      %v1275 = vmul.f32 %v238, %v1273
      %v1276 = vmul.f32 %v239, %v1273
      %v1277 = vmul.f32 %v240, %v1273
      %v1278 = vmul.f32 %v241, %v1273
      %v1279 = vmul.f32 %v242, %v1273
      %v1280 = vmul.f32 %v243, %v1273
      %v1281 = vmul.f32 %v244, %v1273
      %v1282 = vmul.f32 %v245, %v1273
      %v1283 = vmul.f32 %v246, %v1273
      %v1284 = vmul.f32 %v247, %v1273
      %v1285 = vmul.f32 %v248, %v1273
      %v1286 = vmul.f32 %v249, %v1273
      %v1287 = vmul.f32 %v250, %v1273
      %v1288 = vmul.f32 %v251, %v1273
      %v1289 = vmul.f32 %v252, %v1273
      %v1290 = vmul.f32 %v253, %v1273
      %v1291 = vmul.f32 %v254, %v1273
      %v1292 = vmul.f32 %v255, %v1273
      %v1293 = vmul.f32 %v256, %v1273
      %v1294 = vmul.f32 %v257, %v1273
      %v1295 = vmul.f32 %v258, %v1273
      %v1296 = vmul.f32 %v259, %v1273
      %v1297 = vmul.f32 %v260, %v1273
      %v1298 = vmul.f32 %v261, %v1273
      %v1299 = vmul.f32 %v262, %v1273
      %v1300 = vmul.f32 %v263, %v1273
      %v1301 = vmul.f32 %v264, %v1273
      %v1302 = vmul.f32 %v265, %v1273
      %v1303 = vmul.f32 %v266, %v1273
      %v1304 = vmul.f32 %v267, %v1273
      %v1305 = vmul.f32 %v268, %v1273
      %v1306 = vadd.f32 %v1240, %v1274
      %v1307 = vadd.f32 %v1241, %v1275
      %v1308 = vadd.f32 %v1242, %v1276
      %v1309 = vadd.f32 %v1243, %v1277
      %v1310 = vadd.f32 %v1244, %v1278
      %v1311 = vadd.f32 %v1245, %v1279
      %v1312 = vadd.f32 %v1246, %v1280
      %v1313 = vadd.f32 %v1247, %v1281
      %v1314 = vadd.f32 %v1248, %v1282
      %v1315 = vadd.f32 %v1249, %v1283
      %v1316 = vadd.f32 %v1250, %v1284
      %v1317 = vadd.f32 %v1251, %v1285
      %v1318 = vadd.f32 %v1252, %v1286
      %v1319 = vadd.f32 %v1253, %v1287
      %v1320 = vadd.f32 %v1254, %v1288
      %v1321 = vadd.f32 %v1255, %v1289
      %v1322 = vadd.f32 %v1256, %v1290
      %v1323 = vadd.f32 %v1257, %v1291
      %v1324 = vadd.f32 %v1258, %v1292
      %v1325 = vadd.f32 %v1259, %v1293
      %v1326 = vadd.f32 %v1260, %v1294
      %v1327 = vadd.f32 %v1261, %v1295
      %v1328 = vadd.f32 %v1262, %v1296
      %v1329 = vadd.f32 %v1263, %v1297
      %v1330 = vadd.f32 %v1264, %v1298
      %v1331 = vadd.f32 %v1265, %v1299
      %v1332 = vadd.f32 %v1266, %v1300
      %v1333 = vadd.f32 %v1267, %v1301
      %v1334 = vadd.f32 %v1268, %v1302
      %v1335 = vadd.f32 %v1269, %v1303
      %v1336 = vadd.f32 %v1270, %v1304
      %v1337 = vadd.f32 %v1271, %v1305
      %v1338 = vld [vmem:[%s1 + $0x11] sm:$0x1]
      %v1339 = vperm.slane %v1338, 0
      %v1340 = vmul.f32 %v270, %v1339
      %v1341 = vmul.f32 %v271, %v1339
      %v1342 = vmul.f32 %v272, %v1339
      %v1343 = vmul.f32 %v273, %v1339
      %v1344 = vmul.f32 %v274, %v1339
      %v1345 = vmul.f32 %v275, %v1339
      %v1346 = vmul.f32 %v276, %v1339
      %v1347 = vmul.f32 %v277, %v1339
      %v1348 = vmul.f32 %v278, %v1339
      %v1349 = vmul.f32 %v279, %v1339
      %v1350 = vmul.f32 %v280, %v1339
      %v1351 = vmul.f32 %v281, %v1339
      %v1352 = vmul.f32 %v282, %v1339
      %v1353 = vmul.f32 %v283, %v1339
      %v1354 = vmul.f32 %v284, %v1339
      %v1355 = vmul.f32 %v285, %v1339
      %v1356 = vmul.f32 %v286, %v1339
      %v1357 = vmul.f32 %v287, %v1339
      %v1358 = vmul.f32 %v288, %v1339
      %v1359 = vmul.f32 %v289, %v1339
      %v1360 = vmul.f32 %v290, %v1339
      %v1361 = vmul.f32 %v291, %v1339
      %v1362 = vmul.f32 %v292, %v1339
      %v1363 = vmul.f32 %v293, %v1339
      %v1364 = vmul.f32 %v294, %v1339
      %v1365 = vmul.f32 %v295, %v1339
      %v1366 = vmul.f32 %v296, %v1339
      %v1367 = vmul.f32 %v297, %v1339
      %v1368 = vmul.f32 %v298, %v1339
      %v1369 = vmul.f32 %v299, %v1339
      %v1370 = vmul.f32 %v300, %v1339
      %v1371 = vmul.f32 %v301, %v1339
      %v1372 = vadd.f32 %v1306, %v1340
      %v1373 = vadd.f32 %v1307, %v1341
      %v1374 = vadd.f32 %v1308, %v1342
      %v1375 = vadd.f32 %v1309, %v1343
      %v1376 = vadd.f32 %v1310, %v1344
      %v1377 = vadd.f32 %v1311, %v1345
      %v1378 = vadd.f32 %v1312, %v1346
      %v1379 = vadd.f32 %v1313, %v1347
      %v1380 = vadd.f32 %v1314, %v1348
      %v1381 = vadd.f32 %v1315, %v1349
      %v1382 = vadd.f32 %v1316, %v1350
      %v1383 = vadd.f32 %v1317, %v1351
      %v1384 = vadd.f32 %v1318, %v1352
      %v1385 = vadd.f32 %v1319, %v1353
      %v1386 = vadd.f32 %v1320, %v1354
      %v1387 = vadd.f32 %v1321, %v1355
      %v1388 = vadd.f32 %v1322, %v1356
      %v1389 = vadd.f32 %v1323, %v1357
      %v1390 = vadd.f32 %v1324, %v1358
      %v1391 = vadd.f32 %v1325, %v1359
      %v1392 = vadd.f32 %v1326, %v1360
      %v1393 = vadd.f32 %v1327, %v1361
      %v1394 = vadd.f32 %v1328, %v1362
      %v1395 = vadd.f32 %v1329, %v1363
      %v1396 = vadd.f32 %v1330, %v1364
      %v1397 = vadd.f32 %v1331, %v1365
      %v1398 = vadd.f32 %v1332, %v1366
      %v1399 = vadd.f32 %v1333, %v1367
      %v1400 = vadd.f32 %v1334, %v1368
      %v1401 = vadd.f32 %v1335, %v1369
      %v1402 = vadd.f32 %v1336, %v1370
      %v1403 = vadd.f32 %v1337, %v1371
      %v1404 = vld [vmem:[%s1 + $0x16] sm:$0x1]
      %v1405 = vperm.slane %v1404, 0
      %v1406 = vmul.f32 %v303, %v1405
      %v1407 = vmul.f32 %v304, %v1405
      %v1408 = vmul.f32 %v305, %v1405
      %v1409 = vmul.f32 %v306, %v1405
      %v1410 = vmul.f32 %v307, %v1405
      %v1411 = vmul.f32 %v308, %v1405
      %v1412 = vmul.f32 %v309, %v1405
      %v1413 = vmul.f32 %v310, %v1405
      %v1414 = vmul.f32 %v311, %v1405
      %v1415 = vmul.f32 %v312, %v1405
      %v1416 = vmul.f32 %v313, %v1405
      %v1417 = vmul.f32 %v314, %v1405
      %v1418 = vmul.f32 %v315, %v1405
      %v1419 = vmul.f32 %v316, %v1405
      %v1420 = vmul.f32 %v317, %v1405
      %v1421 = vmul.f32 %v318, %v1405
      %v1422 = vmul.f32 %v319, %v1405
      %v1423 = vmul.f32 %v320, %v1405
      %v1424 = vmul.f32 %v321, %v1405
      %v1425 = vmul.f32 %v322, %v1405
      %v1426 = vmul.f32 %v323, %v1405
      %v1427 = vmul.f32 %v324, %v1405
      %v1428 = vmul.f32 %v325, %v1405
      %v1429 = vmul.f32 %v326, %v1405
      %v1430 = vmul.f32 %v327, %v1405
      %v1431 = vmul.f32 %v328, %v1405
      %v1432 = vmul.f32 %v329, %v1405
      %v1433 = vmul.f32 %v330, %v1405
      %v1434 = vmul.f32 %v331, %v1405
      %v1435 = vmul.f32 %v332, %v1405
      %v1436 = vmul.f32 %v333, %v1405
      %v1437 = vmul.f32 %v334, %v1405
      %v1438 = vadd.f32 %v1372, %v1406
      %v1439 = vadd.f32 %v1373, %v1407
      %v1440 = vadd.f32 %v1374, %v1408
      %v1441 = vadd.f32 %v1375, %v1409
      %v1442 = vadd.f32 %v1376, %v1410
      %v1443 = vadd.f32 %v1377, %v1411
      %v1444 = vadd.f32 %v1378, %v1412
      %v1445 = vadd.f32 %v1379, %v1413
      %v1446 = vadd.f32 %v1380, %v1414
      %v1447 = vadd.f32 %v1381, %v1415
      %v1448 = vadd.f32 %v1382, %v1416
      %v1449 = vadd.f32 %v1383, %v1417
      %v1450 = vadd.f32 %v1384, %v1418
      %v1451 = vadd.f32 %v1385, %v1419
      %v1452 = vadd.f32 %v1386, %v1420
      %v1453 = vadd.f32 %v1387, %v1421
      %v1454 = vadd.f32 %v1388, %v1422
      %v1455 = vadd.f32 %v1389, %v1423
      %v1456 = vadd.f32 %v1390, %v1424
      %v1457 = vadd.f32 %v1391, %v1425
      %v1458 = vadd.f32 %v1392, %v1426
      %v1459 = vadd.f32 %v1393, %v1427
      %v1460 = vadd.f32 %v1394, %v1428
      %v1461 = vadd.f32 %v1395, %v1429
      %v1462 = vadd.f32 %v1396, %v1430
      %v1463 = vadd.f32 %v1397, %v1431
      %v1464 = vadd.f32 %v1398, %v1432
      %v1465 = vadd.f32 %v1399, %v1433
      %v1466 = vadd.f32 %v1400, %v1434
      %v1467 = vadd.f32 %v1401, %v1435
      %v1468 = vadd.f32 %v1402, %v1436
      %v1469 = vadd.f32 %v1403, %v1437
      %v1470 = vadd.f32 %v1140, %v1438
      %v1471 = vadd.f32 %v1141, %v1439
      %v1472 = vadd.f32 %v1142, %v1440
      %v1473 = vadd.f32 %v1143, %v1441
      %v1474 = vadd.f32 %v1144, %v1442
      %v1475 = vadd.f32 %v1145, %v1443
      %v1476 = vadd.f32 %v1146, %v1444
      %v1477 = vadd.f32 %v1147, %v1445
      %v1478 = vadd.f32 %v1148, %v1446
      %v1479 = vadd.f32 %v1149, %v1447
      %v1480 = vadd.f32 %v1150, %v1448
      %v1481 = vadd.f32 %v1151, %v1449
      %v1482 = vadd.f32 %v1152, %v1450
      %v1483 = vadd.f32 %v1153, %v1451
      %v1484 = vadd.f32 %v1154, %v1452
      %v1485 = vadd.f32 %v1155, %v1453
      %v1486 = vadd.f32 %v1156, %v1454
      %v1487 = vadd.f32 %v1157, %v1455
      %v1488 = vadd.f32 %v1158, %v1456
      %v1489 = vadd.f32 %v1159, %v1457
      %v1490 = vadd.f32 %v1160, %v1458
      %v1491 = vadd.f32 %v1161, %v1459
      %v1492 = vadd.f32 %v1162, %v1460
      %v1493 = vadd.f32 %v1163, %v1461
      %v1494 = vadd.f32 %v1164, %v1462
      %v1495 = vadd.f32 %v1165, %v1463
      %v1496 = vadd.f32 %v1166, %v1464
      %v1497 = vadd.f32 %v1167, %v1465
      %v1498 = vadd.f32 %v1168, %v1466
      %v1499 = vadd.f32 %v1169, %v1467
      %v1500 = vadd.f32 %v1170, %v1468
      %v1501 = vadd.f32 %v1171, %v1469
      %v1502 = vld [vmem:[%s1 + $0x3] sm:$0x1]
      %v1503 = vperm.slane %v1502, 0
      %v1504 = vmul.f32 %v171, %v1503
      %v1505 = vmul.f32 %v172, %v1503
      %v1506 = vmul.f32 %v173, %v1503
      %v1507 = vmul.f32 %v174, %v1503
      %v1508 = vmul.f32 %v175, %v1503
      %v1509 = vmul.f32 %v176, %v1503
      %v1510 = vmul.f32 %v177, %v1503
      %v1511 = vmul.f32 %v178, %v1503
      %v1512 = vmul.f32 %v179, %v1503
      %v1513 = vmul.f32 %v180, %v1503
      %v1514 = vmul.f32 %v181, %v1503
      %v1515 = vmul.f32 %v182, %v1503
      %v1516 = vmul.f32 %v183, %v1503
      %v1517 = vmul.f32 %v184, %v1503
      %v1518 = vmul.f32 %v185, %v1503
      %v1519 = vmul.f32 %v186, %v1503
      %v1520 = vmul.f32 %v187, %v1503
      %v1521 = vmul.f32 %v188, %v1503
      %v1522 = vmul.f32 %v189, %v1503
      %v1523 = vmul.f32 %v190, %v1503
      %v1524 = vmul.f32 %v191, %v1503
      %v1525 = vmul.f32 %v192, %v1503
      %v1526 = vmul.f32 %v193, %v1503
      %v1527 = vmul.f32 %v194, %v1503
      %v1528 = vmul.f32 %v195, %v1503
      %v1529 = vmul.f32 %v196, %v1503
      %v1530 = vmul.f32 %v197, %v1503
      %v1531 = vmul.f32 %v198, %v1503
      %v1532 = vmul.f32 %v199, %v1503
      %v1533 = vmul.f32 %v200, %v1503
      %v1534 = vmul.f32 %v201, %v1503
      %v1535 = vmul.f32 %v202, %v1503
      %v1536 = vld [vmem:[%s1 + $0x8] sm:$0x1]
      %v1537 = vperm.slane %v1536, 0
      %v1538 = vmul.f32 %v204, %v1537
      %v1539 = vmul.f32 %v205, %v1537
      %v1540 = vmul.f32 %v206, %v1537
      %v1541 = vmul.f32 %v207, %v1537
      %v1542 = vmul.f32 %v208, %v1537
      %v1543 = vmul.f32 %v209, %v1537
      %v1544 = vmul.f32 %v210, %v1537
      %v1545 = vmul.f32 %v211, %v1537
      %v1546 = vmul.f32 %v212, %v1537
      %v1547 = vmul.f32 %v213, %v1537
      %v1548 = vmul.f32 %v214, %v1537
      %v1549 = vmul.f32 %v215, %v1537
      %v1550 = vmul.f32 %v216, %v1537
      %v1551 = vmul.f32 %v217, %v1537
      %v1552 = vmul.f32 %v218, %v1537
      %v1553 = vmul.f32 %v219, %v1537
      %v1554 = vmul.f32 %v220, %v1537
      %v1555 = vmul.f32 %v221, %v1537
      %v1556 = vmul.f32 %v222, %v1537
      %v1557 = vmul.f32 %v223, %v1537
      %v1558 = vmul.f32 %v224, %v1537
      %v1559 = vmul.f32 %v225, %v1537
      %v1560 = vmul.f32 %v226, %v1537
      %v1561 = vmul.f32 %v227, %v1537
      %v1562 = vmul.f32 %v228, %v1537
      %v1563 = vmul.f32 %v229, %v1537
      %v1564 = vmul.f32 %v230, %v1537
      %v1565 = vmul.f32 %v231, %v1537
      %v1566 = vmul.f32 %v232, %v1537
      %v1567 = vmul.f32 %v233, %v1537
      %v1568 = vmul.f32 %v234, %v1537
      %v1569 = vmul.f32 %v235, %v1537
      %v1570 = vadd.f32 %v1504, %v1538
      %v1571 = vadd.f32 %v1505, %v1539
      %v1572 = vadd.f32 %v1506, %v1540
      %v1573 = vadd.f32 %v1507, %v1541
      %v1574 = vadd.f32 %v1508, %v1542
      %v1575 = vadd.f32 %v1509, %v1543
      %v1576 = vadd.f32 %v1510, %v1544
      %v1577 = vadd.f32 %v1511, %v1545
      %v1578 = vadd.f32 %v1512, %v1546
      %v1579 = vadd.f32 %v1513, %v1547
      %v1580 = vadd.f32 %v1514, %v1548
      %v1581 = vadd.f32 %v1515, %v1549
      %v1582 = vadd.f32 %v1516, %v1550
      %v1583 = vadd.f32 %v1517, %v1551
      %v1584 = vadd.f32 %v1518, %v1552
      %v1585 = vadd.f32 %v1519, %v1553
      %v1586 = vadd.f32 %v1520, %v1554
      %v1587 = vadd.f32 %v1521, %v1555
      %v1588 = vadd.f32 %v1522, %v1556
      %v1589 = vadd.f32 %v1523, %v1557
      %v1590 = vadd.f32 %v1524, %v1558
      %v1591 = vadd.f32 %v1525, %v1559
      %v1592 = vadd.f32 %v1526, %v1560
      %v1593 = vadd.f32 %v1527, %v1561
      %v1594 = vadd.f32 %v1528, %v1562
      %v1595 = vadd.f32 %v1529, %v1563
      %v1596 = vadd.f32 %v1530, %v1564
      %v1597 = vadd.f32 %v1531, %v1565
      %v1598 = vadd.f32 %v1532, %v1566
      %v1599 = vadd.f32 %v1533, %v1567
      %v1600 = vadd.f32 %v1534, %v1568
      %v1601 = vadd.f32 %v1535, %v1569
      %v1602 = vld [vmem:[%s1 + $0xd] sm:$0x1]
      %v1603 = vperm.slane %v1602, 0
      %v1604 = vmul.f32 %v237, %v1603
      %v1605 = vmul.f32 %v238, %v1603
      %v1606 = vmul.f32 %v239, %v1603
      %v1607 = vmul.f32 %v240, %v1603
      %v1608 = vmul.f32 %v241, %v1603
      %v1609 = vmul.f32 %v242, %v1603
      %v1610 = vmul.f32 %v243, %v1603
      %v1611 = vmul.f32 %v244, %v1603
      %v1612 = vmul.f32 %v245, %v1603
      %v1613 = vmul.f32 %v246, %v1603
      %v1614 = vmul.f32 %v247, %v1603
      %v1615 = vmul.f32 %v248, %v1603
      %v1616 = vmul.f32 %v249, %v1603
      %v1617 = vmul.f32 %v250, %v1603
      %v1618 = vmul.f32 %v251, %v1603
      %v1619 = vmul.f32 %v252, %v1603
      %v1620 = vmul.f32 %v253, %v1603
      %v1621 = vmul.f32 %v254, %v1603
      %v1622 = vmul.f32 %v255, %v1603
      %v1623 = vmul.f32 %v256, %v1603
      %v1624 = vmul.f32 %v257, %v1603
      %v1625 = vmul.f32 %v258, %v1603
      %v1626 = vmul.f32 %v259, %v1603
      %v1627 = vmul.f32 %v260, %v1603
      %v1628 = vmul.f32 %v261, %v1603
      %v1629 = vmul.f32 %v262, %v1603
      %v1630 = vmul.f32 %v263, %v1603
      %v1631 = vmul.f32 %v264, %v1603
      %v1632 = vmul.f32 %v265, %v1603
      %v1633 = vmul.f32 %v266, %v1603
      %v1634 = vmul.f32 %v267, %v1603
      %v1635 = vmul.f32 %v268, %v1603
      %v1636 = vadd.f32 %v1570, %v1604
      %v1637 = vadd.f32 %v1571, %v1605
      %v1638 = vadd.f32 %v1572, %v1606
      %v1639 = vadd.f32 %v1573, %v1607
      %v1640 = vadd.f32 %v1574, %v1608
      %v1641 = vadd.f32 %v1575, %v1609
      %v1642 = vadd.f32 %v1576, %v1610
      %v1643 = vadd.f32 %v1577, %v1611
      %v1644 = vadd.f32 %v1578, %v1612
      %v1645 = vadd.f32 %v1579, %v1613
      %v1646 = vadd.f32 %v1580, %v1614
      %v1647 = vadd.f32 %v1581, %v1615
      %v1648 = vadd.f32 %v1582, %v1616
      %v1649 = vadd.f32 %v1583, %v1617
      %v1650 = vadd.f32 %v1584, %v1618
      %v1651 = vadd.f32 %v1585, %v1619
      %v1652 = vadd.f32 %v1586, %v1620
      %v1653 = vadd.f32 %v1587, %v1621
      %v1654 = vadd.f32 %v1588, %v1622
      %v1655 = vadd.f32 %v1589, %v1623
      %v1656 = vadd.f32 %v1590, %v1624
      %v1657 = vadd.f32 %v1591, %v1625
      %v1658 = vadd.f32 %v1592, %v1626
      %v1659 = vadd.f32 %v1593, %v1627
      %v1660 = vadd.f32 %v1594, %v1628
      %v1661 = vadd.f32 %v1595, %v1629
      %v1662 = vadd.f32 %v1596, %v1630
      %v1663 = vadd.f32 %v1597, %v1631
      %v1664 = vadd.f32 %v1598, %v1632
      %v1665 = vadd.f32 %v1599, %v1633
      %v1666 = vadd.f32 %v1600, %v1634
      %v1667 = vadd.f32 %v1601, %v1635
      %v1668 = vld [vmem:[%s1 + $0x12] sm:$0x1]
      %v1669 = vperm.slane %v1668, 0
      %v1670 = vmul.f32 %v270, %v1669
      %v1671 = vmul.f32 %v271, %v1669
      %v1672 = vmul.f32 %v272, %v1669
      %v1673 = vmul.f32 %v273, %v1669
      %v1674 = vmul.f32 %v274, %v1669
      %v1675 = vmul.f32 %v275, %v1669
      %v1676 = vmul.f32 %v276, %v1669
      %v1677 = vmul.f32 %v277, %v1669
      %v1678 = vmul.f32 %v278, %v1669
      %v1679 = vmul.f32 %v279, %v1669
      %v1680 = vmul.f32 %v280, %v1669
      %v1681 = vmul.f32 %v281, %v1669
      %v1682 = vmul.f32 %v282, %v1669
      %v1683 = vmul.f32 %v283, %v1669
      %v1684 = vmul.f32 %v284, %v1669
      %v1685 = vmul.f32 %v285, %v1669
      %v1686 = vmul.f32 %v286, %v1669
      %v1687 = vmul.f32 %v287, %v1669
      %v1688 = vmul.f32 %v288, %v1669
      %v1689 = vmul.f32 %v289, %v1669
      %v1690 = vmul.f32 %v290, %v1669
      %v1691 = vmul.f32 %v291, %v1669
      %v1692 = vmul.f32 %v292, %v1669
      %v1693 = vmul.f32 %v293, %v1669
      %v1694 = vmul.f32 %v294, %v1669
      %v1695 = vmul.f32 %v295, %v1669
      %v1696 = vmul.f32 %v296, %v1669
      %v1697 = vmul.f32 %v297, %v1669
      %v1698 = vmul.f32 %v298, %v1669
      %v1699 = vmul.f32 %v299, %v1669
      %v1700 = vmul.f32 %v300, %v1669
      %v1701 = vmul.f32 %v301, %v1669
      %v1702 = vadd.f32 %v1636, %v1670
      %v1703 = vadd.f32 %v1637, %v1671
      %v1704 = vadd.f32 %v1638, %v1672
      %v1705 = vadd.f32 %v1639, %v1673
      %v1706 = vadd.f32 %v1640, %v1674
      %v1707 = vadd.f32 %v1641, %v1675
      %v1708 = vadd.f32 %v1642, %v1676
      %v1709 = vadd.f32 %v1643, %v1677
      %v1710 = vadd.f32 %v1644, %v1678
      %v1711 = vadd.f32 %v1645, %v1679
      %v1712 = vadd.f32 %v1646, %v1680
      %v1713 = vadd.f32 %v1647, %v1681
      %v1714 = vadd.f32 %v1648, %v1682
      %v1715 = vadd.f32 %v1649, %v1683
      %v1716 = vadd.f32 %v1650, %v1684
      %v1717 = vadd.f32 %v1651, %v1685
      %v1718 = vadd.f32 %v1652, %v1686
      %v1719 = vadd.f32 %v1653, %v1687
      %v1720 = vadd.f32 %v1654, %v1688
      %v1721 = vadd.f32 %v1655, %v1689
      %v1722 = vadd.f32 %v1656, %v1690
      %v1723 = vadd.f32 %v1657, %v1691
      %v1724 = vadd.f32 %v1658, %v1692
      %v1725 = vadd.f32 %v1659, %v1693
      %v1726 = vadd.f32 %v1660, %v1694
      %v1727 = vadd.f32 %v1661, %v1695
      %v1728 = vadd.f32 %v1662, %v1696
      %v1729 = vadd.f32 %v1663, %v1697
      %v1730 = vadd.f32 %v1664, %v1698
      %v1731 = vadd.f32 %v1665, %v1699
      %v1732 = vadd.f32 %v1666, %v1700
      %v1733 = vadd.f32 %v1667, %v1701
      %v1734 = vld [vmem:[%s1 + $0x17] sm:$0x1]
      %v1735 = vperm.slane %v1734, 0
      %v1736 = vmul.f32 %v303, %v1735
      %v1737 = vmul.f32 %v304, %v1735
      %v1738 = vmul.f32 %v305, %v1735
      %v1739 = vmul.f32 %v306, %v1735
      %v1740 = vmul.f32 %v307, %v1735
      %v1741 = vmul.f32 %v308, %v1735
      %v1742 = vmul.f32 %v309, %v1735
      %v1743 = vmul.f32 %v310, %v1735
      %v1744 = vmul.f32 %v311, %v1735
      %v1745 = vmul.f32 %v312, %v1735
      %v1746 = vmul.f32 %v313, %v1735
      %v1747 = vmul.f32 %v314, %v1735
      %v1748 = vmul.f32 %v315, %v1735
      %v1749 = vmul.f32 %v316, %v1735
      %v1750 = vmul.f32 %v317, %v1735
      %v1751 = vmul.f32 %v318, %v1735
      %v1752 = vmul.f32 %v319, %v1735
      %v1753 = vmul.f32 %v320, %v1735
      %v1754 = vmul.f32 %v321, %v1735
      %v1755 = vmul.f32 %v322, %v1735
      %v1756 = vmul.f32 %v323, %v1735
      %v1757 = vmul.f32 %v324, %v1735
      %v1758 = vmul.f32 %v325, %v1735
      %v1759 = vmul.f32 %v326, %v1735
      %v1760 = vmul.f32 %v327, %v1735
      %v1761 = vmul.f32 %v328, %v1735
      %v1762 = vmul.f32 %v329, %v1735
      %v1763 = vmul.f32 %v330, %v1735
      %v1764 = vmul.f32 %v331, %v1735
      %v1765 = vmul.f32 %v332, %v1735
      %v1766 = vmul.f32 %v333, %v1735
      %v1767 = vmul.f32 %v334, %v1735
      %v1768 = vadd.f32 %v1702, %v1736
      %v1769 = vadd.f32 %v1703, %v1737
      %v1770 = vadd.f32 %v1704, %v1738
      %v1771 = vadd.f32 %v1705, %v1739
      %v1772 = vadd.f32 %v1706, %v1740
      %v1773 = vadd.f32 %v1707, %v1741
      %v1774 = vadd.f32 %v1708, %v1742
      %v1775 = vadd.f32 %v1709, %v1743
      %v1776 = vadd.f32 %v1710, %v1744
      %v1777 = vadd.f32 %v1711, %v1745
      %v1778 = vadd.f32 %v1712, %v1746
      %v1779 = vadd.f32 %v1713, %v1747
      %v1780 = vadd.f32 %v1714, %v1748
      %v1781 = vadd.f32 %v1715, %v1749
      %v1782 = vadd.f32 %v1716, %v1750
      %v1783 = vadd.f32 %v1717, %v1751
      %v1784 = vadd.f32 %v1718, %v1752
      %v1785 = vadd.f32 %v1719, %v1753
      %v1786 = vadd.f32 %v1720, %v1754
      %v1787 = vadd.f32 %v1721, %v1755
      %v1788 = vadd.f32 %v1722, %v1756
      %v1789 = vadd.f32 %v1723, %v1757
      %v1790 = vadd.f32 %v1724, %v1758
      %v1791 = vadd.f32 %v1725, %v1759
      %v1792 = vadd.f32 %v1726, %v1760
      %v1793 = vadd.f32 %v1727, %v1761
      %v1794 = vadd.f32 %v1728, %v1762
      %v1795 = vadd.f32 %v1729, %v1763
      %v1796 = vadd.f32 %v1730, %v1764
      %v1797 = vadd.f32 %v1731, %v1765
      %v1798 = vadd.f32 %v1732, %v1766
      %v1799 = vadd.f32 %v1733, %v1767
      %v1800 = vrot.slane %v1768, 1
      %v1801 = vrot.slane %v1769, 1
      %v1802 = vrot.slane %v1770, 1
      %v1803 = vrot.slane %v1771, 1
      %v1804 = vrot.slane %v1772, 1
      %v1805 = vrot.slane %v1773, 1
      %v1806 = vrot.slane %v1774, 1
      %v1807 = vrot.slane %v1775, 1
      %v1808 = vrot.slane %v1776, 1
      %v1809 = vrot.slane %v1777, 1
      %v1810 = vrot.slane %v1778, 1
      %v1811 = vrot.slane %v1779, 1
      %v1812 = vrot.slane %v1780, 1
      %v1813 = vrot.slane %v1781, 1
      %v1814 = vrot.slane %v1782, 1
      %v1815 = vrot.slane %v1783, 1
      %v1816 = vrot.slane %v1784, 1
      %v1817 = vrot.slane %v1785, 1
      %v1818 = vrot.slane %v1786, 1
      %v1819 = vrot.slane %v1787, 1
      %v1820 = vrot.slane %v1788, 1
      %v1821 = vrot.slane %v1789, 1
      %v1822 = vrot.slane %v1790, 1
      %v1823 = vrot.slane %v1791, 1
      %v1824 = vrot.slane %v1792, 1
      %v1825 = vrot.slane %v1793, 1
      %v1826 = vrot.slane %v1794, 1
      %v1827 = vrot.slane %v1795, 1
      %v1828 = vrot.slane %v1796, 1
      %v1829 = vrot.slane %v1797, 1
      %v1830 = vrot.slane %v1798, 1
      %v1831 = vrot.slane %v1799, 1
      %vm1832 = vcmp.lt.s32.totalorder %v666, 7
      %v1833 = vsel %vm1832, %v1830, %v1831
      %v1834 = vsel %vm1832, %v1829, %v1830
      %v1835 = vsel %vm1832, %v1828, %v1829
      %v1836 = vsel %vm1832, %v1827, %v1828
      %v1837 = vsel %vm1832, %v1826, %v1827
      %v1838 = vsel %vm1832, %v1825, %v1826
      %v1839 = vsel %vm1832, %v1824, %v1825
      %v1840 = vsel %vm1832, %v1823, %v1824
      %v1841 = vsel %vm1832, %v1822, %v1823
      %v1842 = vsel %vm1832, %v1821, %v1822
      %v1843 = vsel %vm1832, %v1820, %v1821
      %v1844 = vsel %vm1832, %v1819, %v1820
      %v1845 = vsel %vm1832, %v1818, %v1819
      %v1846 = vsel %vm1832, %v1817, %v1818
      %v1847 = vsel %vm1832, %v1816, %v1817
      %v1848 = vsel %vm1832, %v1815, %v1816
      %v1849 = vsel %vm1832, %v1814, %v1815
      %v1850 = vsel %vm1832, %v1813, %v1814
      %v1851 = vsel %vm1832, %v1812, %v1813
      %v1852 = vsel %vm1832, %v1811, %v1812
      %v1853 = vsel %vm1832, %v1810, %v1811
      %v1854 = vsel %vm1832, %v1809, %v1810
      %v1855 = vsel %vm1832, %v1808, %v1809
      %v1856 = vsel %vm1832, %v1807, %v1808
      %v1857 = vsel %vm1832, %v1806, %v1807
      %v1858 = vsel %vm1832, %v1805, %v1806
      %v1859 = vsel %vm1832, %v1804, %v1805
      %v1860 = vsel %vm1832, %v1803, %v1804
      %v1861 = vsel %vm1832, %v1802, %v1803
      %v1862 = vsel %vm1832, %v1801, %v1802
      %v1863 = vsel %vm1832, %v1800, %v1801
      %v1864 = vsel %vm1832, %v1831, %v1800
      %vm1865 = vcmp.lt.s32.totalorder %v666, 15
      %vm1866 = vcmp.lt.s32.totalorder %v700, 15
      %v1867 = vsel %vm1865, 1, 0
      %v1868 = vsel %vm1866, 1, 0
      %vm1869 = vcmp.eq.s32.totalorder %v1867, 1
      %vm1870 = vcmp.eq.s32.totalorder %v1868, 1
      %v1871 = vsel %vm1869, %v1863, 0.0
      %v1872 = vsel %vm1870, %v1862, 0.0
      %v1873 = vsel %vm1869, %v1861, 0.0
      %v1874 = vsel %vm1870, %v1860, 0.0
      %v1875 = vsel %vm1869, %v1859, 0.0
      %v1876 = vsel %vm1870, %v1858, 0.0
      %v1877 = vsel %vm1869, %v1857, 0.0
      %v1878 = vsel %vm1870, %v1856, 0.0
      %v1879 = vsel %vm1869, %v1855, 0.0
      %v1880 = vsel %vm1870, %v1854, 0.0
      %v1881 = vsel %vm1869, %v1853, 0.0
      %v1882 = vsel %vm1870, %v1852, 0.0
      %v1883 = vsel %vm1869, %v1851, 0.0
      %v1884 = vsel %vm1870, %v1850, 0.0
      %v1885 = vsel %vm1869, %v1849, 0.0
      %v1886 = vsel %vm1870, %v1848, 0.0
      %v1887 = vsel %vm1869, %v1847, 0.0
      %v1888 = vsel %vm1870, %v1846, 0.0
      %v1889 = vsel %vm1869, %v1845, 0.0
      %v1890 = vsel %vm1870, %v1844, 0.0
      %v1891 = vsel %vm1869, %v1843, 0.0
      %v1892 = vsel %vm1870, %v1842, 0.0
      %v1893 = vsel %vm1869, %v1841, 0.0
      %v1894 = vsel %vm1870, %v1840, 0.0
      %v1895 = vsel %vm1869, %v1839, 0.0
      %v1896 = vsel %vm1870, %v1838, 0.0
      %v1897 = vsel %vm1869, %v1837, 0.0
      %v1898 = vsel %vm1870, %v1836, 0.0
      %v1899 = vsel %vm1869, %v1835, 0.0
      %v1900 = vsel %vm1870, %v1834, 0.0
      %v1901 = vsel %vm1869, %v1833, 0.0
      %v1902 = vsel %vm1870, %v1864, 0.0
      %v1903 = vadd.f32 %v1470, %v1871
      %v1904 = vadd.f32 %v1471, %v1872
      %v1905 = vadd.f32 %v1472, %v1873
      %v1906 = vadd.f32 %v1473, %v1874
      %v1907 = vadd.f32 %v1474, %v1875
      %v1908 = vadd.f32 %v1475, %v1876
      %v1909 = vadd.f32 %v1476, %v1877
      %v1910 = vadd.f32 %v1477, %v1878
      %v1911 = vadd.f32 %v1478, %v1879
      %v1912 = vadd.f32 %v1479, %v1880
      %v1913 = vadd.f32 %v1480, %v1881
      %v1914 = vadd.f32 %v1481, %v1882
      %v1915 = vadd.f32 %v1482, %v1883
      %v1916 = vadd.f32 %v1483, %v1884
      %v1917 = vadd.f32 %v1484, %v1885
      %v1918 = vadd.f32 %v1485, %v1886
      %v1919 = vadd.f32 %v1486, %v1887
      %v1920 = vadd.f32 %v1487, %v1888
      %v1921 = vadd.f32 %v1488, %v1889
      %v1922 = vadd.f32 %v1489, %v1890
      %v1923 = vadd.f32 %v1490, %v1891
      %v1924 = vadd.f32 %v1491, %v1892
      %v1925 = vadd.f32 %v1492, %v1893
      %v1926 = vadd.f32 %v1493, %v1894
      %v1927 = vadd.f32 %v1494, %v1895
      %v1928 = vadd.f32 %v1495, %v1896
      %v1929 = vadd.f32 %v1496, %v1897
      %v1930 = vadd.f32 %v1497, %v1898
      %v1931 = vadd.f32 %v1498, %v1899
      %v1932 = vadd.f32 %v1499, %v1900
      %v1933 = vadd.f32 %v1500, %v1901
      %v1934 = vadd.f32 %v1501, %v1902
      %v1935 = vld [vmem:[%s1 + $0x4] sm:$0x1]
      %v1936 = vperm.slane %v1935, 0
      %v1937 = vmul.f32 %v171, %v1936
      %v1938 = vmul.f32 %v172, %v1936
      %v1939 = vmul.f32 %v173, %v1936
      %v1940 = vmul.f32 %v174, %v1936
      %v1941 = vmul.f32 %v175, %v1936
      %v1942 = vmul.f32 %v176, %v1936
      %v1943 = vmul.f32 %v177, %v1936
      %v1944 = vmul.f32 %v178, %v1936
      %v1945 = vmul.f32 %v179, %v1936
      %v1946 = vmul.f32 %v180, %v1936
      %v1947 = vmul.f32 %v181, %v1936
      %v1948 = vmul.f32 %v182, %v1936
      %v1949 = vmul.f32 %v183, %v1936
      %v1950 = vmul.f32 %v184, %v1936
      %v1951 = vmul.f32 %v185, %v1936
      %v1952 = vmul.f32 %v186, %v1936
      %v1953 = vmul.f32 %v187, %v1936
      %v1954 = vmul.f32 %v188, %v1936
      %v1955 = vmul.f32 %v189, %v1936
      %v1956 = vmul.f32 %v190, %v1936
      %v1957 = vmul.f32 %v191, %v1936
      %v1958 = vmul.f32 %v192, %v1936
      %v1959 = vmul.f32 %v193, %v1936
      %v1960 = vmul.f32 %v194, %v1936
      %v1961 = vmul.f32 %v195, %v1936
      %v1962 = vmul.f32 %v196, %v1936
      %v1963 = vmul.f32 %v197, %v1936
      %v1964 = vmul.f32 %v198, %v1936
      %v1965 = vmul.f32 %v199, %v1936
      %v1966 = vmul.f32 %v200, %v1936
      %v1967 = vmul.f32 %v201, %v1936
      %v1968 = vmul.f32 %v202, %v1936
      %v1969 = vld [vmem:[%s1 + $0x9] sm:$0x1]
      %v1970 = vperm.slane %v1969, 0
      %v1971 = vmul.f32 %v204, %v1970
      %v1972 = vmul.f32 %v205, %v1970
      %v1973 = vmul.f32 %v206, %v1970
      %v1974 = vmul.f32 %v207, %v1970
      %v1975 = vmul.f32 %v208, %v1970
      %v1976 = vmul.f32 %v209, %v1970
      %v1977 = vmul.f32 %v210, %v1970
      %v1978 = vmul.f32 %v211, %v1970
      %v1979 = vmul.f32 %v212, %v1970
      %v1980 = vmul.f32 %v213, %v1970
      %v1981 = vmul.f32 %v214, %v1970
      %v1982 = vmul.f32 %v215, %v1970
      %v1983 = vmul.f32 %v216, %v1970
      %v1984 = vmul.f32 %v217, %v1970
      %v1985 = vmul.f32 %v218, %v1970
      %v1986 = vmul.f32 %v219, %v1970
      %v1987 = vmul.f32 %v220, %v1970
      %v1988 = vmul.f32 %v221, %v1970
      %v1989 = vmul.f32 %v222, %v1970
      %v1990 = vmul.f32 %v223, %v1970
      %v1991 = vmul.f32 %v224, %v1970
      %v1992 = vmul.f32 %v225, %v1970
      %v1993 = vmul.f32 %v226, %v1970
      %v1994 = vmul.f32 %v227, %v1970
      %v1995 = vmul.f32 %v228, %v1970
      %v1996 = vmul.f32 %v229, %v1970
      %v1997 = vmul.f32 %v230, %v1970
      %v1998 = vmul.f32 %v231, %v1970
      %v1999 = vmul.f32 %v232, %v1970
      %v2000 = vmul.f32 %v233, %v1970
      %v2001 = vmul.f32 %v234, %v1970
      %v2002 = vmul.f32 %v235, %v1970
      %v2003 = vadd.f32 %v1937, %v1971
      %v2004 = vadd.f32 %v1938, %v1972
      %v2005 = vadd.f32 %v1939, %v1973
      %v2006 = vadd.f32 %v1940, %v1974
      %v2007 = vadd.f32 %v1941, %v1975
      %v2008 = vadd.f32 %v1942, %v1976
      %v2009 = vadd.f32 %v1943, %v1977
      %v2010 = vadd.f32 %v1944, %v1978
      %v2011 = vadd.f32 %v1945, %v1979
      %v2012 = vadd.f32 %v1946, %v1980
      %v2013 = vadd.f32 %v1947, %v1981
      %v2014 = vadd.f32 %v1948, %v1982
      %v2015 = vadd.f32 %v1949, %v1983
      %v2016 = vadd.f32 %v1950, %v1984
      %v2017 = vadd.f32 %v1951, %v1985
      %v2018 = vadd.f32 %v1952, %v1986
      %v2019 = vadd.f32 %v1953, %v1987
      %v2020 = vadd.f32 %v1954, %v1988
      %v2021 = vadd.f32 %v1955, %v1989
      %v2022 = vadd.f32 %v1956, %v1990
      %v2023 = vadd.f32 %v1957, %v1991
      %v2024 = vadd.f32 %v1958, %v1992
      %v2025 = vadd.f32 %v1959, %v1993
      %v2026 = vadd.f32 %v1960, %v1994
      %v2027 = vadd.f32 %v1961, %v1995
      %v2028 = vadd.f32 %v1962, %v1996
      %v2029 = vadd.f32 %v1963, %v1997
      %v2030 = vadd.f32 %v1964, %v1998
      %v2031 = vadd.f32 %v1965, %v1999
      %v2032 = vadd.f32 %v1966, %v2000
      %v2033 = vadd.f32 %v1967, %v2001
      %v2034 = vadd.f32 %v1968, %v2002
      %v2035 = vld [vmem:[%s1 + $0xe] sm:$0x1]
      %v2036 = vperm.slane %v2035, 0
      %v2037 = vmul.f32 %v237, %v2036
      %v2038 = vmul.f32 %v238, %v2036
      %v2039 = vmul.f32 %v239, %v2036
      %v2040 = vmul.f32 %v240, %v2036
      %v2041 = vmul.f32 %v241, %v2036
      %v2042 = vmul.f32 %v242, %v2036
      %v2043 = vmul.f32 %v243, %v2036
      %v2044 = vmul.f32 %v244, %v2036
      %v2045 = vmul.f32 %v245, %v2036
      %v2046 = vmul.f32 %v246, %v2036
      %v2047 = vmul.f32 %v247, %v2036
      %v2048 = vmul.f32 %v248, %v2036
      %v2049 = vmul.f32 %v249, %v2036
      %v2050 = vmul.f32 %v250, %v2036
      %v2051 = vmul.f32 %v251, %v2036
      %v2052 = vmul.f32 %v252, %v2036
      %v2053 = vmul.f32 %v253, %v2036
      %v2054 = vmul.f32 %v254, %v2036
      %v2055 = vmul.f32 %v255, %v2036
      %v2056 = vmul.f32 %v256, %v2036
      %v2057 = vmul.f32 %v257, %v2036
      %v2058 = vmul.f32 %v258, %v2036
      %v2059 = vmul.f32 %v259, %v2036
      %v2060 = vmul.f32 %v260, %v2036
      %v2061 = vmul.f32 %v261, %v2036
      %v2062 = vmul.f32 %v262, %v2036
      %v2063 = vmul.f32 %v263, %v2036
      %v2064 = vmul.f32 %v264, %v2036
      %v2065 = vmul.f32 %v265, %v2036
      %v2066 = vmul.f32 %v266, %v2036
      %v2067 = vmul.f32 %v267, %v2036
      %v2068 = vmul.f32 %v268, %v2036
      %v2069 = vadd.f32 %v2003, %v2037
      %v2070 = vadd.f32 %v2004, %v2038
      %v2071 = vadd.f32 %v2005, %v2039
      %v2072 = vadd.f32 %v2006, %v2040
      %v2073 = vadd.f32 %v2007, %v2041
      %v2074 = vadd.f32 %v2008, %v2042
      %v2075 = vadd.f32 %v2009, %v2043
      %v2076 = vadd.f32 %v2010, %v2044
      %v2077 = vadd.f32 %v2011, %v2045
      %v2078 = vadd.f32 %v2012, %v2046
      %v2079 = vadd.f32 %v2013, %v2047
      %v2080 = vadd.f32 %v2014, %v2048
      %v2081 = vadd.f32 %v2015, %v2049
      %v2082 = vadd.f32 %v2016, %v2050
      %v2083 = vadd.f32 %v2017, %v2051
      %v2084 = vadd.f32 %v2018, %v2052
      %v2085 = vadd.f32 %v2019, %v2053
      %v2086 = vadd.f32 %v2020, %v2054
      %v2087 = vadd.f32 %v2021, %v2055
      %v2088 = vadd.f32 %v2022, %v2056
      %v2089 = vadd.f32 %v2023, %v2057
      %v2090 = vadd.f32 %v2024, %v2058
      %v2091 = vadd.f32 %v2025, %v2059
      %v2092 = vadd.f32 %v2026, %v2060
      %v2093 = vadd.f32 %v2027, %v2061
      %v2094 = vadd.f32 %v2028, %v2062
      %v2095 = vadd.f32 %v2029, %v2063
      %v2096 = vadd.f32 %v2030, %v2064
      %v2097 = vadd.f32 %v2031, %v2065
      %v2098 = vadd.f32 %v2032, %v2066
      %v2099 = vadd.f32 %v2033, %v2067
      %v2100 = vadd.f32 %v2034, %v2068
      %v2101 = vld [vmem:[%s1 + $0x13] sm:$0x1]
      %v2102 = vperm.slane %v2101, 0
      %v2103 = vmul.f32 %v270, %v2102
      %v2104 = vmul.f32 %v271, %v2102
      %v2105 = vmul.f32 %v272, %v2102
      %v2106 = vmul.f32 %v273, %v2102
      %v2107 = vmul.f32 %v274, %v2102
      %v2108 = vmul.f32 %v275, %v2102
      %v2109 = vmul.f32 %v276, %v2102
      %v2110 = vmul.f32 %v277, %v2102
      %v2111 = vmul.f32 %v278, %v2102
      %v2112 = vmul.f32 %v279, %v2102
      %v2113 = vmul.f32 %v280, %v2102
      %v2114 = vmul.f32 %v281, %v2102
      %v2115 = vmul.f32 %v282, %v2102
      %v2116 = vmul.f32 %v283, %v2102
      %v2117 = vmul.f32 %v284, %v2102
      %v2118 = vmul.f32 %v285, %v2102
      %v2119 = vmul.f32 %v286, %v2102
      %v2120 = vmul.f32 %v287, %v2102
      %v2121 = vmul.f32 %v288, %v2102
      %v2122 = vmul.f32 %v289, %v2102
      %v2123 = vmul.f32 %v290, %v2102
      %v2124 = vmul.f32 %v291, %v2102
      %v2125 = vmul.f32 %v292, %v2102
      %v2126 = vmul.f32 %v293, %v2102
      %v2127 = vmul.f32 %v294, %v2102
      %v2128 = vmul.f32 %v295, %v2102
      %v2129 = vmul.f32 %v296, %v2102
      %v2130 = vmul.f32 %v297, %v2102
      %v2131 = vmul.f32 %v298, %v2102
      %v2132 = vmul.f32 %v299, %v2102
      %v2133 = vmul.f32 %v300, %v2102
      %v2134 = vmul.f32 %v301, %v2102
      %v2135 = vadd.f32 %v2069, %v2103
      %v2136 = vadd.f32 %v2070, %v2104
      %v2137 = vadd.f32 %v2071, %v2105
      %v2138 = vadd.f32 %v2072, %v2106
      %v2139 = vadd.f32 %v2073, %v2107
      %v2140 = vadd.f32 %v2074, %v2108
      %v2141 = vadd.f32 %v2075, %v2109
      %v2142 = vadd.f32 %v2076, %v2110
      %v2143 = vadd.f32 %v2077, %v2111
      %v2144 = vadd.f32 %v2078, %v2112
      %v2145 = vadd.f32 %v2079, %v2113
      %v2146 = vadd.f32 %v2080, %v2114
      %v2147 = vadd.f32 %v2081, %v2115
      %v2148 = vadd.f32 %v2082, %v2116
      %v2149 = vadd.f32 %v2083, %v2117
      %v2150 = vadd.f32 %v2084, %v2118
      %v2151 = vadd.f32 %v2085, %v2119
      %v2152 = vadd.f32 %v2086, %v2120
      %v2153 = vadd.f32 %v2087, %v2121
      %v2154 = vadd.f32 %v2088, %v2122
      %v2155 = vadd.f32 %v2089, %v2123
      %v2156 = vadd.f32 %v2090, %v2124
      %v2157 = vadd.f32 %v2091, %v2125
      %v2158 = vadd.f32 %v2092, %v2126
      %v2159 = vadd.f32 %v2093, %v2127
      %v2160 = vadd.f32 %v2094, %v2128
      %v2161 = vadd.f32 %v2095, %v2129
      %v2162 = vadd.f32 %v2096, %v2130
      %v2163 = vadd.f32 %v2097, %v2131
      %v2164 = vadd.f32 %v2098, %v2132
      %v2165 = vadd.f32 %v2099, %v2133
      %v2166 = vadd.f32 %v2100, %v2134
      %v2167 = vld [vmem:[%s1 + $0x18] sm:$0x1]
      %v2168 = vperm.slane %v2167, 0
      %v2169 = vmul.f32 %v303, %v2168
      %v2170 = vmul.f32 %v304, %v2168
      %v2171 = vmul.f32 %v305, %v2168
      %v2172 = vmul.f32 %v306, %v2168
      %v2173 = vmul.f32 %v307, %v2168
      %v2174 = vmul.f32 %v308, %v2168
      %v2175 = vmul.f32 %v309, %v2168
      %v2176 = vmul.f32 %v310, %v2168
      %v2177 = vmul.f32 %v311, %v2168
      %v2178 = vmul.f32 %v312, %v2168
      %v2179 = vmul.f32 %v313, %v2168
      %v2180 = vmul.f32 %v314, %v2168
      %v2181 = vmul.f32 %v315, %v2168
      %v2182 = vmul.f32 %v316, %v2168
      %v2183 = vmul.f32 %v317, %v2168
      %v2184 = vmul.f32 %v318, %v2168
      %v2185 = vmul.f32 %v319, %v2168
      %v2186 = vmul.f32 %v320, %v2168
      %v2187 = vmul.f32 %v321, %v2168
      %v2188 = vmul.f32 %v322, %v2168
      %v2189 = vmul.f32 %v323, %v2168
      %v2190 = vmul.f32 %v324, %v2168
      %v2191 = vmul.f32 %v325, %v2168
      %v2192 = vmul.f32 %v326, %v2168
      %v2193 = vmul.f32 %v327, %v2168
      %v2194 = vmul.f32 %v328, %v2168
      %v2195 = vmul.f32 %v329, %v2168
      %v2196 = vmul.f32 %v330, %v2168
      %v2197 = vmul.f32 %v331, %v2168
      %v2198 = vmul.f32 %v332, %v2168
      %v2199 = vmul.f32 %v333, %v2168
      %v2200 = vmul.f32 %v334, %v2168
      %v2201 = vadd.f32 %v2135, %v2169
      %v2202 = vadd.f32 %v2136, %v2170
      %v2203 = vadd.f32 %v2137, %v2171
      %v2204 = vadd.f32 %v2138, %v2172
      %v2205 = vadd.f32 %v2139, %v2173
      %v2206 = vadd.f32 %v2140, %v2174
      %v2207 = vadd.f32 %v2141, %v2175
      %v2208 = vadd.f32 %v2142, %v2176
      %v2209 = vadd.f32 %v2143, %v2177
      %v2210 = vadd.f32 %v2144, %v2178
      %v2211 = vadd.f32 %v2145, %v2179
      %v2212 = vadd.f32 %v2146, %v2180
      %v2213 = vadd.f32 %v2147, %v2181
      %v2214 = vadd.f32 %v2148, %v2182
      %v2215 = vadd.f32 %v2149, %v2183
      %v2216 = vadd.f32 %v2150, %v2184
      %v2217 = vadd.f32 %v2151, %v2185
      %v2218 = vadd.f32 %v2152, %v2186
      %v2219 = vadd.f32 %v2153, %v2187
      %v2220 = vadd.f32 %v2154, %v2188
      %v2221 = vadd.f32 %v2155, %v2189
      %v2222 = vadd.f32 %v2156, %v2190
      %v2223 = vadd.f32 %v2157, %v2191
      %v2224 = vadd.f32 %v2158, %v2192
      %v2225 = vadd.f32 %v2159, %v2193
      %v2226 = vadd.f32 %v2160, %v2194
      %v2227 = vadd.f32 %v2161, %v2195
      %v2228 = vadd.f32 %v2162, %v2196
      %v2229 = vadd.f32 %v2163, %v2197
      %v2230 = vadd.f32 %v2164, %v2198
      %v2231 = vadd.f32 %v2165, %v2199
      %v2232 = vadd.f32 %v2166, %v2200
      %v2233 = vrot.slane %v2201, 2
      %v2234 = vrot.slane %v2202, 2
      %v2235 = vrot.slane %v2203, 2
      %v2236 = vrot.slane %v2204, 2
      %v2237 = vrot.slane %v2205, 2
      %v2238 = vrot.slane %v2206, 2
      %v2239 = vrot.slane %v2207, 2
      %v2240 = vrot.slane %v2208, 2
      %v2241 = vrot.slane %v2209, 2
      %v2242 = vrot.slane %v2210, 2
      %v2243 = vrot.slane %v2211, 2
      %v2244 = vrot.slane %v2212, 2
      %v2245 = vrot.slane %v2213, 2
      %v2246 = vrot.slane %v2214, 2
      %v2247 = vrot.slane %v2215, 2
      %v2248 = vrot.slane %v2216, 2
      %v2249 = vrot.slane %v2217, 2
      %v2250 = vrot.slane %v2218, 2
      %v2251 = vrot.slane %v2219, 2
      %v2252 = vrot.slane %v2220, 2
      %v2253 = vrot.slane %v2221, 2
      %v2254 = vrot.slane %v2222, 2
      %v2255 = vrot.slane %v2223, 2
      %v2256 = vrot.slane %v2224, 2
      %v2257 = vrot.slane %v2225, 2
      %v2258 = vrot.slane %v2226, 2
      %v2259 = vrot.slane %v2227, 2
      %v2260 = vrot.slane %v2228, 2
      %v2261 = vrot.slane %v2229, 2
      %v2262 = vrot.slane %v2230, 2
      %v2263 = vrot.slane %v2231, 2
      %v2264 = vrot.slane %v2232, 2
      %vm2265 = vcmp.lt.s32.totalorder %v666, 6
      %v2266 = vsel %vm2265, %v2263, %v2264
      %v2267 = vsel %vm2265, %v2262, %v2263
      %v2268 = vsel %vm2265, %v2261, %v2262
      %v2269 = vsel %vm2265, %v2260, %v2261
      %v2270 = vsel %vm2265, %v2259, %v2260
      %v2271 = vsel %vm2265, %v2258, %v2259
      %v2272 = vsel %vm2265, %v2257, %v2258
      %v2273 = vsel %vm2265, %v2256, %v2257
      %v2274 = vsel %vm2265, %v2255, %v2256
      %v2275 = vsel %vm2265, %v2254, %v2255
      %v2276 = vsel %vm2265, %v2253, %v2254
      %v2277 = vsel %vm2265, %v2252, %v2253
      %v2278 = vsel %vm2265, %v2251, %v2252
      %v2279 = vsel %vm2265, %v2250, %v2251
      %v2280 = vsel %vm2265, %v2249, %v2250
      %v2281 = vsel %vm2265, %v2248, %v2249
      %v2282 = vsel %vm2265, %v2247, %v2248
      %v2283 = vsel %vm2265, %v2246, %v2247
      %v2284 = vsel %vm2265, %v2245, %v2246
      %v2285 = vsel %vm2265, %v2244, %v2245
      %v2286 = vsel %vm2265, %v2243, %v2244
      %v2287 = vsel %vm2265, %v2242, %v2243
      %v2288 = vsel %vm2265, %v2241, %v2242
      %v2289 = vsel %vm2265, %v2240, %v2241
      %v2290 = vsel %vm2265, %v2239, %v2240
      %v2291 = vsel %vm2265, %v2238, %v2239
      %v2292 = vsel %vm2265, %v2237, %v2238
      %v2293 = vsel %vm2265, %v2236, %v2237
      %v2294 = vsel %vm2265, %v2235, %v2236
      %v2295 = vsel %vm2265, %v2234, %v2235
      %v2296 = vsel %vm2265, %v2233, %v2234
      %v2297 = vsel %vm2265, %v2264, %v2233
      %vm2298 = vcmp.lt.s32.totalorder %v666, 14
      %vm2299 = vcmp.lt.s32.totalorder %v700, 14
      %v2300 = vsel %vm2298, 1, 0
      %v2301 = vsel %vm2299, 1, 0
      %vm2302 = vcmp.eq.s32.totalorder %v2300, 1
      %vm2303 = vcmp.eq.s32.totalorder %v2301, 1
      %v2304 = vsel %vm2302, %v2296, 0.0
      %v2305 = vsel %vm2303, %v2295, 0.0
      %v2306 = vsel %vm2302, %v2294, 0.0
      %v2307 = vsel %vm2303, %v2293, 0.0
      %v2308 = vsel %vm2302, %v2292, 0.0
      %v2309 = vsel %vm2303, %v2291, 0.0
      %v2310 = vsel %vm2302, %v2290, 0.0
      %v2311 = vsel %vm2303, %v2289, 0.0
      %v2312 = vsel %vm2302, %v2288, 0.0
      %v2313 = vsel %vm2303, %v2287, 0.0
      %v2314 = vsel %vm2302, %v2286, 0.0
      %v2315 = vsel %vm2303, %v2285, 0.0
      %v2316 = vsel %vm2302, %v2284, 0.0
      %v2317 = vsel %vm2303, %v2283, 0.0
      %v2318 = vsel %vm2302, %v2282, 0.0
      %v2319 = vsel %vm2303, %v2281, 0.0
      %v2320 = vsel %vm2302, %v2280, 0.0
      %v2321 = vsel %vm2303, %v2279, 0.0
      %v2322 = vsel %vm2302, %v2278, 0.0
      %v2323 = vsel %vm2303, %v2277, 0.0
      %v2324 = vsel %vm2302, %v2276, 0.0
      %v2325 = vsel %vm2303, %v2275, 0.0
      %v2326 = vsel %vm2302, %v2274, 0.0
      %v2327 = vsel %vm2303, %v2273, 0.0
      %v2328 = vsel %vm2302, %v2272, 0.0
      %v2329 = vsel %vm2303, %v2271, 0.0
      %v2330 = vsel %vm2302, %v2270, 0.0
      %v2331 = vsel %vm2303, %v2269, 0.0
      %v2332 = vsel %vm2302, %v2268, 0.0
      %v2333 = vsel %vm2303, %v2267, 0.0
      %v2334 = vsel %vm2302, %v2266, 0.0
      %v2335 = vsel %vm2303, %v2297, 0.0
      %v2336 = vadd.f32 %v1903, %v2304
      %v2337 = vadd.f32 %v1904, %v2305
      %v2338 = vadd.f32 %v1905, %v2306
      %v2339 = vadd.f32 %v1906, %v2307
      %v2340 = vadd.f32 %v1907, %v2308
      %v2341 = vadd.f32 %v1908, %v2309
      %v2342 = vadd.f32 %v1909, %v2310
      %v2343 = vadd.f32 %v1910, %v2311
      %v2344 = vadd.f32 %v1911, %v2312
      %v2345 = vadd.f32 %v1912, %v2313
      %v2346 = vadd.f32 %v1913, %v2314
      %v2347 = vadd.f32 %v1914, %v2315
      %v2348 = vadd.f32 %v1915, %v2316
      %v2349 = vadd.f32 %v1916, %v2317
      %v2350 = vadd.f32 %v1917, %v2318
      %v2351 = vadd.f32 %v1918, %v2319
      %v2352 = vadd.f32 %v1919, %v2320
      %v2353 = vadd.f32 %v1920, %v2321
      %v2354 = vadd.f32 %v1921, %v2322
      %v2355 = vadd.f32 %v1922, %v2323
      %v2356 = vadd.f32 %v1923, %v2324
      %v2357 = vadd.f32 %v1924, %v2325
      %v2358 = vadd.f32 %v1925, %v2326
      %v2359 = vadd.f32 %v1926, %v2327
      %v2360 = vadd.f32 %v1927, %v2328
      %v2361 = vadd.f32 %v1928, %v2329
      %v2362 = vadd.f32 %v1929, %v2330
      %v2363 = vadd.f32 %v1930, %v2331
      %v2364 = vadd.f32 %v1931, %v2332
      %v2365 = vadd.f32 %v1932, %v2333
      %v2366 = vadd.f32 %v1933, %v2334
      %v2367 = vadd.f32 %v1934, %v2335
      %v2368 = vpack.c.bf16 %v2337, %v2336
      %v2369 = vpack.c.bf16 %v2339, %v2338
      %v2370 = vpack.c.bf16 %v2341, %v2340
      %v2371 = vpack.c.bf16 %v2343, %v2342
      %v2372 = vpack.c.bf16 %v2345, %v2344
      %v2373 = vpack.c.bf16 %v2347, %v2346
      %v2374 = vpack.c.bf16 %v2349, %v2348
      %v2375 = vpack.c.bf16 %v2351, %v2350
      %v2376 = vpack.c.bf16 %v2353, %v2352
      %v2377 = vpack.c.bf16 %v2355, %v2354
      %v2378 = vpack.c.bf16 %v2357, %v2356
      %v2379 = vpack.c.bf16 %v2359, %v2358
      %v2380 = vpack.c.bf16 %v2361, %v2360
      %v2381 = vpack.c.bf16 %v2363, %v2362
      %v2382 = vpack.c.bf16 %v2365, %v2364
      %v2383 = vpack.c.bf16 %v2367, %v2366
      %v2384 = vld [vmem:[%s2] sm:$0xf]
      %v2385 = vld [vmem:[%s2 + $0x4] sm:$0xf]
      %v2386 = vld [vmem:[%s2 + $0x8] sm:$0xf]
      %v2387 = vld [vmem:[%s2 + $0xc] sm:$0xf]
      %v2388 = vld [vmem:[%s2 + $0x10] sm:$0xf]
      %v2389 = vld [vmem:[%s2 + $0x14] sm:$0xf]
      %v2390 = vld [vmem:[%s2 + $0x18] sm:$0xf]
      %v2391 = vld [vmem:[%s2 + $0x1c] sm:$0xf]
      %v2392 = vld [vmem:[%s2 + $0x20] sm:$0xf]
      %v2393 = vld [vmem:[%s2 + $0x24] sm:$0xf]
      %v2394 = vld [vmem:[%s2 + $0x28] sm:$0xf]
      %v2395 = vld [vmem:[%s2 + $0x2c] sm:$0xf]
      %v2396 = vld [vmem:[%s2 + $0x30] sm:$0xf]
      %v2397 = vld [vmem:[%s2 + $0x34] sm:$0xf]
      %v2398 = vld [vmem:[%s2 + $0x38] sm:$0xf]
      %v2399 = vld [vmem:[%s2 + $0x3c] sm:$0xf]
      %v2416 = vunpack.c.l.b16 %v2384
      %v2417 = vunpack.c.l.b16 %v2385
      %v2418 = vunpack.c.l.b16 %v2386
      %v2419 = vunpack.c.l.b16 %v2387
      %v2420 = vunpack.c.l.b16 %v2388
      %v2421 = vunpack.c.l.b16 %v2389
      %v2422 = vunpack.c.l.b16 %v2390
      %v2423 = vunpack.c.l.b16 %v2391
      %v2424 = vunpack.c.l.b16 %v2392
      %v2425 = vunpack.c.l.b16 %v2393
      %v2426 = vunpack.c.l.b16 %v2394
      %v2427 = vunpack.c.l.b16 %v2395
      %v2428 = vunpack.c.l.b16 %v2396
      %v2429 = vunpack.c.l.b16 %v2397
      %v2430 = vunpack.c.l.b16 %v2398
      %v2431 = vunpack.c.l.b16 %v2399
      %v2432 = vpack.c.b16 %v2417, %v2416
      %v2433 = vpack.c.b16 %v2419, %v2418
      %v2434 = vpack.c.b16 %v2421, %v2420
      %v2435 = vpack.c.b16 %v2423, %v2422
      %v2436 = vpack.c.b16 %v2425, %v2424
      %v2437 = vpack.c.b16 %v2427, %v2426
      %v2438 = vpack.c.b16 %v2429, %v2428
      %v2439 = vpack.c.b16 %v2431, %v2430
      %2448 = vmatpush.bf16.msra.mxu0 %v2439
      %2449 = vmatpush.bf16.msra.mxu0 %v2438
      %2450 = vmatpush.bf16.msra.mxu0 %v2437
      %2451 = vmatpush.bf16.msra.mxu0 %v2436
      %2452 = vmatpush.bf16.msra.mxu0 %v2435
      %2453 = vmatpush.bf16.msra.mxu0 %v2434
      %2454 = vmatpush.bf16.msra.mxu0 %v2433
      %2455 = vmatpush.bf16.msra.mxu0 %v2432
      %2456 = vmatmul.bf16.gmra.mxu0 %v2368
      %v2457 = vpop.f32.mrf.mxu0
      %v2458 = vadd.f32 0.0, %v2457
      %v2459 = vpop.f32.mrf.mxu0
      %v2460 = vadd.f32 0.0, %v2459
      %2461 = vmatmul.bf16.gmra.mxu0 %v2369
      %v2462 = vpop.f32.mrf.mxu0
      %v2463 = vadd.f32 0.0, %v2462
      %v2464 = vpop.f32.mrf.mxu0
      %v2465 = vadd.f32 0.0, %v2464
      %2466 = vmatmul.bf16.gmra.mxu0 %v2370
      %v2467 = vpop.f32.mrf.mxu0
      %v2468 = vadd.f32 0.0, %v2467
      %v2469 = vpop.f32.mrf.mxu0
      %v2470 = vadd.f32 0.0, %v2469
      %2471 = vmatmul.bf16.gmra.mxu0 %v2371
      %v2472 = vpop.f32.mrf.mxu0
      %v2473 = vadd.f32 0.0, %v2472
      %v2474 = vpop.f32.mrf.mxu0
      %v2475 = vadd.f32 0.0, %v2474
      %2476 = vmatmul.bf16.gmra.mxu0 %v2372
      %v2477 = vpop.f32.mrf.mxu0
      %v2478 = vadd.f32 0.0, %v2477
      %v2479 = vpop.f32.mrf.mxu0
      %v2480 = vadd.f32 0.0, %v2479
      %2481 = vmatmul.bf16.gmra.mxu0 %v2373
      %v2482 = vpop.f32.mrf.mxu0
      %v2483 = vadd.f32 0.0, %v2482
      %v2484 = vpop.f32.mrf.mxu0
      %v2485 = vadd.f32 0.0, %v2484
      %2486 = vmatmul.bf16.gmra.mxu0 %v2374
      %v2487 = vpop.f32.mrf.mxu0
      %v2488 = vadd.f32 0.0, %v2487
      %v2489 = vpop.f32.mrf.mxu0
      %v2490 = vadd.f32 0.0, %v2489
      %2491 = vmatmul.bf16.gmra.mxu0 %v2375
      %v2492 = vpop.f32.mrf.mxu0
      %v2493 = vadd.f32 0.0, %v2492
      %v2494 = vpop.f32.mrf.mxu0
      %v2495 = vadd.f32 0.0, %v2494
      %2496 = vmatmul.bf16.gmra.mxu0 %v2376
      %v2497 = vpop.f32.mrf.mxu0
      %v2498 = vadd.f32 0.0, %v2497
      %v2499 = vpop.f32.mrf.mxu0
      %v2500 = vadd.f32 0.0, %v2499
      %2501 = vmatmul.bf16.gmra.mxu0 %v2377
      %v2502 = vpop.f32.mrf.mxu0
      %v2503 = vadd.f32 0.0, %v2502
      %v2504 = vpop.f32.mrf.mxu0
      %v2505 = vadd.f32 0.0, %v2504
      %2506 = vmatmul.bf16.gmra.mxu0 %v2378
      %v2507 = vpop.f32.mrf.mxu0
      %v2508 = vadd.f32 0.0, %v2507
      %v2509 = vpop.f32.mrf.mxu0
      %v2510 = vadd.f32 0.0, %v2509
      %2511 = vmatmul.bf16.gmra.mxu0 %v2379
      %v2512 = vpop.f32.mrf.mxu0
      %v2513 = vadd.f32 0.0, %v2512
      %v2514 = vpop.f32.mrf.mxu0
      %v2515 = vadd.f32 0.0, %v2514
      %2516 = vmatmul.bf16.gmra.mxu0 %v2380
      %v2517 = vpop.f32.mrf.mxu0
      %v2518 = vadd.f32 0.0, %v2517
      %v2519 = vpop.f32.mrf.mxu0
      %v2520 = vadd.f32 0.0, %v2519
      %2521 = vmatmul.bf16.gmra.mxu0 %v2381
      %v2522 = vpop.f32.mrf.mxu0
      %v2523 = vadd.f32 0.0, %v2522
      %v2524 = vpop.f32.mrf.mxu0
      %v2525 = vadd.f32 0.0, %v2524
      %2526 = vmatmul.bf16.gmra.mxu0 %v2382
      %v2527 = vpop.f32.mrf.mxu0
      %v2528 = vadd.f32 0.0, %v2527
      %v2529 = vpop.f32.mrf.mxu0
      %v2530 = vadd.f32 0.0, %v2529
      %2531 = vmatmul.bf16.gmra.mxu0 %v2383
      %v2532 = vpop.f32.mrf.mxu0
      %v2533 = vadd.f32 0.0, %v2532
      %v2534 = vpop.f32.mrf.mxu0
      %v2535 = vadd.f32 0.0, %v2534
      %2536 = vdwg.mxu0
      %v2537 = vmax.f32 %v2458, 0.0
      %v2538 = vmax.f32 %v2460, 0.0
      %v2539 = vmax.f32 %v2463, 0.0
      %v2540 = vmax.f32 %v2465, 0.0
      %v2541 = vmax.f32 %v2468, 0.0
      %v2542 = vmax.f32 %v2470, 0.0
      %v2543 = vmax.f32 %v2473, 0.0
      %v2544 = vmax.f32 %v2475, 0.0
      %v2545 = vmax.f32 %v2478, 0.0
      %v2546 = vmax.f32 %v2480, 0.0
      %v2547 = vmax.f32 %v2483, 0.0
      %v2548 = vmax.f32 %v2485, 0.0
      %v2549 = vmax.f32 %v2488, 0.0
      %v2550 = vmax.f32 %v2490, 0.0
      %v2551 = vmax.f32 %v2493, 0.0
      %v2552 = vmax.f32 %v2495, 0.0
      %v2553 = vmax.f32 %v2498, 0.0
      %v2554 = vmax.f32 %v2500, 0.0
      %v2555 = vmax.f32 %v2503, 0.0
      %v2556 = vmax.f32 %v2505, 0.0
      %v2557 = vmax.f32 %v2508, 0.0
      %v2558 = vmax.f32 %v2510, 0.0
      %v2559 = vmax.f32 %v2513, 0.0
      %v2560 = vmax.f32 %v2515, 0.0
      %v2561 = vmax.f32 %v2518, 0.0
      %v2562 = vmax.f32 %v2520, 0.0
      %v2563 = vmax.f32 %v2523, 0.0
      %v2564 = vmax.f32 %v2525, 0.0
      %v2565 = vmax.f32 %v2528, 0.0
      %v2566 = vmax.f32 %v2530, 0.0
      %v2567 = vmax.f32 %v2533, 0.0
      %v2568 = vmax.f32 %v2535, 0.0
      %2569 = vst [vmem:[%s236] sm:$0xff] %v2537
      %2570 = vst [vmem:[%s236 + $0x8] sm:$0xff] %v2538
      %2571 = vst [vmem:[%s236 + $0x10] sm:$0xff] %v2539
      %2572 = vst [vmem:[%s236 + $0x18] sm:$0xff] %v2540
      %2573 = vst [vmem:[%s236 + $0x20] sm:$0xff] %v2541
      %2574 = vst [vmem:[%s236 + $0x28] sm:$0xff] %v2542
      %2575 = vst [vmem:[%s236 + $0x30] sm:$0xff] %v2543
      %2576 = vst [vmem:[%s236 + $0x38] sm:$0xff] %v2544
      %2577 = vst [vmem:[%s236 + $0x40] sm:$0xff] %v2545
      %2578 = vst [vmem:[%s236 + $0x48] sm:$0xff] %v2546
      %2579 = vst [vmem:[%s236 + $0x50] sm:$0xff] %v2547
      %2580 = vst [vmem:[%s236 + $0x58] sm:$0xff] %v2548
      %2581 = vst [vmem:[%s236 + $0x60] sm:$0xff] %v2549
      %2582 = vst [vmem:[%s236 + $0x68] sm:$0xff] %v2550
      %2583 = vst [vmem:[%s236 + $0x70] sm:$0xff] %v2551
      %2584 = vst [vmem:[%s236 + $0x78] sm:$0xff] %v2552
      %2585 = vst [vmem:[%s236 + $0x80] sm:$0xff] %v2553
      %2586 = vst [vmem:[%s236 + $0x88] sm:$0xff] %v2554
      %2587 = vst [vmem:[%s236 + $0x90] sm:$0xff] %v2555
      %2588 = vst [vmem:[%s236 + $0x98] sm:$0xff] %v2556
      %2589 = vst [vmem:[%s236 + $0xa0] sm:$0xff] %v2557
      %2590 = vst [vmem:[%s236 + $0xa8] sm:$0xff] %v2558
      %2591 = vst [vmem:[%s236 + $0xb0] sm:$0xff] %v2559
      %2592 = vst [vmem:[%s236 + $0xb8] sm:$0xff] %v2560
      %2593 = vst [vmem:[%s236 + $0xc0] sm:$0xff] %v2561
      %2594 = vst [vmem:[%s236 + $0xc8] sm:$0xff] %v2562
      %2595 = vst [vmem:[%s236 + $0xd0] sm:$0xff] %v2563
      %2596 = vst [vmem:[%s236 + $0xd8] sm:$0xff] %v2564
      %2597 = vst [vmem:[%s236 + $0xe0] sm:$0xff] %v2565
      %2598 = vst [vmem:[%s236 + $0xe8] sm:$0xff] %v2566
      %2599 = vst [vmem:[%s236 + $0xf0] sm:$0xff] %v2567
      %2600 = vst [vmem:[%s236 + $0xf8] sm:$0xff] %v2568
      %v2601 = vld [vmem:[%s203] sm:$0xff]
      %v2602 = vld [vmem:[%s203 + $0x8] sm:$0xff]
      %v2603 = vld [vmem:[%s203 + $0x10] sm:$0xff]
      %v2604 = vld [vmem:[%s203 + $0x18] sm:$0xff]
      %v2605 = vld [vmem:[%s203 + $0x20] sm:$0xff]
      %v2606 = vld [vmem:[%s203 + $0x28] sm:$0xff]
      %v2607 = vld [vmem:[%s203 + $0x30] sm:$0xff]
      %v2608 = vld [vmem:[%s203 + $0x38] sm:$0xff]
      %v2609 = vld [vmem:[%s203 + $0x40] sm:$0xff]
      %v2610 = vld [vmem:[%s203 + $0x48] sm:$0xff]
      %v2611 = vld [vmem:[%s203 + $0x50] sm:$0xff]
      %v2612 = vld [vmem:[%s203 + $0x58] sm:$0xff]
      %v2613 = vld [vmem:[%s203 + $0x60] sm:$0xff]
      %v2614 = vld [vmem:[%s203 + $0x68] sm:$0xff]
      %v2615 = vld [vmem:[%s203 + $0x70] sm:$0xff]
      %v2616 = vld [vmem:[%s203 + $0x78] sm:$0xff]
      %v2617 = vld [vmem:[%s203 + $0x80] sm:$0xff]
      %v2618 = vld [vmem:[%s203 + $0x88] sm:$0xff]
      %v2619 = vld [vmem:[%s203 + $0x90] sm:$0xff]
      %v2620 = vld [vmem:[%s203 + $0x98] sm:$0xff]
      %v2621 = vld [vmem:[%s203 + $0xa0] sm:$0xff]
      %v2622 = vld [vmem:[%s203 + $0xa8] sm:$0xff]
      %v2623 = vld [vmem:[%s203 + $0xb0] sm:$0xff]
      %v2624 = vld [vmem:[%s203 + $0xb8] sm:$0xff]
      %v2625 = vld [vmem:[%s203 + $0xc0] sm:$0xff]
      %v2626 = vld [vmem:[%s203 + $0xc8] sm:$0xff]
      %v2627 = vld [vmem:[%s203 + $0xd0] sm:$0xff]
      %v2628 = vld [vmem:[%s203 + $0xd8] sm:$0xff]
      %v2629 = vld [vmem:[%s203 + $0xe0] sm:$0xff]
      %v2630 = vld [vmem:[%s203 + $0xe8] sm:$0xff]
      %v2631 = vld [vmem:[%s203 + $0xf0] sm:$0xff]
      %v2632 = vld [vmem:[%s203 + $0xf8] sm:$0xff]
      %v2633 = vld [vmem:[%s236] sm:$0xff]
      %v2634 = vld [vmem:[%s236 + $0x8] sm:$0xff]
      %v2635 = vld [vmem:[%s236 + $0x10] sm:$0xff]
      %v2636 = vld [vmem:[%s236 + $0x18] sm:$0xff]
      %v2637 = vld [vmem:[%s236 + $0x20] sm:$0xff]
      %v2638 = vld [vmem:[%s236 + $0x28] sm:$0xff]
      %v2639 = vld [vmem:[%s236 + $0x30] sm:$0xff]
      %v2640 = vld [vmem:[%s236 + $0x38] sm:$0xff]
      %v2641 = vld [vmem:[%s236 + $0x40] sm:$0xff]
      %v2642 = vld [vmem:[%s236 + $0x48] sm:$0xff]
      %v2643 = vld [vmem:[%s236 + $0x50] sm:$0xff]
      %v2644 = vld [vmem:[%s236 + $0x58] sm:$0xff]
      %v2645 = vld [vmem:[%s236 + $0x60] sm:$0xff]
      %v2646 = vld [vmem:[%s236 + $0x68] sm:$0xff]
      %v2647 = vld [vmem:[%s236 + $0x70] sm:$0xff]
      %v2648 = vld [vmem:[%s236 + $0x78] sm:$0xff]
      %v2649 = vld [vmem:[%s236 + $0x80] sm:$0xff]
      %v2650 = vld [vmem:[%s236 + $0x88] sm:$0xff]
      %v2651 = vld [vmem:[%s236 + $0x90] sm:$0xff]
      %v2652 = vld [vmem:[%s236 + $0x98] sm:$0xff]
      %v2653 = vld [vmem:[%s236 + $0xa0] sm:$0xff]
      %v2654 = vld [vmem:[%s236 + $0xa8] sm:$0xff]
      %v2655 = vld [vmem:[%s236 + $0xb0] sm:$0xff]
      %v2656 = vld [vmem:[%s236 + $0xb8] sm:$0xff]
      %v2657 = vld [vmem:[%s236 + $0xc0] sm:$0xff]
      %v2658 = vld [vmem:[%s236 + $0xc8] sm:$0xff]
      %v2659 = vld [vmem:[%s236 + $0xd0] sm:$0xff]
      %v2660 = vld [vmem:[%s236 + $0xd8] sm:$0xff]
      %v2661 = vld [vmem:[%s236 + $0xe0] sm:$0xff]
      %v2662 = vld [vmem:[%s236 + $0xe8] sm:$0xff]
      %v2663 = vld [vmem:[%s236 + $0xf0] sm:$0xff]
      %v2664 = vld [vmem:[%s236 + $0xf8] sm:$0xff]
      %v2665 = vld [vmem:[%s269] sm:$0xff]
      %v2666 = vld [vmem:[%s269 + $0x8] sm:$0xff]
      %v2667 = vld [vmem:[%s269 + $0x10] sm:$0xff]
      %v2668 = vld [vmem:[%s269 + $0x18] sm:$0xff]
      %v2669 = vld [vmem:[%s269 + $0x20] sm:$0xff]
      %v2670 = vld [vmem:[%s269 + $0x28] sm:$0xff]
      %v2671 = vld [vmem:[%s269 + $0x30] sm:$0xff]
      %v2672 = vld [vmem:[%s269 + $0x38] sm:$0xff]
      %v2673 = vld [vmem:[%s269 + $0x40] sm:$0xff]
      %v2674 = vld [vmem:[%s269 + $0x48] sm:$0xff]
      %v2675 = vld [vmem:[%s269 + $0x50] sm:$0xff]
      %v2676 = vld [vmem:[%s269 + $0x58] sm:$0xff]
      %v2677 = vld [vmem:[%s269 + $0x60] sm:$0xff]
      %v2678 = vld [vmem:[%s269 + $0x68] sm:$0xff]
      %v2679 = vld [vmem:[%s269 + $0x70] sm:$0xff]
      %v2680 = vld [vmem:[%s269 + $0x78] sm:$0xff]
      %v2681 = vld [vmem:[%s269 + $0x80] sm:$0xff]
      %v2682 = vld [vmem:[%s269 + $0x88] sm:$0xff]
      %v2683 = vld [vmem:[%s269 + $0x90] sm:$0xff]
      %v2684 = vld [vmem:[%s269 + $0x98] sm:$0xff]
      %v2685 = vld [vmem:[%s269 + $0xa0] sm:$0xff]
      %v2686 = vld [vmem:[%s269 + $0xa8] sm:$0xff]
      %v2687 = vld [vmem:[%s269 + $0xb0] sm:$0xff]
      %v2688 = vld [vmem:[%s269 + $0xb8] sm:$0xff]
      %v2689 = vld [vmem:[%s269 + $0xc0] sm:$0xff]
      %v2690 = vld [vmem:[%s269 + $0xc8] sm:$0xff]
      %v2691 = vld [vmem:[%s269 + $0xd0] sm:$0xff]
      %v2692 = vld [vmem:[%s269 + $0xd8] sm:$0xff]
      %v2693 = vld [vmem:[%s269 + $0xe0] sm:$0xff]
      %v2694 = vld [vmem:[%s269 + $0xe8] sm:$0xff]
      %v2695 = vld [vmem:[%s269 + $0xf0] sm:$0xff]
      %v2696 = vld [vmem:[%s269 + $0xf8] sm:$0xff]
      %v2697 = vld [vmem:[%s1 + $0x19] sm:$0x1]
      %v2698 = vperm.slane %v2697, 0
      %v2699 = vmul.f32 %v2601, %v2698
      %v2700 = vmul.f32 %v2602, %v2698
      %v2701 = vmul.f32 %v2603, %v2698
      %v2702 = vmul.f32 %v2604, %v2698
      %v2703 = vmul.f32 %v2605, %v2698
      %v2704 = vmul.f32 %v2606, %v2698
      %v2705 = vmul.f32 %v2607, %v2698
      %v2706 = vmul.f32 %v2608, %v2698
      %v2707 = vmul.f32 %v2609, %v2698
      %v2708 = vmul.f32 %v2610, %v2698
      %v2709 = vmul.f32 %v2611, %v2698
      %v2710 = vmul.f32 %v2612, %v2698
      %v2711 = vmul.f32 %v2613, %v2698
      %v2712 = vmul.f32 %v2614, %v2698
      %v2713 = vmul.f32 %v2615, %v2698
      %v2714 = vmul.f32 %v2616, %v2698
      %v2715 = vmul.f32 %v2617, %v2698
      %v2716 = vmul.f32 %v2618, %v2698
      %v2717 = vmul.f32 %v2619, %v2698
      %v2718 = vmul.f32 %v2620, %v2698
      %v2719 = vmul.f32 %v2621, %v2698
      %v2720 = vmul.f32 %v2622, %v2698
      %v2721 = vmul.f32 %v2623, %v2698
      %v2722 = vmul.f32 %v2624, %v2698
      %v2723 = vmul.f32 %v2625, %v2698
      %v2724 = vmul.f32 %v2626, %v2698
      %v2725 = vmul.f32 %v2627, %v2698
      %v2726 = vmul.f32 %v2628, %v2698
      %v2727 = vmul.f32 %v2629, %v2698
      %v2728 = vmul.f32 %v2630, %v2698
      %v2729 = vmul.f32 %v2631, %v2698
      %v2730 = vmul.f32 %v2632, %v2698
      %v2731 = vld [vmem:[%s1 + $0x1c] sm:$0x1]
      %v2732 = vperm.slane %v2731, 0
      %v2733 = vmul.f32 %v2633, %v2732
      %v2734 = vmul.f32 %v2634, %v2732
      %v2735 = vmul.f32 %v2635, %v2732
      %v2736 = vmul.f32 %v2636, %v2732
      %v2737 = vmul.f32 %v2637, %v2732
      %v2738 = vmul.f32 %v2638, %v2732
      %v2739 = vmul.f32 %v2639, %v2732
      %v2740 = vmul.f32 %v2640, %v2732
      %v2741 = vmul.f32 %v2641, %v2732
      %v2742 = vmul.f32 %v2642, %v2732
      %v2743 = vmul.f32 %v2643, %v2732
      %v2744 = vmul.f32 %v2644, %v2732
      %v2745 = vmul.f32 %v2645, %v2732
      %v2746 = vmul.f32 %v2646, %v2732
      %v2747 = vmul.f32 %v2647, %v2732
      %v2748 = vmul.f32 %v2648, %v2732
      %v2749 = vmul.f32 %v2649, %v2732
      %v2750 = vmul.f32 %v2650, %v2732
      %v2751 = vmul.f32 %v2651, %v2732
      %v2752 = vmul.f32 %v2652, %v2732
      %v2753 = vmul.f32 %v2653, %v2732
      %v2754 = vmul.f32 %v2654, %v2732
      %v2755 = vmul.f32 %v2655, %v2732
      %v2756 = vmul.f32 %v2656, %v2732
      %v2757 = vmul.f32 %v2657, %v2732
      %v2758 = vmul.f32 %v2658, %v2732
      %v2759 = vmul.f32 %v2659, %v2732
      %v2760 = vmul.f32 %v2660, %v2732
      %v2761 = vmul.f32 %v2661, %v2732
      %v2762 = vmul.f32 %v2662, %v2732
      %v2763 = vmul.f32 %v2663, %v2732
      %v2764 = vmul.f32 %v2664, %v2732
      %v2765 = vadd.f32 %v2699, %v2733
      %v2766 = vadd.f32 %v2700, %v2734
      %v2767 = vadd.f32 %v2701, %v2735
      %v2768 = vadd.f32 %v2702, %v2736
      %v2769 = vadd.f32 %v2703, %v2737
      %v2770 = vadd.f32 %v2704, %v2738
      %v2771 = vadd.f32 %v2705, %v2739
      %v2772 = vadd.f32 %v2706, %v2740
      %v2773 = vadd.f32 %v2707, %v2741
      %v2774 = vadd.f32 %v2708, %v2742
      %v2775 = vadd.f32 %v2709, %v2743
      %v2776 = vadd.f32 %v2710, %v2744
      %v2777 = vadd.f32 %v2711, %v2745
      %v2778 = vadd.f32 %v2712, %v2746
      %v2779 = vadd.f32 %v2713, %v2747
      %v2780 = vadd.f32 %v2714, %v2748
      %v2781 = vadd.f32 %v2715, %v2749
      %v2782 = vadd.f32 %v2716, %v2750
      %v2783 = vadd.f32 %v2717, %v2751
      %v2784 = vadd.f32 %v2718, %v2752
      %v2785 = vadd.f32 %v2719, %v2753
      %v2786 = vadd.f32 %v2720, %v2754
      %v2787 = vadd.f32 %v2721, %v2755
      %v2788 = vadd.f32 %v2722, %v2756
      %v2789 = vadd.f32 %v2723, %v2757
      %v2790 = vadd.f32 %v2724, %v2758
      %v2791 = vadd.f32 %v2725, %v2759
      %v2792 = vadd.f32 %v2726, %v2760
      %v2793 = vadd.f32 %v2727, %v2761
      %v2794 = vadd.f32 %v2728, %v2762
      %v2795 = vadd.f32 %v2729, %v2763
      %v2796 = vadd.f32 %v2730, %v2764
      %v2797 = vld [vmem:[%s1 + $0x1f] sm:$0x1]
      %v2798 = vperm.slane %v2797, 0
      %v2799 = vmul.f32 %v2665, %v2798
      %v2800 = vmul.f32 %v2666, %v2798
      %v2801 = vmul.f32 %v2667, %v2798
      %v2802 = vmul.f32 %v2668, %v2798
      %v2803 = vmul.f32 %v2669, %v2798
      %v2804 = vmul.f32 %v2670, %v2798
      %v2805 = vmul.f32 %v2671, %v2798
      %v2806 = vmul.f32 %v2672, %v2798
      %v2807 = vmul.f32 %v2673, %v2798
      %v2808 = vmul.f32 %v2674, %v2798
      %v2809 = vmul.f32 %v2675, %v2798
      %v2810 = vmul.f32 %v2676, %v2798
      %v2811 = vmul.f32 %v2677, %v2798
      %v2812 = vmul.f32 %v2678, %v2798
      %v2813 = vmul.f32 %v2679, %v2798
      %v2814 = vmul.f32 %v2680, %v2798
      %v2815 = vmul.f32 %v2681, %v2798
      %v2816 = vmul.f32 %v2682, %v2798
      %v2817 = vmul.f32 %v2683, %v2798
      %v2818 = vmul.f32 %v2684, %v2798
      %v2819 = vmul.f32 %v2685, %v2798
      %v2820 = vmul.f32 %v2686, %v2798
      %v2821 = vmul.f32 %v2687, %v2798
      %v2822 = vmul.f32 %v2688, %v2798
      %v2823 = vmul.f32 %v2689, %v2798
      %v2824 = vmul.f32 %v2690, %v2798
      %v2825 = vmul.f32 %v2691, %v2798
      %v2826 = vmul.f32 %v2692, %v2798
      %v2827 = vmul.f32 %v2693, %v2798
      %v2828 = vmul.f32 %v2694, %v2798
      %v2829 = vmul.f32 %v2695, %v2798
      %v2830 = vmul.f32 %v2696, %v2798
      %v2831 = vadd.f32 %v2765, %v2799
      %v2832 = vadd.f32 %v2766, %v2800
      %v2833 = vadd.f32 %v2767, %v2801
      %v2834 = vadd.f32 %v2768, %v2802
      %v2835 = vadd.f32 %v2769, %v2803
      %v2836 = vadd.f32 %v2770, %v2804
      %v2837 = vadd.f32 %v2771, %v2805
      %v2838 = vadd.f32 %v2772, %v2806
      %v2839 = vadd.f32 %v2773, %v2807
      %v2840 = vadd.f32 %v2774, %v2808
      %v2841 = vadd.f32 %v2775, %v2809
      %v2842 = vadd.f32 %v2776, %v2810
      %v2843 = vadd.f32 %v2777, %v2811
      %v2844 = vadd.f32 %v2778, %v2812
      %v2845 = vadd.f32 %v2779, %v2813
      %v2846 = vadd.f32 %v2780, %v2814
      %v2847 = vadd.f32 %v2781, %v2815
      %v2848 = vadd.f32 %v2782, %v2816
      %v2849 = vadd.f32 %v2783, %v2817
      %v2850 = vadd.f32 %v2784, %v2818
      %v2851 = vadd.f32 %v2785, %v2819
      %v2852 = vadd.f32 %v2786, %v2820
      %v2853 = vadd.f32 %v2787, %v2821
      %v2854 = vadd.f32 %v2788, %v2822
      %v2855 = vadd.f32 %v2789, %v2823
      %v2856 = vadd.f32 %v2790, %v2824
      %v2857 = vadd.f32 %v2791, %v2825
      %v2858 = vadd.f32 %v2792, %v2826
      %v2859 = vadd.f32 %v2793, %v2827
      %v2860 = vadd.f32 %v2794, %v2828
      %v2861 = vadd.f32 %v2795, %v2829
      %v2862 = vadd.f32 %v2796, %v2830
      %v2863 = vrot.slane %v2831, 7
      %v2864 = vrot.slane %v2832, 7
      %v2865 = vrot.slane %v2833, 7
      %v2866 = vrot.slane %v2834, 7
      %v2867 = vrot.slane %v2835, 7
      %v2868 = vrot.slane %v2836, 7
      %v2869 = vrot.slane %v2837, 7
      %v2870 = vrot.slane %v2838, 7
      %v2871 = vrot.slane %v2839, 7
      %v2872 = vrot.slane %v2840, 7
      %v2873 = vrot.slane %v2841, 7
      %v2874 = vrot.slane %v2842, 7
      %v2875 = vrot.slane %v2843, 7
      %v2876 = vrot.slane %v2844, 7
      %v2877 = vrot.slane %v2845, 7
      %v2878 = vrot.slane %v2846, 7
      %v2879 = vrot.slane %v2847, 7
      %v2880 = vrot.slane %v2848, 7
      %v2881 = vrot.slane %v2849, 7
      %v2882 = vrot.slane %v2850, 7
      %v2883 = vrot.slane %v2851, 7
      %v2884 = vrot.slane %v2852, 7
      %v2885 = vrot.slane %v2853, 7
      %v2886 = vrot.slane %v2854, 7
      %v2887 = vrot.slane %v2855, 7
      %v2888 = vrot.slane %v2856, 7
      %v2889 = vrot.slane %v2857, 7
      %v2890 = vrot.slane %v2858, 7
      %v2891 = vrot.slane %v2859, 7
      %v2892 = vrot.slane %v2860, 7
      %v2893 = vrot.slane %v2861, 7
      %v2894 = vrot.slane %v2862, 7
      %v2895 = vsel %vm1069, %v2893, %v2894
      %v2896 = vsel %vm1069, %v2892, %v2893
      %v2897 = vsel %vm1069, %v2891, %v2892
      %v2898 = vsel %vm1069, %v2890, %v2891
      %v2899 = vsel %vm1069, %v2889, %v2890
      %v2900 = vsel %vm1069, %v2888, %v2889
      %v2901 = vsel %vm1069, %v2887, %v2888
      %v2902 = vsel %vm1069, %v2886, %v2887
      %v2903 = vsel %vm1069, %v2885, %v2886
      %v2904 = vsel %vm1069, %v2884, %v2885
      %v2905 = vsel %vm1069, %v2883, %v2884
      %v2906 = vsel %vm1069, %v2882, %v2883
      %v2907 = vsel %vm1069, %v2881, %v2882
      %v2908 = vsel %vm1069, %v2880, %v2881
      %v2909 = vsel %vm1069, %v2879, %v2880
      %v2910 = vsel %vm1069, %v2878, %v2879
      %v2911 = vsel %vm1069, %v2877, %v2878
      %v2912 = vsel %vm1069, %v2876, %v2877
      %v2913 = vsel %vm1069, %v2875, %v2876
      %v2914 = vsel %vm1069, %v2874, %v2875
      %v2915 = vsel %vm1069, %v2873, %v2874
      %v2916 = vsel %vm1069, %v2872, %v2873
      %v2917 = vsel %vm1069, %v2871, %v2872
      %v2918 = vsel %vm1069, %v2870, %v2871
      %v2919 = vsel %vm1069, %v2869, %v2870
      %v2920 = vsel %vm1069, %v2868, %v2869
      %v2921 = vsel %vm1069, %v2867, %v2868
      %v2922 = vsel %vm1069, %v2866, %v2867
      %v2923 = vsel %vm1069, %v2865, %v2866
      %v2924 = vsel %vm1069, %v2864, %v2865
      %v2925 = vsel %vm1069, %v2863, %v2864
      %v2926 = vsel %vm1069, %v2894, %v2863
      %v2927 = vsel %vm1106, %v2926, 0.0
      %v2928 = vsel %vm1107, %v2925, 0.0
      %v2929 = vsel %vm1106, %v2924, 0.0
      %v2930 = vsel %vm1107, %v2923, 0.0
      %v2931 = vsel %vm1106, %v2922, 0.0
      %v2932 = vsel %vm1107, %v2921, 0.0
      %v2933 = vsel %vm1106, %v2920, 0.0
      %v2934 = vsel %vm1107, %v2919, 0.0
      %v2935 = vsel %vm1106, %v2918, 0.0
      %v2936 = vsel %vm1107, %v2917, 0.0
      %v2937 = vsel %vm1106, %v2916, 0.0
      %v2938 = vsel %vm1107, %v2915, 0.0
      %v2939 = vsel %vm1106, %v2914, 0.0
      %v2940 = vsel %vm1107, %v2913, 0.0
      %v2941 = vsel %vm1106, %v2912, 0.0
      %v2942 = vsel %vm1107, %v2911, 0.0
      %v2943 = vsel %vm1106, %v2910, 0.0
      %v2944 = vsel %vm1107, %v2909, 0.0
      %v2945 = vsel %vm1106, %v2908, 0.0
      %v2946 = vsel %vm1107, %v2907, 0.0
      %v2947 = vsel %vm1106, %v2906, 0.0
      %v2948 = vsel %vm1107, %v2905, 0.0
      %v2949 = vsel %vm1106, %v2904, 0.0
      %v2950 = vsel %vm1107, %v2903, 0.0
      %v2951 = vsel %vm1106, %v2902, 0.0
      %v2952 = vsel %vm1107, %v2901, 0.0
      %v2953 = vsel %vm1106, %v2900, 0.0
      %v2954 = vsel %vm1107, %v2899, 0.0
      %v2955 = vsel %vm1106, %v2898, 0.0
      %v2956 = vsel %vm1107, %v2897, 0.0
      %v2957 = vsel %vm1106, %v2896, 0.0
      %v2958 = vsel %vm1107, %v2895, 0.0
      %v2959 = vld [vmem:[%s1 + $0x1a] sm:$0x1]
      %v2960 = vperm.slane %v2959, 0
      %v2961 = vmul.f32 %v2601, %v2960
      %v2962 = vmul.f32 %v2602, %v2960
      %v2963 = vmul.f32 %v2603, %v2960
      %v2964 = vmul.f32 %v2604, %v2960
      %v2965 = vmul.f32 %v2605, %v2960
      %v2966 = vmul.f32 %v2606, %v2960
      %v2967 = vmul.f32 %v2607, %v2960
      %v2968 = vmul.f32 %v2608, %v2960
      %v2969 = vmul.f32 %v2609, %v2960
      %v2970 = vmul.f32 %v2610, %v2960
      %v2971 = vmul.f32 %v2611, %v2960
      %v2972 = vmul.f32 %v2612, %v2960
      %v2973 = vmul.f32 %v2613, %v2960
      %v2974 = vmul.f32 %v2614, %v2960
      %v2975 = vmul.f32 %v2615, %v2960
      %v2976 = vmul.f32 %v2616, %v2960
      %v2977 = vmul.f32 %v2617, %v2960
      %v2978 = vmul.f32 %v2618, %v2960
      %v2979 = vmul.f32 %v2619, %v2960
      %v2980 = vmul.f32 %v2620, %v2960
      %v2981 = vmul.f32 %v2621, %v2960
      %v2982 = vmul.f32 %v2622, %v2960
      %v2983 = vmul.f32 %v2623, %v2960
      %v2984 = vmul.f32 %v2624, %v2960
      %v2985 = vmul.f32 %v2625, %v2960
      %v2986 = vmul.f32 %v2626, %v2960
      %v2987 = vmul.f32 %v2627, %v2960
      %v2988 = vmul.f32 %v2628, %v2960
      %v2989 = vmul.f32 %v2629, %v2960
      %v2990 = vmul.f32 %v2630, %v2960
      %v2991 = vmul.f32 %v2631, %v2960
      %v2992 = vmul.f32 %v2632, %v2960
      %v2993 = vld [vmem:[%s1 + $0x1d] sm:$0x1]
      %v2994 = vperm.slane %v2993, 0
      %v2995 = vmul.f32 %v2633, %v2994
      %v2996 = vmul.f32 %v2634, %v2994
      %v2997 = vmul.f32 %v2635, %v2994
      %v2998 = vmul.f32 %v2636, %v2994
      %v2999 = vmul.f32 %v2637, %v2994
      %v3000 = vmul.f32 %v2638, %v2994
      %v3001 = vmul.f32 %v2639, %v2994
      %v3002 = vmul.f32 %v2640, %v2994
      %v3003 = vmul.f32 %v2641, %v2994
      %v3004 = vmul.f32 %v2642, %v2994
      %v3005 = vmul.f32 %v2643, %v2994
      %v3006 = vmul.f32 %v2644, %v2994
      %v3007 = vmul.f32 %v2645, %v2994
      %v3008 = vmul.f32 %v2646, %v2994
      %v3009 = vmul.f32 %v2647, %v2994
      %v3010 = vmul.f32 %v2648, %v2994
      %v3011 = vmul.f32 %v2649, %v2994
      %v3012 = vmul.f32 %v2650, %v2994
      %v3013 = vmul.f32 %v2651, %v2994
      %v3014 = vmul.f32 %v2652, %v2994
      %v3015 = vmul.f32 %v2653, %v2994
      %v3016 = vmul.f32 %v2654, %v2994
      %v3017 = vmul.f32 %v2655, %v2994
      %v3018 = vmul.f32 %v2656, %v2994
      %v3019 = vmul.f32 %v2657, %v2994
      %v3020 = vmul.f32 %v2658, %v2994
      %v3021 = vmul.f32 %v2659, %v2994
      %v3022 = vmul.f32 %v2660, %v2994
      %v3023 = vmul.f32 %v2661, %v2994
      %v3024 = vmul.f32 %v2662, %v2994
      %v3025 = vmul.f32 %v2663, %v2994
      %v3026 = vmul.f32 %v2664, %v2994
      %v3027 = vadd.f32 %v2961, %v2995
      %v3028 = vadd.f32 %v2962, %v2996
      %v3029 = vadd.f32 %v2963, %v2997
      %v3030 = vadd.f32 %v2964, %v2998
      %v3031 = vadd.f32 %v2965, %v2999
      %v3032 = vadd.f32 %v2966, %v3000
      %v3033 = vadd.f32 %v2967, %v3001
      %v3034 = vadd.f32 %v2968, %v3002
      %v3035 = vadd.f32 %v2969, %v3003
      %v3036 = vadd.f32 %v2970, %v3004
      %v3037 = vadd.f32 %v2971, %v3005
      %v3038 = vadd.f32 %v2972, %v3006
      %v3039 = vadd.f32 %v2973, %v3007
      %v3040 = vadd.f32 %v2974, %v3008
      %v3041 = vadd.f32 %v2975, %v3009
      %v3042 = vadd.f32 %v2976, %v3010
      %v3043 = vadd.f32 %v2977, %v3011
      %v3044 = vadd.f32 %v2978, %v3012
      %v3045 = vadd.f32 %v2979, %v3013
      %v3046 = vadd.f32 %v2980, %v3014
      %v3047 = vadd.f32 %v2981, %v3015
      %v3048 = vadd.f32 %v2982, %v3016
      %v3049 = vadd.f32 %v2983, %v3017
      %v3050 = vadd.f32 %v2984, %v3018
      %v3051 = vadd.f32 %v2985, %v3019
      %v3052 = vadd.f32 %v2986, %v3020
      %v3053 = vadd.f32 %v2987, %v3021
      %v3054 = vadd.f32 %v2988, %v3022
      %v3055 = vadd.f32 %v2989, %v3023
      %v3056 = vadd.f32 %v2990, %v3024
      %v3057 = vadd.f32 %v2991, %v3025
      %v3058 = vadd.f32 %v2992, %v3026
      %v3059 = vld [vmem:[%s1 + $0x20] sm:$0x1]
      %v3060 = vperm.slane %v3059, 0
      %v3061 = vmul.f32 %v2665, %v3060
      %v3062 = vmul.f32 %v2666, %v3060
      %v3063 = vmul.f32 %v2667, %v3060
      %v3064 = vmul.f32 %v2668, %v3060
      %v3065 = vmul.f32 %v2669, %v3060
      %v3066 = vmul.f32 %v2670, %v3060
      %v3067 = vmul.f32 %v2671, %v3060
      %v3068 = vmul.f32 %v2672, %v3060
      %v3069 = vmul.f32 %v2673, %v3060
      %v3070 = vmul.f32 %v2674, %v3060
      %v3071 = vmul.f32 %v2675, %v3060
      %v3072 = vmul.f32 %v2676, %v3060
      %v3073 = vmul.f32 %v2677, %v3060
      %v3074 = vmul.f32 %v2678, %v3060
      %v3075 = vmul.f32 %v2679, %v3060
      %v3076 = vmul.f32 %v2680, %v3060
      %v3077 = vmul.f32 %v2681, %v3060
      %v3078 = vmul.f32 %v2682, %v3060
      %v3079 = vmul.f32 %v2683, %v3060
      %v3080 = vmul.f32 %v2684, %v3060
      %v3081 = vmul.f32 %v2685, %v3060
      %v3082 = vmul.f32 %v2686, %v3060
      %v3083 = vmul.f32 %v2687, %v3060
      %v3084 = vmul.f32 %v2688, %v3060
      %v3085 = vmul.f32 %v2689, %v3060
      %v3086 = vmul.f32 %v2690, %v3060
      %v3087 = vmul.f32 %v2691, %v3060
      %v3088 = vmul.f32 %v2692, %v3060
      %v3089 = vmul.f32 %v2693, %v3060
      %v3090 = vmul.f32 %v2694, %v3060
      %v3091 = vmul.f32 %v2695, %v3060
      %v3092 = vmul.f32 %v2696, %v3060
      %v3093 = vadd.f32 %v3027, %v3061
      %v3094 = vadd.f32 %v3028, %v3062
      %v3095 = vadd.f32 %v3029, %v3063
      %v3096 = vadd.f32 %v3030, %v3064
      %v3097 = vadd.f32 %v3031, %v3065
      %v3098 = vadd.f32 %v3032, %v3066
      %v3099 = vadd.f32 %v3033, %v3067
      %v3100 = vadd.f32 %v3034, %v3068
      %v3101 = vadd.f32 %v3035, %v3069
      %v3102 = vadd.f32 %v3036, %v3070
      %v3103 = vadd.f32 %v3037, %v3071
      %v3104 = vadd.f32 %v3038, %v3072
      %v3105 = vadd.f32 %v3039, %v3073
      %v3106 = vadd.f32 %v3040, %v3074
      %v3107 = vadd.f32 %v3041, %v3075
      %v3108 = vadd.f32 %v3042, %v3076
      %v3109 = vadd.f32 %v3043, %v3077
      %v3110 = vadd.f32 %v3044, %v3078
      %v3111 = vadd.f32 %v3045, %v3079
      %v3112 = vadd.f32 %v3046, %v3080
      %v3113 = vadd.f32 %v3047, %v3081
      %v3114 = vadd.f32 %v3048, %v3082
      %v3115 = vadd.f32 %v3049, %v3083
      %v3116 = vadd.f32 %v3050, %v3084
      %v3117 = vadd.f32 %v3051, %v3085
      %v3118 = vadd.f32 %v3052, %v3086
      %v3119 = vadd.f32 %v3053, %v3087
      %v3120 = vadd.f32 %v3054, %v3088
      %v3121 = vadd.f32 %v3055, %v3089
      %v3122 = vadd.f32 %v3056, %v3090
      %v3123 = vadd.f32 %v3057, %v3091
      %v3124 = vadd.f32 %v3058, %v3092
      %v3125 = vadd.f32 %v2927, %v3093
      %v3126 = vadd.f32 %v2928, %v3094
      %v3127 = vadd.f32 %v2929, %v3095
      %v3128 = vadd.f32 %v2930, %v3096
      %v3129 = vadd.f32 %v2931, %v3097
      %v3130 = vadd.f32 %v2932, %v3098
      %v3131 = vadd.f32 %v2933, %v3099
      %v3132 = vadd.f32 %v2934, %v3100
      %v3133 = vadd.f32 %v2935, %v3101
      %v3134 = vadd.f32 %v2936, %v3102
      %v3135 = vadd.f32 %v2937, %v3103
      %v3136 = vadd.f32 %v2938, %v3104
      %v3137 = vadd.f32 %v2939, %v3105
      %v3138 = vadd.f32 %v2940, %v3106
      %v3139 = vadd.f32 %v2941, %v3107
      %v3140 = vadd.f32 %v2942, %v3108
      %v3141 = vadd.f32 %v2943, %v3109
      %v3142 = vadd.f32 %v2944, %v3110
      %v3143 = vadd.f32 %v2945, %v3111
      %v3144 = vadd.f32 %v2946, %v3112
      %v3145 = vadd.f32 %v2947, %v3113
      %v3146 = vadd.f32 %v2948, %v3114
      %v3147 = vadd.f32 %v2949, %v3115
      %v3148 = vadd.f32 %v2950, %v3116
      %v3149 = vadd.f32 %v2951, %v3117
      %v3150 = vadd.f32 %v2952, %v3118
      %v3151 = vadd.f32 %v2953, %v3119
      %v3152 = vadd.f32 %v2954, %v3120
      %v3153 = vadd.f32 %v2955, %v3121
      %v3154 = vadd.f32 %v2956, %v3122
      %v3155 = vadd.f32 %v2957, %v3123
      %v3156 = vadd.f32 %v2958, %v3124
      %v3157 = vld [vmem:[%s1 + $0x1b] sm:$0x1]
      %v3158 = vperm.slane %v3157, 0
      %v3159 = vmul.f32 %v2601, %v3158
      %v3160 = vmul.f32 %v2602, %v3158
      %v3161 = vmul.f32 %v2603, %v3158
      %v3162 = vmul.f32 %v2604, %v3158
      %v3163 = vmul.f32 %v2605, %v3158
      %v3164 = vmul.f32 %v2606, %v3158
      %v3165 = vmul.f32 %v2607, %v3158
      %v3166 = vmul.f32 %v2608, %v3158
      %v3167 = vmul.f32 %v2609, %v3158
      %v3168 = vmul.f32 %v2610, %v3158
      %v3169 = vmul.f32 %v2611, %v3158
      %v3170 = vmul.f32 %v2612, %v3158
      %v3171 = vmul.f32 %v2613, %v3158
      %v3172 = vmul.f32 %v2614, %v3158
      %v3173 = vmul.f32 %v2615, %v3158
      %v3174 = vmul.f32 %v2616, %v3158
      %v3175 = vmul.f32 %v2617, %v3158
      %v3176 = vmul.f32 %v2618, %v3158
      %v3177 = vmul.f32 %v2619, %v3158
      %v3178 = vmul.f32 %v2620, %v3158
      %v3179 = vmul.f32 %v2621, %v3158
      %v3180 = vmul.f32 %v2622, %v3158
      %v3181 = vmul.f32 %v2623, %v3158
      %v3182 = vmul.f32 %v2624, %v3158
      %v3183 = vmul.f32 %v2625, %v3158
      %v3184 = vmul.f32 %v2626, %v3158
      %v3185 = vmul.f32 %v2627, %v3158
      %v3186 = vmul.f32 %v2628, %v3158
      %v3187 = vmul.f32 %v2629, %v3158
      %v3188 = vmul.f32 %v2630, %v3158
      %v3189 = vmul.f32 %v2631, %v3158
      %v3190 = vmul.f32 %v2632, %v3158
      %v3191 = vld [vmem:[%s1 + $0x1e] sm:$0x1]
      %v3192 = vperm.slane %v3191, 0
      %v3193 = vmul.f32 %v2633, %v3192
      %v3194 = vmul.f32 %v2634, %v3192
      %v3195 = vmul.f32 %v2635, %v3192
      %v3196 = vmul.f32 %v2636, %v3192
      %v3197 = vmul.f32 %v2637, %v3192
      %v3198 = vmul.f32 %v2638, %v3192
      %v3199 = vmul.f32 %v2639, %v3192
      %v3200 = vmul.f32 %v2640, %v3192
      %v3201 = vmul.f32 %v2641, %v3192
      %v3202 = vmul.f32 %v2642, %v3192
      %v3203 = vmul.f32 %v2643, %v3192
      %v3204 = vmul.f32 %v2644, %v3192
      %v3205 = vmul.f32 %v2645, %v3192
      %v3206 = vmul.f32 %v2646, %v3192
      %v3207 = vmul.f32 %v2647, %v3192
      %v3208 = vmul.f32 %v2648, %v3192
      %v3209 = vmul.f32 %v2649, %v3192
      %v3210 = vmul.f32 %v2650, %v3192
      %v3211 = vmul.f32 %v2651, %v3192
      %v3212 = vmul.f32 %v2652, %v3192
      %v3213 = vmul.f32 %v2653, %v3192
      %v3214 = vmul.f32 %v2654, %v3192
      %v3215 = vmul.f32 %v2655, %v3192
      %v3216 = vmul.f32 %v2656, %v3192
      %v3217 = vmul.f32 %v2657, %v3192
      %v3218 = vmul.f32 %v2658, %v3192
      %v3219 = vmul.f32 %v2659, %v3192
      %v3220 = vmul.f32 %v2660, %v3192
      %v3221 = vmul.f32 %v2661, %v3192
      %v3222 = vmul.f32 %v2662, %v3192
      %v3223 = vmul.f32 %v2663, %v3192
      %v3224 = vmul.f32 %v2664, %v3192
      %v3225 = vadd.f32 %v3159, %v3193
      %v3226 = vadd.f32 %v3160, %v3194
      %v3227 = vadd.f32 %v3161, %v3195
      %v3228 = vadd.f32 %v3162, %v3196
      %v3229 = vadd.f32 %v3163, %v3197
      %v3230 = vadd.f32 %v3164, %v3198
      %v3231 = vadd.f32 %v3165, %v3199
      %v3232 = vadd.f32 %v3166, %v3200
      %v3233 = vadd.f32 %v3167, %v3201
      %v3234 = vadd.f32 %v3168, %v3202
      %v3235 = vadd.f32 %v3169, %v3203
      %v3236 = vadd.f32 %v3170, %v3204
      %v3237 = vadd.f32 %v3171, %v3205
      %v3238 = vadd.f32 %v3172, %v3206
      %v3239 = vadd.f32 %v3173, %v3207
      %v3240 = vadd.f32 %v3174, %v3208
      %v3241 = vadd.f32 %v3175, %v3209
      %v3242 = vadd.f32 %v3176, %v3210
      %v3243 = vadd.f32 %v3177, %v3211
      %v3244 = vadd.f32 %v3178, %v3212
      %v3245 = vadd.f32 %v3179, %v3213
      %v3246 = vadd.f32 %v3180, %v3214
      %v3247 = vadd.f32 %v3181, %v3215
      %v3248 = vadd.f32 %v3182, %v3216
      %v3249 = vadd.f32 %v3183, %v3217
      %v3250 = vadd.f32 %v3184, %v3218
      %v3251 = vadd.f32 %v3185, %v3219
      %v3252 = vadd.f32 %v3186, %v3220
      %v3253 = vadd.f32 %v3187, %v3221
      %v3254 = vadd.f32 %v3188, %v3222
      %v3255 = vadd.f32 %v3189, %v3223
      %v3256 = vadd.f32 %v3190, %v3224
      %v3257 = vld [vmem:[%s1 + $0x21] sm:$0x1]
      %v3258 = vperm.slane %v3257, 0
      %v3259 = vmul.f32 %v2665, %v3258
      %v3260 = vmul.f32 %v2666, %v3258
      %v3261 = vmul.f32 %v2667, %v3258
      %v3262 = vmul.f32 %v2668, %v3258
      %v3263 = vmul.f32 %v2669, %v3258
      %v3264 = vmul.f32 %v2670, %v3258
      %v3265 = vmul.f32 %v2671, %v3258
      %v3266 = vmul.f32 %v2672, %v3258
      %v3267 = vmul.f32 %v2673, %v3258
      %v3268 = vmul.f32 %v2674, %v3258
      %v3269 = vmul.f32 %v2675, %v3258
      %v3270 = vmul.f32 %v2676, %v3258
      %v3271 = vmul.f32 %v2677, %v3258
      %v3272 = vmul.f32 %v2678, %v3258
      %v3273 = vmul.f32 %v2679, %v3258
      %v3274 = vmul.f32 %v2680, %v3258
      %v3275 = vmul.f32 %v2681, %v3258
      %v3276 = vmul.f32 %v2682, %v3258
      %v3277 = vmul.f32 %v2683, %v3258
      %v3278 = vmul.f32 %v2684, %v3258
      %v3279 = vmul.f32 %v2685, %v3258
      %v3280 = vmul.f32 %v2686, %v3258
      %v3281 = vmul.f32 %v2687, %v3258
      %v3282 = vmul.f32 %v2688, %v3258
      %v3283 = vmul.f32 %v2689, %v3258
      %v3284 = vmul.f32 %v2690, %v3258
      %v3285 = vmul.f32 %v2691, %v3258
      %v3286 = vmul.f32 %v2692, %v3258
      %v3287 = vmul.f32 %v2693, %v3258
      %v3288 = vmul.f32 %v2694, %v3258
      %v3289 = vmul.f32 %v2695, %v3258
      %v3290 = vmul.f32 %v2696, %v3258
      %v3291 = vadd.f32 %v3225, %v3259
      %v3292 = vadd.f32 %v3226, %v3260
      %v3293 = vadd.f32 %v3227, %v3261
      %v3294 = vadd.f32 %v3228, %v3262
      %v3295 = vadd.f32 %v3229, %v3263
      %v3296 = vadd.f32 %v3230, %v3264
      %v3297 = vadd.f32 %v3231, %v3265
      %v3298 = vadd.f32 %v3232, %v3266
      %v3299 = vadd.f32 %v3233, %v3267
      %v3300 = vadd.f32 %v3234, %v3268
      %v3301 = vadd.f32 %v3235, %v3269
      %v3302 = vadd.f32 %v3236, %v3270
      %v3303 = vadd.f32 %v3237, %v3271
      %v3304 = vadd.f32 %v3238, %v3272
      %v3305 = vadd.f32 %v3239, %v3273
      %v3306 = vadd.f32 %v3240, %v3274
      %v3307 = vadd.f32 %v3241, %v3275
      %v3308 = vadd.f32 %v3242, %v3276
      %v3309 = vadd.f32 %v3243, %v3277
      %v3310 = vadd.f32 %v3244, %v3278
      %v3311 = vadd.f32 %v3245, %v3279
      %v3312 = vadd.f32 %v3246, %v3280
      %v3313 = vadd.f32 %v3247, %v3281
      %v3314 = vadd.f32 %v3248, %v3282
      %v3315 = vadd.f32 %v3249, %v3283
      %v3316 = vadd.f32 %v3250, %v3284
      %v3317 = vadd.f32 %v3251, %v3285
      %v3318 = vadd.f32 %v3252, %v3286
      %v3319 = vadd.f32 %v3253, %v3287
      %v3320 = vadd.f32 %v3254, %v3288
      %v3321 = vadd.f32 %v3255, %v3289
      %v3322 = vadd.f32 %v3256, %v3290
      %v3323 = vrot.slane %v3291, 1
      %v3324 = vrot.slane %v3292, 1
      %v3325 = vrot.slane %v3293, 1
      %v3326 = vrot.slane %v3294, 1
      %v3327 = vrot.slane %v3295, 1
      %v3328 = vrot.slane %v3296, 1
      %v3329 = vrot.slane %v3297, 1
      %v3330 = vrot.slane %v3298, 1
      %v3331 = vrot.slane %v3299, 1
      %v3332 = vrot.slane %v3300, 1
      %v3333 = vrot.slane %v3301, 1
      %v3334 = vrot.slane %v3302, 1
      %v3335 = vrot.slane %v3303, 1
      %v3336 = vrot.slane %v3304, 1
      %v3337 = vrot.slane %v3305, 1
      %v3338 = vrot.slane %v3306, 1
      %v3339 = vrot.slane %v3307, 1
      %v3340 = vrot.slane %v3308, 1
      %v3341 = vrot.slane %v3309, 1
      %v3342 = vrot.slane %v3310, 1
      %v3343 = vrot.slane %v3311, 1
      %v3344 = vrot.slane %v3312, 1
      %v3345 = vrot.slane %v3313, 1
      %v3346 = vrot.slane %v3314, 1
      %v3347 = vrot.slane %v3315, 1
      %v3348 = vrot.slane %v3316, 1
      %v3349 = vrot.slane %v3317, 1
      %v3350 = vrot.slane %v3318, 1
      %v3351 = vrot.slane %v3319, 1
      %v3352 = vrot.slane %v3320, 1
      %v3353 = vrot.slane %v3321, 1
      %v3354 = vrot.slane %v3322, 1
      %v3355 = vsel %vm1832, %v3353, %v3354
      %v3356 = vsel %vm1832, %v3352, %v3353
      %v3357 = vsel %vm1832, %v3351, %v3352
      %v3358 = vsel %vm1832, %v3350, %v3351
      %v3359 = vsel %vm1832, %v3349, %v3350
      %v3360 = vsel %vm1832, %v3348, %v3349
      %v3361 = vsel %vm1832, %v3347, %v3348
      %v3362 = vsel %vm1832, %v3346, %v3347
      %v3363 = vsel %vm1832, %v3345, %v3346
      %v3364 = vsel %vm1832, %v3344, %v3345
      %v3365 = vsel %vm1832, %v3343, %v3344
      %v3366 = vsel %vm1832, %v3342, %v3343
      %v3367 = vsel %vm1832, %v3341, %v3342
      %v3368 = vsel %vm1832, %v3340, %v3341
      %v3369 = vsel %vm1832, %v3339, %v3340
      %v3370 = vsel %vm1832, %v3338, %v3339
      %v3371 = vsel %vm1832, %v3337, %v3338
      %v3372 = vsel %vm1832, %v3336, %v3337
      %v3373 = vsel %vm1832, %v3335, %v3336
      %v3374 = vsel %vm1832, %v3334, %v3335
      %v3375 = vsel %vm1832, %v3333, %v3334
      %v3376 = vsel %vm1832, %v3332, %v3333
      %v3377 = vsel %vm1832, %v3331, %v3332
      %v3378 = vsel %vm1832, %v3330, %v3331
      %v3379 = vsel %vm1832, %v3329, %v3330
      %v3380 = vsel %vm1832, %v3328, %v3329
      %v3381 = vsel %vm1832, %v3327, %v3328
      %v3382 = vsel %vm1832, %v3326, %v3327
      %v3383 = vsel %vm1832, %v3325, %v3326
      %v3384 = vsel %vm1832, %v3324, %v3325
      %v3385 = vsel %vm1832, %v3323, %v3324
      %v3386 = vsel %vm1832, %v3354, %v3323
      %v3387 = vsel %vm1869, %v3385, 0.0
      %v3388 = vsel %vm1870, %v3384, 0.0
      %v3389 = vsel %vm1869, %v3383, 0.0
      %v3390 = vsel %vm1870, %v3382, 0.0
      %v3391 = vsel %vm1869, %v3381, 0.0
      %v3392 = vsel %vm1870, %v3380, 0.0
      %v3393 = vsel %vm1869, %v3379, 0.0
      %v3394 = vsel %vm1870, %v3378, 0.0
      %v3395 = vsel %vm1869, %v3377, 0.0
      %v3396 = vsel %vm1870, %v3376, 0.0
      %v3397 = vsel %vm1869, %v3375, 0.0
      %v3398 = vsel %vm1870, %v3374, 0.0
      %v3399 = vsel %vm1869, %v3373, 0.0
      %v3400 = vsel %vm1870, %v3372, 0.0
      %v3401 = vsel %vm1869, %v3371, 0.0
      %v3402 = vsel %vm1870, %v3370, 0.0
      %v3403 = vsel %vm1869, %v3369, 0.0
      %v3404 = vsel %vm1870, %v3368, 0.0
      %v3405 = vsel %vm1869, %v3367, 0.0
      %v3406 = vsel %vm1870, %v3366, 0.0
      %v3407 = vsel %vm1869, %v3365, 0.0
      %v3408 = vsel %vm1870, %v3364, 0.0
      %v3409 = vsel %vm1869, %v3363, 0.0
      %v3410 = vsel %vm1870, %v3362, 0.0
      %v3411 = vsel %vm1869, %v3361, 0.0
      %v3412 = vsel %vm1870, %v3360, 0.0
      %v3413 = vsel %vm1869, %v3359, 0.0
      %v3414 = vsel %vm1870, %v3358, 0.0
      %v3415 = vsel %vm1869, %v3357, 0.0
      %v3416 = vsel %vm1870, %v3356, 0.0
      %v3417 = vsel %vm1869, %v3355, 0.0
      %v3418 = vsel %vm1870, %v3386, 0.0
      %v3419 = vadd.f32 %v3125, %v3387
      %v3420 = vadd.f32 %v3126, %v3388
      %v3421 = vadd.f32 %v3127, %v3389
      %v3422 = vadd.f32 %v3128, %v3390
      %v3423 = vadd.f32 %v3129, %v3391
      %v3424 = vadd.f32 %v3130, %v3392
      %v3425 = vadd.f32 %v3131, %v3393
      %v3426 = vadd.f32 %v3132, %v3394
      %v3427 = vadd.f32 %v3133, %v3395
      %v3428 = vadd.f32 %v3134, %v3396
      %v3429 = vadd.f32 %v3135, %v3397
      %v3430 = vadd.f32 %v3136, %v3398
      %v3431 = vadd.f32 %v3137, %v3399
      %v3432 = vadd.f32 %v3138, %v3400
      %v3433 = vadd.f32 %v3139, %v3401
      %v3434 = vadd.f32 %v3140, %v3402
      %v3435 = vadd.f32 %v3141, %v3403
      %v3436 = vadd.f32 %v3142, %v3404
      %v3437 = vadd.f32 %v3143, %v3405
      %v3438 = vadd.f32 %v3144, %v3406
      %v3439 = vadd.f32 %v3145, %v3407
      %v3440 = vadd.f32 %v3146, %v3408
      %v3441 = vadd.f32 %v3147, %v3409
      %v3442 = vadd.f32 %v3148, %v3410
      %v3443 = vadd.f32 %v3149, %v3411
      %v3444 = vadd.f32 %v3150, %v3412
      %v3445 = vadd.f32 %v3151, %v3413
      %v3446 = vadd.f32 %v3152, %v3414
      %v3447 = vadd.f32 %v3153, %v3415
      %v3448 = vadd.f32 %v3154, %v3416
      %v3449 = vadd.f32 %v3155, %v3417
      %v3450 = vadd.f32 %v3156, %v3418
      %v3451 = vpack.c.bf16 %v3420, %v3419
      %v3452 = vpack.c.bf16 %v3422, %v3421
      %v3453 = vpack.c.bf16 %v3424, %v3423
      %v3454 = vpack.c.bf16 %v3426, %v3425
      %v3455 = vpack.c.bf16 %v3428, %v3427
      %v3456 = vpack.c.bf16 %v3430, %v3429
      %v3457 = vpack.c.bf16 %v3432, %v3431
      %v3458 = vpack.c.bf16 %v3434, %v3433
      %v3459 = vpack.c.bf16 %v3436, %v3435
      %v3460 = vpack.c.bf16 %v3438, %v3437
      %v3461 = vpack.c.bf16 %v3440, %v3439
      %v3462 = vpack.c.bf16 %v3442, %v3441
      %v3463 = vpack.c.bf16 %v3444, %v3443
      %v3464 = vpack.c.bf16 %v3446, %v3445
      %v3465 = vpack.c.bf16 %v3448, %v3447
      %v3466 = vpack.c.bf16 %v3450, %v3449
      %s3467 = scalar_lea.vmem %s2, 64
      %v3468 = vld [vmem:[%s3467] sm:$0xf]
      %v3469 = vld [vmem:[%s3467 + $0x4] sm:$0xf]
      %v3470 = vld [vmem:[%s3467 + $0x8] sm:$0xf]
      %v3471 = vld [vmem:[%s3467 + $0xc] sm:$0xf]
      %v3472 = vld [vmem:[%s3467 + $0x10] sm:$0xf]
      %v3473 = vld [vmem:[%s3467 + $0x14] sm:$0xf]
      %v3474 = vld [vmem:[%s3467 + $0x18] sm:$0xf]
      %v3475 = vld [vmem:[%s3467 + $0x1c] sm:$0xf]
      %v3476 = vld [vmem:[%s3467 + $0x20] sm:$0xf]
      %v3477 = vld [vmem:[%s3467 + $0x24] sm:$0xf]
      %v3478 = vld [vmem:[%s3467 + $0x28] sm:$0xf]
      %v3479 = vld [vmem:[%s3467 + $0x2c] sm:$0xf]
      %v3480 = vld [vmem:[%s3467 + $0x30] sm:$0xf]
      %v3481 = vld [vmem:[%s3467 + $0x34] sm:$0xf]
      %v3482 = vld [vmem:[%s3467 + $0x38] sm:$0xf]
      %v3483 = vld [vmem:[%s3467 + $0x3c] sm:$0xf]
      %v3500 = vunpack.c.l.b16 %v3468
      %v3501 = vunpack.c.l.b16 %v3469
      %v3502 = vunpack.c.l.b16 %v3470
      %v3503 = vunpack.c.l.b16 %v3471
      %v3504 = vunpack.c.l.b16 %v3472
      %v3505 = vunpack.c.l.b16 %v3473
      %v3506 = vunpack.c.l.b16 %v3474
      %v3507 = vunpack.c.l.b16 %v3475
      %v3508 = vunpack.c.l.b16 %v3476
      %v3509 = vunpack.c.l.b16 %v3477
      %v3510 = vunpack.c.l.b16 %v3478
      %v3511 = vunpack.c.l.b16 %v3479
      %v3512 = vunpack.c.l.b16 %v3480
      %v3513 = vunpack.c.l.b16 %v3481
      %v3514 = vunpack.c.l.b16 %v3482
      %v3515 = vunpack.c.l.b16 %v3483
      %v3516 = vpack.c.b16 %v3501, %v3500
      %v3517 = vpack.c.b16 %v3503, %v3502
      %v3518 = vpack.c.b16 %v3505, %v3504
      %v3519 = vpack.c.b16 %v3507, %v3506
      %v3520 = vpack.c.b16 %v3509, %v3508
      %v3521 = vpack.c.b16 %v3511, %v3510
      %v3522 = vpack.c.b16 %v3513, %v3512
      %v3523 = vpack.c.b16 %v3515, %v3514
      %3532 = vmatpush.bf16.msra.mxu0 %v3523
      %3533 = vmatpush.bf16.msra.mxu0 %v3522
      %3534 = vmatpush.bf16.msra.mxu0 %v3521
      %3535 = vmatpush.bf16.msra.mxu0 %v3520
      %3536 = vmatpush.bf16.msra.mxu0 %v3519
      %3537 = vmatpush.bf16.msra.mxu0 %v3518
      %3538 = vmatpush.bf16.msra.mxu0 %v3517
      %3539 = vmatpush.bf16.msra.mxu0 %v3516
      %3540 = vmatmul.bf16.gmra.mxu0 %v3451
      %v3541 = vpop.f32.mrf.mxu0
      %v3542 = vadd.f32 0.0, %v3541
      %v3543 = vpop.f32.mrf.mxu0
      %v3544 = vadd.f32 0.0, %v3543
      %3545 = vmatmul.bf16.gmra.mxu0 %v3452
      %v3546 = vpop.f32.mrf.mxu0
      %v3547 = vadd.f32 0.0, %v3546
      %v3548 = vpop.f32.mrf.mxu0
      %v3549 = vadd.f32 0.0, %v3548
      %3550 = vmatmul.bf16.gmra.mxu0 %v3453
      %v3551 = vpop.f32.mrf.mxu0
      %v3552 = vadd.f32 0.0, %v3551
      %v3553 = vpop.f32.mrf.mxu0
      %v3554 = vadd.f32 0.0, %v3553
      %3555 = vmatmul.bf16.gmra.mxu0 %v3454
      %v3556 = vpop.f32.mrf.mxu0
      %v3557 = vadd.f32 0.0, %v3556
      %v3558 = vpop.f32.mrf.mxu0
      %v3559 = vadd.f32 0.0, %v3558
      %3560 = vmatmul.bf16.gmra.mxu0 %v3455
      %v3561 = vpop.f32.mrf.mxu0
      %v3562 = vadd.f32 0.0, %v3561
      %v3563 = vpop.f32.mrf.mxu0
      %v3564 = vadd.f32 0.0, %v3563
      %3565 = vmatmul.bf16.gmra.mxu0 %v3456
      %v3566 = vpop.f32.mrf.mxu0
      %v3567 = vadd.f32 0.0, %v3566
      %v3568 = vpop.f32.mrf.mxu0
      %v3569 = vadd.f32 0.0, %v3568
      %3570 = vmatmul.bf16.gmra.mxu0 %v3457
      %v3571 = vpop.f32.mrf.mxu0
      %v3572 = vadd.f32 0.0, %v3571
      %v3573 = vpop.f32.mrf.mxu0
      %v3574 = vadd.f32 0.0, %v3573
      %3575 = vmatmul.bf16.gmra.mxu0 %v3458
      %v3576 = vpop.f32.mrf.mxu0
      %v3577 = vadd.f32 0.0, %v3576
      %v3578 = vpop.f32.mrf.mxu0
      %v3579 = vadd.f32 0.0, %v3578
      %3580 = vmatmul.bf16.gmra.mxu0 %v3459
      %v3581 = vpop.f32.mrf.mxu0
      %v3582 = vadd.f32 0.0, %v3581
      %v3583 = vpop.f32.mrf.mxu0
      %v3584 = vadd.f32 0.0, %v3583
      %3585 = vmatmul.bf16.gmra.mxu0 %v3460
      %v3586 = vpop.f32.mrf.mxu0
      %v3587 = vadd.f32 0.0, %v3586
      %v3588 = vpop.f32.mrf.mxu0
      %v3589 = vadd.f32 0.0, %v3588
      %3590 = vmatmul.bf16.gmra.mxu0 %v3461
      %v3591 = vpop.f32.mrf.mxu0
      %v3592 = vadd.f32 0.0, %v3591
      %v3593 = vpop.f32.mrf.mxu0
      %v3594 = vadd.f32 0.0, %v3593
      %3595 = vmatmul.bf16.gmra.mxu0 %v3462
      %v3596 = vpop.f32.mrf.mxu0
      %v3597 = vadd.f32 0.0, %v3596
      %v3598 = vpop.f32.mrf.mxu0
      %v3599 = vadd.f32 0.0, %v3598
      %3600 = vmatmul.bf16.gmra.mxu0 %v3463
      %v3601 = vpop.f32.mrf.mxu0
      %v3602 = vadd.f32 0.0, %v3601
      %v3603 = vpop.f32.mrf.mxu0
      %v3604 = vadd.f32 0.0, %v3603
      %3605 = vmatmul.bf16.gmra.mxu0 %v3464
      %v3606 = vpop.f32.mrf.mxu0
      %v3607 = vadd.f32 0.0, %v3606
      %v3608 = vpop.f32.mrf.mxu0
      %v3609 = vadd.f32 0.0, %v3608
      %3610 = vmatmul.bf16.gmra.mxu0 %v3465
      %v3611 = vpop.f32.mrf.mxu0
      %v3612 = vadd.f32 0.0, %v3611
      %v3613 = vpop.f32.mrf.mxu0
      %v3614 = vadd.f32 0.0, %v3613
      %3615 = vmatmul.bf16.gmra.mxu0 %v3466
      %v3616 = vpop.f32.mrf.mxu0
      %v3617 = vadd.f32 0.0, %v3616
      %v3618 = vpop.f32.mrf.mxu0
      %v3619 = vadd.f32 0.0, %v3618
      %3620 = vdwg.mxu0
      %v3621 = vmax.f32 %v3542, 0.0
      %v3622 = vmax.f32 %v3544, 0.0
      %v3623 = vmax.f32 %v3547, 0.0
      %v3624 = vmax.f32 %v3549, 0.0
      %v3625 = vmax.f32 %v3552, 0.0
      %v3626 = vmax.f32 %v3554, 0.0
      %v3627 = vmax.f32 %v3557, 0.0
      %v3628 = vmax.f32 %v3559, 0.0
      %v3629 = vmax.f32 %v3562, 0.0
      %v3630 = vmax.f32 %v3564, 0.0
      %v3631 = vmax.f32 %v3567, 0.0
      %v3632 = vmax.f32 %v3569, 0.0
      %v3633 = vmax.f32 %v3572, 0.0
      %v3634 = vmax.f32 %v3574, 0.0
      %v3635 = vmax.f32 %v3577, 0.0
      %v3636 = vmax.f32 %v3579, 0.0
      %v3637 = vmax.f32 %v3582, 0.0
      %v3638 = vmax.f32 %v3584, 0.0
      %v3639 = vmax.f32 %v3587, 0.0
      %v3640 = vmax.f32 %v3589, 0.0
      %v3641 = vmax.f32 %v3592, 0.0
      %v3642 = vmax.f32 %v3594, 0.0
      %v3643 = vmax.f32 %v3597, 0.0
      %v3644 = vmax.f32 %v3599, 0.0
      %v3645 = vmax.f32 %v3602, 0.0
      %v3646 = vmax.f32 %v3604, 0.0
      %v3647 = vmax.f32 %v3607, 0.0
      %v3648 = vmax.f32 %v3609, 0.0
      %v3649 = vmax.f32 %v3612, 0.0
      %v3650 = vmax.f32 %v3614, 0.0
      %v3651 = vmax.f32 %v3617, 0.0
      %v3652 = vmax.f32 %v3619, 0.0
      %3653 = vst [vmem:[%s236] sm:$0xff] %v3621
      %3654 = vst [vmem:[%s236 + $0x8] sm:$0xff] %v3622
      %3655 = vst [vmem:[%s236 + $0x10] sm:$0xff] %v3623
      %3656 = vst [vmem:[%s236 + $0x18] sm:$0xff] %v3624
      %3657 = vst [vmem:[%s236 + $0x20] sm:$0xff] %v3625
      %3658 = vst [vmem:[%s236 + $0x28] sm:$0xff] %v3626
      %3659 = vst [vmem:[%s236 + $0x30] sm:$0xff] %v3627
      %3660 = vst [vmem:[%s236 + $0x38] sm:$0xff] %v3628
      %3661 = vst [vmem:[%s236 + $0x40] sm:$0xff] %v3629
      %3662 = vst [vmem:[%s236 + $0x48] sm:$0xff] %v3630
      %3663 = vst [vmem:[%s236 + $0x50] sm:$0xff] %v3631
      %3664 = vst [vmem:[%s236 + $0x58] sm:$0xff] %v3632
      %3665 = vst [vmem:[%s236 + $0x60] sm:$0xff] %v3633
      %3666 = vst [vmem:[%s236 + $0x68] sm:$0xff] %v3634
      %3667 = vst [vmem:[%s236 + $0x70] sm:$0xff] %v3635
      %3668 = vst [vmem:[%s236 + $0x78] sm:$0xff] %v3636
      %3669 = vst [vmem:[%s236 + $0x80] sm:$0xff] %v3637
      %3670 = vst [vmem:[%s236 + $0x88] sm:$0xff] %v3638
      %3671 = vst [vmem:[%s236 + $0x90] sm:$0xff] %v3639
      %3672 = vst [vmem:[%s236 + $0x98] sm:$0xff] %v3640
      %3673 = vst [vmem:[%s236 + $0xa0] sm:$0xff] %v3641
      %3674 = vst [vmem:[%s236 + $0xa8] sm:$0xff] %v3642
      %3675 = vst [vmem:[%s236 + $0xb0] sm:$0xff] %v3643
      %3676 = vst [vmem:[%s236 + $0xb8] sm:$0xff] %v3644
      %3677 = vst [vmem:[%s236 + $0xc0] sm:$0xff] %v3645
      %3678 = vst [vmem:[%s236 + $0xc8] sm:$0xff] %v3646
      %3679 = vst [vmem:[%s236 + $0xd0] sm:$0xff] %v3647
      %3680 = vst [vmem:[%s236 + $0xd8] sm:$0xff] %v3648
      %3681 = vst [vmem:[%s236 + $0xe0] sm:$0xff] %v3649
      %3682 = vst [vmem:[%s236 + $0xe8] sm:$0xff] %v3650
      %3683 = vst [vmem:[%s236 + $0xf0] sm:$0xff] %v3651
      %3684 = vst [vmem:[%s236 + $0xf8] sm:$0xff] %v3652
      %v3685 = vld [vmem:[%s203] sm:$0xff]
      %v3686 = vld [vmem:[%s203 + $0x8] sm:$0xff]
      %v3687 = vld [vmem:[%s203 + $0x10] sm:$0xff]
      %v3688 = vld [vmem:[%s203 + $0x18] sm:$0xff]
      %v3689 = vld [vmem:[%s203 + $0x20] sm:$0xff]
      %v3690 = vld [vmem:[%s203 + $0x28] sm:$0xff]
      %v3691 = vld [vmem:[%s203 + $0x30] sm:$0xff]
      %v3692 = vld [vmem:[%s203 + $0x38] sm:$0xff]
      %v3693 = vld [vmem:[%s203 + $0x40] sm:$0xff]
      %v3694 = vld [vmem:[%s203 + $0x48] sm:$0xff]
      %v3695 = vld [vmem:[%s203 + $0x50] sm:$0xff]
      %v3696 = vld [vmem:[%s203 + $0x58] sm:$0xff]
      %v3697 = vld [vmem:[%s203 + $0x60] sm:$0xff]
      %v3698 = vld [vmem:[%s203 + $0x68] sm:$0xff]
      %v3699 = vld [vmem:[%s203 + $0x70] sm:$0xff]
      %v3700 = vld [vmem:[%s203 + $0x78] sm:$0xff]
      %v3701 = vld [vmem:[%s203 + $0x80] sm:$0xff]
      %v3702 = vld [vmem:[%s203 + $0x88] sm:$0xff]
      %v3703 = vld [vmem:[%s203 + $0x90] sm:$0xff]
      %v3704 = vld [vmem:[%s203 + $0x98] sm:$0xff]
      %v3705 = vld [vmem:[%s203 + $0xa0] sm:$0xff]
      %v3706 = vld [vmem:[%s203 + $0xa8] sm:$0xff]
      %v3707 = vld [vmem:[%s203 + $0xb0] sm:$0xff]
      %v3708 = vld [vmem:[%s203 + $0xb8] sm:$0xff]
      %v3709 = vld [vmem:[%s203 + $0xc0] sm:$0xff]
      %v3710 = vld [vmem:[%s203 + $0xc8] sm:$0xff]
      %v3711 = vld [vmem:[%s203 + $0xd0] sm:$0xff]
      %v3712 = vld [vmem:[%s203 + $0xd8] sm:$0xff]
      %v3713 = vld [vmem:[%s203 + $0xe0] sm:$0xff]
      %v3714 = vld [vmem:[%s203 + $0xe8] sm:$0xff]
      %v3715 = vld [vmem:[%s203 + $0xf0] sm:$0xff]
      %v3716 = vld [vmem:[%s203 + $0xf8] sm:$0xff]
      %v3717 = vld [vmem:[%s236] sm:$0xff]
      %v3718 = vld [vmem:[%s236 + $0x8] sm:$0xff]
      %v3719 = vld [vmem:[%s236 + $0x10] sm:$0xff]
      %v3720 = vld [vmem:[%s236 + $0x18] sm:$0xff]
      %v3721 = vld [vmem:[%s236 + $0x20] sm:$0xff]
      %v3722 = vld [vmem:[%s236 + $0x28] sm:$0xff]
      %v3723 = vld [vmem:[%s236 + $0x30] sm:$0xff]
      %v3724 = vld [vmem:[%s236 + $0x38] sm:$0xff]
      %v3725 = vld [vmem:[%s236 + $0x40] sm:$0xff]
      %v3726 = vld [vmem:[%s236 + $0x48] sm:$0xff]
      %v3727 = vld [vmem:[%s236 + $0x50] sm:$0xff]
      %v3728 = vld [vmem:[%s236 + $0x58] sm:$0xff]
      %v3729 = vld [vmem:[%s236 + $0x60] sm:$0xff]
      %v3730 = vld [vmem:[%s236 + $0x68] sm:$0xff]
      %v3731 = vld [vmem:[%s236 + $0x70] sm:$0xff]
      %v3732 = vld [vmem:[%s236 + $0x78] sm:$0xff]
      %v3733 = vld [vmem:[%s236 + $0x80] sm:$0xff]
      %v3734 = vld [vmem:[%s236 + $0x88] sm:$0xff]
      %v3735 = vld [vmem:[%s236 + $0x90] sm:$0xff]
      %v3736 = vld [vmem:[%s236 + $0x98] sm:$0xff]
      %v3737 = vld [vmem:[%s236 + $0xa0] sm:$0xff]
      %v3738 = vld [vmem:[%s236 + $0xa8] sm:$0xff]
      %v3739 = vld [vmem:[%s236 + $0xb0] sm:$0xff]
      %v3740 = vld [vmem:[%s236 + $0xb8] sm:$0xff]
      %v3741 = vld [vmem:[%s236 + $0xc0] sm:$0xff]
      %v3742 = vld [vmem:[%s236 + $0xc8] sm:$0xff]
      %v3743 = vld [vmem:[%s236 + $0xd0] sm:$0xff]
      %v3744 = vld [vmem:[%s236 + $0xd8] sm:$0xff]
      %v3745 = vld [vmem:[%s236 + $0xe0] sm:$0xff]
      %v3746 = vld [vmem:[%s236 + $0xe8] sm:$0xff]
      %v3747 = vld [vmem:[%s236 + $0xf0] sm:$0xff]
      %v3748 = vld [vmem:[%s236 + $0xf8] sm:$0xff]
      %v3749 = vld [vmem:[%s269] sm:$0xff]
      %v3750 = vld [vmem:[%s269 + $0x8] sm:$0xff]
      %v3751 = vld [vmem:[%s269 + $0x10] sm:$0xff]
      %v3752 = vld [vmem:[%s269 + $0x18] sm:$0xff]
      %v3753 = vld [vmem:[%s269 + $0x20] sm:$0xff]
      %v3754 = vld [vmem:[%s269 + $0x28] sm:$0xff]
      %v3755 = vld [vmem:[%s269 + $0x30] sm:$0xff]
      %v3756 = vld [vmem:[%s269 + $0x38] sm:$0xff]
      %v3757 = vld [vmem:[%s269 + $0x40] sm:$0xff]
      %v3758 = vld [vmem:[%s269 + $0x48] sm:$0xff]
      %v3759 = vld [vmem:[%s269 + $0x50] sm:$0xff]
      %v3760 = vld [vmem:[%s269 + $0x58] sm:$0xff]
      %v3761 = vld [vmem:[%s269 + $0x60] sm:$0xff]
      %v3762 = vld [vmem:[%s269 + $0x68] sm:$0xff]
      %v3763 = vld [vmem:[%s269 + $0x70] sm:$0xff]
      %v3764 = vld [vmem:[%s269 + $0x78] sm:$0xff]
      %v3765 = vld [vmem:[%s269 + $0x80] sm:$0xff]
      %v3766 = vld [vmem:[%s269 + $0x88] sm:$0xff]
      %v3767 = vld [vmem:[%s269 + $0x90] sm:$0xff]
      %v3768 = vld [vmem:[%s269 + $0x98] sm:$0xff]
      %v3769 = vld [vmem:[%s269 + $0xa0] sm:$0xff]
      %v3770 = vld [vmem:[%s269 + $0xa8] sm:$0xff]
      %v3771 = vld [vmem:[%s269 + $0xb0] sm:$0xff]
      %v3772 = vld [vmem:[%s269 + $0xb8] sm:$0xff]
      %v3773 = vld [vmem:[%s269 + $0xc0] sm:$0xff]
      %v3774 = vld [vmem:[%s269 + $0xc8] sm:$0xff]
      %v3775 = vld [vmem:[%s269 + $0xd0] sm:$0xff]
      %v3776 = vld [vmem:[%s269 + $0xd8] sm:$0xff]
      %v3777 = vld [vmem:[%s269 + $0xe0] sm:$0xff]
      %v3778 = vld [vmem:[%s269 + $0xe8] sm:$0xff]
      %v3779 = vld [vmem:[%s269 + $0xf0] sm:$0xff]
      %v3780 = vld [vmem:[%s269 + $0xf8] sm:$0xff]
      %v3781 = vld [vmem:[%s1 + $0x22] sm:$0x1]
      %v3782 = vperm.slane %v3781, 0
      %v3783 = vmul.f32 %v3685, %v3782
      %v3784 = vmul.f32 %v3686, %v3782
      %v3785 = vmul.f32 %v3687, %v3782
      %v3786 = vmul.f32 %v3688, %v3782
      %v3787 = vmul.f32 %v3689, %v3782
      %v3788 = vmul.f32 %v3690, %v3782
      %v3789 = vmul.f32 %v3691, %v3782
      %v3790 = vmul.f32 %v3692, %v3782
      %v3791 = vmul.f32 %v3693, %v3782
      %v3792 = vmul.f32 %v3694, %v3782
      %v3793 = vmul.f32 %v3695, %v3782
      %v3794 = vmul.f32 %v3696, %v3782
      %v3795 = vmul.f32 %v3697, %v3782
      %v3796 = vmul.f32 %v3698, %v3782
      %v3797 = vmul.f32 %v3699, %v3782
      %v3798 = vmul.f32 %v3700, %v3782
      %v3799 = vmul.f32 %v3701, %v3782
      %v3800 = vmul.f32 %v3702, %v3782
      %v3801 = vmul.f32 %v3703, %v3782
      %v3802 = vmul.f32 %v3704, %v3782
      %v3803 = vmul.f32 %v3705, %v3782
      %v3804 = vmul.f32 %v3706, %v3782
      %v3805 = vmul.f32 %v3707, %v3782
      %v3806 = vmul.f32 %v3708, %v3782
      %v3807 = vmul.f32 %v3709, %v3782
      %v3808 = vmul.f32 %v3710, %v3782
      %v3809 = vmul.f32 %v3711, %v3782
      %v3810 = vmul.f32 %v3712, %v3782
      %v3811 = vmul.f32 %v3713, %v3782
      %v3812 = vmul.f32 %v3714, %v3782
      %v3813 = vmul.f32 %v3715, %v3782
      %v3814 = vmul.f32 %v3716, %v3782
      %v3815 = vld [vmem:[%s1 + $0x25] sm:$0x1]
      %v3816 = vperm.slane %v3815, 0
      %v3817 = vmul.f32 %v3717, %v3816
      %v3818 = vmul.f32 %v3718, %v3816
      %v3819 = vmul.f32 %v3719, %v3816
      %v3820 = vmul.f32 %v3720, %v3816
      %v3821 = vmul.f32 %v3721, %v3816
      %v3822 = vmul.f32 %v3722, %v3816
      %v3823 = vmul.f32 %v3723, %v3816
      %v3824 = vmul.f32 %v3724, %v3816
      %v3825 = vmul.f32 %v3725, %v3816
      %v3826 = vmul.f32 %v3726, %v3816
      %v3827 = vmul.f32 %v3727, %v3816
      %v3828 = vmul.f32 %v3728, %v3816
      %v3829 = vmul.f32 %v3729, %v3816
      %v3830 = vmul.f32 %v3730, %v3816
      %v3831 = vmul.f32 %v3731, %v3816
      %v3832 = vmul.f32 %v3732, %v3816
      %v3833 = vmul.f32 %v3733, %v3816
      %v3834 = vmul.f32 %v3734, %v3816
      %v3835 = vmul.f32 %v3735, %v3816
      %v3836 = vmul.f32 %v3736, %v3816
      %v3837 = vmul.f32 %v3737, %v3816
      %v3838 = vmul.f32 %v3738, %v3816
      %v3839 = vmul.f32 %v3739, %v3816
      %v3840 = vmul.f32 %v3740, %v3816
      %v3841 = vmul.f32 %v3741, %v3816
      %v3842 = vmul.f32 %v3742, %v3816
      %v3843 = vmul.f32 %v3743, %v3816
      %v3844 = vmul.f32 %v3744, %v3816
      %v3845 = vmul.f32 %v3745, %v3816
      %v3846 = vmul.f32 %v3746, %v3816
      %v3847 = vmul.f32 %v3747, %v3816
      %v3848 = vmul.f32 %v3748, %v3816
      %v3849 = vadd.f32 %v3783, %v3817
      %v3850 = vadd.f32 %v3784, %v3818
      %v3851 = vadd.f32 %v3785, %v3819
      %v3852 = vadd.f32 %v3786, %v3820
      %v3853 = vadd.f32 %v3787, %v3821
      %v3854 = vadd.f32 %v3788, %v3822
      %v3855 = vadd.f32 %v3789, %v3823
      %v3856 = vadd.f32 %v3790, %v3824
      %v3857 = vadd.f32 %v3791, %v3825
      %v3858 = vadd.f32 %v3792, %v3826
      %v3859 = vadd.f32 %v3793, %v3827
      %v3860 = vadd.f32 %v3794, %v3828
      %v3861 = vadd.f32 %v3795, %v3829
      %v3862 = vadd.f32 %v3796, %v3830
      %v3863 = vadd.f32 %v3797, %v3831
      %v3864 = vadd.f32 %v3798, %v3832
      %v3865 = vadd.f32 %v3799, %v3833
      %v3866 = vadd.f32 %v3800, %v3834
      %v3867 = vadd.f32 %v3801, %v3835
      %v3868 = vadd.f32 %v3802, %v3836
      %v3869 = vadd.f32 %v3803, %v3837
      %v3870 = vadd.f32 %v3804, %v3838
      %v3871 = vadd.f32 %v3805, %v3839
      %v3872 = vadd.f32 %v3806, %v3840
      %v3873 = vadd.f32 %v3807, %v3841
      %v3874 = vadd.f32 %v3808, %v3842
      %v3875 = vadd.f32 %v3809, %v3843
      %v3876 = vadd.f32 %v3810, %v3844
      %v3877 = vadd.f32 %v3811, %v3845
      %v3878 = vadd.f32 %v3812, %v3846
      %v3879 = vadd.f32 %v3813, %v3847
      %v3880 = vadd.f32 %v3814, %v3848
      %v3881 = vld [vmem:[%s1 + $0x28] sm:$0x1]
      %v3882 = vperm.slane %v3881, 0
      %v3883 = vmul.f32 %v3749, %v3882
      %v3884 = vmul.f32 %v3750, %v3882
      %v3885 = vmul.f32 %v3751, %v3882
      %v3886 = vmul.f32 %v3752, %v3882
      %v3887 = vmul.f32 %v3753, %v3882
      %v3888 = vmul.f32 %v3754, %v3882
      %v3889 = vmul.f32 %v3755, %v3882
      %v3890 = vmul.f32 %v3756, %v3882
      %v3891 = vmul.f32 %v3757, %v3882
      %v3892 = vmul.f32 %v3758, %v3882
      %v3893 = vmul.f32 %v3759, %v3882
      %v3894 = vmul.f32 %v3760, %v3882
      %v3895 = vmul.f32 %v3761, %v3882
      %v3896 = vmul.f32 %v3762, %v3882
      %v3897 = vmul.f32 %v3763, %v3882
      %v3898 = vmul.f32 %v3764, %v3882
      %v3899 = vmul.f32 %v3765, %v3882
      %v3900 = vmul.f32 %v3766, %v3882
      %v3901 = vmul.f32 %v3767, %v3882
      %v3902 = vmul.f32 %v3768, %v3882
      %v3903 = vmul.f32 %v3769, %v3882
      %v3904 = vmul.f32 %v3770, %v3882
      %v3905 = vmul.f32 %v3771, %v3882
      %v3906 = vmul.f32 %v3772, %v3882
      %v3907 = vmul.f32 %v3773, %v3882
      %v3908 = vmul.f32 %v3774, %v3882
      %v3909 = vmul.f32 %v3775, %v3882
      %v3910 = vmul.f32 %v3776, %v3882
      %v3911 = vmul.f32 %v3777, %v3882
      %v3912 = vmul.f32 %v3778, %v3882
      %v3913 = vmul.f32 %v3779, %v3882
      %v3914 = vmul.f32 %v3780, %v3882
      %v3915 = vadd.f32 %v3849, %v3883
      %v3916 = vadd.f32 %v3850, %v3884
      %v3917 = vadd.f32 %v3851, %v3885
      %v3918 = vadd.f32 %v3852, %v3886
      %v3919 = vadd.f32 %v3853, %v3887
      %v3920 = vadd.f32 %v3854, %v3888
      %v3921 = vadd.f32 %v3855, %v3889
      %v3922 = vadd.f32 %v3856, %v3890
      %v3923 = vadd.f32 %v3857, %v3891
      %v3924 = vadd.f32 %v3858, %v3892
      %v3925 = vadd.f32 %v3859, %v3893
      %v3926 = vadd.f32 %v3860, %v3894
      %v3927 = vadd.f32 %v3861, %v3895
      %v3928 = vadd.f32 %v3862, %v3896
      %v3929 = vadd.f32 %v3863, %v3897
      %v3930 = vadd.f32 %v3864, %v3898
      %v3931 = vadd.f32 %v3865, %v3899
      %v3932 = vadd.f32 %v3866, %v3900
      %v3933 = vadd.f32 %v3867, %v3901
      %v3934 = vadd.f32 %v3868, %v3902
      %v3935 = vadd.f32 %v3869, %v3903
      %v3936 = vadd.f32 %v3870, %v3904
      %v3937 = vadd.f32 %v3871, %v3905
      %v3938 = vadd.f32 %v3872, %v3906
      %v3939 = vadd.f32 %v3873, %v3907
      %v3940 = vadd.f32 %v3874, %v3908
      %v3941 = vadd.f32 %v3875, %v3909
      %v3942 = vadd.f32 %v3876, %v3910
      %v3943 = vadd.f32 %v3877, %v3911
      %v3944 = vadd.f32 %v3878, %v3912
      %v3945 = vadd.f32 %v3879, %v3913
      %v3946 = vadd.f32 %v3880, %v3914
      %v3947 = vrot.slane %v3915, 7
      %v3948 = vrot.slane %v3916, 7
      %v3949 = vrot.slane %v3917, 7
      %v3950 = vrot.slane %v3918, 7
      %v3951 = vrot.slane %v3919, 7
      %v3952 = vrot.slane %v3920, 7
      %v3953 = vrot.slane %v3921, 7
      %v3954 = vrot.slane %v3922, 7
      %v3955 = vrot.slane %v3923, 7
      %v3956 = vrot.slane %v3924, 7
      %v3957 = vrot.slane %v3925, 7
      %v3958 = vrot.slane %v3926, 7
      %v3959 = vrot.slane %v3927, 7
      %v3960 = vrot.slane %v3928, 7
      %v3961 = vrot.slane %v3929, 7
      %v3962 = vrot.slane %v3930, 7
      %v3963 = vrot.slane %v3931, 7
      %v3964 = vrot.slane %v3932, 7
      %v3965 = vrot.slane %v3933, 7
      %v3966 = vrot.slane %v3934, 7
      %v3967 = vrot.slane %v3935, 7
      %v3968 = vrot.slane %v3936, 7
      %v3969 = vrot.slane %v3937, 7
      %v3970 = vrot.slane %v3938, 7
      %v3971 = vrot.slane %v3939, 7
      %v3972 = vrot.slane %v3940, 7
      %v3973 = vrot.slane %v3941, 7
      %v3974 = vrot.slane %v3942, 7
      %v3975 = vrot.slane %v3943, 7
      %v3976 = vrot.slane %v3944, 7
      %v3977 = vrot.slane %v3945, 7
      %v3978 = vrot.slane %v3946, 7
      %v3979 = vsel %vm1069, %v3977, %v3978
      %v3980 = vsel %vm1069, %v3976, %v3977
      %v3981 = vsel %vm1069, %v3975, %v3976
      %v3982 = vsel %vm1069, %v3974, %v3975
      %v3983 = vsel %vm1069, %v3973, %v3974
      %v3984 = vsel %vm1069, %v3972, %v3973
      %v3985 = vsel %vm1069, %v3971, %v3972
      %v3986 = vsel %vm1069, %v3970, %v3971
      %v3987 = vsel %vm1069, %v3969, %v3970
      %v3988 = vsel %vm1069, %v3968, %v3969
      %v3989 = vsel %vm1069, %v3967, %v3968
      %v3990 = vsel %vm1069, %v3966, %v3967
      %v3991 = vsel %vm1069, %v3965, %v3966
      %v3992 = vsel %vm1069, %v3964, %v3965
      %v3993 = vsel %vm1069, %v3963, %v3964
      %v3994 = vsel %vm1069, %v3962, %v3963
      %v3995 = vsel %vm1069, %v3961, %v3962
      %v3996 = vsel %vm1069, %v3960, %v3961
      %v3997 = vsel %vm1069, %v3959, %v3960
      %v3998 = vsel %vm1069, %v3958, %v3959
      %v3999 = vsel %vm1069, %v3957, %v3958
      %v4000 = vsel %vm1069, %v3956, %v3957
      %v4001 = vsel %vm1069, %v3955, %v3956
      %v4002 = vsel %vm1069, %v3954, %v3955
      %v4003 = vsel %vm1069, %v3953, %v3954
      %v4004 = vsel %vm1069, %v3952, %v3953
      %v4005 = vsel %vm1069, %v3951, %v3952
      %v4006 = vsel %vm1069, %v3950, %v3951
      %v4007 = vsel %vm1069, %v3949, %v3950
      %v4008 = vsel %vm1069, %v3948, %v3949
      %v4009 = vsel %vm1069, %v3947, %v3948
      %v4010 = vsel %vm1069, %v3978, %v3947
      %v4011 = vsel %vm1106, %v4010, 0.0
      %v4012 = vsel %vm1107, %v4009, 0.0
      %v4013 = vsel %vm1106, %v4008, 0.0
      %v4014 = vsel %vm1107, %v4007, 0.0
      %v4015 = vsel %vm1106, %v4006, 0.0
      %v4016 = vsel %vm1107, %v4005, 0.0
      %v4017 = vsel %vm1106, %v4004, 0.0
      %v4018 = vsel %vm1107, %v4003, 0.0
      %v4019 = vsel %vm1106, %v4002, 0.0
      %v4020 = vsel %vm1107, %v4001, 0.0
      %v4021 = vsel %vm1106, %v4000, 0.0
      %v4022 = vsel %vm1107, %v3999, 0.0
      %v4023 = vsel %vm1106, %v3998, 0.0
      %v4024 = vsel %vm1107, %v3997, 0.0
      %v4025 = vsel %vm1106, %v3996, 0.0
      %v4026 = vsel %vm1107, %v3995, 0.0
      %v4027 = vsel %vm1106, %v3994, 0.0
      %v4028 = vsel %vm1107, %v3993, 0.0
      %v4029 = vsel %vm1106, %v3992, 0.0
      %v4030 = vsel %vm1107, %v3991, 0.0
      %v4031 = vsel %vm1106, %v3990, 0.0
      %v4032 = vsel %vm1107, %v3989, 0.0
      %v4033 = vsel %vm1106, %v3988, 0.0
      %v4034 = vsel %vm1107, %v3987, 0.0
      %v4035 = vsel %vm1106, %v3986, 0.0
      %v4036 = vsel %vm1107, %v3985, 0.0
      %v4037 = vsel %vm1106, %v3984, 0.0
      %v4038 = vsel %vm1107, %v3983, 0.0
      %v4039 = vsel %vm1106, %v3982, 0.0
      %v4040 = vsel %vm1107, %v3981, 0.0
      %v4041 = vsel %vm1106, %v3980, 0.0
      %v4042 = vsel %vm1107, %v3979, 0.0
      %v4043 = vld [vmem:[%s1 + $0x23] sm:$0x1]
      %v4044 = vperm.slane %v4043, 0
      %v4045 = vmul.f32 %v3685, %v4044
      %v4046 = vmul.f32 %v3686, %v4044
      %v4047 = vmul.f32 %v3687, %v4044
      %v4048 = vmul.f32 %v3688, %v4044
      %v4049 = vmul.f32 %v3689, %v4044
      %v4050 = vmul.f32 %v3690, %v4044
      %v4051 = vmul.f32 %v3691, %v4044
      %v4052 = vmul.f32 %v3692, %v4044
      %v4053 = vmul.f32 %v3693, %v4044
      %v4054 = vmul.f32 %v3694, %v4044
      %v4055 = vmul.f32 %v3695, %v4044
      %v4056 = vmul.f32 %v3696, %v4044
      %v4057 = vmul.f32 %v3697, %v4044
      %v4058 = vmul.f32 %v3698, %v4044
      %v4059 = vmul.f32 %v3699, %v4044
      %v4060 = vmul.f32 %v3700, %v4044
      %v4061 = vmul.f32 %v3701, %v4044
      %v4062 = vmul.f32 %v3702, %v4044
      %v4063 = vmul.f32 %v3703, %v4044
      %v4064 = vmul.f32 %v3704, %v4044
      %v4065 = vmul.f32 %v3705, %v4044
      %v4066 = vmul.f32 %v3706, %v4044
      %v4067 = vmul.f32 %v3707, %v4044
      %v4068 = vmul.f32 %v3708, %v4044
      %v4069 = vmul.f32 %v3709, %v4044
      %v4070 = vmul.f32 %v3710, %v4044
      %v4071 = vmul.f32 %v3711, %v4044
      %v4072 = vmul.f32 %v3712, %v4044
      %v4073 = vmul.f32 %v3713, %v4044
      %v4074 = vmul.f32 %v3714, %v4044
      %v4075 = vmul.f32 %v3715, %v4044
      %v4076 = vmul.f32 %v3716, %v4044
      %v4077 = vld [vmem:[%s1 + $0x26] sm:$0x1]
      %v4078 = vperm.slane %v4077, 0
      %v4079 = vmul.f32 %v3717, %v4078
      %v4080 = vmul.f32 %v3718, %v4078
      %v4081 = vmul.f32 %v3719, %v4078
      %v4082 = vmul.f32 %v3720, %v4078
      %v4083 = vmul.f32 %v3721, %v4078
      %v4084 = vmul.f32 %v3722, %v4078
      %v4085 = vmul.f32 %v3723, %v4078
      %v4086 = vmul.f32 %v3724, %v4078
      %v4087 = vmul.f32 %v3725, %v4078
      %v4088 = vmul.f32 %v3726, %v4078
      %v4089 = vmul.f32 %v3727, %v4078
      %v4090 = vmul.f32 %v3728, %v4078
      %v4091 = vmul.f32 %v3729, %v4078
      %v4092 = vmul.f32 %v3730, %v4078
      %v4093 = vmul.f32 %v3731, %v4078
      %v4094 = vmul.f32 %v3732, %v4078
      %v4095 = vmul.f32 %v3733, %v4078
      %v4096 = vmul.f32 %v3734, %v4078
      %v4097 = vmul.f32 %v3735, %v4078
      %v4098 = vmul.f32 %v3736, %v4078
      %v4099 = vmul.f32 %v3737, %v4078
      %v4100 = vmul.f32 %v3738, %v4078
      %v4101 = vmul.f32 %v3739, %v4078
      %v4102 = vmul.f32 %v3740, %v4078
      %v4103 = vmul.f32 %v3741, %v4078
      %v4104 = vmul.f32 %v3742, %v4078
      %v4105 = vmul.f32 %v3743, %v4078
      %v4106 = vmul.f32 %v3744, %v4078
      %v4107 = vmul.f32 %v3745, %v4078
      %v4108 = vmul.f32 %v3746, %v4078
      %v4109 = vmul.f32 %v3747, %v4078
      %v4110 = vmul.f32 %v3748, %v4078
      %v4111 = vadd.f32 %v4045, %v4079
      %v4112 = vadd.f32 %v4046, %v4080
      %v4113 = vadd.f32 %v4047, %v4081
      %v4114 = vadd.f32 %v4048, %v4082
      %v4115 = vadd.f32 %v4049, %v4083
      %v4116 = vadd.f32 %v4050, %v4084
      %v4117 = vadd.f32 %v4051, %v4085
      %v4118 = vadd.f32 %v4052, %v4086
      %v4119 = vadd.f32 %v4053, %v4087
      %v4120 = vadd.f32 %v4054, %v4088
      %v4121 = vadd.f32 %v4055, %v4089
      %v4122 = vadd.f32 %v4056, %v4090
      %v4123 = vadd.f32 %v4057, %v4091
      %v4124 = vadd.f32 %v4058, %v4092
      %v4125 = vadd.f32 %v4059, %v4093
      %v4126 = vadd.f32 %v4060, %v4094
      %v4127 = vadd.f32 %v4061, %v4095
      %v4128 = vadd.f32 %v4062, %v4096
      %v4129 = vadd.f32 %v4063, %v4097
      %v4130 = vadd.f32 %v4064, %v4098
      %v4131 = vadd.f32 %v4065, %v4099
      %v4132 = vadd.f32 %v4066, %v4100
      %v4133 = vadd.f32 %v4067, %v4101
      %v4134 = vadd.f32 %v4068, %v4102
      %v4135 = vadd.f32 %v4069, %v4103
      %v4136 = vadd.f32 %v4070, %v4104
      %v4137 = vadd.f32 %v4071, %v4105
      %v4138 = vadd.f32 %v4072, %v4106
      %v4139 = vadd.f32 %v4073, %v4107
      %v4140 = vadd.f32 %v4074, %v4108
      %v4141 = vadd.f32 %v4075, %v4109
      %v4142 = vadd.f32 %v4076, %v4110
      %v4143 = vld [vmem:[%s1 + $0x29] sm:$0x1]
      %v4144 = vperm.slane %v4143, 0
      %v4145 = vmul.f32 %v3749, %v4144
      %v4146 = vmul.f32 %v3750, %v4144
      %v4147 = vmul.f32 %v3751, %v4144
      %v4148 = vmul.f32 %v3752, %v4144
      %v4149 = vmul.f32 %v3753, %v4144
      %v4150 = vmul.f32 %v3754, %v4144
      %v4151 = vmul.f32 %v3755, %v4144
      %v4152 = vmul.f32 %v3756, %v4144
      %v4153 = vmul.f32 %v3757, %v4144
      %v4154 = vmul.f32 %v3758, %v4144
      %v4155 = vmul.f32 %v3759, %v4144
      %v4156 = vmul.f32 %v3760, %v4144
      %v4157 = vmul.f32 %v3761, %v4144
      %v4158 = vmul.f32 %v3762, %v4144
      %v4159 = vmul.f32 %v3763, %v4144
      %v4160 = vmul.f32 %v3764, %v4144
      %v4161 = vmul.f32 %v3765, %v4144
      %v4162 = vmul.f32 %v3766, %v4144
      %v4163 = vmul.f32 %v3767, %v4144
      %v4164 = vmul.f32 %v3768, %v4144
      %v4165 = vmul.f32 %v3769, %v4144
      %v4166 = vmul.f32 %v3770, %v4144
      %v4167 = vmul.f32 %v3771, %v4144
      %v4168 = vmul.f32 %v3772, %v4144
      %v4169 = vmul.f32 %v3773, %v4144
      %v4170 = vmul.f32 %v3774, %v4144
      %v4171 = vmul.f32 %v3775, %v4144
      %v4172 = vmul.f32 %v3776, %v4144
      %v4173 = vmul.f32 %v3777, %v4144
      %v4174 = vmul.f32 %v3778, %v4144
      %v4175 = vmul.f32 %v3779, %v4144
      %v4176 = vmul.f32 %v3780, %v4144
      %v4177 = vadd.f32 %v4111, %v4145
      %v4178 = vadd.f32 %v4112, %v4146
      %v4179 = vadd.f32 %v4113, %v4147
      %v4180 = vadd.f32 %v4114, %v4148
      %v4181 = vadd.f32 %v4115, %v4149
      %v4182 = vadd.f32 %v4116, %v4150
      %v4183 = vadd.f32 %v4117, %v4151
      %v4184 = vadd.f32 %v4118, %v4152
      %v4185 = vadd.f32 %v4119, %v4153
      %v4186 = vadd.f32 %v4120, %v4154
      %v4187 = vadd.f32 %v4121, %v4155
      %v4188 = vadd.f32 %v4122, %v4156
      %v4189 = vadd.f32 %v4123, %v4157
      %v4190 = vadd.f32 %v4124, %v4158
      %v4191 = vadd.f32 %v4125, %v4159
      %v4192 = vadd.f32 %v4126, %v4160
      %v4193 = vadd.f32 %v4127, %v4161
      %v4194 = vadd.f32 %v4128, %v4162
      %v4195 = vadd.f32 %v4129, %v4163
      %v4196 = vadd.f32 %v4130, %v4164
      %v4197 = vadd.f32 %v4131, %v4165
      %v4198 = vadd.f32 %v4132, %v4166
      %v4199 = vadd.f32 %v4133, %v4167
      %v4200 = vadd.f32 %v4134, %v4168
      %v4201 = vadd.f32 %v4135, %v4169
      %v4202 = vadd.f32 %v4136, %v4170
      %v4203 = vadd.f32 %v4137, %v4171
      %v4204 = vadd.f32 %v4138, %v4172
      %v4205 = vadd.f32 %v4139, %v4173
      %v4206 = vadd.f32 %v4140, %v4174
      %v4207 = vadd.f32 %v4141, %v4175
      %v4208 = vadd.f32 %v4142, %v4176
      %v4209 = vadd.f32 %v4011, %v4177
      %v4210 = vadd.f32 %v4012, %v4178
      %v4211 = vadd.f32 %v4013, %v4179
      %v4212 = vadd.f32 %v4014, %v4180
      %v4213 = vadd.f32 %v4015, %v4181
      %v4214 = vadd.f32 %v4016, %v4182
      %v4215 = vadd.f32 %v4017, %v4183
      %v4216 = vadd.f32 %v4018, %v4184
      %v4217 = vadd.f32 %v4019, %v4185
      %v4218 = vadd.f32 %v4020, %v4186
      %v4219 = vadd.f32 %v4021, %v4187
      %v4220 = vadd.f32 %v4022, %v4188
      %v4221 = vadd.f32 %v4023, %v4189
      %v4222 = vadd.f32 %v4024, %v4190
      %v4223 = vadd.f32 %v4025, %v4191
      %v4224 = vadd.f32 %v4026, %v4192
      %v4225 = vadd.f32 %v4027, %v4193
      %v4226 = vadd.f32 %v4028, %v4194
      %v4227 = vadd.f32 %v4029, %v4195
      %v4228 = vadd.f32 %v4030, %v4196
      %v4229 = vadd.f32 %v4031, %v4197
      %v4230 = vadd.f32 %v4032, %v4198
      %v4231 = vadd.f32 %v4033, %v4199
      %v4232 = vadd.f32 %v4034, %v4200
      %v4233 = vadd.f32 %v4035, %v4201
      %v4234 = vadd.f32 %v4036, %v4202
      %v4235 = vadd.f32 %v4037, %v4203
      %v4236 = vadd.f32 %v4038, %v4204
      %v4237 = vadd.f32 %v4039, %v4205
      %v4238 = vadd.f32 %v4040, %v4206
      %v4239 = vadd.f32 %v4041, %v4207
      %v4240 = vadd.f32 %v4042, %v4208
      %v4241 = vld [vmem:[%s1 + $0x24] sm:$0x1]
      %v4242 = vperm.slane %v4241, 0
      %v4243 = vmul.f32 %v3685, %v4242
      %v4244 = vmul.f32 %v3686, %v4242
      %v4245 = vmul.f32 %v3687, %v4242
      %v4246 = vmul.f32 %v3688, %v4242
      %v4247 = vmul.f32 %v3689, %v4242
      %v4248 = vmul.f32 %v3690, %v4242
      %v4249 = vmul.f32 %v3691, %v4242
      %v4250 = vmul.f32 %v3692, %v4242
      %v4251 = vmul.f32 %v3693, %v4242
      %v4252 = vmul.f32 %v3694, %v4242
      %v4253 = vmul.f32 %v3695, %v4242
      %v4254 = vmul.f32 %v3696, %v4242
      %v4255 = vmul.f32 %v3697, %v4242
      %v4256 = vmul.f32 %v3698, %v4242
      %v4257 = vmul.f32 %v3699, %v4242
      %v4258 = vmul.f32 %v3700, %v4242
      %v4259 = vmul.f32 %v3701, %v4242
      %v4260 = vmul.f32 %v3702, %v4242
      %v4261 = vmul.f32 %v3703, %v4242
      %v4262 = vmul.f32 %v3704, %v4242
      %v4263 = vmul.f32 %v3705, %v4242
      %v4264 = vmul.f32 %v3706, %v4242
      %v4265 = vmul.f32 %v3707, %v4242
      %v4266 = vmul.f32 %v3708, %v4242
      %v4267 = vmul.f32 %v3709, %v4242
      %v4268 = vmul.f32 %v3710, %v4242
      %v4269 = vmul.f32 %v3711, %v4242
      %v4270 = vmul.f32 %v3712, %v4242
      %v4271 = vmul.f32 %v3713, %v4242
      %v4272 = vmul.f32 %v3714, %v4242
      %v4273 = vmul.f32 %v3715, %v4242
      %v4274 = vmul.f32 %v3716, %v4242
      %v4275 = vld [vmem:[%s1 + $0x27] sm:$0x1]
      %v4276 = vperm.slane %v4275, 0
      %v4277 = vmul.f32 %v3717, %v4276
      %v4278 = vmul.f32 %v3718, %v4276
      %v4279 = vmul.f32 %v3719, %v4276
      %v4280 = vmul.f32 %v3720, %v4276
      %v4281 = vmul.f32 %v3721, %v4276
      %v4282 = vmul.f32 %v3722, %v4276
      %v4283 = vmul.f32 %v3723, %v4276
      %v4284 = vmul.f32 %v3724, %v4276
      %v4285 = vmul.f32 %v3725, %v4276
      %v4286 = vmul.f32 %v3726, %v4276
      %v4287 = vmul.f32 %v3727, %v4276
      %v4288 = vmul.f32 %v3728, %v4276
      %v4289 = vmul.f32 %v3729, %v4276
      %v4290 = vmul.f32 %v3730, %v4276
      %v4291 = vmul.f32 %v3731, %v4276
      %v4292 = vmul.f32 %v3732, %v4276
      %v4293 = vmul.f32 %v3733, %v4276
      %v4294 = vmul.f32 %v3734, %v4276
      %v4295 = vmul.f32 %v3735, %v4276
      %v4296 = vmul.f32 %v3736, %v4276
      %v4297 = vmul.f32 %v3737, %v4276
      %v4298 = vmul.f32 %v3738, %v4276
      %v4299 = vmul.f32 %v3739, %v4276
      %v4300 = vmul.f32 %v3740, %v4276
      %v4301 = vmul.f32 %v3741, %v4276
      %v4302 = vmul.f32 %v3742, %v4276
      %v4303 = vmul.f32 %v3743, %v4276
      %v4304 = vmul.f32 %v3744, %v4276
      %v4305 = vmul.f32 %v3745, %v4276
      %v4306 = vmul.f32 %v3746, %v4276
      %v4307 = vmul.f32 %v3747, %v4276
      %v4308 = vmul.f32 %v3748, %v4276
      %v4309 = vadd.f32 %v4243, %v4277
      %v4310 = vadd.f32 %v4244, %v4278
      %v4311 = vadd.f32 %v4245, %v4279
      %v4312 = vadd.f32 %v4246, %v4280
      %v4313 = vadd.f32 %v4247, %v4281
      %v4314 = vadd.f32 %v4248, %v4282
      %v4315 = vadd.f32 %v4249, %v4283
      %v4316 = vadd.f32 %v4250, %v4284
      %v4317 = vadd.f32 %v4251, %v4285
      %v4318 = vadd.f32 %v4252, %v4286
      %v4319 = vadd.f32 %v4253, %v4287
      %v4320 = vadd.f32 %v4254, %v4288
      %v4321 = vadd.f32 %v4255, %v4289
      %v4322 = vadd.f32 %v4256, %v4290
      %v4323 = vadd.f32 %v4257, %v4291
      %v4324 = vadd.f32 %v4258, %v4292
      %v4325 = vadd.f32 %v4259, %v4293
      %v4326 = vadd.f32 %v4260, %v4294
      %v4327 = vadd.f32 %v4261, %v4295
      %v4328 = vadd.f32 %v4262, %v4296
      %v4329 = vadd.f32 %v4263, %v4297
      %v4330 = vadd.f32 %v4264, %v4298
      %v4331 = vadd.f32 %v4265, %v4299
      %v4332 = vadd.f32 %v4266, %v4300
      %v4333 = vadd.f32 %v4267, %v4301
      %v4334 = vadd.f32 %v4268, %v4302
      %v4335 = vadd.f32 %v4269, %v4303
      %v4336 = vadd.f32 %v4270, %v4304
      %v4337 = vadd.f32 %v4271, %v4305
      %v4338 = vadd.f32 %v4272, %v4306
      %v4339 = vadd.f32 %v4273, %v4307
      %v4340 = vadd.f32 %v4274, %v4308
      %v4341 = vld [vmem:[%s1 + $0x2a] sm:$0x1]
      %v4342 = vperm.slane %v4341, 0
      %v4343 = vmul.f32 %v3749, %v4342
      %v4344 = vmul.f32 %v3750, %v4342
      %v4345 = vmul.f32 %v3751, %v4342
      %v4346 = vmul.f32 %v3752, %v4342
      %v4347 = vmul.f32 %v3753, %v4342
      %v4348 = vmul.f32 %v3754, %v4342
      %v4349 = vmul.f32 %v3755, %v4342
      %v4350 = vmul.f32 %v3756, %v4342
      %v4351 = vmul.f32 %v3757, %v4342
      %v4352 = vmul.f32 %v3758, %v4342
      %v4353 = vmul.f32 %v3759, %v4342
      %v4354 = vmul.f32 %v3760, %v4342
      %v4355 = vmul.f32 %v3761, %v4342
      %v4356 = vmul.f32 %v3762, %v4342
      %v4357 = vmul.f32 %v3763, %v4342
      %v4358 = vmul.f32 %v3764, %v4342
      %v4359 = vmul.f32 %v3765, %v4342
      %v4360 = vmul.f32 %v3766, %v4342
      %v4361 = vmul.f32 %v3767, %v4342
      %v4362 = vmul.f32 %v3768, %v4342
      %v4363 = vmul.f32 %v3769, %v4342
      %v4364 = vmul.f32 %v3770, %v4342
      %v4365 = vmul.f32 %v3771, %v4342
      %v4366 = vmul.f32 %v3772, %v4342
      %v4367 = vmul.f32 %v3773, %v4342
      %v4368 = vmul.f32 %v3774, %v4342
      %v4369 = vmul.f32 %v3775, %v4342
      %v4370 = vmul.f32 %v3776, %v4342
      %v4371 = vmul.f32 %v3777, %v4342
      %v4372 = vmul.f32 %v3778, %v4342
      %v4373 = vmul.f32 %v3779, %v4342
      %v4374 = vmul.f32 %v3780, %v4342
      %v4375 = vadd.f32 %v4309, %v4343
      %v4376 = vadd.f32 %v4310, %v4344
      %v4377 = vadd.f32 %v4311, %v4345
      %v4378 = vadd.f32 %v4312, %v4346
      %v4379 = vadd.f32 %v4313, %v4347
      %v4380 = vadd.f32 %v4314, %v4348
      %v4381 = vadd.f32 %v4315, %v4349
      %v4382 = vadd.f32 %v4316, %v4350
      %v4383 = vadd.f32 %v4317, %v4351
      %v4384 = vadd.f32 %v4318, %v4352
      %v4385 = vadd.f32 %v4319, %v4353
      %v4386 = vadd.f32 %v4320, %v4354
      %v4387 = vadd.f32 %v4321, %v4355
      %v4388 = vadd.f32 %v4322, %v4356
      %v4389 = vadd.f32 %v4323, %v4357
      %v4390 = vadd.f32 %v4324, %v4358
      %v4391 = vadd.f32 %v4325, %v4359
      %v4392 = vadd.f32 %v4326, %v4360
      %v4393 = vadd.f32 %v4327, %v4361
      %v4394 = vadd.f32 %v4328, %v4362
      %v4395 = vadd.f32 %v4329, %v4363
      %v4396 = vadd.f32 %v4330, %v4364
      %v4397 = vadd.f32 %v4331, %v4365
      %v4398 = vadd.f32 %v4332, %v4366
      %v4399 = vadd.f32 %v4333, %v4367
      %v4400 = vadd.f32 %v4334, %v4368
      %v4401 = vadd.f32 %v4335, %v4369
      %v4402 = vadd.f32 %v4336, %v4370
      %v4403 = vadd.f32 %v4337, %v4371
      %v4404 = vadd.f32 %v4338, %v4372
      %v4405 = vadd.f32 %v4339, %v4373
      %v4406 = vadd.f32 %v4340, %v4374
      %v4407 = vrot.slane %v4375, 1
      %v4408 = vrot.slane %v4376, 1
      %v4409 = vrot.slane %v4377, 1
      %v4410 = vrot.slane %v4378, 1
      %v4411 = vrot.slane %v4379, 1
      %v4412 = vrot.slane %v4380, 1
      %v4413 = vrot.slane %v4381, 1
      %v4414 = vrot.slane %v4382, 1
      %v4415 = vrot.slane %v4383, 1
      %v4416 = vrot.slane %v4384, 1
      %v4417 = vrot.slane %v4385, 1
      %v4418 = vrot.slane %v4386, 1
      %v4419 = vrot.slane %v4387, 1
      %v4420 = vrot.slane %v4388, 1
      %v4421 = vrot.slane %v4389, 1
      %v4422 = vrot.slane %v4390, 1
      %v4423 = vrot.slane %v4391, 1
      %v4424 = vrot.slane %v4392, 1
      %v4425 = vrot.slane %v4393, 1
      %v4426 = vrot.slane %v4394, 1
      %v4427 = vrot.slane %v4395, 1
      %v4428 = vrot.slane %v4396, 1
      %v4429 = vrot.slane %v4397, 1
      %v4430 = vrot.slane %v4398, 1
      %v4431 = vrot.slane %v4399, 1
      %v4432 = vrot.slane %v4400, 1
      %v4433 = vrot.slane %v4401, 1
      %v4434 = vrot.slane %v4402, 1
      %v4435 = vrot.slane %v4403, 1
      %v4436 = vrot.slane %v4404, 1
      %v4437 = vrot.slane %v4405, 1
      %v4438 = vrot.slane %v4406, 1
      %v4439 = vsel %vm1832, %v4437, %v4438
      %v4440 = vsel %vm1832, %v4436, %v4437
      %v4441 = vsel %vm1832, %v4435, %v4436
      %v4442 = vsel %vm1832, %v4434, %v4435
      %v4443 = vsel %vm1832, %v4433, %v4434
      %v4444 = vsel %vm1832, %v4432, %v4433
      %v4445 = vsel %vm1832, %v4431, %v4432
      %v4446 = vsel %vm1832, %v4430, %v4431
      %v4447 = vsel %vm1832, %v4429, %v4430
      %v4448 = vsel %vm1832, %v4428, %v4429
      %v4449 = vsel %vm1832, %v4427, %v4428
      %v4450 = vsel %vm1832, %v4426, %v4427
      %v4451 = vsel %vm1832, %v4425, %v4426
      %v4452 = vsel %vm1832, %v4424, %v4425
      %v4453 = vsel %vm1832, %v4423, %v4424
      %v4454 = vsel %vm1832, %v4422, %v4423
      %v4455 = vsel %vm1832, %v4421, %v4422
      %v4456 = vsel %vm1832, %v4420, %v4421
      %v4457 = vsel %vm1832, %v4419, %v4420
      %v4458 = vsel %vm1832, %v4418, %v4419
      %v4459 = vsel %vm1832, %v4417, %v4418
      %v4460 = vsel %vm1832, %v4416, %v4417
      %v4461 = vsel %vm1832, %v4415, %v4416
      %v4462 = vsel %vm1832, %v4414, %v4415
      %v4463 = vsel %vm1832, %v4413, %v4414
      %v4464 = vsel %vm1832, %v4412, %v4413
      %v4465 = vsel %vm1832, %v4411, %v4412
      %v4466 = vsel %vm1832, %v4410, %v4411
      %v4467 = vsel %vm1832, %v4409, %v4410
      %v4468 = vsel %vm1832, %v4408, %v4409
      %v4469 = vsel %vm1832, %v4407, %v4408
      %v4470 = vsel %vm1832, %v4438, %v4407
      %v4471 = vsel %vm1869, %v4469, 0.0
      %v4472 = vsel %vm1870, %v4468, 0.0
      %v4473 = vsel %vm1869, %v4467, 0.0
      %v4474 = vsel %vm1870, %v4466, 0.0
      %v4475 = vsel %vm1869, %v4465, 0.0
      %v4476 = vsel %vm1870, %v4464, 0.0
      %v4477 = vsel %vm1869, %v4463, 0.0
      %v4478 = vsel %vm1870, %v4462, 0.0
      %v4479 = vsel %vm1869, %v4461, 0.0
      %v4480 = vsel %vm1870, %v4460, 0.0
      %v4481 = vsel %vm1869, %v4459, 0.0
      %v4482 = vsel %vm1870, %v4458, 0.0
      %v4483 = vsel %vm1869, %v4457, 0.0
      %v4484 = vsel %vm1870, %v4456, 0.0
      %v4485 = vsel %vm1869, %v4455, 0.0
      %v4486 = vsel %vm1870, %v4454, 0.0
      %v4487 = vsel %vm1869, %v4453, 0.0
      %v4488 = vsel %vm1870, %v4452, 0.0
      %v4489 = vsel %vm1869, %v4451, 0.0
      %v4490 = vsel %vm1870, %v4450, 0.0
      %v4491 = vsel %vm1869, %v4449, 0.0
      %v4492 = vsel %vm1870, %v4448, 0.0
      %v4493 = vsel %vm1869, %v4447, 0.0
      %v4494 = vsel %vm1870, %v4446, 0.0
      %v4495 = vsel %vm1869, %v4445, 0.0
      %v4496 = vsel %vm1870, %v4444, 0.0
      %v4497 = vsel %vm1869, %v4443, 0.0
      %v4498 = vsel %vm1870, %v4442, 0.0
      %v4499 = vsel %vm1869, %v4441, 0.0
      %v4500 = vsel %vm1870, %v4440, 0.0
      %v4501 = vsel %vm1869, %v4439, 0.0
      %v4502 = vsel %vm1870, %v4470, 0.0
      %v4503 = vadd.f32 %v4209, %v4471
      %v4504 = vadd.f32 %v4210, %v4472
      %v4505 = vadd.f32 %v4211, %v4473
      %v4506 = vadd.f32 %v4212, %v4474
      %v4507 = vadd.f32 %v4213, %v4475
      %v4508 = vadd.f32 %v4214, %v4476
      %v4509 = vadd.f32 %v4215, %v4477
      %v4510 = vadd.f32 %v4216, %v4478
      %v4511 = vadd.f32 %v4217, %v4479
      %v4512 = vadd.f32 %v4218, %v4480
      %v4513 = vadd.f32 %v4219, %v4481
      %v4514 = vadd.f32 %v4220, %v4482
      %v4515 = vadd.f32 %v4221, %v4483
      %v4516 = vadd.f32 %v4222, %v4484
      %v4517 = vadd.f32 %v4223, %v4485
      %v4518 = vadd.f32 %v4224, %v4486
      %v4519 = vadd.f32 %v4225, %v4487
      %v4520 = vadd.f32 %v4226, %v4488
      %v4521 = vadd.f32 %v4227, %v4489
      %v4522 = vadd.f32 %v4228, %v4490
      %v4523 = vadd.f32 %v4229, %v4491
      %v4524 = vadd.f32 %v4230, %v4492
      %v4525 = vadd.f32 %v4231, %v4493
      %v4526 = vadd.f32 %v4232, %v4494
      %v4527 = vadd.f32 %v4233, %v4495
      %v4528 = vadd.f32 %v4234, %v4496
      %v4529 = vadd.f32 %v4235, %v4497
      %v4530 = vadd.f32 %v4236, %v4498
      %v4531 = vadd.f32 %v4237, %v4499
      %v4532 = vadd.f32 %v4238, %v4500
      %v4533 = vadd.f32 %v4239, %v4501
      %v4534 = vadd.f32 %v4240, %v4502
      %v4535 = vpack.c.bf16 %v4504, %v4503
      %v4536 = vpack.c.bf16 %v4506, %v4505
      %v4537 = vpack.c.bf16 %v4508, %v4507
      %v4538 = vpack.c.bf16 %v4510, %v4509
      %v4539 = vpack.c.bf16 %v4512, %v4511
      %v4540 = vpack.c.bf16 %v4514, %v4513
      %v4541 = vpack.c.bf16 %v4516, %v4515
      %v4542 = vpack.c.bf16 %v4518, %v4517
      %v4543 = vpack.c.bf16 %v4520, %v4519
      %v4544 = vpack.c.bf16 %v4522, %v4521
      %v4545 = vpack.c.bf16 %v4524, %v4523
      %v4546 = vpack.c.bf16 %v4526, %v4525
      %v4547 = vpack.c.bf16 %v4528, %v4527
      %v4548 = vpack.c.bf16 %v4530, %v4529
      %v4549 = vpack.c.bf16 %v4532, %v4531
      %v4550 = vpack.c.bf16 %v4534, %v4533
      %s4551 = scalar_lea.vmem %s2, 128
      %v4552 = vld [vmem:[%s4551] sm:$0xf]
      %v4553 = vld [vmem:[%s4551 + $0x4] sm:$0xf]
      %v4554 = vld [vmem:[%s4551 + $0x8] sm:$0xf]
      %v4555 = vld [vmem:[%s4551 + $0xc] sm:$0xf]
      %v4556 = vld [vmem:[%s4551 + $0x10] sm:$0xf]
      %v4557 = vld [vmem:[%s4551 + $0x14] sm:$0xf]
      %v4558 = vld [vmem:[%s4551 + $0x18] sm:$0xf]
      %v4559 = vld [vmem:[%s4551 + $0x1c] sm:$0xf]
      %v4560 = vld [vmem:[%s4551 + $0x20] sm:$0xf]
      %v4561 = vld [vmem:[%s4551 + $0x24] sm:$0xf]
      %v4562 = vld [vmem:[%s4551 + $0x28] sm:$0xf]
      %v4563 = vld [vmem:[%s4551 + $0x2c] sm:$0xf]
      %v4564 = vld [vmem:[%s4551 + $0x30] sm:$0xf]
      %v4565 = vld [vmem:[%s4551 + $0x34] sm:$0xf]
      %v4566 = vld [vmem:[%s4551 + $0x38] sm:$0xf]
      %v4567 = vld [vmem:[%s4551 + $0x3c] sm:$0xf]
      %v4584 = vunpack.c.l.b16 %v4552
      %v4585 = vunpack.c.l.b16 %v4553
      %v4586 = vunpack.c.l.b16 %v4554
      %v4587 = vunpack.c.l.b16 %v4555
      %v4588 = vunpack.c.l.b16 %v4556
      %v4589 = vunpack.c.l.b16 %v4557
      %v4590 = vunpack.c.l.b16 %v4558
      %v4591 = vunpack.c.l.b16 %v4559
      %v4592 = vunpack.c.l.b16 %v4560
      %v4593 = vunpack.c.l.b16 %v4561
      %v4594 = vunpack.c.l.b16 %v4562
      %v4595 = vunpack.c.l.b16 %v4563
      %v4596 = vunpack.c.l.b16 %v4564
      %v4597 = vunpack.c.l.b16 %v4565
      %v4598 = vunpack.c.l.b16 %v4566
      %v4599 = vunpack.c.l.b16 %v4567
      %v4600 = vpack.c.b16 %v4585, %v4584
      %v4601 = vpack.c.b16 %v4587, %v4586
      %v4602 = vpack.c.b16 %v4589, %v4588
      %v4603 = vpack.c.b16 %v4591, %v4590
      %v4604 = vpack.c.b16 %v4593, %v4592
      %v4605 = vpack.c.b16 %v4595, %v4594
      %v4606 = vpack.c.b16 %v4597, %v4596
      %v4607 = vpack.c.b16 %v4599, %v4598
      %4616 = vmatpush.bf16.msra.mxu0 %v4607
      %4617 = vmatpush.bf16.msra.mxu0 %v4606
      %4618 = vmatpush.bf16.msra.mxu0 %v4605
      %4619 = vmatpush.bf16.msra.mxu0 %v4604
      %4620 = vmatpush.bf16.msra.mxu0 %v4603
      %4621 = vmatpush.bf16.msra.mxu0 %v4602
      %4622 = vmatpush.bf16.msra.mxu0 %v4601
      %4623 = vmatpush.bf16.msra.mxu0 %v4600
      %4624 = vmatmul.bf16.gmra.mxu0 %v4535
      %v4625 = vpop.f32.mrf.mxu0
      %v4626 = vadd.f32 0.0, %v4625
      %v4627 = vpop.f32.mrf.mxu0
      %v4628 = vadd.f32 0.0, %v4627
      %4629 = vmatmul.bf16.gmra.mxu0 %v4536
      %v4630 = vpop.f32.mrf.mxu0
      %v4631 = vadd.f32 0.0, %v4630
      %v4632 = vpop.f32.mrf.mxu0
      %v4633 = vadd.f32 0.0, %v4632
      %4634 = vmatmul.bf16.gmra.mxu0 %v4537
      %v4635 = vpop.f32.mrf.mxu0
      %v4636 = vadd.f32 0.0, %v4635
      %v4637 = vpop.f32.mrf.mxu0
      %v4638 = vadd.f32 0.0, %v4637
      %4639 = vmatmul.bf16.gmra.mxu0 %v4538
      %v4640 = vpop.f32.mrf.mxu0
      %v4641 = vadd.f32 0.0, %v4640
      %v4642 = vpop.f32.mrf.mxu0
      %v4643 = vadd.f32 0.0, %v4642
      %4644 = vmatmul.bf16.gmra.mxu0 %v4539
      %v4645 = vpop.f32.mrf.mxu0
      %v4646 = vadd.f32 0.0, %v4645
      %v4647 = vpop.f32.mrf.mxu0
      %v4648 = vadd.f32 0.0, %v4647
      %4649 = vmatmul.bf16.gmra.mxu0 %v4540
      %v4650 = vpop.f32.mrf.mxu0
      %v4651 = vadd.f32 0.0, %v4650
      %v4652 = vpop.f32.mrf.mxu0
      %v4653 = vadd.f32 0.0, %v4652
      %4654 = vmatmul.bf16.gmra.mxu0 %v4541
      %v4655 = vpop.f32.mrf.mxu0
      %v4656 = vadd.f32 0.0, %v4655
      %v4657 = vpop.f32.mrf.mxu0
      %v4658 = vadd.f32 0.0, %v4657
      %4659 = vmatmul.bf16.gmra.mxu0 %v4542
      %v4660 = vpop.f32.mrf.mxu0
      %v4661 = vadd.f32 0.0, %v4660
      %v4662 = vpop.f32.mrf.mxu0
      %v4663 = vadd.f32 0.0, %v4662
      %4664 = vmatmul.bf16.gmra.mxu0 %v4543
      %v4665 = vpop.f32.mrf.mxu0
      %v4666 = vadd.f32 0.0, %v4665
      %v4667 = vpop.f32.mrf.mxu0
      %v4668 = vadd.f32 0.0, %v4667
      %4669 = vmatmul.bf16.gmra.mxu0 %v4544
      %v4670 = vpop.f32.mrf.mxu0
      %v4671 = vadd.f32 0.0, %v4670
      %v4672 = vpop.f32.mrf.mxu0
      %v4673 = vadd.f32 0.0, %v4672
      %4674 = vmatmul.bf16.gmra.mxu0 %v4545
      %v4675 = vpop.f32.mrf.mxu0
      %v4676 = vadd.f32 0.0, %v4675
      %v4677 = vpop.f32.mrf.mxu0
      %v4678 = vadd.f32 0.0, %v4677
      %4679 = vmatmul.bf16.gmra.mxu0 %v4546
      %v4680 = vpop.f32.mrf.mxu0
      %v4681 = vadd.f32 0.0, %v4680
      %v4682 = vpop.f32.mrf.mxu0
      %v4683 = vadd.f32 0.0, %v4682
      %4684 = vmatmul.bf16.gmra.mxu0 %v4547
      %v4685 = vpop.f32.mrf.mxu0
      %v4686 = vadd.f32 0.0, %v4685
      %v4687 = vpop.f32.mrf.mxu0
      %v4688 = vadd.f32 0.0, %v4687
      %4689 = vmatmul.bf16.gmra.mxu0 %v4548
      %v4690 = vpop.f32.mrf.mxu0
      %v4691 = vadd.f32 0.0, %v4690
      %v4692 = vpop.f32.mrf.mxu0
      %v4693 = vadd.f32 0.0, %v4692
      %4694 = vmatmul.bf16.gmra.mxu0 %v4549
      %v4695 = vpop.f32.mrf.mxu0
      %v4696 = vadd.f32 0.0, %v4695
      %v4697 = vpop.f32.mrf.mxu0
      %v4698 = vadd.f32 0.0, %v4697
      %4699 = vmatmul.bf16.gmra.mxu0 %v4550
      %v4700 = vpop.f32.mrf.mxu0
      %v4701 = vadd.f32 0.0, %v4700
      %v4702 = vpop.f32.mrf.mxu0
      %v4703 = vadd.f32 0.0, %v4702
      %4704 = vdwg.mxu0
      %v4705 = vmax.f32 %v4626, 0.0
      %v4706 = vmax.f32 %v4628, 0.0
      %v4707 = vmax.f32 %v4631, 0.0
      %v4708 = vmax.f32 %v4633, 0.0
      %v4709 = vmax.f32 %v4636, 0.0
      %v4710 = vmax.f32 %v4638, 0.0
      %v4711 = vmax.f32 %v4641, 0.0
      %v4712 = vmax.f32 %v4643, 0.0
      %v4713 = vmax.f32 %v4646, 0.0
      %v4714 = vmax.f32 %v4648, 0.0
      %v4715 = vmax.f32 %v4651, 0.0
      %v4716 = vmax.f32 %v4653, 0.0
      %v4717 = vmax.f32 %v4656, 0.0
      %v4718 = vmax.f32 %v4658, 0.0
      %v4719 = vmax.f32 %v4661, 0.0
      %v4720 = vmax.f32 %v4663, 0.0
      %v4721 = vmax.f32 %v4666, 0.0
      %v4722 = vmax.f32 %v4668, 0.0
      %v4723 = vmax.f32 %v4671, 0.0
      %v4724 = vmax.f32 %v4673, 0.0
      %v4725 = vmax.f32 %v4676, 0.0
      %v4726 = vmax.f32 %v4678, 0.0
      %v4727 = vmax.f32 %v4681, 0.0
      %v4728 = vmax.f32 %v4683, 0.0
      %v4729 = vmax.f32 %v4686, 0.0
      %v4730 = vmax.f32 %v4688, 0.0
      %v4731 = vmax.f32 %v4691, 0.0
      %v4732 = vmax.f32 %v4693, 0.0
      %v4733 = vmax.f32 %v4696, 0.0
      %v4734 = vmax.f32 %v4698, 0.0
      %v4735 = vmax.f32 %v4701, 0.0
      %v4736 = vmax.f32 %v4703, 0.0
      %4737 = vst [vmem:[%s236] sm:$0xff] %v4705
      %4738 = vst [vmem:[%s236 + $0x8] sm:$0xff] %v4706
      %4739 = vst [vmem:[%s236 + $0x10] sm:$0xff] %v4707
      %4740 = vst [vmem:[%s236 + $0x18] sm:$0xff] %v4708
      %4741 = vst [vmem:[%s236 + $0x20] sm:$0xff] %v4709
      %4742 = vst [vmem:[%s236 + $0x28] sm:$0xff] %v4710
      %4743 = vst [vmem:[%s236 + $0x30] sm:$0xff] %v4711
      %4744 = vst [vmem:[%s236 + $0x38] sm:$0xff] %v4712
      %4745 = vst [vmem:[%s236 + $0x40] sm:$0xff] %v4713
      %4746 = vst [vmem:[%s236 + $0x48] sm:$0xff] %v4714
      %4747 = vst [vmem:[%s236 + $0x50] sm:$0xff] %v4715
      %4748 = vst [vmem:[%s236 + $0x58] sm:$0xff] %v4716
      %4749 = vst [vmem:[%s236 + $0x60] sm:$0xff] %v4717
      %4750 = vst [vmem:[%s236 + $0x68] sm:$0xff] %v4718
      %4751 = vst [vmem:[%s236 + $0x70] sm:$0xff] %v4719
      %4752 = vst [vmem:[%s236 + $0x78] sm:$0xff] %v4720
      %4753 = vst [vmem:[%s236 + $0x80] sm:$0xff] %v4721
      %4754 = vst [vmem:[%s236 + $0x88] sm:$0xff] %v4722
      %4755 = vst [vmem:[%s236 + $0x90] sm:$0xff] %v4723
      %4756 = vst [vmem:[%s236 + $0x98] sm:$0xff] %v4724
      %4757 = vst [vmem:[%s236 + $0xa0] sm:$0xff] %v4725
      %4758 = vst [vmem:[%s236 + $0xa8] sm:$0xff] %v4726
      %4759 = vst [vmem:[%s236 + $0xb0] sm:$0xff] %v4727
      %4760 = vst [vmem:[%s236 + $0xb8] sm:$0xff] %v4728
      %4761 = vst [vmem:[%s236 + $0xc0] sm:$0xff] %v4729
      %4762 = vst [vmem:[%s236 + $0xc8] sm:$0xff] %v4730
      %4763 = vst [vmem:[%s236 + $0xd0] sm:$0xff] %v4731
      %4764 = vst [vmem:[%s236 + $0xd8] sm:$0xff] %v4732
      %4765 = vst [vmem:[%s236 + $0xe0] sm:$0xff] %v4733
      %4766 = vst [vmem:[%s236 + $0xe8] sm:$0xff] %v4734
      %4767 = vst [vmem:[%s236 + $0xf0] sm:$0xff] %v4735
      %4768 = vst [vmem:[%s236 + $0xf8] sm:$0xff] %v4736
      %v4769 = vld [vmem:[%s203] sm:$0xff]
      %v4770 = vld [vmem:[%s203 + $0x8] sm:$0xff]
      %v4771 = vld [vmem:[%s203 + $0x10] sm:$0xff]
      %v4772 = vld [vmem:[%s203 + $0x18] sm:$0xff]
      %v4773 = vld [vmem:[%s203 + $0x20] sm:$0xff]
      %v4774 = vld [vmem:[%s203 + $0x28] sm:$0xff]
      %v4775 = vld [vmem:[%s203 + $0x30] sm:$0xff]
      %v4776 = vld [vmem:[%s203 + $0x38] sm:$0xff]
      %v4777 = vld [vmem:[%s203 + $0x40] sm:$0xff]
      %v4778 = vld [vmem:[%s203 + $0x48] sm:$0xff]
      %v4779 = vld [vmem:[%s203 + $0x50] sm:$0xff]
      %v4780 = vld [vmem:[%s203 + $0x58] sm:$0xff]
      %v4781 = vld [vmem:[%s203 + $0x60] sm:$0xff]
      %v4782 = vld [vmem:[%s203 + $0x68] sm:$0xff]
      %v4783 = vld [vmem:[%s203 + $0x70] sm:$0xff]
      %v4784 = vld [vmem:[%s203 + $0x78] sm:$0xff]
      %v4785 = vld [vmem:[%s203 + $0x80] sm:$0xff]
      %v4786 = vld [vmem:[%s203 + $0x88] sm:$0xff]
      %v4787 = vld [vmem:[%s203 + $0x90] sm:$0xff]
      %v4788 = vld [vmem:[%s203 + $0x98] sm:$0xff]
      %v4789 = vld [vmem:[%s203 + $0xa0] sm:$0xff]
      %v4790 = vld [vmem:[%s203 + $0xa8] sm:$0xff]
      %v4791 = vld [vmem:[%s203 + $0xb0] sm:$0xff]
      %v4792 = vld [vmem:[%s203 + $0xb8] sm:$0xff]
      %v4793 = vld [vmem:[%s203 + $0xc0] sm:$0xff]
      %v4794 = vld [vmem:[%s203 + $0xc8] sm:$0xff]
      %v4795 = vld [vmem:[%s203 + $0xd0] sm:$0xff]
      %v4796 = vld [vmem:[%s203 + $0xd8] sm:$0xff]
      %v4797 = vld [vmem:[%s203 + $0xe0] sm:$0xff]
      %v4798 = vld [vmem:[%s203 + $0xe8] sm:$0xff]
      %v4799 = vld [vmem:[%s203 + $0xf0] sm:$0xff]
      %v4800 = vld [vmem:[%s203 + $0xf8] sm:$0xff]
      %v4801 = vld [vmem:[%s236] sm:$0xff]
      %v4802 = vld [vmem:[%s236 + $0x8] sm:$0xff]
      %v4803 = vld [vmem:[%s236 + $0x10] sm:$0xff]
      %v4804 = vld [vmem:[%s236 + $0x18] sm:$0xff]
      %v4805 = vld [vmem:[%s236 + $0x20] sm:$0xff]
      %v4806 = vld [vmem:[%s236 + $0x28] sm:$0xff]
      %v4807 = vld [vmem:[%s236 + $0x30] sm:$0xff]
      %v4808 = vld [vmem:[%s236 + $0x38] sm:$0xff]
      %v4809 = vld [vmem:[%s236 + $0x40] sm:$0xff]
      %v4810 = vld [vmem:[%s236 + $0x48] sm:$0xff]
      %v4811 = vld [vmem:[%s236 + $0x50] sm:$0xff]
      %v4812 = vld [vmem:[%s236 + $0x58] sm:$0xff]
      %v4813 = vld [vmem:[%s236 + $0x60] sm:$0xff]
      %v4814 = vld [vmem:[%s236 + $0x68] sm:$0xff]
      %v4815 = vld [vmem:[%s236 + $0x70] sm:$0xff]
      %v4816 = vld [vmem:[%s236 + $0x78] sm:$0xff]
      %v4817 = vld [vmem:[%s236 + $0x80] sm:$0xff]
      %v4818 = vld [vmem:[%s236 + $0x88] sm:$0xff]
      %v4819 = vld [vmem:[%s236 + $0x90] sm:$0xff]
      %v4820 = vld [vmem:[%s236 + $0x98] sm:$0xff]
      %v4821 = vld [vmem:[%s236 + $0xa0] sm:$0xff]
      %v4822 = vld [vmem:[%s236 + $0xa8] sm:$0xff]
      %v4823 = vld [vmem:[%s236 + $0xb0] sm:$0xff]
      %v4824 = vld [vmem:[%s236 + $0xb8] sm:$0xff]
      %v4825 = vld [vmem:[%s236 + $0xc0] sm:$0xff]
      %v4826 = vld [vmem:[%s236 + $0xc8] sm:$0xff]
      %v4827 = vld [vmem:[%s236 + $0xd0] sm:$0xff]
      %v4828 = vld [vmem:[%s236 + $0xd8] sm:$0xff]
      %v4829 = vld [vmem:[%s236 + $0xe0] sm:$0xff]
      %v4830 = vld [vmem:[%s236 + $0xe8] sm:$0xff]
      %v4831 = vld [vmem:[%s236 + $0xf0] sm:$0xff]
      %v4832 = vld [vmem:[%s236 + $0xf8] sm:$0xff]
      %v4833 = vld [vmem:[%s269] sm:$0xff]
      %v4834 = vld [vmem:[%s269 + $0x8] sm:$0xff]
      %v4835 = vld [vmem:[%s269 + $0x10] sm:$0xff]
      %v4836 = vld [vmem:[%s269 + $0x18] sm:$0xff]
      %v4837 = vld [vmem:[%s269 + $0x20] sm:$0xff]
      %v4838 = vld [vmem:[%s269 + $0x28] sm:$0xff]
      %v4839 = vld [vmem:[%s269 + $0x30] sm:$0xff]
      %v4840 = vld [vmem:[%s269 + $0x38] sm:$0xff]
      %v4841 = vld [vmem:[%s269 + $0x40] sm:$0xff]
      %v4842 = vld [vmem:[%s269 + $0x48] sm:$0xff]
      %v4843 = vld [vmem:[%s269 + $0x50] sm:$0xff]
      %v4844 = vld [vmem:[%s269 + $0x58] sm:$0xff]
      %v4845 = vld [vmem:[%s269 + $0x60] sm:$0xff]
      %v4846 = vld [vmem:[%s269 + $0x68] sm:$0xff]
      %v4847 = vld [vmem:[%s269 + $0x70] sm:$0xff]
      %v4848 = vld [vmem:[%s269 + $0x78] sm:$0xff]
      %v4849 = vld [vmem:[%s269 + $0x80] sm:$0xff]
      %v4850 = vld [vmem:[%s269 + $0x88] sm:$0xff]
      %v4851 = vld [vmem:[%s269 + $0x90] sm:$0xff]
      %v4852 = vld [vmem:[%s269 + $0x98] sm:$0xff]
      %v4853 = vld [vmem:[%s269 + $0xa0] sm:$0xff]
      %v4854 = vld [vmem:[%s269 + $0xa8] sm:$0xff]
      %v4855 = vld [vmem:[%s269 + $0xb0] sm:$0xff]
      %v4856 = vld [vmem:[%s269 + $0xb8] sm:$0xff]
      %v4857 = vld [vmem:[%s269 + $0xc0] sm:$0xff]
      %v4858 = vld [vmem:[%s269 + $0xc8] sm:$0xff]
      %v4859 = vld [vmem:[%s269 + $0xd0] sm:$0xff]
      %v4860 = vld [vmem:[%s269 + $0xd8] sm:$0xff]
      %v4861 = vld [vmem:[%s269 + $0xe0] sm:$0xff]
      %v4862 = vld [vmem:[%s269 + $0xe8] sm:$0xff]
      %v4863 = vld [vmem:[%s269 + $0xf0] sm:$0xff]
      %v4864 = vld [vmem:[%s269 + $0xf8] sm:$0xff]
      %v4865 = vld [vmem:[%s1 + $0x2b] sm:$0x1]
      %v4866 = vperm.slane %v4865, 0
      %v4867 = vmul.f32 %v4769, %v4866
      %v4868 = vmul.f32 %v4770, %v4866
      %v4869 = vmul.f32 %v4771, %v4866
      %v4870 = vmul.f32 %v4772, %v4866
      %v4871 = vmul.f32 %v4773, %v4866
      %v4872 = vmul.f32 %v4774, %v4866
      %v4873 = vmul.f32 %v4775, %v4866
      %v4874 = vmul.f32 %v4776, %v4866
      %v4875 = vmul.f32 %v4777, %v4866
      %v4876 = vmul.f32 %v4778, %v4866
      %v4877 = vmul.f32 %v4779, %v4866
      %v4878 = vmul.f32 %v4780, %v4866
      %v4879 = vmul.f32 %v4781, %v4866
      %v4880 = vmul.f32 %v4782, %v4866
      %v4881 = vmul.f32 %v4783, %v4866
      %v4882 = vmul.f32 %v4784, %v4866
      %v4883 = vmul.f32 %v4785, %v4866
      %v4884 = vmul.f32 %v4786, %v4866
      %v4885 = vmul.f32 %v4787, %v4866
      %v4886 = vmul.f32 %v4788, %v4866
      %v4887 = vmul.f32 %v4789, %v4866
      %v4888 = vmul.f32 %v4790, %v4866
      %v4889 = vmul.f32 %v4791, %v4866
      %v4890 = vmul.f32 %v4792, %v4866
      %v4891 = vmul.f32 %v4793, %v4866
      %v4892 = vmul.f32 %v4794, %v4866
      %v4893 = vmul.f32 %v4795, %v4866
      %v4894 = vmul.f32 %v4796, %v4866
      %v4895 = vmul.f32 %v4797, %v4866
      %v4896 = vmul.f32 %v4798, %v4866
      %v4897 = vmul.f32 %v4799, %v4866
      %v4898 = vmul.f32 %v4800, %v4866
      %v4899 = vld [vmem:[%s1 + $0x2e] sm:$0x1]
      %v4900 = vperm.slane %v4899, 0
      %v4901 = vmul.f32 %v4801, %v4900
      %v4902 = vmul.f32 %v4802, %v4900
      %v4903 = vmul.f32 %v4803, %v4900
      %v4904 = vmul.f32 %v4804, %v4900
      %v4905 = vmul.f32 %v4805, %v4900
      %v4906 = vmul.f32 %v4806, %v4900
      %v4907 = vmul.f32 %v4807, %v4900
      %v4908 = vmul.f32 %v4808, %v4900
      %v4909 = vmul.f32 %v4809, %v4900
      %v4910 = vmul.f32 %v4810, %v4900
      %v4911 = vmul.f32 %v4811, %v4900
      %v4912 = vmul.f32 %v4812, %v4900
      %v4913 = vmul.f32 %v4813, %v4900
      %v4914 = vmul.f32 %v4814, %v4900
      %v4915 = vmul.f32 %v4815, %v4900
      %v4916 = vmul.f32 %v4816, %v4900
      %v4917 = vmul.f32 %v4817, %v4900
      %v4918 = vmul.f32 %v4818, %v4900
      %v4919 = vmul.f32 %v4819, %v4900
      %v4920 = vmul.f32 %v4820, %v4900
      %v4921 = vmul.f32 %v4821, %v4900
      %v4922 = vmul.f32 %v4822, %v4900
      %v4923 = vmul.f32 %v4823, %v4900
      %v4924 = vmul.f32 %v4824, %v4900
      %v4925 = vmul.f32 %v4825, %v4900
      %v4926 = vmul.f32 %v4826, %v4900
      %v4927 = vmul.f32 %v4827, %v4900
      %v4928 = vmul.f32 %v4828, %v4900
      %v4929 = vmul.f32 %v4829, %v4900
      %v4930 = vmul.f32 %v4830, %v4900
      %v4931 = vmul.f32 %v4831, %v4900
      %v4932 = vmul.f32 %v4832, %v4900
      %v4933 = vadd.f32 %v4867, %v4901
      %v4934 = vadd.f32 %v4868, %v4902
      %v4935 = vadd.f32 %v4869, %v4903
      %v4936 = vadd.f32 %v4870, %v4904
      %v4937 = vadd.f32 %v4871, %v4905
      %v4938 = vadd.f32 %v4872, %v4906
      %v4939 = vadd.f32 %v4873, %v4907
      %v4940 = vadd.f32 %v4874, %v4908
      %v4941 = vadd.f32 %v4875, %v4909
      %v4942 = vadd.f32 %v4876, %v4910
      %v4943 = vadd.f32 %v4877, %v4911
      %v4944 = vadd.f32 %v4878, %v4912
      %v4945 = vadd.f32 %v4879, %v4913
      %v4946 = vadd.f32 %v4880, %v4914
      %v4947 = vadd.f32 %v4881, %v4915
      %v4948 = vadd.f32 %v4882, %v4916
      %v4949 = vadd.f32 %v4883, %v4917
      %v4950 = vadd.f32 %v4884, %v4918
      %v4951 = vadd.f32 %v4885, %v4919
      %v4952 = vadd.f32 %v4886, %v4920
      %v4953 = vadd.f32 %v4887, %v4921
      %v4954 = vadd.f32 %v4888, %v4922
      %v4955 = vadd.f32 %v4889, %v4923
      %v4956 = vadd.f32 %v4890, %v4924
      %v4957 = vadd.f32 %v4891, %v4925
      %v4958 = vadd.f32 %v4892, %v4926
      %v4959 = vadd.f32 %v4893, %v4927
      %v4960 = vadd.f32 %v4894, %v4928
      %v4961 = vadd.f32 %v4895, %v4929
      %v4962 = vadd.f32 %v4896, %v4930
      %v4963 = vadd.f32 %v4897, %v4931
      %v4964 = vadd.f32 %v4898, %v4932
      %v4965 = vld [vmem:[%s1 + $0x31] sm:$0x1]
      %v4966 = vperm.slane %v4965, 0
      %v4967 = vmul.f32 %v4833, %v4966
      %v4968 = vmul.f32 %v4834, %v4966
      %v4969 = vmul.f32 %v4835, %v4966
      %v4970 = vmul.f32 %v4836, %v4966
      %v4971 = vmul.f32 %v4837, %v4966
      %v4972 = vmul.f32 %v4838, %v4966
      %v4973 = vmul.f32 %v4839, %v4966
      %v4974 = vmul.f32 %v4840, %v4966
      %v4975 = vmul.f32 %v4841, %v4966
      %v4976 = vmul.f32 %v4842, %v4966
      %v4977 = vmul.f32 %v4843, %v4966
      %v4978 = vmul.f32 %v4844, %v4966
      %v4979 = vmul.f32 %v4845, %v4966
      %v4980 = vmul.f32 %v4846, %v4966
      %v4981 = vmul.f32 %v4847, %v4966
      %v4982 = vmul.f32 %v4848, %v4966
      %v4983 = vmul.f32 %v4849, %v4966
      %v4984 = vmul.f32 %v4850, %v4966
      %v4985 = vmul.f32 %v4851, %v4966
      %v4986 = vmul.f32 %v4852, %v4966
      %v4987 = vmul.f32 %v4853, %v4966
      %v4988 = vmul.f32 %v4854, %v4966
      %v4989 = vmul.f32 %v4855, %v4966
      %v4990 = vmul.f32 %v4856, %v4966
      %v4991 = vmul.f32 %v4857, %v4966
      %v4992 = vmul.f32 %v4858, %v4966
      %v4993 = vmul.f32 %v4859, %v4966
      %v4994 = vmul.f32 %v4860, %v4966
      %v4995 = vmul.f32 %v4861, %v4966
      %v4996 = vmul.f32 %v4862, %v4966
      %v4997 = vmul.f32 %v4863, %v4966
      %v4998 = vmul.f32 %v4864, %v4966
      %v4999 = vadd.f32 %v4933, %v4967
      %v5000 = vadd.f32 %v4934, %v4968
      %v5001 = vadd.f32 %v4935, %v4969
      %v5002 = vadd.f32 %v4936, %v4970
      %v5003 = vadd.f32 %v4937, %v4971
      %v5004 = vadd.f32 %v4938, %v4972
      %v5005 = vadd.f32 %v4939, %v4973
      %v5006 = vadd.f32 %v4940, %v4974
      %v5007 = vadd.f32 %v4941, %v4975
      %v5008 = vadd.f32 %v4942, %v4976
      %v5009 = vadd.f32 %v4943, %v4977
      %v5010 = vadd.f32 %v4944, %v4978
      %v5011 = vadd.f32 %v4945, %v4979
      %v5012 = vadd.f32 %v4946, %v4980
      %v5013 = vadd.f32 %v4947, %v4981
      %v5014 = vadd.f32 %v4948, %v4982
      %v5015 = vadd.f32 %v4949, %v4983
      %v5016 = vadd.f32 %v4950, %v4984
      %v5017 = vadd.f32 %v4951, %v4985
      %v5018 = vadd.f32 %v4952, %v4986
      %v5019 = vadd.f32 %v4953, %v4987
      %v5020 = vadd.f32 %v4954, %v4988
      %v5021 = vadd.f32 %v4955, %v4989
      %v5022 = vadd.f32 %v4956, %v4990
      %v5023 = vadd.f32 %v4957, %v4991
      %v5024 = vadd.f32 %v4958, %v4992
      %v5025 = vadd.f32 %v4959, %v4993
      %v5026 = vadd.f32 %v4960, %v4994
      %v5027 = vadd.f32 %v4961, %v4995
      %v5028 = vadd.f32 %v4962, %v4996
      %v5029 = vadd.f32 %v4963, %v4997
      %v5030 = vadd.f32 %v4964, %v4998
      %v5031 = vrot.slane %v4999, 7
      %v5032 = vrot.slane %v5000, 7
      %v5033 = vrot.slane %v5001, 7
      %v5034 = vrot.slane %v5002, 7
      %v5035 = vrot.slane %v5003, 7
      %v5036 = vrot.slane %v5004, 7
      %v5037 = vrot.slane %v5005, 7
      %v5038 = vrot.slane %v5006, 7
      %v5039 = vrot.slane %v5007, 7
      %v5040 = vrot.slane %v5008, 7
      %v5041 = vrot.slane %v5009, 7
      %v5042 = vrot.slane %v5010, 7
      %v5043 = vrot.slane %v5011, 7
      %v5044 = vrot.slane %v5012, 7
      %v5045 = vrot.slane %v5013, 7
      %v5046 = vrot.slane %v5014, 7
      %v5047 = vrot.slane %v5015, 7
      %v5048 = vrot.slane %v5016, 7
      %v5049 = vrot.slane %v5017, 7
      %v5050 = vrot.slane %v5018, 7
      %v5051 = vrot.slane %v5019, 7
      %v5052 = vrot.slane %v5020, 7
      %v5053 = vrot.slane %v5021, 7
      %v5054 = vrot.slane %v5022, 7
      %v5055 = vrot.slane %v5023, 7
      %v5056 = vrot.slane %v5024, 7
      %v5057 = vrot.slane %v5025, 7
      %v5058 = vrot.slane %v5026, 7
      %v5059 = vrot.slane %v5027, 7
      %v5060 = vrot.slane %v5028, 7
      %v5061 = vrot.slane %v5029, 7
      %v5062 = vrot.slane %v5030, 7
      %v5063 = vsel %vm1069, %v5061, %v5062
      %v5064 = vsel %vm1069, %v5060, %v5061
      %v5065 = vsel %vm1069, %v5059, %v5060
      %v5066 = vsel %vm1069, %v5058, %v5059
      %v5067 = vsel %vm1069, %v5057, %v5058
      %v5068 = vsel %vm1069, %v5056, %v5057
      %v5069 = vsel %vm1069, %v5055, %v5056
      %v5070 = vsel %vm1069, %v5054, %v5055
      %v5071 = vsel %vm1069, %v5053, %v5054
      %v5072 = vsel %vm1069, %v5052, %v5053
      %v5073 = vsel %vm1069, %v5051, %v5052
      %v5074 = vsel %vm1069, %v5050, %v5051
      %v5075 = vsel %vm1069, %v5049, %v5050
      %v5076 = vsel %vm1069, %v5048, %v5049
      %v5077 = vsel %vm1069, %v5047, %v5048
      %v5078 = vsel %vm1069, %v5046, %v5047
      %v5079 = vsel %vm1069, %v5045, %v5046
      %v5080 = vsel %vm1069, %v5044, %v5045
      %v5081 = vsel %vm1069, %v5043, %v5044
      %v5082 = vsel %vm1069, %v5042, %v5043
      %v5083 = vsel %vm1069, %v5041, %v5042
      %v5084 = vsel %vm1069, %v5040, %v5041
      %v5085 = vsel %vm1069, %v5039, %v5040
      %v5086 = vsel %vm1069, %v5038, %v5039
      %v5087 = vsel %vm1069, %v5037, %v5038
      %v5088 = vsel %vm1069, %v5036, %v5037
      %v5089 = vsel %vm1069, %v5035, %v5036
      %v5090 = vsel %vm1069, %v5034, %v5035
      %v5091 = vsel %vm1069, %v5033, %v5034
      %v5092 = vsel %vm1069, %v5032, %v5033
      %v5093 = vsel %vm1069, %v5031, %v5032
      %v5094 = vsel %vm1069, %v5062, %v5031
      %v5095 = vsel %vm1106, %v5094, 0.0
      %v5096 = vsel %vm1107, %v5093, 0.0
      %v5097 = vsel %vm1106, %v5092, 0.0
      %v5098 = vsel %vm1107, %v5091, 0.0
      %v5099 = vsel %vm1106, %v5090, 0.0
      %v5100 = vsel %vm1107, %v5089, 0.0
      %v5101 = vsel %vm1106, %v5088, 0.0
      %v5102 = vsel %vm1107, %v5087, 0.0
      %v5103 = vsel %vm1106, %v5086, 0.0
      %v5104 = vsel %vm1107, %v5085, 0.0
      %v5105 = vsel %vm1106, %v5084, 0.0
      %v5106 = vsel %vm1107, %v5083, 0.0
      %v5107 = vsel %vm1106, %v5082, 0.0
      %v5108 = vsel %vm1107, %v5081, 0.0
      %v5109 = vsel %vm1106, %v5080, 0.0
      %v5110 = vsel %vm1107, %v5079, 0.0
      %v5111 = vsel %vm1106, %v5078, 0.0
      %v5112 = vsel %vm1107, %v5077, 0.0
      %v5113 = vsel %vm1106, %v5076, 0.0
      %v5114 = vsel %vm1107, %v5075, 0.0
      %v5115 = vsel %vm1106, %v5074, 0.0
      %v5116 = vsel %vm1107, %v5073, 0.0
      %v5117 = vsel %vm1106, %v5072, 0.0
      %v5118 = vsel %vm1107, %v5071, 0.0
      %v5119 = vsel %vm1106, %v5070, 0.0
      %v5120 = vsel %vm1107, %v5069, 0.0
      %v5121 = vsel %vm1106, %v5068, 0.0
      %v5122 = vsel %vm1107, %v5067, 0.0
      %v5123 = vsel %vm1106, %v5066, 0.0
      %v5124 = vsel %vm1107, %v5065, 0.0
      %v5125 = vsel %vm1106, %v5064, 0.0
      %v5126 = vsel %vm1107, %v5063, 0.0
      %v5127 = vld [vmem:[%s1 + $0x2c] sm:$0x1]
      %v5128 = vperm.slane %v5127, 0
      %v5129 = vmul.f32 %v4769, %v5128
      %v5130 = vmul.f32 %v4770, %v5128
      %v5131 = vmul.f32 %v4771, %v5128
      %v5132 = vmul.f32 %v4772, %v5128
      %v5133 = vmul.f32 %v4773, %v5128
      %v5134 = vmul.f32 %v4774, %v5128
      %v5135 = vmul.f32 %v4775, %v5128
      %v5136 = vmul.f32 %v4776, %v5128
      %v5137 = vmul.f32 %v4777, %v5128
      %v5138 = vmul.f32 %v4778, %v5128
      %v5139 = vmul.f32 %v4779, %v5128
      %v5140 = vmul.f32 %v4780, %v5128
      %v5141 = vmul.f32 %v4781, %v5128
      %v5142 = vmul.f32 %v4782, %v5128
      %v5143 = vmul.f32 %v4783, %v5128
      %v5144 = vmul.f32 %v4784, %v5128
      %v5145 = vmul.f32 %v4785, %v5128
      %v5146 = vmul.f32 %v4786, %v5128
      %v5147 = vmul.f32 %v4787, %v5128
      %v5148 = vmul.f32 %v4788, %v5128
      %v5149 = vmul.f32 %v4789, %v5128
      %v5150 = vmul.f32 %v4790, %v5128
      %v5151 = vmul.f32 %v4791, %v5128
      %v5152 = vmul.f32 %v4792, %v5128
      %v5153 = vmul.f32 %v4793, %v5128
      %v5154 = vmul.f32 %v4794, %v5128
      %v5155 = vmul.f32 %v4795, %v5128
      %v5156 = vmul.f32 %v4796, %v5128
      %v5157 = vmul.f32 %v4797, %v5128
      %v5158 = vmul.f32 %v4798, %v5128
      %v5159 = vmul.f32 %v4799, %v5128
      %v5160 = vmul.f32 %v4800, %v5128
      %v5161 = vld [vmem:[%s1 + $0x2f] sm:$0x1]
      %v5162 = vperm.slane %v5161, 0
      %v5163 = vmul.f32 %v4801, %v5162
      %v5164 = vmul.f32 %v4802, %v5162
      %v5165 = vmul.f32 %v4803, %v5162
      %v5166 = vmul.f32 %v4804, %v5162
      %v5167 = vmul.f32 %v4805, %v5162
      %v5168 = vmul.f32 %v4806, %v5162
      %v5169 = vmul.f32 %v4807, %v5162
      %v5170 = vmul.f32 %v4808, %v5162
      %v5171 = vmul.f32 %v4809, %v5162
      %v5172 = vmul.f32 %v4810, %v5162
      %v5173 = vmul.f32 %v4811, %v5162
      %v5174 = vmul.f32 %v4812, %v5162
      %v5175 = vmul.f32 %v4813, %v5162
      %v5176 = vmul.f32 %v4814, %v5162
      %v5177 = vmul.f32 %v4815, %v5162
      %v5178 = vmul.f32 %v4816, %v5162
      %v5179 = vmul.f32 %v4817, %v5162
      %v5180 = vmul.f32 %v4818, %v5162
      %v5181 = vmul.f32 %v4819, %v5162
      %v5182 = vmul.f32 %v4820, %v5162
      %v5183 = vmul.f32 %v4821, %v5162
      %v5184 = vmul.f32 %v4822, %v5162
      %v5185 = vmul.f32 %v4823, %v5162
      %v5186 = vmul.f32 %v4824, %v5162
      %v5187 = vmul.f32 %v4825, %v5162
      %v5188 = vmul.f32 %v4826, %v5162
      %v5189 = vmul.f32 %v4827, %v5162
      %v5190 = vmul.f32 %v4828, %v5162
      %v5191 = vmul.f32 %v4829, %v5162
      %v5192 = vmul.f32 %v4830, %v5162
      %v5193 = vmul.f32 %v4831, %v5162
      %v5194 = vmul.f32 %v4832, %v5162
      %v5195 = vadd.f32 %v5129, %v5163
      %v5196 = vadd.f32 %v5130, %v5164
      %v5197 = vadd.f32 %v5131, %v5165
      %v5198 = vadd.f32 %v5132, %v5166
      %v5199 = vadd.f32 %v5133, %v5167
      %v5200 = vadd.f32 %v5134, %v5168
      %v5201 = vadd.f32 %v5135, %v5169
      %v5202 = vadd.f32 %v5136, %v5170
      %v5203 = vadd.f32 %v5137, %v5171
      %v5204 = vadd.f32 %v5138, %v5172
      %v5205 = vadd.f32 %v5139, %v5173
      %v5206 = vadd.f32 %v5140, %v5174
      %v5207 = vadd.f32 %v5141, %v5175
      %v5208 = vadd.f32 %v5142, %v5176
      %v5209 = vadd.f32 %v5143, %v5177
      %v5210 = vadd.f32 %v5144, %v5178
      %v5211 = vadd.f32 %v5145, %v5179
      %v5212 = vadd.f32 %v5146, %v5180
      %v5213 = vadd.f32 %v5147, %v5181
      %v5214 = vadd.f32 %v5148, %v5182
      %v5215 = vadd.f32 %v5149, %v5183
      %v5216 = vadd.f32 %v5150, %v5184
      %v5217 = vadd.f32 %v5151, %v5185
      %v5218 = vadd.f32 %v5152, %v5186
      %v5219 = vadd.f32 %v5153, %v5187
      %v5220 = vadd.f32 %v5154, %v5188
      %v5221 = vadd.f32 %v5155, %v5189
      %v5222 = vadd.f32 %v5156, %v5190
      %v5223 = vadd.f32 %v5157, %v5191
      %v5224 = vadd.f32 %v5158, %v5192
      %v5225 = vadd.f32 %v5159, %v5193
      %v5226 = vadd.f32 %v5160, %v5194
      %v5227 = vld [vmem:[%s1 + $0x32] sm:$0x1]
      %v5228 = vperm.slane %v5227, 0
      %v5229 = vmul.f32 %v4833, %v5228
      %v5230 = vmul.f32 %v4834, %v5228
      %v5231 = vmul.f32 %v4835, %v5228
      %v5232 = vmul.f32 %v4836, %v5228
      %v5233 = vmul.f32 %v4837, %v5228
      %v5234 = vmul.f32 %v4838, %v5228
      %v5235 = vmul.f32 %v4839, %v5228
      %v5236 = vmul.f32 %v4840, %v5228
      %v5237 = vmul.f32 %v4841, %v5228
      %v5238 = vmul.f32 %v4842, %v5228
      %v5239 = vmul.f32 %v4843, %v5228
      %v5240 = vmul.f32 %v4844, %v5228
      %v5241 = vmul.f32 %v4845, %v5228
      %v5242 = vmul.f32 %v4846, %v5228
      %v5243 = vmul.f32 %v4847, %v5228
      %v5244 = vmul.f32 %v4848, %v5228
      %v5245 = vmul.f32 %v4849, %v5228
      %v5246 = vmul.f32 %v4850, %v5228
      %v5247 = vmul.f32 %v4851, %v5228
      %v5248 = vmul.f32 %v4852, %v5228
      %v5249 = vmul.f32 %v4853, %v5228
      %v5250 = vmul.f32 %v4854, %v5228
      %v5251 = vmul.f32 %v4855, %v5228
      %v5252 = vmul.f32 %v4856, %v5228
      %v5253 = vmul.f32 %v4857, %v5228
      %v5254 = vmul.f32 %v4858, %v5228
      %v5255 = vmul.f32 %v4859, %v5228
      %v5256 = vmul.f32 %v4860, %v5228
      %v5257 = vmul.f32 %v4861, %v5228
      %v5258 = vmul.f32 %v4862, %v5228
      %v5259 = vmul.f32 %v4863, %v5228
      %v5260 = vmul.f32 %v4864, %v5228
      %v5261 = vadd.f32 %v5195, %v5229
      %v5262 = vadd.f32 %v5196, %v5230
      %v5263 = vadd.f32 %v5197, %v5231
      %v5264 = vadd.f32 %v5198, %v5232
      %v5265 = vadd.f32 %v5199, %v5233
      %v5266 = vadd.f32 %v5200, %v5234
      %v5267 = vadd.f32 %v5201, %v5235
      %v5268 = vadd.f32 %v5202, %v5236
      %v5269 = vadd.f32 %v5203, %v5237
      %v5270 = vadd.f32 %v5204, %v5238
      %v5271 = vadd.f32 %v5205, %v5239
      %v5272 = vadd.f32 %v5206, %v5240
      %v5273 = vadd.f32 %v5207, %v5241
      %v5274 = vadd.f32 %v5208, %v5242
      %v5275 = vadd.f32 %v5209, %v5243
      %v5276 = vadd.f32 %v5210, %v5244
      %v5277 = vadd.f32 %v5211, %v5245
      %v5278 = vadd.f32 %v5212, %v5246
      %v5279 = vadd.f32 %v5213, %v5247
      %v5280 = vadd.f32 %v5214, %v5248
      %v5281 = vadd.f32 %v5215, %v5249
      %v5282 = vadd.f32 %v5216, %v5250
      %v5283 = vadd.f32 %v5217, %v5251
      %v5284 = vadd.f32 %v5218, %v5252
      %v5285 = vadd.f32 %v5219, %v5253
      %v5286 = vadd.f32 %v5220, %v5254
      %v5287 = vadd.f32 %v5221, %v5255
      %v5288 = vadd.f32 %v5222, %v5256
      %v5289 = vadd.f32 %v5223, %v5257
      %v5290 = vadd.f32 %v5224, %v5258
      %v5291 = vadd.f32 %v5225, %v5259
      %v5292 = vadd.f32 %v5226, %v5260
      %v5293 = vadd.f32 %v5095, %v5261
      %v5294 = vadd.f32 %v5096, %v5262
      %v5295 = vadd.f32 %v5097, %v5263
      %v5296 = vadd.f32 %v5098, %v5264
      %v5297 = vadd.f32 %v5099, %v5265
      %v5298 = vadd.f32 %v5100, %v5266
      %v5299 = vadd.f32 %v5101, %v5267
      %v5300 = vadd.f32 %v5102, %v5268
      %v5301 = vadd.f32 %v5103, %v5269
      %v5302 = vadd.f32 %v5104, %v5270
      %v5303 = vadd.f32 %v5105, %v5271
      %v5304 = vadd.f32 %v5106, %v5272
      %v5305 = vadd.f32 %v5107, %v5273
      %v5306 = vadd.f32 %v5108, %v5274
      %v5307 = vadd.f32 %v5109, %v5275
      %v5308 = vadd.f32 %v5110, %v5276
      %v5309 = vadd.f32 %v5111, %v5277
      %v5310 = vadd.f32 %v5112, %v5278
      %v5311 = vadd.f32 %v5113, %v5279
      %v5312 = vadd.f32 %v5114, %v5280
      %v5313 = vadd.f32 %v5115, %v5281
      %v5314 = vadd.f32 %v5116, %v5282
      %v5315 = vadd.f32 %v5117, %v5283
      %v5316 = vadd.f32 %v5118, %v5284
      %v5317 = vadd.f32 %v5119, %v5285
      %v5318 = vadd.f32 %v5120, %v5286
      %v5319 = vadd.f32 %v5121, %v5287
      %v5320 = vadd.f32 %v5122, %v5288
      %v5321 = vadd.f32 %v5123, %v5289
      %v5322 = vadd.f32 %v5124, %v5290
      %v5323 = vadd.f32 %v5125, %v5291
      %v5324 = vadd.f32 %v5126, %v5292
      %v5325 = vld [vmem:[%s1 + $0x2d] sm:$0x1]
      %v5326 = vperm.slane %v5325, 0
      %v5327 = vmul.f32 %v4769, %v5326
      %v5328 = vmul.f32 %v4770, %v5326
      %v5329 = vmul.f32 %v4771, %v5326
      %v5330 = vmul.f32 %v4772, %v5326
      %v5331 = vmul.f32 %v4773, %v5326
      %v5332 = vmul.f32 %v4774, %v5326
      %v5333 = vmul.f32 %v4775, %v5326
      %v5334 = vmul.f32 %v4776, %v5326
      %v5335 = vmul.f32 %v4777, %v5326
      %v5336 = vmul.f32 %v4778, %v5326
      %v5337 = vmul.f32 %v4779, %v5326
      %v5338 = vmul.f32 %v4780, %v5326
      %v5339 = vmul.f32 %v4781, %v5326
      %v5340 = vmul.f32 %v4782, %v5326
      %v5341 = vmul.f32 %v4783, %v5326
      %v5342 = vmul.f32 %v4784, %v5326
      %v5343 = vmul.f32 %v4785, %v5326
      %v5344 = vmul.f32 %v4786, %v5326
      %v5345 = vmul.f32 %v4787, %v5326
      %v5346 = vmul.f32 %v4788, %v5326
      %v5347 = vmul.f32 %v4789, %v5326
      %v5348 = vmul.f32 %v4790, %v5326
      %v5349 = vmul.f32 %v4791, %v5326
      %v5350 = vmul.f32 %v4792, %v5326
      %v5351 = vmul.f32 %v4793, %v5326
      %v5352 = vmul.f32 %v4794, %v5326
      %v5353 = vmul.f32 %v4795, %v5326
      %v5354 = vmul.f32 %v4796, %v5326
      %v5355 = vmul.f32 %v4797, %v5326
      %v5356 = vmul.f32 %v4798, %v5326
      %v5357 = vmul.f32 %v4799, %v5326
      %v5358 = vmul.f32 %v4800, %v5326
      %v5359 = vld [vmem:[%s1 + $0x30] sm:$0x1]
      %v5360 = vperm.slane %v5359, 0
      %v5361 = vmul.f32 %v4801, %v5360
      %v5362 = vmul.f32 %v4802, %v5360
      %v5363 = vmul.f32 %v4803, %v5360
      %v5364 = vmul.f32 %v4804, %v5360
      %v5365 = vmul.f32 %v4805, %v5360
      %v5366 = vmul.f32 %v4806, %v5360
      %v5367 = vmul.f32 %v4807, %v5360
      %v5368 = vmul.f32 %v4808, %v5360
      %v5369 = vmul.f32 %v4809, %v5360
      %v5370 = vmul.f32 %v4810, %v5360
      %v5371 = vmul.f32 %v4811, %v5360
      %v5372 = vmul.f32 %v4812, %v5360
      %v5373 = vmul.f32 %v4813, %v5360
      %v5374 = vmul.f32 %v4814, %v5360
      %v5375 = vmul.f32 %v4815, %v5360
      %v5376 = vmul.f32 %v4816, %v5360
      %v5377 = vmul.f32 %v4817, %v5360
      %v5378 = vmul.f32 %v4818, %v5360
      %v5379 = vmul.f32 %v4819, %v5360
      %v5380 = vmul.f32 %v4820, %v5360
      %v5381 = vmul.f32 %v4821, %v5360
      %v5382 = vmul.f32 %v4822, %v5360
      %v5383 = vmul.f32 %v4823, %v5360
      %v5384 = vmul.f32 %v4824, %v5360
      %v5385 = vmul.f32 %v4825, %v5360
      %v5386 = vmul.f32 %v4826, %v5360
      %v5387 = vmul.f32 %v4827, %v5360
      %v5388 = vmul.f32 %v4828, %v5360
      %v5389 = vmul.f32 %v4829, %v5360
      %v5390 = vmul.f32 %v4830, %v5360
      %v5391 = vmul.f32 %v4831, %v5360
      %v5392 = vmul.f32 %v4832, %v5360
      %v5393 = vadd.f32 %v5327, %v5361
      %v5394 = vadd.f32 %v5328, %v5362
      %v5395 = vadd.f32 %v5329, %v5363
      %v5396 = vadd.f32 %v5330, %v5364
      %v5397 = vadd.f32 %v5331, %v5365
      %v5398 = vadd.f32 %v5332, %v5366
      %v5399 = vadd.f32 %v5333, %v5367
      %v5400 = vadd.f32 %v5334, %v5368
      %v5401 = vadd.f32 %v5335, %v5369
      %v5402 = vadd.f32 %v5336, %v5370
      %v5403 = vadd.f32 %v5337, %v5371
      %v5404 = vadd.f32 %v5338, %v5372
      %v5405 = vadd.f32 %v5339, %v5373
      %v5406 = vadd.f32 %v5340, %v5374
      %v5407 = vadd.f32 %v5341, %v5375
      %v5408 = vadd.f32 %v5342, %v5376
      %v5409 = vadd.f32 %v5343, %v5377
      %v5410 = vadd.f32 %v5344, %v5378
      %v5411 = vadd.f32 %v5345, %v5379
      %v5412 = vadd.f32 %v5346, %v5380
      %v5413 = vadd.f32 %v5347, %v5381
      %v5414 = vadd.f32 %v5348, %v5382
      %v5415 = vadd.f32 %v5349, %v5383
      %v5416 = vadd.f32 %v5350, %v5384
      %v5417 = vadd.f32 %v5351, %v5385
      %v5418 = vadd.f32 %v5352, %v5386
      %v5419 = vadd.f32 %v5353, %v5387
      %v5420 = vadd.f32 %v5354, %v5388
      %v5421 = vadd.f32 %v5355, %v5389
      %v5422 = vadd.f32 %v5356, %v5390
      %v5423 = vadd.f32 %v5357, %v5391
      %v5424 = vadd.f32 %v5358, %v5392
      %v5425 = vld [vmem:[%s1 + $0x33] sm:$0x1]
      %v5426 = vperm.slane %v5425, 0
      %v5427 = vmul.f32 %v4833, %v5426
      %v5428 = vmul.f32 %v4834, %v5426
      %v5429 = vmul.f32 %v4835, %v5426
      %v5430 = vmul.f32 %v4836, %v5426
      %v5431 = vmul.f32 %v4837, %v5426
      %v5432 = vmul.f32 %v4838, %v5426
      %v5433 = vmul.f32 %v4839, %v5426
      %v5434 = vmul.f32 %v4840, %v5426
      %v5435 = vmul.f32 %v4841, %v5426
      %v5436 = vmul.f32 %v4842, %v5426
      %v5437 = vmul.f32 %v4843, %v5426
      %v5438 = vmul.f32 %v4844, %v5426
      %v5439 = vmul.f32 %v4845, %v5426
      %v5440 = vmul.f32 %v4846, %v5426
      %v5441 = vmul.f32 %v4847, %v5426
      %v5442 = vmul.f32 %v4848, %v5426
      %v5443 = vmul.f32 %v4849, %v5426
      %v5444 = vmul.f32 %v4850, %v5426
      %v5445 = vmul.f32 %v4851, %v5426
      %v5446 = vmul.f32 %v4852, %v5426
      %v5447 = vmul.f32 %v4853, %v5426
      %v5448 = vmul.f32 %v4854, %v5426
      %v5449 = vmul.f32 %v4855, %v5426
      %v5450 = vmul.f32 %v4856, %v5426
      %v5451 = vmul.f32 %v4857, %v5426
      %v5452 = vmul.f32 %v4858, %v5426
      %v5453 = vmul.f32 %v4859, %v5426
      %v5454 = vmul.f32 %v4860, %v5426
      %v5455 = vmul.f32 %v4861, %v5426
      %v5456 = vmul.f32 %v4862, %v5426
      %v5457 = vmul.f32 %v4863, %v5426
      %v5458 = vmul.f32 %v4864, %v5426
      %v5459 = vadd.f32 %v5393, %v5427
      %v5460 = vadd.f32 %v5394, %v5428
      %v5461 = vadd.f32 %v5395, %v5429
      %v5462 = vadd.f32 %v5396, %v5430
      %v5463 = vadd.f32 %v5397, %v5431
      %v5464 = vadd.f32 %v5398, %v5432
      %v5465 = vadd.f32 %v5399, %v5433
      %v5466 = vadd.f32 %v5400, %v5434
      %v5467 = vadd.f32 %v5401, %v5435
      %v5468 = vadd.f32 %v5402, %v5436
      %v5469 = vadd.f32 %v5403, %v5437
      %v5470 = vadd.f32 %v5404, %v5438
      %v5471 = vadd.f32 %v5405, %v5439
      %v5472 = vadd.f32 %v5406, %v5440
      %v5473 = vadd.f32 %v5407, %v5441
      %v5474 = vadd.f32 %v5408, %v5442
      %v5475 = vadd.f32 %v5409, %v5443
      %v5476 = vadd.f32 %v5410, %v5444
      %v5477 = vadd.f32 %v5411, %v5445
      %v5478 = vadd.f32 %v5412, %v5446
      %v5479 = vadd.f32 %v5413, %v5447
      %v5480 = vadd.f32 %v5414, %v5448
      %v5481 = vadd.f32 %v5415, %v5449
      %v5482 = vadd.f32 %v5416, %v5450
      %v5483 = vadd.f32 %v5417, %v5451
      %v5484 = vadd.f32 %v5418, %v5452
      %v5485 = vadd.f32 %v5419, %v5453
      %v5486 = vadd.f32 %v5420, %v5454
      %v5487 = vadd.f32 %v5421, %v5455
      %v5488 = vadd.f32 %v5422, %v5456
      %v5489 = vadd.f32 %v5423, %v5457
      %v5490 = vadd.f32 %v5424, %v5458
      %v5491 = vrot.slane %v5459, 1
      %v5492 = vrot.slane %v5460, 1
      %v5493 = vrot.slane %v5461, 1
      %v5494 = vrot.slane %v5462, 1
      %v5495 = vrot.slane %v5463, 1
      %v5496 = vrot.slane %v5464, 1
      %v5497 = vrot.slane %v5465, 1
      %v5498 = vrot.slane %v5466, 1
      %v5499 = vrot.slane %v5467, 1
      %v5500 = vrot.slane %v5468, 1
      %v5501 = vrot.slane %v5469, 1
      %v5502 = vrot.slane %v5470, 1
      %v5503 = vrot.slane %v5471, 1
      %v5504 = vrot.slane %v5472, 1
      %v5505 = vrot.slane %v5473, 1
      %v5506 = vrot.slane %v5474, 1
      %v5507 = vrot.slane %v5475, 1
      %v5508 = vrot.slane %v5476, 1
      %v5509 = vrot.slane %v5477, 1
      %v5510 = vrot.slane %v5478, 1
      %v5511 = vrot.slane %v5479, 1
      %v5512 = vrot.slane %v5480, 1
      %v5513 = vrot.slane %v5481, 1
      %v5514 = vrot.slane %v5482, 1
      %v5515 = vrot.slane %v5483, 1
      %v5516 = vrot.slane %v5484, 1
      %v5517 = vrot.slane %v5485, 1
      %v5518 = vrot.slane %v5486, 1
      %v5519 = vrot.slane %v5487, 1
      %v5520 = vrot.slane %v5488, 1
      %v5521 = vrot.slane %v5489, 1
      %v5522 = vrot.slane %v5490, 1
      %v5523 = vsel %vm1832, %v5521, %v5522
      %v5524 = vsel %vm1832, %v5520, %v5521
      %v5525 = vsel %vm1832, %v5519, %v5520
      %v5526 = vsel %vm1832, %v5518, %v5519
      %v5527 = vsel %vm1832, %v5517, %v5518
      %v5528 = vsel %vm1832, %v5516, %v5517
      %v5529 = vsel %vm1832, %v5515, %v5516
      %v5530 = vsel %vm1832, %v5514, %v5515
      %v5531 = vsel %vm1832, %v5513, %v5514
      %v5532 = vsel %vm1832, %v5512, %v5513
      %v5533 = vsel %vm1832, %v5511, %v5512
      %v5534 = vsel %vm1832, %v5510, %v5511
      %v5535 = vsel %vm1832, %v5509, %v5510
      %v5536 = vsel %vm1832, %v5508, %v5509
      %v5537 = vsel %vm1832, %v5507, %v5508
      %v5538 = vsel %vm1832, %v5506, %v5507
      %v5539 = vsel %vm1832, %v5505, %v5506
      %v5540 = vsel %vm1832, %v5504, %v5505
      %v5541 = vsel %vm1832, %v5503, %v5504
      %v5542 = vsel %vm1832, %v5502, %v5503
      %v5543 = vsel %vm1832, %v5501, %v5502
      %v5544 = vsel %vm1832, %v5500, %v5501
      %v5545 = vsel %vm1832, %v5499, %v5500
      %v5546 = vsel %vm1832, %v5498, %v5499
      %v5547 = vsel %vm1832, %v5497, %v5498
      %v5548 = vsel %vm1832, %v5496, %v5497
      %v5549 = vsel %vm1832, %v5495, %v5496
      %v5550 = vsel %vm1832, %v5494, %v5495
      %v5551 = vsel %vm1832, %v5493, %v5494
      %v5552 = vsel %vm1832, %v5492, %v5493
      %v5553 = vsel %vm1832, %v5491, %v5492
      %v5554 = vsel %vm1832, %v5522, %v5491
      %v5555 = vsel %vm1869, %v5553, 0.0
      %v5556 = vsel %vm1870, %v5552, 0.0
      %v5557 = vsel %vm1869, %v5551, 0.0
      %v5558 = vsel %vm1870, %v5550, 0.0
      %v5559 = vsel %vm1869, %v5549, 0.0
      %v5560 = vsel %vm1870, %v5548, 0.0
      %v5561 = vsel %vm1869, %v5547, 0.0
      %v5562 = vsel %vm1870, %v5546, 0.0
      %v5563 = vsel %vm1869, %v5545, 0.0
      %v5564 = vsel %vm1870, %v5544, 0.0
      %v5565 = vsel %vm1869, %v5543, 0.0
      %v5566 = vsel %vm1870, %v5542, 0.0
      %v5567 = vsel %vm1869, %v5541, 0.0
      %v5568 = vsel %vm1870, %v5540, 0.0
      %v5569 = vsel %vm1869, %v5539, 0.0
      %v5570 = vsel %vm1870, %v5538, 0.0
      %v5571 = vsel %vm1869, %v5537, 0.0
      %v5572 = vsel %vm1870, %v5536, 0.0
      %v5573 = vsel %vm1869, %v5535, 0.0
      %v5574 = vsel %vm1870, %v5534, 0.0
      %v5575 = vsel %vm1869, %v5533, 0.0
      %v5576 = vsel %vm1870, %v5532, 0.0
      %v5577 = vsel %vm1869, %v5531, 0.0
      %v5578 = vsel %vm1870, %v5530, 0.0
      %v5579 = vsel %vm1869, %v5529, 0.0
      %v5580 = vsel %vm1870, %v5528, 0.0
      %v5581 = vsel %vm1869, %v5527, 0.0
      %v5582 = vsel %vm1870, %v5526, 0.0
      %v5583 = vsel %vm1869, %v5525, 0.0
      %v5584 = vsel %vm1870, %v5524, 0.0
      %v5585 = vsel %vm1869, %v5523, 0.0
      %v5586 = vsel %vm1870, %v5554, 0.0
      %v5587 = vadd.f32 %v5293, %v5555
      %v5588 = vadd.f32 %v5294, %v5556
      %v5589 = vadd.f32 %v5295, %v5557
      %v5590 = vadd.f32 %v5296, %v5558
      %v5591 = vadd.f32 %v5297, %v5559
      %v5592 = vadd.f32 %v5298, %v5560
      %v5593 = vadd.f32 %v5299, %v5561
      %v5594 = vadd.f32 %v5300, %v5562
      %v5595 = vadd.f32 %v5301, %v5563
      %v5596 = vadd.f32 %v5302, %v5564
      %v5597 = vadd.f32 %v5303, %v5565
      %v5598 = vadd.f32 %v5304, %v5566
      %v5599 = vadd.f32 %v5305, %v5567
      %v5600 = vadd.f32 %v5306, %v5568
      %v5601 = vadd.f32 %v5307, %v5569
      %v5602 = vadd.f32 %v5308, %v5570
      %v5603 = vadd.f32 %v5309, %v5571
      %v5604 = vadd.f32 %v5310, %v5572
      %v5605 = vadd.f32 %v5311, %v5573
      %v5606 = vadd.f32 %v5312, %v5574
      %v5607 = vadd.f32 %v5313, %v5575
      %v5608 = vadd.f32 %v5314, %v5576
      %v5609 = vadd.f32 %v5315, %v5577
      %v5610 = vadd.f32 %v5316, %v5578
      %v5611 = vadd.f32 %v5317, %v5579
      %v5612 = vadd.f32 %v5318, %v5580
      %v5613 = vadd.f32 %v5319, %v5581
      %v5614 = vadd.f32 %v5320, %v5582
      %v5615 = vadd.f32 %v5321, %v5583
      %v5616 = vadd.f32 %v5322, %v5584
      %v5617 = vadd.f32 %v5323, %v5585
      %v5618 = vadd.f32 %v5324, %v5586
      %v5619 = vpack.c.bf16 %v5588, %v5587
      %v5620 = vpack.c.bf16 %v5590, %v5589
      %v5621 = vpack.c.bf16 %v5592, %v5591
      %v5622 = vpack.c.bf16 %v5594, %v5593
      %v5623 = vpack.c.bf16 %v5596, %v5595
      %v5624 = vpack.c.bf16 %v5598, %v5597
      %v5625 = vpack.c.bf16 %v5600, %v5599
      %v5626 = vpack.c.bf16 %v5602, %v5601
      %v5627 = vpack.c.bf16 %v5604, %v5603
      %v5628 = vpack.c.bf16 %v5606, %v5605
      %v5629 = vpack.c.bf16 %v5608, %v5607
      %v5630 = vpack.c.bf16 %v5610, %v5609
      %v5631 = vpack.c.bf16 %v5612, %v5611
      %v5632 = vpack.c.bf16 %v5614, %v5613
      %v5633 = vpack.c.bf16 %v5616, %v5615
      %v5634 = vpack.c.bf16 %v5618, %v5617
      %s5635 = scalar_lea.vmem %s2, 192
      %v5636 = vld [vmem:[%s5635] sm:$0xf]
      %v5637 = vld [vmem:[%s5635 + $0x4] sm:$0xf]
      %v5638 = vld [vmem:[%s5635 + $0x8] sm:$0xf]
      %v5639 = vld [vmem:[%s5635 + $0xc] sm:$0xf]
      %v5640 = vld [vmem:[%s5635 + $0x10] sm:$0xf]
      %v5641 = vld [vmem:[%s5635 + $0x14] sm:$0xf]
      %v5642 = vld [vmem:[%s5635 + $0x18] sm:$0xf]
      %v5643 = vld [vmem:[%s5635 + $0x1c] sm:$0xf]
      %v5644 = vld [vmem:[%s5635 + $0x20] sm:$0xf]
      %v5645 = vld [vmem:[%s5635 + $0x24] sm:$0xf]
      %v5646 = vld [vmem:[%s5635 + $0x28] sm:$0xf]
      %v5647 = vld [vmem:[%s5635 + $0x2c] sm:$0xf]
      %v5648 = vld [vmem:[%s5635 + $0x30] sm:$0xf]
      %v5649 = vld [vmem:[%s5635 + $0x34] sm:$0xf]
      %v5650 = vld [vmem:[%s5635 + $0x38] sm:$0xf]
      %v5651 = vld [vmem:[%s5635 + $0x3c] sm:$0xf]
      %v5668 = vunpack.c.l.b16 %v5636
      %v5669 = vunpack.c.l.b16 %v5637
      %v5670 = vunpack.c.l.b16 %v5638
      %v5671 = vunpack.c.l.b16 %v5639
      %v5672 = vunpack.c.l.b16 %v5640
      %v5673 = vunpack.c.l.b16 %v5641
      %v5674 = vunpack.c.l.b16 %v5642
      %v5675 = vunpack.c.l.b16 %v5643
      %v5676 = vunpack.c.l.b16 %v5644
      %v5677 = vunpack.c.l.b16 %v5645
      %v5678 = vunpack.c.l.b16 %v5646
      %v5679 = vunpack.c.l.b16 %v5647
      %v5680 = vunpack.c.l.b16 %v5648
      %v5681 = vunpack.c.l.b16 %v5649
      %v5682 = vunpack.c.l.b16 %v5650
      %v5683 = vunpack.c.l.b16 %v5651
      %v5684 = vpack.c.b16 %v5669, %v5668
      %v5685 = vpack.c.b16 %v5671, %v5670
      %v5686 = vpack.c.b16 %v5673, %v5672
      %v5687 = vpack.c.b16 %v5675, %v5674
      %v5688 = vpack.c.b16 %v5677, %v5676
      %v5689 = vpack.c.b16 %v5679, %v5678
      %v5690 = vpack.c.b16 %v5681, %v5680
      %v5691 = vpack.c.b16 %v5683, %v5682
      %5700 = vmatpush.bf16.msra.mxu0 %v5691
      %5701 = vmatpush.bf16.msra.mxu0 %v5690
      %5702 = vmatpush.bf16.msra.mxu0 %v5689
      %5703 = vmatpush.bf16.msra.mxu0 %v5688
      %5704 = vmatpush.bf16.msra.mxu0 %v5687
      %5705 = vmatpush.bf16.msra.mxu0 %v5686
      %5706 = vmatpush.bf16.msra.mxu0 %v5685
      %5707 = vmatpush.bf16.msra.mxu0 %v5684
      %5708 = vmatmul.bf16.gmra.mxu0 %v5619
      %v5709 = vpop.f32.mrf.mxu0
      %v5710 = vadd.f32 0.0, %v5709
      %v5711 = vpop.f32.mrf.mxu0
      %v5712 = vadd.f32 0.0, %v5711
      %5713 = vmatmul.bf16.gmra.mxu0 %v5620
      %v5714 = vpop.f32.mrf.mxu0
      %v5715 = vadd.f32 0.0, %v5714
      %v5716 = vpop.f32.mrf.mxu0
      %v5717 = vadd.f32 0.0, %v5716
      %5718 = vmatmul.bf16.gmra.mxu0 %v5621
      %v5719 = vpop.f32.mrf.mxu0
      %v5720 = vadd.f32 0.0, %v5719
      %v5721 = vpop.f32.mrf.mxu0
      %v5722 = vadd.f32 0.0, %v5721
      %5723 = vmatmul.bf16.gmra.mxu0 %v5622
      %v5724 = vpop.f32.mrf.mxu0
      %v5725 = vadd.f32 0.0, %v5724
      %v5726 = vpop.f32.mrf.mxu0
      %v5727 = vadd.f32 0.0, %v5726
      %5728 = vmatmul.bf16.gmra.mxu0 %v5623
      %v5729 = vpop.f32.mrf.mxu0
      %v5730 = vadd.f32 0.0, %v5729
      %v5731 = vpop.f32.mrf.mxu0
      %v5732 = vadd.f32 0.0, %v5731
      %5733 = vmatmul.bf16.gmra.mxu0 %v5624
      %v5734 = vpop.f32.mrf.mxu0
      %v5735 = vadd.f32 0.0, %v5734
      %v5736 = vpop.f32.mrf.mxu0
      %v5737 = vadd.f32 0.0, %v5736
      %5738 = vmatmul.bf16.gmra.mxu0 %v5625
      %v5739 = vpop.f32.mrf.mxu0
      %v5740 = vadd.f32 0.0, %v5739
      %v5741 = vpop.f32.mrf.mxu0
      %v5742 = vadd.f32 0.0, %v5741
      %5743 = vmatmul.bf16.gmra.mxu0 %v5626
      %v5744 = vpop.f32.mrf.mxu0
      %v5745 = vadd.f32 0.0, %v5744
      %v5746 = vpop.f32.mrf.mxu0
      %v5747 = vadd.f32 0.0, %v5746
      %5748 = vmatmul.bf16.gmra.mxu0 %v5627
      %v5749 = vpop.f32.mrf.mxu0
      %v5750 = vadd.f32 0.0, %v5749
      %v5751 = vpop.f32.mrf.mxu0
      %v5752 = vadd.f32 0.0, %v5751
      %5753 = vmatmul.bf16.gmra.mxu0 %v5628
      %v5754 = vpop.f32.mrf.mxu0
      %v5755 = vadd.f32 0.0, %v5754
      %v5756 = vpop.f32.mrf.mxu0
      %v5757 = vadd.f32 0.0, %v5756
      %5758 = vmatmul.bf16.gmra.mxu0 %v5629
      %v5759 = vpop.f32.mrf.mxu0
      %v5760 = vadd.f32 0.0, %v5759
      %v5761 = vpop.f32.mrf.mxu0
      %v5762 = vadd.f32 0.0, %v5761
      %5763 = vmatmul.bf16.gmra.mxu0 %v5630
      %v5764 = vpop.f32.mrf.mxu0
      %v5765 = vadd.f32 0.0, %v5764
      %v5766 = vpop.f32.mrf.mxu0
      %v5767 = vadd.f32 0.0, %v5766
      %5768 = vmatmul.bf16.gmra.mxu0 %v5631
      %v5769 = vpop.f32.mrf.mxu0
      %v5770 = vadd.f32 0.0, %v5769
      %v5771 = vpop.f32.mrf.mxu0
      %v5772 = vadd.f32 0.0, %v5771
      %5773 = vmatmul.bf16.gmra.mxu0 %v5632
      %v5774 = vpop.f32.mrf.mxu0
      %v5775 = vadd.f32 0.0, %v5774
      %v5776 = vpop.f32.mrf.mxu0
      %v5777 = vadd.f32 0.0, %v5776
      %5778 = vmatmul.bf16.gmra.mxu0 %v5633
      %v5779 = vpop.f32.mrf.mxu0
      %v5780 = vadd.f32 0.0, %v5779
      %v5781 = vpop.f32.mrf.mxu0
      %v5782 = vadd.f32 0.0, %v5781
      %5783 = vmatmul.bf16.gmra.mxu0 %v5634
      %v5784 = vpop.f32.mrf.mxu0
      %v5785 = vadd.f32 0.0, %v5784
      %v5786 = vpop.f32.mrf.mxu0
      %v5787 = vadd.f32 0.0, %v5786
      %5788 = vdwg.mxu0
      %5789 = vst [vmem:[%s170] sm:$0xff] %v5710
      %5790 = vst [vmem:[%s170 + $0x8] sm:$0xff] %v5712
      %5791 = vst [vmem:[%s170 + $0x10] sm:$0xff] %v5715
      %5792 = vst [vmem:[%s170 + $0x18] sm:$0xff] %v5717
      %5793 = vst [vmem:[%s170 + $0x20] sm:$0xff] %v5720
      %5794 = vst [vmem:[%s170 + $0x28] sm:$0xff] %v5722
      %5795 = vst [vmem:[%s170 + $0x30] sm:$0xff] %v5725
      %5796 = vst [vmem:[%s170 + $0x38] sm:$0xff] %v5727
      %5797 = vst [vmem:[%s170 + $0x40] sm:$0xff] %v5730
      %5798 = vst [vmem:[%s170 + $0x48] sm:$0xff] %v5732
      %5799 = vst [vmem:[%s170 + $0x50] sm:$0xff] %v5735
      %5800 = vst [vmem:[%s170 + $0x58] sm:$0xff] %v5737
      %5801 = vst [vmem:[%s170 + $0x60] sm:$0xff] %v5740
      %5802 = vst [vmem:[%s170 + $0x68] sm:$0xff] %v5742
      %5803 = vst [vmem:[%s170 + $0x70] sm:$0xff] %v5745
      %5804 = vst [vmem:[%s170 + $0x78] sm:$0xff] %v5747
      %5805 = vst [vmem:[%s170 + $0x80] sm:$0xff] %v5750
      %5806 = vst [vmem:[%s170 + $0x88] sm:$0xff] %v5752
      %5807 = vst [vmem:[%s170 + $0x90] sm:$0xff] %v5755
      %5808 = vst [vmem:[%s170 + $0x98] sm:$0xff] %v5757
      %5809 = vst [vmem:[%s170 + $0xa0] sm:$0xff] %v5760
      %5810 = vst [vmem:[%s170 + $0xa8] sm:$0xff] %v5762
      %5811 = vst [vmem:[%s170 + $0xb0] sm:$0xff] %v5765
      %5812 = vst [vmem:[%s170 + $0xb8] sm:$0xff] %v5767
      %5813 = vst [vmem:[%s170 + $0xc0] sm:$0xff] %v5770
      %5814 = vst [vmem:[%s170 + $0xc8] sm:$0xff] %v5772
      %5815 = vst [vmem:[%s170 + $0xd0] sm:$0xff] %v5775
      %5816 = vst [vmem:[%s170 + $0xd8] sm:$0xff] %v5777
      %5817 = vst [vmem:[%s170 + $0xe0] sm:$0xff] %v5780
      %5818 = vst [vmem:[%s170 + $0xe8] sm:$0xff] %v5782
      %5819 = vst [vmem:[%s170 + $0xf0] sm:$0xff] %v5785
      %5820 = vst [vmem:[%s170 + $0xf8] sm:$0xff] %v5787
      %p5821 = scmp.lt.s32.totalorder %s14, 1
      %s5822 = scalar_select %p5821, %s14, 1
      %s5823 = smul.addr %s5822, 32
      %s5824 = smul.addr %s5823, 8
      %s5825 = scalar_lea.vmem %s3, %s5824
      // Predicated region
      $region33: #{simple_rsnet_forward.1} parent=31 // pred_check
        %p5826 = pneg %p100
      $region34: #{simple_rsnet_forward.1} parent=31 // pred_check_branch
        %5828 = sbr.rel (%p5826) target = $region36
      $region35: #{simple_rsnet_forward.1} parent=31 // pred_region
        _
      $region36: #{simple_rsnet_forward.1} parent=31 // pred_fallthru
        _
    $region32: #{simple_rsnet_forward.1} parent=5 // pred_fallthru
      _
    %p5829 = scmp.le.s32.totalorder 2, %s9
    // Predicated region
    $region37: #{simple_rsnet_forward.1} parent=5 // pred_check
      %p5830 = pneg %p5829
    $region38: #{simple_rsnet_forward.1} parent=5 // pred_check_branch
      %5832 = sbr.rel (%p5830) target = $region40
    $region39: #{simple_rsnet_forward.1} parent=5 // pred_region
      %s5833 = ssub.s32 %s9, 2
      // Predicated region
      $region41: #{simple_rsnet_forward.1} parent=39 // pred_check
        %p5834 = pneg %p106
      $region42: #{simple_rsnet_forward.1} parent=39 // pred_check_branch
        %5836 = sbr.rel (%p5834) target = $region44
      $region43: #{simple_rsnet_forward.1} parent=39 // pred_region
        %p5837 = scmp.lt.s32.totalorder %s15, 1
        %s5838 = scalar_select %p5837, %s15, 1
        %s5839 = smul.addr %s5838, 32
        %s5840 = smul.addr %s5839, 8
        %s5841 = scalar_lea.vmem %s3, %s5840
      $region44: #{simple_rsnet_forward.1} parent=39 // pred_fallthru
        _
    $region40: #{simple_rsnet_forward.1} parent=5 // pred_fallthru
      _
  $region6: #{simple_rsnet_forward.1} parent=0 // loop_footer
    %s13 = sadd.s32 1, %s9
  $region7: #{simple_rsnet_forward.1} parent=0 // loop_footer_branch
    %8 = sbr.rel target = $region3
  $region8: #{simple_rsnet_forward.1} parent=0 // loop_exit
    _

</llo_original>
